<compile_context>
chip_gen: v6e
topology: v6e:2x2x1
jax: 0.10.0
libtpu: 0.0.40
codegen_flags: <defaults>
</compile_context>

<pallas_src>
import numpy as np
import jax
import jax.numpy as jnp
from jax.experimental import pallas as pl
from jax.experimental.pallas import tpu as pltpu

# ----------------------- config (mirrors opt.arch / opt.VolSDF) ---------------
L_3D = 4                     # opt.arch.posenc.L_3D
L_VIEW = 2                   # opt.arch.posenc.L_view
LAYERS_SURFACE = [None, 64, 64, 64, 64]   # opt.arch.layers_surface
LAYERS_RADIANCE = [None, 64, 64, 3]       # opt.arch.layers_radiance
SKIP = (2,)                  # opt.arch.skip
OBJ_BOUNDING_RADIUS = 3.0    # opt.VolSDF.obj_bounding_radius
RESCALE = 1.0
SOFTPLUS_BETA = 100.0
SOFTPLUS_THRESH = 20.0

IN3D = 3 + 6 * L_3D          # 27
INVIEW = 3 + 6 * L_VIEW      # 15
SPATIAL = LAYERS_SURFACE[-1] # 64

FREQS_3D = [float((2.0 ** l) * np.pi) for l in range(L_3D)]
FREQS_VIEW = [float((2.0 ** l) * np.pi) for l in range(L_VIEW)]

TILE = 512                    # rows (samples) per grid step
REF_PREC = jax.lax.Precision.HIGHEST   # reference only


# ----------------------- layer-dim helpers (util.get_layer_dims) --------------
def surface_layer_dims():
    pairs = list(zip(LAYERS_SURFACE[:-1], LAYERS_SURFACE[1:]))
    dims = []
    for li, (k_in, k_out) in enumerate(pairs):
        if li == 0:
            k_in = IN3D
        if li in SKIP:
            k_in += IN3D
        if li == len(pairs) - 1:
            k_out += 1
        dims.append((k_in, k_out))
    return dims


def radiance_layer_dims():
    pairs = list(zip(LAYERS_RADIANCE[:-1], LAYERS_RADIANCE[1:]))
    dims = []
    for li, (k_in, k_out) in enumerate(pairs):
        if li == 0:
            k_in = SPATIAL + INVIEW + 6
        dims.append((k_in, k_out))
    return dims


# ----------------------- deterministic parameter init -------------------------
def init_params(key):
    s_dims = surface_layer_dims()
    r_dims = radiance_layer_dims()
    keys = jax.random.split(key, len(s_dims) + len(r_dims))
    surface_w, surface_b = [], []
    n = len(s_dims)
    for li, (k_in, k_out) in enumerate(s_dims):
        kk = keys[li]
        if li == n - 1:     # geometric init of last surface layer
            W = np.sqrt(np.pi) / np.sqrt(k_in) + 1e-4 * jax.random.normal(kk, (k_in, k_out))
            b = -1.0 * jnp.ones((1, k_out))
        elif li == 0:
            W = jnp.zeros((k_in, k_out))
            W = W.at[:3, :].set(np.sqrt(2.0) / np.sqrt(k_out)
                                * jax.random.normal(kk, (3, k_out)))
            b = jnp.zeros((1, k_out))
        elif li in SKIP:
            W = np.sqrt(2.0) / np.sqrt(k_out) * jax.random.normal(kk, (k_in, k_out))
            W = W.at[-(IN3D - 3):, :].set(0.0)
            b = jnp.zeros((1, k_out))
        else:
            W = np.sqrt(2.0) / np.sqrt(k_out) * jax.random.normal(kk, (k_in, k_out))
            b = jnp.zeros((1, k_out))
        surface_w.append(W.astype(jnp.float32))
        surface_b.append(b.astype(jnp.float32))

    radiance_w, radiance_b = [], []
    for li, (k_in, k_out) in enumerate(r_dims):
        kk = keys[len(s_dims) + li]
        W = (1.0 / np.sqrt(k_in)) * jax.random.normal(kk, (k_in, k_out))
        b = jnp.zeros((1, k_out))
        radiance_w.append(W.astype(jnp.float32))
        radiance_b.append(b.astype(jnp.float32))

    return {"surface_w": surface_w, "surface_b": surface_b,
            "radiance_w": radiance_w, "radiance_b": radiance_b}


# ----------------------- reference-side math -----------------------------------
def _sigmoid(x):
    return 1.0 / (1.0 + jnp.exp(-x))


def _softplus100(x):
    bz = SOFTPLUS_BETA * x
    safe = jnp.minimum(bz, SOFTPLUS_THRESH)
    return jnp.where(bz > SOFTPLUS_THRESH, x,
                     jnp.log(1.0 + jnp.exp(safe)) / SOFTPLUS_BETA)


# ----------------------- the Pallas kernel ------------------------------------
def volsdf_kernel(x_ref,
                  sw0, sb0, sw1, sb1, sw2, sb2, sw3, sb3,
                  rw0, rb0, rw1, rb1, rw2, rb2,
                  rgb_ref, sdf_ref, nrm_ref):
    f32 = jnp.float32
    x = x_ref[...]                         # [6, T]: rows 0-2 points, 3-5 ray
    T = x.shape[1]
    p = x[0:3, :]                          # raw points
    ray = x[3:6, :]
    inv_rescale = 1.0 / RESCALE
    pr = p * inv_rescale

    L = L_3D
    # ---- vectorized 3D positional encoding (coordinate-major rows) ----------
    spec = jnp.concatenate(
        [pr[c:c + 1, :] * f for c in range(3) for f in FREQS_3D], axis=0)    # [3L, T]
    sin_a = jnp.sin(spec)                  # single EUP call for all rows
    cos_a = jnp.cos(spec)
    enc = jnp.concatenate(
        [pr,
         sin_a[0 * L:1 * L], cos_a[0 * L:1 * L],
         sin_a[1 * L:2 * L], cos_a[1 * L:2 * L],
         sin_a[2 * L:3 * L], cos_a[2 * L:3 * L]], axis=0)                    # [27, T]

    # analytic d(enc)/dx_c rows (reuse sin/cos): d sin(fx)=f cos(fx), d cos(fx)=-f sin(fx)
    fcos = jnp.concatenate(
        [cos_a[c * L + j:c * L + j + 1, :] * (FREQS_3D[j] * inv_rescale)
         for c in range(3) for j in range(L)], axis=0)                       # [3L, T]
    nfsin = jnp.concatenate(
        [sin_a[c * L + j:c * L + j + 1, :] * (-FREQS_3D[j] * inv_rescale)
         for c in range(3) for j in range(L)], axis=0)                       # [3L, T]

    z2L = jnp.zeros((2 * L, T), f32)
    row3 = jax.lax.broadcasted_iota(jnp.int32, (3, T), 0)
    tan_streams = []
    for k in range(3):
        top = jnp.where(row3 == k, inv_rescale, 0.0).astype(f32)             # [3, T]
        dblk = jnp.concatenate([fcos[k * L:(k + 1) * L],
                                nfsin[k * L:(k + 1) * L]], axis=0)           # [2L, T]
        parts = [top] + [dblk if c == k else z2L for c in range(3)]
        tan_streams.append(jnp.concatenate(parts, axis=0))                   # [27, T]

    # stack value stream + 3 tangent streams along lanes -> [27, 4T]
    enc_stack = jnp.concatenate([enc] + tan_streams, axis=1)

    # bias only applies to the value stream (lanes [0, T))
    lane = jax.lax.broadcasted_iota(jnp.int32, (1, 4 * T), 1)
    feat_mask = (lane < T).astype(f32)                                       # [1, 4T]

    # ---- surface MLP (softplus beta=100), fused value+tangent matmuls -------
    sW = (sw0, sw1, sw2, sw3)
    sB = (sb0, sb1, sb2, sb3)
    inv_sqrt2 = float(1.0 / np.sqrt(2.0))
    n_surf = len(sW)
    xs = enc_stack
    for li in range(n_surf):
        if li in SKIP:
            xs = jnp.concatenate([xs, enc_stack], axis=0) * inv_sqrt2
        z = jnp.dot(sW[li][...], xs, preferred_element_type=f32)             # [out, 4T]
        z = z + sB[li][...] * feat_mask
        if li <= n_surf - 2:
            zf = z[:, :T]
            bz = SOFTPLUS_BETA * zf
            e = jnp.exp(jnp.minimum(bz, SOFTPLUS_THRESH))    # shared exp
            big = bz > SOFTPLUS_THRESH
            sp = jnp.where(big, zf, jnp.log(1.0 + e) * (1.0 / SOFTPLUS_BETA))
            d = jnp.where(big, 1.0, e / (1.0 + e))           # softplus'
            d3 = jnp.concatenate([d, d, d], axis=1)          # [out, 3T]
            xs = jnp.concatenate([sp, z[:, T:] * d3], axis=1)
        else:
            xs = z                                           # [65, 4T]

    sdf = xs[0:1, :T]                                        # [1, T]
    surf_feat = xs[1:, :T]                                   # [64, T]
    normals = jnp.concatenate(
        [xs[0:1, T:2 * T], xs[0:1, 2 * T:3 * T], xs[0:1, 3 * T:4 * T]],
        axis=0)                                              # [3, T]

    # ---- view-direction positional encoding ---------------------------------
    Lv = L_VIEW
    vspec = jnp.concatenate(
        [ray[c:c + 1, :] * f for c in range(3) for f in FREQS_VIEW], axis=0)  # [3Lv, T]
    vs = jnp.sin(vspec)
    vc = jnp.cos(vspec)
    ray_enc = jnp.concatenate(
        [ray,
         vs[0 * Lv:1 * Lv], vc[0 * Lv:1 * Lv],
         vs[1 * Lv:2 * Lv], vc[1 * Lv:2 * Lv],
         vs[2 * Lv:3 * Lv], vc[2 * Lv:3 * Lv]], axis=0)                       # [15, T]

    # ---- radiance MLP (relu hidden, sigmoid output) --------------------------
    h = jnp.concatenate([p, ray_enc, normals, surf_feat], axis=0)             # [85, T]
    rW = (rw0, rw1, rw2)
    rB = (rb0, rb1, rb2)
    n_rad = len(rW)
    for li in range(n_rad):
        h = jnp.dot(rW[li][...], h, preferred_element_type=f32) + rB[li][...]
        if li <= n_rad - 2:
            h = jnp.maximum(h, 0.0)
    rgb = 1.0 / (1.0 + jnp.exp(-h))                                           # [3, T]

    # ---- bounded sdf: min(sdf, R - ||points||) -------------------------------
    pnorm = jnp.sqrt(jnp.sum(p * p, axis=0, keepdims=True))                   # [1, T]
    sdf_out = jnp.minimum(sdf, OBJ_BOUNDING_RADIUS - pnorm)

    rgb_ref[...] = rgb
    sdf_ref[...] = sdf_out
    nrm_ref[...] = normals


# ----------------------- wrapper ----------------------------------------------
def volsdf_pallas(points, ray, params, tile=TILE):
    N = points.shape[0]
    n_pad = ((N + tile - 1) // tile) * tile

    # pack points + ray into one ref, transpose so samples sit on the lane axis
    x = jnp.concatenate([points, ray], axis=-1).astype(jnp.float32)           # [N, 6]
    if n_pad != N:
        x = jnp.pad(x, ((0, n_pad - N), (0, 0)))
    x_t = jnp.transpose(x)                                                    # [6, n_pad]

    all_w = params["surface_w"] + params["radiance_w"]
    all_b = params["surface_b"] + params["radiance_b"]
    args = [x_t]
    in_specs = [pl.BlockSpec((6, tile), lambda i: (0, i))]
    for W, b in zip(all_w, all_b):
        Wt = jnp.transpose(W)            # [out, in] (torch Linear layout)
        bt = jnp.transpose(b)            # [out, 1]
        args += [Wt, bt]
        in_specs += [pl.BlockSpec(Wt.shape, lambda i: (0, 0)),
                     pl.BlockSpec(bt.shape, lambda i: (0, 0))]

    out_shape = (jax.ShapeDtypeStruct((3, n_pad), jnp.float32),   # rgb (transposed)
                 jax.ShapeDtypeStruct((1, n_pad), jnp.float32),   # bounded sdf
                 jax.ShapeDtypeStruct((3, n_pad), jnp.float32))   # normals
    out_specs = [pl.BlockSpec((3, tile), lambda i: (0, i)),
                 pl.BlockSpec((1, tile), lambda i: (0, i)),
                 pl.BlockSpec((3, tile), lambda i: (0, i))]

    rgb_t, sdf_t, nrm_t = pl.pallas_call(
        volsdf_kernel,
        out_shape=out_shape,
        grid_spec=pltpu.PrefetchScalarGridSpec(
            num_scalar_prefetch=0,
            grid=(n_pad // tile,),
            in_specs=in_specs,
            out_specs=out_specs),
        compiler_params=pltpu.CompilerParams(
            dimension_semantics=("parallel",)),
    )(*args)

    rgb = jnp.transpose(rgb_t)[:N]
    sdf = jnp.transpose(sdf_t)[:N]
    nrm = jnp.transpose(nrm_t)[:N]
    return rgb, sdf, nrm


# ----------------------- pure-JAX reference (for correctness check) -----------
def _ref_posenc(x, L):
    freq = (2.0 ** jnp.arange(L, dtype=jnp.float32)) * np.pi
    spec = x[..., None] * freq
    enc = jnp.stack([jnp.sin(spec), jnp.cos(spec)], axis=-2)
    return enc.reshape(*x.shape[:-1], -1)


def _ref_sdf_feat(p, params):
    pr = p / RESCALE
    enc = jnp.concatenate([pr, _ref_posenc(pr, L_3D)], axis=-1)
    feat = enc
    sW, sB = params["surface_w"], params["surface_b"]
    n = len(sW)
    for li in range(n):
        if li in SKIP:
            feat = jnp.concatenate([feat, enc], axis=-1) / np.sqrt(2.0)
        feat = jnp.dot(feat, sW[li], precision=REF_PREC) + sB[li]
        if li <= n - 2:
            feat = _softplus100(feat)
    return feat


def ref_forward(points, ray, params):
    feat = _ref_sdf_feat(points, params)
    sdf = feat[:, :1]
    normals = jax.vmap(jax.grad(lambda q: _ref_sdf_feat(q[None, :], params)[0, 0]))(points)
    ray_enc = jnp.concatenate([ray, _ref_posenc(ray, L_VIEW)], axis=-1)
    x = jnp.concatenate([points, ray_enc, normals, feat[:, 1:]], axis=-1)
    rW, rB = params["radiance_w"], params["radiance_b"]
    n = len(rW)
    for li in range(n):
        x = jnp.dot(x, rW[li], precision=REF_PREC) + rB[li]
        if li <= n - 2:
            x = jnp.maximum(x, 0.0)
    rgb = _sigmoid(x)
    pnorm = jnp.sqrt(jnp.sum(points * points, axis=-1, keepdims=True))
    sdf_out = jnp.minimum(sdf, OBJ_BOUNDING_RADIUS - pnorm)
    return rgb, sdf_out, normals


# ----------------------- main --------------------------------------------------
if __name__ == "__main__":
    key = jax.random.PRNGKey(0)
    kp, k1, k2 = jax.random.split(key, 3)
    params = init_params(kp)

    # small shapes consistent with forward_samples: batch=2, rays=8, samples=16
    B, R, S = 2, 8, 16
    N = B * R * S                       # 256 flattened sample points
    points = jax.random.normal(k1, (N, 3), dtype=jnp.float32)
    ray = jax.random.normal(k2, (N, 3), dtype=jnp.float32)
    ray = ray / jnp.sqrt(jnp.sum(ray * ray, axis=-1, keepdims=True))

    rgb, sdf, normals = volsdf_pallas(points, ray, params)
    jax.block_until_ready((rgb, sdf, normals))

    rgb_ref, sdf_ref, nrm_ref = ref_forward(points, ray, params)
    # Kernel matmuls run at default MXU precision (per perf review); the f32
    # (HIGHEST) reference is the ground truth, so tolerances are relaxed.
    assert np.allclose(np.asarray(rgb), np.asarray(rgb_ref), atol=2e-2, rtol=2e-2)
    assert np.allclose(np.asarray(sdf), np.asarray(sdf_ref), atol=2e-2, rtol=2e-2)
    assert np.allclose(np.asarray(normals), np.asarray(nrm_ref), atol=2e-2, rtol=2e-2)

    print("KERNEL_OK")
</pallas_src>

<mosaic_0001>
module attributes {stable_mosaic.version = 11 : i64} {
  func.func @volsdf_kernel(%arg0: i32, %arg1: memref<6x512xf32, #tpu.memory_space<vmem>>, %arg2: memref<64x27xf32, #tpu.memory_space<vmem>>, %arg3: memref<64x1xf32, #tpu.memory_space<vmem>>, %arg4: memref<64x64xf32, #tpu.memory_space<vmem>>, %arg5: memref<64x1xf32, #tpu.memory_space<vmem>>, %arg6: memref<64x91xf32, #tpu.memory_space<vmem>>, %arg7: memref<64x1xf32, #tpu.memory_space<vmem>>, %arg8: memref<65x64xf32, #tpu.memory_space<vmem>>, %arg9: memref<65x1xf32, #tpu.memory_space<vmem>>, %arg10: memref<64x85xf32, #tpu.memory_space<vmem>>, %arg11: memref<64x1xf32, #tpu.memory_space<vmem>>, %arg12: memref<64x64xf32, #tpu.memory_space<vmem>>, %arg13: memref<64x1xf32, #tpu.memory_space<vmem>>, %arg14: memref<3x64xf32, #tpu.memory_space<vmem>>, %arg15: memref<3x1xf32, #tpu.memory_space<vmem>>, %arg16: memref<3x512xf32, #tpu.memory_space<vmem>>, %arg17: memref<1x512xf32, #tpu.memory_space<vmem>>, %arg18: memref<3x512xf32, #tpu.memory_space<vmem>>) attributes {dimension_semantics = [#tpu.dimension_semantics<parallel>], iteration_bounds = array<i64: 1>, scalar_prefetch = 0 : i64, scratch_operands = 0 : i64, tpu.core_type = #tpu.core_type<tc>, window_params = [{transform_indices = @transform_0, window_bounds = array<i64: 6, 512>}, {pipeline_mode = #tpu.pipeline_mode<synchronous>, transform_indices = @transform_1, window_bounds = array<i64: 64, 27>}, {pipeline_mode = #tpu.pipeline_mode<synchronous>, transform_indices = @transform_2, window_bounds = array<i64: 64, 1>}, {pipeline_mode = #tpu.pipeline_mode<synchronous>, transform_indices = @transform_3, window_bounds = array<i64: 64, 64>}, {pipeline_mode = #tpu.pipeline_mode<synchronous>, transform_indices = @transform_4, window_bounds = array<i64: 64, 1>}, {pipeline_mode = #tpu.pipeline_mode<synchronous>, transform_indices = @transform_5, window_bounds = array<i64: 64, 91>}, {pipeline_mode = #tpu.pipeline_mode<synchronous>, transform_indices = @transform_6, window_bounds = array<i64: 64, 1>}, {pipeline_mode = #tpu.pipeline_mode<synchronous>, transform_indices = @transform_7, window_bounds = array<i64: 65, 64>}, {pipeline_mode = #tpu.pipeline_mode<synchronous>, transform_indices = @transform_8, window_bounds = array<i64: 65, 1>}, {pipeline_mode = #tpu.pipeline_mode<synchronous>, transform_indices = @transform_9, window_bounds = array<i64: 64, 85>}, {pipeline_mode = #tpu.pipeline_mode<synchronous>, transform_indices = @transform_10, window_bounds = array<i64: 64, 1>}, {pipeline_mode = #tpu.pipeline_mode<synchronous>, transform_indices = @transform_11, window_bounds = array<i64: 64, 64>}, {pipeline_mode = #tpu.pipeline_mode<synchronous>, transform_indices = @transform_12, window_bounds = array<i64: 64, 1>}, {pipeline_mode = #tpu.pipeline_mode<synchronous>, transform_indices = @transform_13, window_bounds = array<i64: 3, 64>}, {pipeline_mode = #tpu.pipeline_mode<synchronous>, transform_indices = @transform_14, window_bounds = array<i64: 3, 1>}, {transform_indices = @transform_15, window_bounds = array<i64: 3, 512>}, {transform_indices = @transform_16, window_bounds = array<i64: 1, 512>}, {transform_indices = @transform_17, window_bounds = array<i64: 3, 512>}]} {
    %c0 = arith.constant 0 : index
    %c0_0 = arith.constant 0 : index
    %0 = vector.load %arg1[%c0, %c0_0] : memref<6x512xf32, #tpu.memory_space<vmem>>, vector<6x512xf32>
    %1 = vector.extract_strided_slice %0 {offsets = [0, 0], sizes = [3, 512], strides = [1, 1]} : vector<6x512xf32> to vector<3x512xf32>
    %2 = vector.extract_strided_slice %0 {offsets = [3, 0], sizes = [3, 512], strides = [1, 1]} : vector<6x512xf32> to vector<3x512xf32>
    %cst = arith.constant 1.000000e+00 : f32
    %3 = vector.broadcast %cst : f32 to vector<3x512xf32>
    %4 = arith.mulf %1, %3 : vector<3x512xf32>
    %5 = vector.extract_strided_slice %4 {offsets = [0, 0], sizes = [1, 512], strides = [1, 1]} : vector<3x512xf32> to vector<1x512xf32>
    %cst_1 = arith.constant 3.14159274 : f32
    %6 = vector.broadcast %cst_1 : f32 to vector<1x512xf32>
    %7 = arith.mulf %5, %6 : vector<1x512xf32>
    %8 = vector.extract_strided_slice %4 {offsets = [0, 0], sizes = [1, 512], strides = [1, 1]} : vector<3x512xf32> to vector<1x512xf32>
    %cst_2 = arith.constant 6.28318548 : f32
    %9 = vector.broadcast %cst_2 : f32 to vector<1x512xf32>
    %10 = arith.mulf %8, %9 : vector<1x512xf32>
    %11 = vector.extract_strided_slice %4 {offsets = [0, 0], sizes = [1, 512], strides = [1, 1]} : vector<3x512xf32> to vector<1x512xf32>
    %cst_3 = arith.constant 12.566371 : f32
    %12 = vector.broadcast %cst_3 : f32 to vector<1x512xf32>
    %13 = arith.mulf %11, %12 : vector<1x512xf32>
    %14 = vector.extract_strided_slice %4 {offsets = [0, 0], sizes = [1, 512], strides = [1, 1]} : vector<3x512xf32> to vector<1x512xf32>
    %cst_4 = arith.constant 25.1327419 : f32
    %15 = vector.broadcast %cst_4 : f32 to vector<1x512xf32>
    %16 = arith.mulf %14, %15 : vector<1x512xf32>
    %17 = vector.extract_strided_slice %4 {offsets = [1, 0], sizes = [1, 512], strides = [1, 1]} : vector<3x512xf32> to vector<1x512xf32>
    %cst_5 = arith.constant 3.14159274 : f32
    %18 = vector.broadcast %cst_5 : f32 to vector<1x512xf32>
    %19 = arith.mulf %17, %18 : vector<1x512xf32>
    %20 = vector.extract_strided_slice %4 {offsets = [1, 0], sizes = [1, 512], strides = [1, 1]} : vector<3x512xf32> to vector<1x512xf32>
    %cst_6 = arith.constant 6.28318548 : f32
    %21 = vector.broadcast %cst_6 : f32 to vector<1x512xf32>
    %22 = arith.mulf %20, %21 : vector<1x512xf32>
    %23 = vector.extract_strided_slice %4 {offsets = [1, 0], sizes = [1, 512], strides = [1, 1]} : vector<3x512xf32> to vector<1x512xf32>
    %cst_7 = arith.constant 12.566371 : f32
    %24 = vector.broadcast %cst_7 : f32 to vector<1x512xf32>
    %25 = arith.mulf %23, %24 : vector<1x512xf32>
    %26 = vector.extract_strided_slice %4 {offsets = [1, 0], sizes = [1, 512], strides = [1, 1]} : vector<3x512xf32> to vector<1x512xf32>
    %cst_8 = arith.constant 25.1327419 : f32
    %27 = vector.broadcast %cst_8 : f32 to vector<1x512xf32>
    %28 = arith.mulf %26, %27 : vector<1x512xf32>
    %29 = vector.extract_strided_slice %4 {offsets = [2, 0], sizes = [1, 512], strides = [1, 1]} : vector<3x512xf32> to vector<1x512xf32>
    %cst_9 = arith.constant 3.14159274 : f32
    %30 = vector.broadcast %cst_9 : f32 to vector<1x512xf32>
    %31 = arith.mulf %29, %30 : vector<1x512xf32>
    %32 = vector.extract_strided_slice %4 {offsets = [2, 0], sizes = [1, 512], strides = [1, 1]} : vector<3x512xf32> to vector<1x512xf32>
    %cst_10 = arith.constant 6.28318548 : f32
    %33 = vector.broadcast %cst_10 : f32 to vector<1x512xf32>
    %34 = arith.mulf %32, %33 : vector<1x512xf32>
    %35 = vector.extract_strided_slice %4 {offsets = [2, 0], sizes = [1, 512], strides = [1, 1]} : vector<3x512xf32> to vector<1x512xf32>
    %cst_11 = arith.constant 12.566371 : f32
    %36 = vector.broadcast %cst_11 : f32 to vector<1x512xf32>
    %37 = arith.mulf %35, %36 : vector<1x512xf32>
    %38 = vector.extract_strided_slice %4 {offsets = [2, 0], sizes = [1, 512], strides = [1, 1]} : vector<3x512xf32> to vector<1x512xf32>
    %cst_12 = arith.constant 25.1327419 : f32
    %39 = vector.broadcast %cst_12 : f32 to vector<1x512xf32>
    %40 = arith.mulf %38, %39 : vector<1x512xf32>
    %41 = tpu.concatenate %7, %10, %13, %16, %19, %22, %25, %28, %31, %34, %37, %40 in 0 : vector<1x512xf32>, vector<1x512xf32>, vector<1x512xf32>, vector<1x512xf32>, vector<1x512xf32>, vector<1x512xf32>, vector<1x512xf32>, vector<1x512xf32>, vector<1x512xf32>, vector<1x512xf32>, vector<1x512xf32>, vector<1x512xf32> -> vector<12x512xf32>
    %42 = math.sin %41 : vector<12x512xf32>
    %43 = math.cos %41 : vector<12x512xf32>
    %44 = vector.extract_strided_slice %42 {offsets = [0, 0], sizes = [4, 512], strides = [1, 1]} : vector<12x512xf32> to vector<4x512xf32>
    %45 = vector.extract_strided_slice %43 {offsets = [0, 0], sizes = [4, 512], strides = [1, 1]} : vector<12x512xf32> to vector<4x512xf32>
    %46 = vector.extract_strided_slice %42 {offsets = [4, 0], sizes = [4, 512], strides = [1, 1]} : vector<12x512xf32> to vector<4x512xf32>
    %47 = vector.extract_strided_slice %43 {offsets = [4, 0], sizes = [4, 512], strides = [1, 1]} : vector<12x512xf32> to vector<4x512xf32>
    %48 = vector.extract_strided_slice %42 {offsets = [8, 0], sizes = [4, 512], strides = [1, 1]} : vector<12x512xf32> to vector<4x512xf32>
    %49 = vector.extract_strided_slice %43 {offsets = [8, 0], sizes = [4, 512], strides = [1, 1]} : vector<12x512xf32> to vector<4x512xf32>
    %50 = tpu.concatenate %4, %44, %45, %46, %47, %48, %49 in 0 : vector<3x512xf32>, vector<4x512xf32>, vector<4x512xf32>, vector<4x512xf32>, vector<4x512xf32>, vector<4x512xf32>, vector<4x512xf32> -> vector<27x512xf32>
    %51 = vector.extract_strided_slice %43 {offsets = [0, 0], sizes = [1, 512], strides = [1, 1]} : vector<12x512xf32> to vector<1x512xf32>
    %cst_13 = arith.constant 3.14159274 : f32
    %52 = vector.broadcast %cst_13 : f32 to vector<1x512xf32>
    %53 = arith.mulf %51, %52 : vector<1x512xf32>
    %54 = vector.extract_strided_slice %43 {offsets = [1, 0], sizes = [1, 512], strides = [1, 1]} : vector<12x512xf32> to vector<1x512xf32>
    %cst_14 = arith.constant 6.28318548 : f32
    %55 = vector.broadcast %cst_14 : f32 to vector<1x512xf32>
    %56 = arith.mulf %54, %55 : vector<1x512xf32>
    %57 = vector.extract_strided_slice %43 {offsets = [2, 0], sizes = [1, 512], strides = [1, 1]} : vector<12x512xf32> to vector<1x512xf32>
    %cst_15 = arith.constant 12.566371 : f32
    %58 = vector.broadcast %cst_15 : f32 to vector<1x512xf32>
    %59 = arith.mulf %57, %58 : vector<1x512xf32>
    %60 = vector.extract_strided_slice %43 {offsets = [3, 0], sizes = [1, 512], strides = [1, 1]} : vector<12x512xf32> to vector<1x512xf32>
    %cst_16 = arith.constant 25.1327419 : f32
    %61 = vector.broadcast %cst_16 : f32 to vector<1x512xf32>
    %62 = arith.mulf %60, %61 : vector<1x512xf32>
    %63 = vector.extract_strided_slice %43 {offsets = [4, 0], sizes = [1, 512], strides = [1, 1]} : vector<12x512xf32> to vector<1x512xf32>
    %cst_17 = arith.constant 3.14159274 : f32
    %64 = vector.broadcast %cst_17 : f32 to vector<1x512xf32>
    %65 = arith.mulf %63, %64 : vector<1x512xf32>
    %66 = vector.extract_strided_slice %43 {offsets = [5, 0], sizes = [1, 512], strides = [1, 1]} : vector<12x512xf32> to vector<1x512xf32>
    %cst_18 = arith.constant 6.28318548 : f32
    %67 = vector.broadcast %cst_18 : f32 to vector<1x512xf32>
    %68 = arith.mulf %66, %67 : vector<1x512xf32>
    %69 = vector.extract_strided_slice %43 {offsets = [6, 0], sizes = [1, 512], strides = [1, 1]} : vector<12x512xf32> to vector<1x512xf32>
    %cst_19 = arith.constant 12.566371 : f32
    %70 = vector.broadcast %cst_19 : f32 to vector<1x512xf32>
    %71 = arith.mulf %69, %70 : vector<1x512xf32>
    %72 = vector.extract_strided_slice %43 {offsets = [7, 0], sizes = [1, 512], strides = [1, 1]} : vector<12x512xf32> to vector<1x512xf32>
    %cst_20 = arith.constant 25.1327419 : f32
    %73 = vector.broadcast %cst_20 : f32 to vector<1x512xf32>
    %74 = arith.mulf %72, %73 : vector<1x512xf32>
    %75 = vector.extract_strided_slice %43 {offsets = [8, 0], sizes = [1, 512], strides = [1, 1]} : vector<12x512xf32> to vector<1x512xf32>
    %cst_21 = arith.constant 3.14159274 : f32
    %76 = vector.broadcast %cst_21 : f32 to vector<1x512xf32>
    %77 = arith.mulf %75, %76 : vector<1x512xf32>
    %78 = vector.extract_strided_slice %43 {offsets = [9, 0], sizes = [1, 512], strides = [1, 1]} : vector<12x512xf32> to vector<1x512xf32>
    %cst_22 = arith.constant 6.28318548 : f32
    %79 = vector.broadcast %cst_22 : f32 to vector<1x512xf32>
    %80 = arith.mulf %78, %79 : vector<1x512xf32>
    %81 = vector.extract_strided_slice %43 {offsets = [10, 0], sizes = [1, 512], strides = [1, 1]} : vector<12x512xf32> to vector<1x512xf32>
    %cst_23 = arith.constant 12.566371 : f32
    %82 = vector.broadcast %cst_23 : f32 to vector<1x512xf32>
    %83 = arith.mulf %81, %82 : vector<1x512xf32>
    %84 = vector.extract_strided_slice %43 {offsets = [11, 0], sizes = [1, 512], strides = [1, 1]} : vector<12x512xf32> to vector<1x512xf32>
    %cst_24 = arith.constant 25.1327419 : f32
    %85 = vector.broadcast %cst_24 : f32 to vector<1x512xf32>
    %86 = arith.mulf %84, %85 : vector<1x512xf32>
    %87 = tpu.concatenate %53, %56, %59, %62, %65, %68, %71, %74, %77, %80, %83, %86 in 0 : vector<1x512xf32>, vector<1x512xf32>, vector<1x512xf32>, vector<1x512xf32>, vector<1x512xf32>, vector<1x512xf32>, vector<1x512xf32>, vector<1x512xf32>, vector<1x512xf32>, vector<1x512xf32>, vector<1x512xf32>, vector<1x512xf32> -> vector<12x512xf32>
    %88 = vector.extract_strided_slice %42 {offsets = [0, 0], sizes = [1, 512], strides = [1, 1]} : vector<12x512xf32> to vector<1x512xf32>
    %cst_25 = arith.constant -3.14159274 : f32
    %89 = vector.broadcast %cst_25 : f32 to vector<1x512xf32>
    %90 = arith.mulf %88, %89 : vector<1x512xf32>
    %91 = vector.extract_strided_slice %42 {offsets = [1, 0], sizes = [1, 512], strides = [1, 1]} : vector<12x512xf32> to vector<1x512xf32>
    %cst_26 = arith.constant -6.28318548 : f32
    %92 = vector.broadcast %cst_26 : f32 to vector<1x512xf32>
    %93 = arith.mulf %91, %92 : vector<1x512xf32>
    %94 = vector.extract_strided_slice %42 {offsets = [2, 0], sizes = [1, 512], strides = [1, 1]} : vector<12x512xf32> to vector<1x512xf32>
    %cst_27 = arith.constant -12.566371 : f32
    %95 = vector.broadcast %cst_27 : f32 to vector<1x512xf32>
    %96 = arith.mulf %94, %95 : vector<1x512xf32>
    %97 = vector.extract_strided_slice %42 {offsets = [3, 0], sizes = [1, 512], strides = [1, 1]} : vector<12x512xf32> to vector<1x512xf32>
    %cst_28 = arith.constant -25.1327419 : f32
    %98 = vector.broadcast %cst_28 : f32 to vector<1x512xf32>
    %99 = arith.mulf %97, %98 : vector<1x512xf32>
    %100 = vector.extract_strided_slice %42 {offsets = [4, 0], sizes = [1, 512], strides = [1, 1]} : vector<12x512xf32> to vector<1x512xf32>
    %cst_29 = arith.constant -3.14159274 : f32
    %101 = vector.broadcast %cst_29 : f32 to vector<1x512xf32>
    %102 = arith.mulf %100, %101 : vector<1x512xf32>
    %103 = vector.extract_strided_slice %42 {offsets = [5, 0], sizes = [1, 512], strides = [1, 1]} : vector<12x512xf32> to vector<1x512xf32>
    %cst_30 = arith.constant -6.28318548 : f32
    %104 = vector.broadcast %cst_30 : f32 to vector<1x512xf32>
    %105 = arith.mulf %103, %104 : vector<1x512xf32>
    %106 = vector.extract_strided_slice %42 {offsets = [6, 0], sizes = [1, 512], strides = [1, 1]} : vector<12x512xf32> to vector<1x512xf32>
    %cst_31 = arith.constant -12.566371 : f32
    %107 = vector.broadcast %cst_31 : f32 to vector<1x512xf32>
    %108 = arith.mulf %106, %107 : vector<1x512xf32>
    %109 = vector.extract_strided_slice %42 {offsets = [7, 0], sizes = [1, 512], strides = [1, 1]} : vector<12x512xf32> to vector<1x512xf32>
    %cst_32 = arith.constant -25.1327419 : f32
    %110 = vector.broadcast %cst_32 : f32 to vector<1x512xf32>
    %111 = arith.mulf %109, %110 : vector<1x512xf32>
    %112 = vector.extract_strided_slice %42 {offsets = [8, 0], sizes = [1, 512], strides = [1, 1]} : vector<12x512xf32> to vector<1x512xf32>
    %cst_33 = arith.constant -3.14159274 : f32
    %113 = vector.broadcast %cst_33 : f32 to vector<1x512xf32>
    %114 = arith.mulf %112, %113 : vector<1x512xf32>
    %115 = vector.extract_strided_slice %42 {offsets = [9, 0], sizes = [1, 512], strides = [1, 1]} : vector<12x512xf32> to vector<1x512xf32>
    %cst_34 = arith.constant -6.28318548 : f32
    %116 = vector.broadcast %cst_34 : f32 to vector<1x512xf32>
    %117 = arith.mulf %115, %116 : vector<1x512xf32>
    %118 = vector.extract_strided_slice %42 {offsets = [10, 0], sizes = [1, 512], strides = [1, 1]} : vector<12x512xf32> to vector<1x512xf32>
    %cst_35 = arith.constant -12.566371 : f32
    %119 = vector.broadcast %cst_35 : f32 to vector<1x512xf32>
    %120 = arith.mulf %118, %119 : vector<1x512xf32>
    %121 = vector.extract_strided_slice %42 {offsets = [11, 0], sizes = [1, 512], strides = [1, 1]} : vector<12x512xf32> to vector<1x512xf32>
    %cst_36 = arith.constant -25.1327419 : f32
    %122 = vector.broadcast %cst_36 : f32 to vector<1x512xf32>
    %123 = arith.mulf %121, %122 : vector<1x512xf32>
    %124 = tpu.concatenate %90, %93, %96, %99, %102, %105, %108, %111, %114, %117, %120, %123 in 0 : vector<1x512xf32>, vector<1x512xf32>, vector<1x512xf32>, vector<1x512xf32>, vector<1x512xf32>, vector<1x512xf32>, vector<1x512xf32>, vector<1x512xf32>, vector<1x512xf32>, vector<1x512xf32>, vector<1x512xf32>, vector<1x512xf32> -> vector<12x512xf32>
    %cst_37 = arith.constant 0.000000e+00 : f32
    %125 = vector.broadcast %cst_37 : f32 to vector<8x512xf32>
    %126 = tpu.iota {dimensions = array<i32: 0>} : vector<3x512xi32>
    %c0_i32 = arith.constant 0 : i32
    %127 = vector.broadcast %c0_i32 : i32 to vector<3x512xi32>
    %128 = arith.cmpi eq, %126, %127 : vector<3x512xi32>
    %cst_38 = arith.constant 1.000000e+00 : f32
    %cst_39 = arith.constant 0.000000e+00 : f32
    %129 = vector.broadcast %cst_38 : f32 to vector<3x512xf32>
    %130 = vector.broadcast %cst_39 : f32 to vector<3x512xf32>
    %131 = arith.select %128, %129, %130 : vector<3x512xi1>, vector<3x512xf32>
    %132 = vector.extract_strided_slice %87 {offsets = [0, 0], sizes = [4, 512], strides = [1, 1]} : vector<12x512xf32> to vector<4x512xf32>
    %133 = vector.extract_strided_slice %124 {offsets = [0, 0], sizes = [4, 512], strides = [1, 1]} : vector<12x512xf32> to vector<4x512xf32>
    %134 = tpu.concatenate %132, %133 in 0 : vector<4x512xf32>, vector<4x512xf32> -> vector<8x512xf32>
    %135 = tpu.concatenate %131, %134, %125, %125 in 0 : vector<3x512xf32>, vector<8x512xf32>, vector<8x512xf32>, vector<8x512xf32> -> vector<27x512xf32>
    %c1_i32 = arith.constant 1 : i32
    %136 = vector.broadcast %c1_i32 : i32 to vector<3x512xi32>
    %137 = arith.cmpi eq, %126, %136 : vector<3x512xi32>
    %cst_40 = arith.constant 1.000000e+00 : f32
    %cst_41 = arith.constant 0.000000e+00 : f32
    %138 = vector.broadcast %cst_40 : f32 to vector<3x512xf32>
    %139 = vector.broadcast %cst_41 : f32 to vector<3x512xf32>
    %140 = arith.select %137, %138, %139 : vector<3x512xi1>, vector<3x512xf32>
    %141 = vector.extract_strided_slice %87 {offsets = [4, 0], sizes = [4, 512], strides = [1, 1]} : vector<12x512xf32> to vector<4x512xf32>
    %142 = vector.extract_strided_slice %124 {offsets = [4, 0], sizes = [4, 512], strides = [1, 1]} : vector<12x512xf32> to vector<4x512xf32>
    %143 = tpu.concatenate %141, %142 in 0 : vector<4x512xf32>, vector<4x512xf32> -> vector<8x512xf32>
    %144 = tpu.concatenate %140, %125, %143, %125 in 0 : vector<3x512xf32>, vector<8x512xf32>, vector<8x512xf32>, vector<8x512xf32> -> vector<27x512xf32>
    %c2_i32 = arith.constant 2 : i32
    %145 = vector.broadcast %c2_i32 : i32 to vector<3x512xi32>
    %146 = arith.cmpi eq, %126, %145 : vector<3x512xi32>
    %cst_42 = arith.constant 1.000000e+00 : f32
    %cst_43 = arith.constant 0.000000e+00 : f32
    %147 = vector.broadcast %cst_42 : f32 to vector<3x512xf32>
    %148 = vector.broadcast %cst_43 : f32 to vector<3x512xf32>
    %149 = arith.select %146, %147, %148 : vector<3x512xi1>, vector<3x512xf32>
    %150 = vector.extract_strided_slice %87 {offsets = [8, 0], sizes = [4, 512], strides = [1, 1]} : vector<12x512xf32> to vector<4x512xf32>
    %151 = vector.extract_strided_slice %124 {offsets = [8, 0], sizes = [4, 512], strides = [1, 1]} : vector<12x512xf32> to vector<4x512xf32>
    %152 = tpu.concatenate %150, %151 in 0 : vector<4x512xf32>, vector<4x512xf32> -> vector<8x512xf32>
    %153 = tpu.concatenate %149, %125, %125, %152 in 0 : vector<3x512xf32>, vector<8x512xf32>, vector<8x512xf32>, vector<8x512xf32> -> vector<27x512xf32>
    %154 = tpu.concatenate %50, %135, %144, %153 in 1 : vector<27x512xf32>, vector<27x512xf32>, vector<27x512xf32>, vector<27x512xf32> -> vector<27x2048xf32>
    %155 = tpu.iota {dimensions = array<i32: 1>} : vector<1x2048xi32>
    %c512_i32 = arith.constant 512 : i32
    %156 = vector.broadcast %c512_i32 : i32 to vector<1x2048xi32>
    %157 = arith.cmpi slt, %155, %156 : vector<1x2048xi32>
    %158 = arith.extui %157 : vector<1x2048xi1> to vector<1x2048xi32>
    %159 = arith.sitofp %158 : vector<1x2048xi32> to vector<1x2048xf32>
    %c0_44 = arith.constant 0 : index
    %c0_45 = arith.constant 0 : index
    %160 = vector.load %arg2[%c0_44, %c0_45] : memref<64x27xf32, #tpu.memory_space<vmem>>, vector<64x27xf32>
    %cst_46 = arith.constant dense<0.000000e+00> : vector<64x2048xf32>
    %161 = tpu.matmul %160, %154, %cst_46 {dimension_numbers = #tpu.dot_dimension_numbers<[1], [0], [0], [1], [0, 0, 1, 1], [], []>} : vector<64x27xf32>, vector<27x2048xf32>, vector<64x2048xf32> -> vector<64x2048xf32>
    %c0_47 = arith.constant 0 : index
    %c0_48 = arith.constant 0 : index
    %162 = vector.load %arg3[%c0_47, %c0_48] : memref<64x1xf32, #tpu.memory_space<vmem>>, vector<64x1xf32>
    %163 = vector.broadcast %162 : vector<64x1xf32> to vector<64x2048xf32>
    %164 = vector.broadcast %159 : vector<1x2048xf32> to vector<64x2048xf32>
    %165 = arith.mulf %163, %164 : vector<64x2048xf32>
    %166 = arith.addf %161, %165 : vector<64x2048xf32>
    %167 = vector.extract_strided_slice %166 {offsets = [0, 0], sizes = [64, 512], strides = [1, 1]} : vector<64x2048xf32> to vector<64x512xf32>
    %cst_49 = arith.constant 1.000000e+02 : f32
    %168 = vector.broadcast %cst_49 : f32 to vector<64x512xf32>
    %169 = arith.mulf %168, %167 : vector<64x512xf32>
    %cst_50 = arith.constant 2.000000e+01 : f32
    %170 = vector.broadcast %cst_50 : f32 to vector<64x512xf32>
    %171 = arith.minimumf %169, %170 : vector<64x512xf32>
    %172 = math.exp %171 : vector<64x512xf32>
    %cst_51 = arith.constant 2.000000e+01 : f32
    %173 = vector.broadcast %cst_51 : f32 to vector<64x512xf32>
    %174 = arith.cmpf ogt, %169, %173 : vector<64x512xf32>
    %cst_52 = arith.constant 1.000000e+00 : f32
    %175 = vector.broadcast %cst_52 : f32 to vector<64x512xf32>
    %176 = arith.addf %175, %172 : vector<64x512xf32>
    %177 = math.log %176 : vector<64x512xf32>
    %cst_53 = arith.constant 0.00999999977 : f32
    %178 = vector.broadcast %cst_53 : f32 to vector<64x512xf32>
    %179 = arith.mulf %177, %178 : vector<64x512xf32>
    %180 = arith.select %174, %167, %179 : vector<64x512xi1>, vector<64x512xf32>
    %cst_54 = arith.constant 1.000000e+00 : f32
    %181 = vector.broadcast %cst_54 : f32 to vector<64x512xf32>
    %182 = arith.addf %181, %172 : vector<64x512xf32>
    %183 = arith.divf %172, %182 : vector<64x512xf32>
    %cst_55 = arith.constant 1.000000e+00 : f32
    %184 = vector.broadcast %cst_55 : f32 to vector<64x512xf32>
    %185 = arith.select %174, %184, %183 : vector<64x512xi1>, vector<64x512xf32>
    %186 = tpu.concatenate %185, %185, %185 in 1 : vector<64x512xf32>, vector<64x512xf32>, vector<64x512xf32> -> vector<64x1536xf32>
    %187 = vector.extract_strided_slice %166 {offsets = [0, 512], sizes = [64, 1536], strides = [1, 1]} : vector<64x2048xf32> to vector<64x1536xf32>
    %188 = arith.mulf %187, %186 : vector<64x1536xf32>
    %189 = tpu.concatenate %180, %188 in 1 : vector<64x512xf32>, vector<64x1536xf32> -> vector<64x2048xf32>
    %c0_56 = arith.constant 0 : index
    %c0_57 = arith.constant 0 : index
    %190 = vector.load %arg4[%c0_56, %c0_57] : memref<64x64xf32, #tpu.memory_space<vmem>>, vector<64x64xf32>
    %cst_58 = arith.constant dense<0.000000e+00> : vector<64x2048xf32>
    %191 = tpu.matmul %190, %189, %cst_58 {dimension_numbers = #tpu.dot_dimension_numbers<[1], [0], [0], [1], [0, 0, 1, 1], [], []>} : vector<64x64xf32>, vector<64x2048xf32>, vector<64x2048xf32> -> vector<64x2048xf32>
    %c0_59 = arith.constant 0 : index
    %c0_60 = arith.constant 0 : index
    %192 = vector.load %arg5[%c0_59, %c0_60] : memref<64x1xf32, #tpu.memory_space<vmem>>, vector<64x1xf32>
    %193 = vector.broadcast %192 : vector<64x1xf32> to vector<64x2048xf32>
    %194 = vector.broadcast %159 : vector<1x2048xf32> to vector<64x2048xf32>
    %195 = arith.mulf %193, %194 : vector<64x2048xf32>
    %196 = arith.addf %191, %195 : vector<64x2048xf32>
    %197 = vector.extract_strided_slice %196 {offsets = [0, 0], sizes = [64, 512], strides = [1, 1]} : vector<64x2048xf32> to vector<64x512xf32>
    %cst_61 = arith.constant 1.000000e+02 : f32
    %198 = vector.broadcast %cst_61 : f32 to vector<64x512xf32>
    %199 = arith.mulf %198, %197 : vector<64x512xf32>
    %cst_62 = arith.constant 2.000000e+01 : f32
    %200 = vector.broadcast %cst_62 : f32 to vector<64x512xf32>
    %201 = arith.minimumf %199, %200 : vector<64x512xf32>
    %202 = math.exp %201 : vector<64x512xf32>
    %cst_63 = arith.constant 2.000000e+01 : f32
    %203 = vector.broadcast %cst_63 : f32 to vector<64x512xf32>
    %204 = arith.cmpf ogt, %199, %203 : vector<64x512xf32>
    %cst_64 = arith.constant 1.000000e+00 : f32
    %205 = vector.broadcast %cst_64 : f32 to vector<64x512xf32>
    %206 = arith.addf %205, %202 : vector<64x512xf32>
    %207 = math.log %206 : vector<64x512xf32>
    %cst_65 = arith.constant 0.00999999977 : f32
    %208 = vector.broadcast %cst_65 : f32 to vector<64x512xf32>
    %209 = arith.mulf %207, %208 : vector<64x512xf32>
    %210 = arith.select %204, %197, %209 : vector<64x512xi1>, vector<64x512xf32>
    %cst_66 = arith.constant 1.000000e+00 : f32
    %211 = vector.broadcast %cst_66 : f32 to vector<64x512xf32>
    %212 = arith.addf %211, %202 : vector<64x512xf32>
    %213 = arith.divf %202, %212 : vector<64x512xf32>
    %cst_67 = arith.constant 1.000000e+00 : f32
    %214 = vector.broadcast %cst_67 : f32 to vector<64x512xf32>
    %215 = arith.select %204, %214, %213 : vector<64x512xi1>, vector<64x512xf32>
    %216 = tpu.concatenate %215, %215, %215 in 1 : vector<64x512xf32>, vector<64x512xf32>, vector<64x512xf32> -> vector<64x1536xf32>
    %217 = vector.extract_strided_slice %196 {offsets = [0, 512], sizes = [64, 1536], strides = [1, 1]} : vector<64x2048xf32> to vector<64x1536xf32>
    %218 = arith.mulf %217, %216 : vector<64x1536xf32>
    %219 = tpu.concatenate %210, %218 in 1 : vector<64x512xf32>, vector<64x1536xf32> -> vector<64x2048xf32>
    %220 = tpu.concatenate %219, %154 in 0 : vector<64x2048xf32>, vector<27x2048xf32> -> vector<91x2048xf32>
    %cst_68 = arith.constant 0.707106769 : f32
    %221 = vector.broadcast %cst_68 : f32 to vector<91x2048xf32>
    %222 = arith.mulf %220, %221 : vector<91x2048xf32>
    %c0_69 = arith.constant 0 : index
    %c0_70 = arith.constant 0 : index
    %223 = vector.load %arg6[%c0_69, %c0_70] : memref<64x91xf32, #tpu.memory_space<vmem>>, vector<64x91xf32>
    %cst_71 = arith.constant dense<0.000000e+00> : vector<64x2048xf32>
    %224 = tpu.matmul %223, %222, %cst_71 {dimension_numbers = #tpu.dot_dimension_numbers<[1], [0], [0], [1], [0, 0, 1, 1], [], []>} : vector<64x91xf32>, vector<91x2048xf32>, vector<64x2048xf32> -> vector<64x2048xf32>
    %c0_72 = arith.constant 0 : index
    %c0_73 = arith.constant 0 : index
    %225 = vector.load %arg7[%c0_72, %c0_73] : memref<64x1xf32, #tpu.memory_space<vmem>>, vector<64x1xf32>
    %226 = vector.broadcast %225 : vector<64x1xf32> to vector<64x2048xf32>
    %227 = vector.broadcast %159 : vector<1x2048xf32> to vector<64x2048xf32>
    %228 = arith.mulf %226, %227 : vector<64x2048xf32>
    %229 = arith.addf %224, %228 : vector<64x2048xf32>
    %230 = vector.extract_strided_slice %229 {offsets = [0, 0], sizes = [64, 512], strides = [1, 1]} : vector<64x2048xf32> to vector<64x512xf32>
    %cst_74 = arith.constant 1.000000e+02 : f32
    %231 = vector.broadcast %cst_74 : f32 to vector<64x512xf32>
    %232 = arith.mulf %231, %230 : vector<64x512xf32>
    %cst_75 = arith.constant 2.000000e+01 : f32
    %233 = vector.broadcast %cst_75 : f32 to vector<64x512xf32>
    %234 = arith.minimumf %232, %233 : vector<64x512xf32>
    %235 = math.exp %234 : vector<64x512xf32>
    %cst_76 = arith.constant 2.000000e+01 : f32
    %236 = vector.broadcast %cst_76 : f32 to vector<64x512xf32>
    %237 = arith.cmpf ogt, %232, %236 : vector<64x512xf32>
    %cst_77 = arith.constant 1.000000e+00 : f32
    %238 = vector.broadcast %cst_77 : f32 to vector<64x512xf32>
    %239 = arith.addf %238, %235 : vector<64x512xf32>
    %240 = math.log %239 : vector<64x512xf32>
    %cst_78 = arith.constant 0.00999999977 : f32
    %241 = vector.broadcast %cst_78 : f32 to vector<64x512xf32>
    %242 = arith.mulf %240, %241 : vector<64x512xf32>
    %243 = arith.select %237, %230, %242 : vector<64x512xi1>, vector<64x512xf32>
    %cst_79 = arith.constant 1.000000e+00 : f32
    %244 = vector.broadcast %cst_79 : f32 to vector<64x512xf32>
    %245 = arith.addf %244, %235 : vector<64x512xf32>
    %246 = arith.divf %235, %245 : vector<64x512xf32>
    %cst_80 = arith.constant 1.000000e+00 : f32
    %247 = vector.broadcast %cst_80 : f32 to vector<64x512xf32>
    %248 = arith.select %237, %247, %246 : vector<64x512xi1>, vector<64x512xf32>
    %249 = tpu.concatenate %248, %248, %248 in 1 : vector<64x512xf32>, vector<64x512xf32>, vector<64x512xf32> -> vector<64x1536xf32>
    %250 = vector.extract_strided_slice %229 {offsets = [0, 512], sizes = [64, 1536], strides = [1, 1]} : vector<64x2048xf32> to vector<64x1536xf32>
    %251 = arith.mulf %250, %249 : vector<64x1536xf32>
    %252 = tpu.concatenate %243, %251 in 1 : vector<64x512xf32>, vector<64x1536xf32> -> vector<64x2048xf32>
    %c0_81 = arith.constant 0 : index
    %c0_82 = arith.constant 0 : index
    %253 = vector.load %arg8[%c0_81, %c0_82] : memref<65x64xf32, #tpu.memory_space<vmem>>, vector<65x64xf32>
    %cst_83 = arith.constant dense<0.000000e+00> : vector<65x2048xf32>
    %254 = tpu.matmul %253, %252, %cst_83 {dimension_numbers = #tpu.dot_dimension_numbers<[1], [0], [0], [1], [0, 0, 1, 1], [], []>} : vector<65x64xf32>, vector<64x2048xf32>, vector<65x2048xf32> -> vector<65x2048xf32>
    %c0_84 = arith.constant 0 : index
    %c0_85 = arith.constant 0 : index
    %255 = vector.load %arg9[%c0_84, %c0_85] : memref<65x1xf32, #tpu.memory_space<vmem>>, vector<65x1xf32>
    %256 = vector.broadcast %255 : vector<65x1xf32> to vector<65x2048xf32>
    %257 = vector.broadcast %159 : vector<1x2048xf32> to vector<65x2048xf32>
    %258 = arith.mulf %256, %257 : vector<65x2048xf32>
    %259 = arith.addf %254, %258 : vector<65x2048xf32>
    %260 = vector.extract_strided_slice %259 {offsets = [0, 0], sizes = [1, 512], strides = [1, 1]} : vector<65x2048xf32> to vector<1x512xf32>
    %261 = vector.extract_strided_slice %259 {offsets = [1, 0], sizes = [64, 512], strides = [1, 1]} : vector<65x2048xf32> to vector<64x512xf32>
    %262 = vector.extract_strided_slice %259 {offsets = [0, 512], sizes = [1, 512], strides = [1, 1]} : vector<65x2048xf32> to vector<1x512xf32>
    %263 = vector.extract_strided_slice %259 {offsets = [0, 1024], sizes = [1, 512], strides = [1, 1]} : vector<65x2048xf32> to vector<1x512xf32>
    %264 = vector.extract_strided_slice %259 {offsets = [0, 1536], sizes = [1, 512], strides = [1, 1]} : vector<65x2048xf32> to vector<1x512xf32>
    %265 = tpu.concatenate %262, %263, %264 in 0 : vector<1x512xf32>, vector<1x512xf32>, vector<1x512xf32> -> vector<3x512xf32>
    %266 = vector.extract_strided_slice %2 {offsets = [0, 0], sizes = [1, 512], strides = [1, 1]} : vector<3x512xf32> to vector<1x512xf32>
    %cst_86 = arith.constant 3.14159274 : f32
    %267 = vector.broadcast %cst_86 : f32 to vector<1x512xf32>
    %268 = arith.mulf %266, %267 : vector<1x512xf32>
    %269 = vector.extract_strided_slice %2 {offsets = [0, 0], sizes = [1, 512], strides = [1, 1]} : vector<3x512xf32> to vector<1x512xf32>
    %cst_87 = arith.constant 6.28318548 : f32
    %270 = vector.broadcast %cst_87 : f32 to vector<1x512xf32>
    %271 = arith.mulf %269, %270 : vector<1x512xf32>
    %272 = vector.extract_strided_slice %2 {offsets = [1, 0], sizes = [1, 512], strides = [1, 1]} : vector<3x512xf32> to vector<1x512xf32>
    %cst_88 = arith.constant 3.14159274 : f32
    %273 = vector.broadcast %cst_88 : f32 to vector<1x512xf32>
    %274 = arith.mulf %272, %273 : vector<1x512xf32>
    %275 = vector.extract_strided_slice %2 {offsets = [1, 0], sizes = [1, 512], strides = [1, 1]} : vector<3x512xf32> to vector<1x512xf32>
    %cst_89 = arith.constant 6.28318548 : f32
    %276 = vector.broadcast %cst_89 : f32 to vector<1x512xf32>
    %277 = arith.mulf %275, %276 : vector<1x512xf32>
    %278 = vector.extract_strided_slice %2 {offsets = [2, 0], sizes = [1, 512], strides = [1, 1]} : vector<3x512xf32> to vector<1x512xf32>
    %cst_90 = arith.constant 3.14159274 : f32
    %279 = vector.broadcast %cst_90 : f32 to vector<1x512xf32>
    %280 = arith.mulf %278, %279 : vector<1x512xf32>
    %281 = vector.extract_strided_slice %2 {offsets = [2, 0], sizes = [1, 512], strides = [1, 1]} : vector<3x512xf32> to vector<1x512xf32>
    %cst_91 = arith.constant 6.28318548 : f32
    %282 = vector.broadcast %cst_91 : f32 to vector<1x512xf32>
    %283 = arith.mulf %281, %282 : vector<1x512xf32>
    %284 = tpu.concatenate %268, %271, %274, %277, %280, %283 in 0 : vector<1x512xf32>, vector<1x512xf32>, vector<1x512xf32>, vector<1x512xf32>, vector<1x512xf32>, vector<1x512xf32> -> vector<6x512xf32>
    %285 = math.sin %284 : vector<6x512xf32>
    %286 = math.cos %284 : vector<6x512xf32>
    %287 = vector.extract_strided_slice %285 {offsets = [0, 0], sizes = [2, 512], strides = [1, 1]} : vector<6x512xf32> to vector<2x512xf32>
    %288 = vector.extract_strided_slice %286 {offsets = [0, 0], sizes = [2, 512], strides = [1, 1]} : vector<6x512xf32> to vector<2x512xf32>
    %289 = vector.extract_strided_slice %285 {offsets = [2, 0], sizes = [2, 512], strides = [1, 1]} : vector<6x512xf32> to vector<2x512xf32>
    %290 = vector.extract_strided_slice %286 {offsets = [2, 0], sizes = [2, 512], strides = [1, 1]} : vector<6x512xf32> to vector<2x512xf32>
    %291 = vector.extract_strided_slice %285 {offsets = [4, 0], sizes = [2, 512], strides = [1, 1]} : vector<6x512xf32> to vector<2x512xf32>
    %292 = vector.extract_strided_slice %286 {offsets = [4, 0], sizes = [2, 512], strides = [1, 1]} : vector<6x512xf32> to vector<2x512xf32>
    %293 = tpu.concatenate %2, %287, %288, %289, %290, %291, %292 in 0 : vector<3x512xf32>, vector<2x512xf32>, vector<2x512xf32>, vector<2x512xf32>, vector<2x512xf32>, vector<2x512xf32>, vector<2x512xf32> -> vector<15x512xf32>
    %294 = tpu.concatenate %1, %293, %265, %261 in 0 : vector<3x512xf32>, vector<15x512xf32>, vector<3x512xf32>, vector<64x512xf32> -> vector<85x512xf32>
    %c0_92 = arith.constant 0 : index
    %c0_93 = arith.constant 0 : index
    %295 = vector.load %arg10[%c0_92, %c0_93] : memref<64x85xf32, #tpu.memory_space<vmem>>, vector<64x85xf32>
    %cst_94 = arith.constant dense<0.000000e+00> : vector<64x512xf32>
    %296 = tpu.matmul %295, %294, %cst_94 {dimension_numbers = #tpu.dot_dimension_numbers<[1], [0], [0], [1], [0, 0, 1, 1], [], []>} : vector<64x85xf32>, vector<85x512xf32>, vector<64x512xf32> -> vector<64x512xf32>
    %c0_95 = arith.constant 0 : index
    %c0_96 = arith.constant 0 : index
    %297 = vector.load %arg11[%c0_95, %c0_96] : memref<64x1xf32, #tpu.memory_space<vmem>>, vector<64x1xf32>
    %298 = vector.broadcast %297 : vector<64x1xf32> to vector<64x512xf32>
    %299 = arith.addf %296, %298 : vector<64x512xf32>
    %cst_97 = arith.constant 0.000000e+00 : f32
    %300 = vector.broadcast %cst_97 : f32 to vector<64x512xf32>
    %301 = arith.maximumf %299, %300 : vector<64x512xf32>
    %c0_98 = arith.constant 0 : index
    %c0_99 = arith.constant 0 : index
    %302 = vector.load %arg12[%c0_98, %c0_99] : memref<64x64xf32, #tpu.memory_space<vmem>>, vector<64x64xf32>
    %cst_100 = arith.constant dense<0.000000e+00> : vector<64x512xf32>
    %303 = tpu.matmul %302, %301, %cst_100 {dimension_numbers = #tpu.dot_dimension_numbers<[1], [0], [0], [1], [0, 0, 1, 1], [], []>} : vector<64x64xf32>, vector<64x512xf32>, vector<64x512xf32> -> vector<64x512xf32>
    %c0_101 = arith.constant 0 : index
    %c0_102 = arith.constant 0 : index
    %304 = vector.load %arg13[%c0_101, %c0_102] : memref<64x1xf32, #tpu.memory_space<vmem>>, vector<64x1xf32>
    %305 = vector.broadcast %304 : vector<64x1xf32> to vector<64x512xf32>
    %306 = arith.addf %303, %305 : vector<64x512xf32>
    %cst_103 = arith.constant 0.000000e+00 : f32
    %307 = vector.broadcast %cst_103 : f32 to vector<64x512xf32>
    %308 = arith.maximumf %306, %307 : vector<64x512xf32>
    %c0_104 = arith.constant 0 : index
    %c0_105 = arith.constant 0 : index
    %309 = vector.load %arg14[%c0_104, %c0_105] : memref<3x64xf32, #tpu.memory_space<vmem>>, vector<3x64xf32>
    %cst_106 = arith.constant dense<0.000000e+00> : vector<3x512xf32>
    %310 = tpu.matmul %309, %308, %cst_106 {dimension_numbers = #tpu.dot_dimension_numbers<[1], [0], [0], [1], [0, 0, 1, 1], [], []>} : vector<3x64xf32>, vector<64x512xf32>, vector<3x512xf32> -> vector<3x512xf32>
    %c0_107 = arith.constant 0 : index
    %c0_108 = arith.constant 0 : index
    %311 = vector.load %arg15[%c0_107, %c0_108] : memref<3x1xf32, #tpu.memory_space<vmem>>, vector<3x1xf32>
    %312 = vector.broadcast %311 : vector<3x1xf32> to vector<3x512xf32>
    %313 = arith.addf %310, %312 : vector<3x512xf32>
    %cst_109 = arith.constant 0.000000e+00 : f32
    %314 = vector.broadcast %cst_109 : f32 to vector<3x512xf32>
    %315 = arith.subf %314, %313 : vector<3x512xf32>
    %316 = math.exp %315 : vector<3x512xf32>
    %cst_110 = arith.constant 1.000000e+00 : f32
    %317 = vector.broadcast %cst_110 : f32 to vector<3x512xf32>
    %318 = arith.addf %317, %316 : vector<3x512xf32>
    %cst_111 = arith.constant 1.000000e+00 : f32
    %319 = vector.broadcast %cst_111 : f32 to vector<3x512xf32>
    %320 = arith.divf %319, %318 : vector<3x512xf32>
    %321 = arith.mulf %1, %1 : vector<3x512xf32>
    %cst_112 = arith.constant dense<0.000000e+00> : vector<512xf32>
    %322 = vector.multi_reduction <add>, %321, %cst_112 [0] : vector<3x512xf32> to vector<512xf32>
    %323 = vector.shape_cast %322 : vector<512xf32> to vector<1x512xf32>
    %324 = math.sqrt %323 : vector<1x512xf32>
    %cst_113 = arith.constant 3.000000e+00 : f32
    %325 = vector.broadcast %cst_113 : f32 to vector<1x512xf32>
    %326 = arith.subf %325, %324 : vector<1x512xf32>
    %327 = arith.minimumf %260, %326 : vector<1x512xf32>
    %c0_114 = arith.constant 0 : index
    %c0_115 = arith.constant 0 : index
    %328 = vector.load %arg16[%c0_114, %c0_115] : memref<3x512xf32, #tpu.memory_space<vmem>>, vector<3x512xf32>
    tpu.vector_store %arg16[%c0_114, %c0_115], %320 {strides = array<i32>} : memref<3x512xf32, #tpu.memory_space<vmem>>, vector<3x512xf32>,
    %c0_116 = arith.constant 0 : index
    %c0_117 = arith.constant 0 : index
    %329 = vector.load %arg17[%c0_116, %c0_117] : memref<1x512xf32, #tpu.memory_space<vmem>>, vector<1x512xf32>
    tpu.vector_store %arg17[%c0_116, %c0_117], %327 {strides = array<i32>} : memref<1x512xf32, #tpu.memory_space<vmem>>, vector<1x512xf32>,
    %c0_118 = arith.constant 0 : index
    %c0_119 = arith.constant 0 : index
    %330 = vector.load %arg18[%c0_118, %c0_119] : memref<3x512xf32, #tpu.memory_space<vmem>>, vector<3x512xf32>
    tpu.vector_store %arg18[%c0_118, %c0_119], %265 {strides = array<i32>} : memref<3x512xf32, #tpu.memory_space<vmem>>, vector<3x512xf32>,
    return
  }
  func.func @transform_0(%arg0: i32) -> (i32, i32) {
    %c0_i32 = arith.constant 0 : i32
    %c0_i32_0 = arith.constant 0 : i32
    return %c0_i32, %arg0 : i32, i32
  }
  func.func @transform_1(%arg0: i32) -> (i32, i32) {
    %c0_i32 = arith.constant 0 : i32
    %c0_i32_0 = arith.constant 0 : i32
    %c0_i32_1 = arith.constant 0 : i32
    return %c0_i32, %c0_i32_0 : i32, i32
  }
  func.func @transform_2(%arg0: i32) -> (i32, i32) {
    %c0_i32 = arith.constant 0 : i32
    %c0_i32_0 = arith.constant 0 : i32
    %c0_i32_1 = arith.constant 0 : i32
    return %c0_i32, %c0_i32_0 : i32, i32
  }
  func.func @transform_3(%arg0: i32) -> (i32, i32) {
    %c0_i32 = arith.constant 0 : i32
    %c0_i32_0 = arith.constant 0 : i32
    %c0_i32_1 = arith.constant 0 : i32
    return %c0_i32, %c0_i32_0 : i32, i32
  }
  func.func @transform_4(%arg0: i32) -> (i32, i32) {
    %c0_i32 = arith.constant 0 : i32
    %c0_i32_0 = arith.constant 0 : i32
    %c0_i32_1 = arith.constant 0 : i32
    return %c0_i32, %c0_i32_0 : i32, i32
  }
  func.func @transform_5(%arg0: i32) -> (i32, i32) {
    %c0_i32 = arith.constant 0 : i32
    %c0_i32_0 = arith.constant 0 : i32
    %c0_i32_1 = arith.constant 0 : i32
    return %c0_i32, %c0_i32_0 : i32, i32
  }
  func.func @transform_6(%arg0: i32) -> (i32, i32) {
    %c0_i32 = arith.constant 0 : i32
    %c0_i32_0 = arith.constant 0 : i32
    %c0_i32_1 = arith.constant 0 : i32
    return %c0_i32, %c0_i32_0 : i32, i32
  }
  func.func @transform_7(%arg0: i32) -> (i32, i32) {
    %c0_i32 = arith.constant 0 : i32
    %c0_i32_0 = arith.constant 0 : i32
    %c0_i32_1 = arith.constant 0 : i32
    return %c0_i32, %c0_i32_0 : i32, i32
  }
  func.func @transform_8(%arg0: i32) -> (i32, i32) {
    %c0_i32 = arith.constant 0 : i32
    %c0_i32_0 = arith.constant 0 : i32
    %c0_i32_1 = arith.constant 0 : i32
    return %c0_i32, %c0_i32_0 : i32, i32
  }
  func.func @transform_9(%arg0: i32) -> (i32, i32) {
    %c0_i32 = arith.constant 0 : i32
    %c0_i32_0 = arith.constant 0 : i32
    %c0_i32_1 = arith.constant 0 : i32
    return %c0_i32, %c0_i32_0 : i32, i32
  }
  func.func @transform_10(%arg0: i32) -> (i32, i32) {
    %c0_i32 = arith.constant 0 : i32
    %c0_i32_0 = arith.constant 0 : i32
    %c0_i32_1 = arith.constant 0 : i32
    return %c0_i32, %c0_i32_0 : i32, i32
  }
  func.func @transform_11(%arg0: i32) -> (i32, i32) {
    %c0_i32 = arith.constant 0 : i32
    %c0_i32_0 = arith.constant 0 : i32
    %c0_i32_1 = arith.constant 0 : i32
    return %c0_i32, %c0_i32_0 : i32, i32
  }
  func.func @transform_12(%arg0: i32) -> (i32, i32) {
    %c0_i32 = arith.constant 0 : i32
    %c0_i32_0 = arith.constant 0 : i32
    %c0_i32_1 = arith.constant 0 : i32
    return %c0_i32, %c0_i32_0 : i32, i32
  }
  func.func @transform_13(%arg0: i32) -> (i32, i32) {
    %c0_i32 = arith.constant 0 : i32
    %c0_i32_0 = arith.constant 0 : i32
    %c0_i32_1 = arith.constant 0 : i32
    return %c0_i32, %c0_i32_0 : i32, i32
  }
  func.func @transform_14(%arg0: i32) -> (i32, i32) {
    %c0_i32 = arith.constant 0 : i32
    %c0_i32_0 = arith.constant 0 : i32
    %c0_i32_1 = arith.constant 0 : i32
    return %c0_i32, %c0_i32_0 : i32, i32
  }
  func.func @transform_15(%arg0: i32) -> (i32, i32) {
    %c0_i32 = arith.constant 0 : i32
    %c0_i32_0 = arith.constant 0 : i32
    return %c0_i32, %arg0 : i32, i32
  }
  func.func @transform_16(%arg0: i32) -> (i32, i32) {
    %c0_i32 = arith.constant 0 : i32
    %c0_i32_0 = arith.constant 0 : i32
    return %c0_i32, %arg0 : i32, i32
  }
  func.func @transform_17(%arg0: i32) -> (i32, i32) {
    %c0_i32 = arith.constant 0 : i32
    %c0_i32_0 = arith.constant 0 : i32
    return %c0_i32, %arg0 : i32, i32
  }
}

</mosaic_0001>

<llo_original>
// kernel: tpu_custom_call.1
$region0: #{tpu_custom_call.1}
  #allocation0 [shape = 'u32[]', space=smem, size = 0x4, offset = 0x4, fixed_abs, tag = 'smem constant byte address 0x4 - core index']
  #allocation1 [shape = 'u32[144,128]{1,0:T(1,128)}', space=vmem, size = 0x12000, scoped, tag = 'internal scratch']
  %s0 = inlined_call_operand.vmem [shape: f32[6,512], index: 0, kind: input, shape index: {}]
  %s1 = inlined_call_operand.vmem [shape: f32[64,27], index: 1, kind: input, shape index: {}]
  %s2 = inlined_call_operand.vmem [shape: f32[64,1], index: 2, kind: input, shape index: {}]
  %s3 = inlined_call_operand.vmem [shape: f32[64,64], index: 3, kind: input, shape index: {}]
  %s4 = inlined_call_operand.vmem [shape: f32[64,1], index: 4, kind: input, shape index: {}]
  %s5 = inlined_call_operand.vmem [shape: f32[64,91], index: 5, kind: input, shape index: {}]
  %s6 = inlined_call_operand.vmem [shape: f32[64,1], index: 6, kind: input, shape index: {}]
  %s7 = inlined_call_operand.vmem [shape: f32[65,64], index: 7, kind: input, shape index: {}]
  %s8 = inlined_call_operand.vmem [shape: f32[65,1], index: 8, kind: input, shape index: {}]
  %s9 = inlined_call_operand.vmem [shape: f32[64,85], index: 9, kind: input, shape index: {}]
  %s10 = inlined_call_operand.vmem [shape: f32[64,1], index: 10, kind: input, shape index: {}]
  %s11 = inlined_call_operand.vmem [shape: f32[64,64], index: 11, kind: input, shape index: {}]
  %s12 = inlined_call_operand.vmem [shape: f32[64,1], index: 12, kind: input, shape index: {}]
  %s13 = inlined_call_operand.vmem [shape: f32[3,64], index: 13, kind: input, shape index: {}]
  %s14 = inlined_call_operand.vmem [shape: f32[3,1], index: 14, kind: input, shape index: {}]
  %s15 = inlined_call_operand.hbm [shape: f32[3,512], index: 15, kind: output, shape index: {0}]
  %s16 = inlined_call_operand.hbm [shape: f32[1,512], index: 16, kind: output, shape index: {1}]
  %s17 = inlined_call_operand.hbm [shape: f32[3,512], index: 17, kind: output, shape index: {2}]
  %18 = xla_tuple %s15, %s16, %s17
  %s19 = sld [smem:[#allocation0]]
  $region86: #{tpu_custom_call.1} parent=0
    _
  %s21 = ssub.s32 1, %s19
  %s22 = scalar_select 0, %s21, %s19
  $region1: #{tpu_custom_call.1} parent=0
    #allocation2 [shape = 'u8[8192]{0}', space=vmem, size = 0x2000, scoped, tag = 'output window, operand 0, single buffered']
    #allocation3 [shape = 's32[1]{0}', space=sflag, size = 0x4, scoped, tag = 'scoped memory for tpu_custom_call.1']
    #allocation4 [shape = 'u8[2048]{0}', space=vmem, size = 0x800, scoped, tag = 'output window, operand 1, single buffered']
    #allocation5 [shape = 's32[1]{0}', space=sflag, size = 0x4, scoped, tag = 'scoped memory for tpu_custom_call.1']
    #allocation6 [shape = 'u8[8192]{0}', space=vmem, size = 0x2000, scoped, tag = 'output window, operand 2, single buffered']
    %23 = vsyncpa [#allocation3], 0
    %24 = vsyncpa [#allocation5], 0
    // Predicated region
    $region2: #{tpu_custom_call.1} parent=1 // pred_check
      _
    $region3: #{tpu_custom_call.1} parent=1 // pred_check_branch
      %26 = sbr.rel (0) target = $region5
    $region4: #{tpu_custom_call.1} parent=1 // pred_region
      _
    $region5: #{tpu_custom_call.1} parent=1 // pred_fallthru
      _
    // Predicated region
    $region6: #{tpu_custom_call.1} parent=1 // pred_check
      _
    $region7: #{tpu_custom_call.1} parent=1 // pred_check_branch
      %28 = sbr.rel (0) target = $region9
    $region8: #{tpu_custom_call.1} parent=1 // pred_region
      _
    $region9: #{tpu_custom_call.1} parent=1 // pred_fallthru
      _
    // Predicated region
    $region10: #{tpu_custom_call.1} parent=1 // pred_check
      _
    $region11: #{tpu_custom_call.1} parent=1 // pred_check_branch
      %30 = sbr.rel (0) target = $region13
    $region12: #{tpu_custom_call.1} parent=1 // pred_region
      _
    $region13: #{tpu_custom_call.1} parent=1 // pred_fallthru
      _
    // Predicated region
    $region14: #{tpu_custom_call.1} parent=1 // pred_check
      _
    $region15: #{tpu_custom_call.1} parent=1 // pred_check_branch
      %32 = sbr.rel (0) target = $region17
    $region16: #{tpu_custom_call.1} parent=1 // pred_region
      _
    $region17: #{tpu_custom_call.1} parent=1 // pred_fallthru
      _
    // Predicated region
    $region18: #{tpu_custom_call.1} parent=1 // pred_check
      _
    $region19: #{tpu_custom_call.1} parent=1 // pred_check_branch
      %34 = sbr.rel (0) target = $region21
    $region20: #{tpu_custom_call.1} parent=1 // pred_region
      _
    $region21: #{tpu_custom_call.1} parent=1 // pred_fallthru
      _
    // Predicated region
    $region22: #{tpu_custom_call.1} parent=1 // pred_check
      _
    $region23: #{tpu_custom_call.1} parent=1 // pred_check_branch
      %36 = sbr.rel (0) target = $region25
    $region24: #{tpu_custom_call.1} parent=1 // pred_region
      _
    $region25: #{tpu_custom_call.1} parent=1 // pred_fallthru
      _
    // Predicated region
    $region26: #{tpu_custom_call.1} parent=1 // pred_check
      _
    $region27: #{tpu_custom_call.1} parent=1 // pred_check_branch
      %38 = sbr.rel (0) target = $region29
    $region28: #{tpu_custom_call.1} parent=1 // pred_region
      _
    $region29: #{tpu_custom_call.1} parent=1 // pred_fallthru
      _
    // Predicated region
    $region30: #{tpu_custom_call.1} parent=1 // pred_check
      _
    $region31: #{tpu_custom_call.1} parent=1 // pred_check_branch
      %40 = sbr.rel (0) target = $region33
    $region32: #{tpu_custom_call.1} parent=1 // pred_region
      _
    $region33: #{tpu_custom_call.1} parent=1 // pred_fallthru
      _
    // Predicated region
    $region34: #{tpu_custom_call.1} parent=1 // pred_check
      _
    $region35: #{tpu_custom_call.1} parent=1 // pred_check_branch
      %42 = sbr.rel (0) target = $region37
    $region36: #{tpu_custom_call.1} parent=1 // pred_region
      _
    $region37: #{tpu_custom_call.1} parent=1 // pred_fallthru
      _
    // Predicated region
    $region38: #{tpu_custom_call.1} parent=1 // pred_check
      _
    $region39: #{tpu_custom_call.1} parent=1 // pred_check_branch
      %44 = sbr.rel (0) target = $region41
    $region40: #{tpu_custom_call.1} parent=1 // pred_region
      _
    $region41: #{tpu_custom_call.1} parent=1 // pred_fallthru
      _
    // Predicated region
    $region42: #{tpu_custom_call.1} parent=1 // pred_check
      _
    $region43: #{tpu_custom_call.1} parent=1 // pred_check_branch
      %46 = sbr.rel (0) target = $region45
    $region44: #{tpu_custom_call.1} parent=1 // pred_region
      _
    $region45: #{tpu_custom_call.1} parent=1 // pred_fallthru
      _
    // Predicated region
    $region46: #{tpu_custom_call.1} parent=1 // pred_check
      _
    $region47: #{tpu_custom_call.1} parent=1 // pred_check_branch
      %48 = sbr.rel (0) target = $region49
    $region48: #{tpu_custom_call.1} parent=1 // pred_region
      _
    $region49: #{tpu_custom_call.1} parent=1 // pred_fallthru
      _
    // Predicated region
    $region50: #{tpu_custom_call.1} parent=1 // pred_check
      _
    $region51: #{tpu_custom_call.1} parent=1 // pred_check_branch
      %50 = sbr.rel (0) target = $region53
    $region52: #{tpu_custom_call.1} parent=1 // pred_region
      _
    $region53: #{tpu_custom_call.1} parent=1 // pred_fallthru
      _
    // Predicated region
    $region54: #{tpu_custom_call.1} parent=1 // pred_check
      _
    $region55: #{tpu_custom_call.1} parent=1 // pred_check_branch
      %52 = sbr.rel (0) target = $region57
    $region56: #{tpu_custom_call.1} parent=1 // pred_region
      _
    $region57: #{tpu_custom_call.1} parent=1 // pred_fallthru
      _
    // Predicated region
    $region58: #{tpu_custom_call.1} parent=1 // pred_check
      _
    $region59: #{tpu_custom_call.1} parent=1 // pred_check_branch
      %54 = sbr.rel (0) target = $region61
    $region60: #{tpu_custom_call.1} parent=1 // pred_region
      _
    $region61: #{tpu_custom_call.1} parent=1 // pred_fallthru
      _
    %v55 = vld [vmem:[%s0] sm:$0x3f]
    %v56 = vld [vmem:[%s0 + $0x8] sm:$0x3f]
    %v57 = vld [vmem:[%s0 + $0x10] sm:$0x3f]
    %v58 = vld [vmem:[%s0 + $0x18] sm:$0x3f]
    %v59 = vmul.f32 %v55, 3.1415927
    %v60 = vmul.f32 %v56, 3.1415927
    %v61 = vmul.f32 %v57, 3.1415927
    %v62 = vmul.f32 %v58, 3.1415927
    %v63 = vmul.f32 %v55, 6.2831855
    %v64 = vmul.f32 %v56, 6.2831855
    %v65 = vmul.f32 %v57, 6.2831855
    %v66 = vmul.f32 %v58, 6.2831855
    %v67 = vmul.f32 %v55, 12.566371
    %v68 = vmul.f32 %v56, 12.566371
    %v69 = vmul.f32 %v57, 12.566371
    %v70 = vmul.f32 %v58, 12.566371
    %v71 = vmul.f32 %v55, 25.132742
    %v72 = vmul.f32 %v56, 25.132742
    %v73 = vmul.f32 %v57, 25.132742
    %v74 = vmul.f32 %v58, 25.132742
    %v79 = vrot.slane %v63, 7
    %v80 = vrot.slane %v64, 7
    %v81 = vrot.slane %v65, 7
    %v82 = vrot.slane %v66, 7
    %v91 = vrot.slane %v67, 6
    %v92 = vrot.slane %v68, 6
    %v93 = vrot.slane %v69, 6
    %v94 = vrot.slane %v70, 6
    %v103 = vrot.slane %v71, 5
    %v104 = vrot.slane %v72, 5
    %v105 = vrot.slane %v73, 5
    %v106 = vrot.slane %v74, 5
    %v115 = vrot.slane %v59, 5
    %v116 = vrot.slane %v60, 5
    %v117 = vrot.slane %v61, 5
    %v118 = vrot.slane %v62, 5
    %v123 = vrot.slane %v63, 4
    %v124 = vrot.slane %v64, 4
    %v125 = vrot.slane %v65, 4
    %v126 = vrot.slane %v66, 4
    %v131 = vrot.slane %v67, 3
    %v132 = vrot.slane %v68, 3
    %v133 = vrot.slane %v69, 3
    %v134 = vrot.slane %v70, 3
    %v139 = vrot.slane %v71, 2
    %v140 = vrot.slane %v72, 2
    %v141 = vrot.slane %v73, 2
    %v142 = vrot.slane %v74, 2
    %v147 = vrot.slane %v59, 2
    %v148 = vrot.slane %v60, 2
    %v149 = vrot.slane %v61, 2
    %v150 = vrot.slane %v62, 2
    %v155 = vrot.slane %v63, 1
    %v156 = vrot.slane %v64, 1
    %v157 = vrot.slane %v65, 1
    %v158 = vrot.slane %v66, 1
    %v163 = vrot.slane %v71, 7
    %v164 = vrot.slane %v72, 7
    %v165 = vrot.slane %v73, 7
    %v166 = vrot.slane %v74, 7
    %vm171 = vcmask 1040384
    %v172 = vsel %vm171, %v59, %v79
    %v173 = vsel %vm171, %v60, %v80
    %v174 = vsel %vm171, %v61, %v81
    %v175 = vsel %vm171, %v62, %v82
    %vm176 = vcmask 1041408
    %v177 = vsel %vm176, %v172, %v91
    %v178 = vsel %vm176, %v173, %v92
    %v179 = vsel %vm176, %v174, %v93
    %v180 = vsel %vm176, %v175, %v94
    %vm181 = vcmask 1042432
    %v182 = vsel %vm181, %v177, %v103
    %v183 = vsel %vm181, %v178, %v104
    %v184 = vsel %vm181, %v179, %v105
    %v185 = vsel %vm181, %v180, %v106
    %vm186 = vcmask 1043456
    %v187 = vsel %vm186, %v182, %v115
    %v188 = vsel %vm186, %v183, %v116
    %v189 = vsel %vm186, %v184, %v117
    %v190 = vsel %vm186, %v185, %v118
    %vm191 = vcmask 1044480
    %v192 = vsel %vm191, %v187, %v123
    %v193 = vsel %vm191, %v188, %v124
    %v194 = vsel %vm191, %v189, %v125
    %v195 = vsel %vm191, %v190, %v126
    %vm196 = vcmask 1045504
    %v197 = vsel %vm196, %v192, %v131
    %v198 = vsel %vm196, %v193, %v132
    %v199 = vsel %vm196, %v194, %v133
    %v200 = vsel %vm196, %v195, %v134
    %vm201 = vcmask 1046528
    %v202 = vsel %vm201, %v197, %v139
    %v203 = vsel %vm201, %v198, %v140
    %v204 = vsel %vm201, %v199, %v141
    %v205 = vsel %vm201, %v200, %v142
    %v206 = vsel %vm171, %v147, %v155
    %v207 = vsel %vm171, %v148, %v156
    %v208 = vsel %vm171, %v149, %v157
    %v209 = vsel %vm171, %v150, %v158
    %v210 = vsel %vm176, %v206, %v67
    %v211 = vsel %vm176, %v207, %v68
    %v212 = vsel %vm176, %v208, %v69
    %v213 = vsel %vm176, %v209, %v70
    %v214 = vsel %vm181, %v210, %v163
    %v215 = vsel %vm181, %v211, %v164
    %v216 = vsel %vm181, %v212, %v165
    %v217 = vsel %vm181, %v213, %v166
    %v218 = vand.u32 2147483647, %v202
    %vm219 = vcmp.le.f32.partialorder %v218, 0.7853982
    %vm220 = vcmp.lt.s32.totalorder %v202, 0
    %v221 = vand.u32 %v202, 2139095040
    %v222 = vshrl.u32 %v221, 23
    %v223 = vsub.s32 %v222, 127
    %v224 = vand.u32 2147483647, %v202
    %v225 = vand.u32 %v224, 8388607
    %v226 = vor.u32 %v225, 8388608
    %v227 = vsub.s32 0, %v226
    %v228 = vadd.s32 %v223, 1
    %vm229 = vcmp.gt.s32.totalorder %v228, 0
    %v230 = vsel %vm229, %v228, 0
    %v231 = vshrl.u32 %v230, 5
    %v232 = vand.u32 %v230, 31
    %v233 = vsub.s32 32, %v232
    %v234 = vshrl.u32 683565275, %v233
    %v235 = vshll.u32 683565275, %v232
    %v236 = vshrl.u32 2475754826, %v233
    %v237 = vor.u32 %v235, %v236
    %v238 = vshll.u32 2475754826, %v232
    %v239 = vshrl.u32 2131351028, %v233
    %v240 = vor.u32 %v238, %v239
    %v241 = vshll.u32 2131351028, %v232
    %v242 = vshrl.u32 2102212464, %v233
    %v243 = vor.u32 %v241, %v242
    %v244 = vshll.u32 2102212464, %v232
    %v245 = vshrl.u32 920167782, %v233
    %v246 = vor.u32 %v244, %v245
    %v247 = vshll.u32 920167782, %v232
    %v248 = vshrl.u32 1326507024, %v233
    %v249 = vor.u32 %v247, %v248
    %vm250 = vcmp.lt.s32.totalorder %v231, 1
    %vm251 = vcmp.lt.s32.totalorder %v231, 2
    %vm252 = vcmp.lt.s32.totalorder %v231, 3
    %vm253 = vcmp.lt.s32.totalorder %v231, 4
    %v254 = vsel %vm250, %v234, %v237
    %v255 = vsel %vm253, %v243, 2102212464
    %v256 = vsel %vm252, %v240, %v255
    %v257 = vsel %vm251, %v254, %v256
    %v258 = vsel %vm250, %v237, %v240
    %v259 = vsel %vm253, %v246, 920167782
    %v260 = vsel %vm252, %v243, %v259
    %v261 = vsel %vm251, %v258, %v260
    %v262 = vsel %vm250, %v240, %v243
    %v263 = vsel %vm253, %v249, 1326507024
    %v264 = vsel %vm252, %v246, %v263
    %v265 = vsel %vm251, %v262, %v264
    %v266 = vshll.u32 %v226, 8
    %v267 = vmul.u32.u64.compose %v266, %v265
    %v268 = vextract.low.u32 %v267
    %v269 = vextract.high.u32 %v267
    %v270 = vmul.u32.u64.compose %v266, %v261
    %v271 = vextract.low.u32 %v270
    %v272 = vextract.high.u32 %v270
    %v273 = vmul.u32 %v266, %v257
    %v274 = vadd.s32 %v269, %v271
    %vm275 = vc.u32 %v269, %v271
    %v276 = vadd.s32 %v272, 1
    %v277 = vsel %vm275, %v276, %v272
    %v278 = vadd.s32 %v273, %v277
    %v279 = vadd.s32 %v278, 536870912
    %v280 = vshrl.u32 %v279, 30
    %v281 = vshll.u32 %v280, 30
    %v282 = vsub.s32 %v278, %v281
    %vm283 = vcmp.lt.s32.totalorder %v282, 0
    %v284 = vsub.s32 0, %v282
    %v285 = vsel %vm283, %v284, %v282
    %v286 = vclz %v285
    %v287 = vsub.s32 %v286, 2
    %vm288 = vcmp.gt.s32.totalorder 0, %v287
    %v289 = vsel %vm288, 0, %v287
    %v290 = vsub.s32 32, %v289
    %v291 = vshll.u32 %v282, %v289
    %v292 = vshrl.u32 %v274, %v290
    %v293 = vor.u32 %v291, %v292
    %v294 = vsub.s32 4294967266, %v289
    %v295 = vadd.s32 %v294, 127
    %v296 = vshll.u32 %v295, 23
    %v297 = vor.u32 4788187, %v296
    %v298 = vand.u32 2147483647, %v297
    %v300 = vcvt.s32.f32 %v293
    %v301 = vmul.f32 %v300, %v298
    %v302 = vxor.u32 %v301, 2147483648
    %v303 = vsel %vm220, %v302, %v301
    %v304 = vsub.s32 4, %v280
    %v305 = vsel %vm220, %v304, %v280
    %v306 = vsel %vm219, %v202, %v303
    %v307 = vsel %vm219, 0, %v305
    %v308 = vcosq.f32.pop %v306
    %v309 = vsinq.f32.pop %v306
    %vm310 = vweird.f32 %v202
    %v311 = vadd.s32 %v307, 3
    %v312 = vand.u32 %v311, 3
    %vm313 = vcmp.lt.s32.totalorder %v312, 2
    %vm314 = vcmp.eq.s32.totalorder %v312, 0
    %v315 = vxor.u32 %v309, 2147483648
    %v316 = vsel %vm314, %v308, %v315
    %vm317 = vcmp.eq.s32.totalorder %v312, 2
    %v318 = vxor.u32 %v308, 2147483648
    %v319 = vsel %vm317, %v318, %v309
    %v320 = vsel %vm313, %v316, %v319
    %v321 = vsel %vm310, nan, %v320
    %v322 = vand.u32 2147483647, %v203
    %vm323 = vcmp.le.f32.partialorder %v322, 0.7853982
    %vm324 = vcmp.lt.s32.totalorder %v203, 0
    %v325 = vand.u32 %v203, 2139095040
    %v326 = vshrl.u32 %v325, 23
    %v327 = vsub.s32 %v326, 127
    %v328 = vand.u32 2147483647, %v203
    %v329 = vand.u32 %v328, 8388607
    %v330 = vor.u32 %v329, 8388608
    %v331 = vsub.s32 0, %v330
    %v332 = vadd.s32 %v327, 1
    %vm333 = vcmp.gt.s32.totalorder %v332, 0
    %v334 = vsel %vm333, %v332, 0
    %v335 = vshrl.u32 %v334, 5
    %v336 = vand.u32 %v334, 31
    %v337 = vsub.s32 32, %v336
    %v338 = vshrl.u32 683565275, %v337
    %v339 = vshll.u32 683565275, %v336
    %v340 = vshrl.u32 2475754826, %v337
    %v341 = vor.u32 %v339, %v340
    %v342 = vshll.u32 2475754826, %v336
    %v343 = vshrl.u32 2131351028, %v337
    %v344 = vor.u32 %v342, %v343
    %v345 = vshll.u32 2131351028, %v336
    %v346 = vshrl.u32 2102212464, %v337
    %v347 = vor.u32 %v345, %v346
    %v348 = vshll.u32 2102212464, %v336
    %v349 = vshrl.u32 920167782, %v337
    %v350 = vor.u32 %v348, %v349
    %v351 = vshll.u32 920167782, %v336
    %v352 = vshrl.u32 1326507024, %v337
    %v353 = vor.u32 %v351, %v352
    %vm354 = vcmp.lt.s32.totalorder %v335, 1
    %vm355 = vcmp.lt.s32.totalorder %v335, 2
    %vm356 = vcmp.lt.s32.totalorder %v335, 3
    %vm357 = vcmp.lt.s32.totalorder %v335, 4
    %v358 = vsel %vm354, %v338, %v341
    %v359 = vsel %vm357, %v347, 2102212464
    %v360 = vsel %vm356, %v344, %v359
    %v361 = vsel %vm355, %v358, %v360
    %v362 = vsel %vm354, %v341, %v344
    %v363 = vsel %vm357, %v350, 920167782
    %v364 = vsel %vm356, %v347, %v363
    %v365 = vsel %vm355, %v362, %v364
    %v366 = vsel %vm354, %v344, %v347
    %v367 = vsel %vm357, %v353, 1326507024
    %v368 = vsel %vm356, %v350, %v367
    %v369 = vsel %vm355, %v366, %v368
    %v370 = vshll.u32 %v330, 8
    %v371 = vmul.u32.u64.compose %v370, %v369
    %v372 = vextract.low.u32 %v371
    %v373 = vextract.high.u32 %v371
    %v374 = vmul.u32.u64.compose %v370, %v365
    %v375 = vextract.low.u32 %v374
    %v376 = vextract.high.u32 %v374
    %v377 = vmul.u32 %v370, %v361
    %v378 = vadd.s32 %v373, %v375
    %vm379 = vc.u32 %v373, %v375
    %v380 = vadd.s32 %v376, 1
    %v381 = vsel %vm379, %v380, %v376
    %v382 = vadd.s32 %v377, %v381
    %v383 = vadd.s32 %v382, 536870912
    %v384 = vshrl.u32 %v383, 30
    %v385 = vshll.u32 %v384, 30
    %v386 = vsub.s32 %v382, %v385
    %vm387 = vcmp.lt.s32.totalorder %v386, 0
    %v388 = vsub.s32 0, %v386
    %v389 = vsel %vm387, %v388, %v386
    %v390 = vclz %v389
    %v391 = vsub.s32 %v390, 2
    %vm392 = vcmp.gt.s32.totalorder 0, %v391
    %v393 = vsel %vm392, 0, %v391
    %v394 = vsub.s32 32, %v393
    %v395 = vshll.u32 %v386, %v393
    %v396 = vshrl.u32 %v378, %v394
    %v397 = vor.u32 %v395, %v396
    %v398 = vsub.s32 4294967266, %v393
    %v399 = vadd.s32 %v398, 127
    %v400 = vshll.u32 %v399, 23
    %v401 = vor.u32 4788187, %v400
    %v402 = vand.u32 2147483647, %v401
    %v404 = vcvt.s32.f32 %v397
    %v405 = vmul.f32 %v404, %v402
    %v406 = vxor.u32 %v405, 2147483648
    %v407 = vsel %vm324, %v406, %v405
    %v408 = vsub.s32 4, %v384
    %v409 = vsel %vm324, %v408, %v384
    %v410 = vsel %vm323, %v203, %v407
    %v411 = vsel %vm323, 0, %v409
    %v412 = vcosq.f32.pop %v410
    %v413 = vsinq.f32.pop %v410
    %vm414 = vweird.f32 %v203
    %v415 = vadd.s32 %v411, 3
    %v416 = vand.u32 %v415, 3
    %vm417 = vcmp.lt.s32.totalorder %v416, 2
    %vm418 = vcmp.eq.s32.totalorder %v416, 0
    %v419 = vxor.u32 %v413, 2147483648
    %v420 = vsel %vm418, %v412, %v419
    %vm421 = vcmp.eq.s32.totalorder %v416, 2
    %v422 = vxor.u32 %v412, 2147483648
    %v423 = vsel %vm421, %v422, %v413
    %v424 = vsel %vm417, %v420, %v423
    %v425 = vsel %vm414, nan, %v424
    %v426 = vand.u32 2147483647, %v204
    %vm427 = vcmp.le.f32.partialorder %v426, 0.7853982
    %vm428 = vcmp.lt.s32.totalorder %v204, 0
    %v429 = vand.u32 %v204, 2139095040
    %v430 = vshrl.u32 %v429, 23
    %v431 = vsub.s32 %v430, 127
    %v432 = vand.u32 2147483647, %v204
    %v433 = vand.u32 %v432, 8388607
    %v434 = vor.u32 %v433, 8388608
    %v435 = vsub.s32 0, %v434
    %v436 = vadd.s32 %v431, 1
    %vm437 = vcmp.gt.s32.totalorder %v436, 0
    %v438 = vsel %vm437, %v436, 0
    %v439 = vshrl.u32 %v438, 5
    %v440 = vand.u32 %v438, 31
    %v441 = vsub.s32 32, %v440
    %v442 = vshrl.u32 683565275, %v441
    %v443 = vshll.u32 683565275, %v440
    %v444 = vshrl.u32 2475754826, %v441
    %v445 = vor.u32 %v443, %v444
    %v446 = vshll.u32 2475754826, %v440
    %v447 = vshrl.u32 2131351028, %v441
    %v448 = vor.u32 %v446, %v447
    %v449 = vshll.u32 2131351028, %v440
    %v450 = vshrl.u32 2102212464, %v441
    %v451 = vor.u32 %v449, %v450
    %v452 = vshll.u32 2102212464, %v440
    %v453 = vshrl.u32 920167782, %v441
    %v454 = vor.u32 %v452, %v453
    %v455 = vshll.u32 920167782, %v440
    %v456 = vshrl.u32 1326507024, %v441
    %v457 = vor.u32 %v455, %v456
    %vm458 = vcmp.lt.s32.totalorder %v439, 1
    %vm459 = vcmp.lt.s32.totalorder %v439, 2
    %vm460 = vcmp.lt.s32.totalorder %v439, 3
    %vm461 = vcmp.lt.s32.totalorder %v439, 4
    %v462 = vsel %vm458, %v442, %v445
    %v463 = vsel %vm461, %v451, 2102212464
    %v464 = vsel %vm460, %v448, %v463
    %v465 = vsel %vm459, %v462, %v464
    %v466 = vsel %vm458, %v445, %v448
    %v467 = vsel %vm461, %v454, 920167782
    %v468 = vsel %vm460, %v451, %v467
    %v469 = vsel %vm459, %v466, %v468
    %v470 = vsel %vm458, %v448, %v451
    %v471 = vsel %vm461, %v457, 1326507024
    %v472 = vsel %vm460, %v454, %v471
    %v473 = vsel %vm459, %v470, %v472
    %v474 = vshll.u32 %v434, 8
    %v475 = vmul.u32.u64.compose %v474, %v473
    %v476 = vextract.low.u32 %v475
    %v477 = vextract.high.u32 %v475
    %v478 = vmul.u32.u64.compose %v474, %v469
    %v479 = vextract.low.u32 %v478
    %v480 = vextract.high.u32 %v478
    %v481 = vmul.u32 %v474, %v465
    %v482 = vadd.s32 %v477, %v479
    %vm483 = vc.u32 %v477, %v479
    %v484 = vadd.s32 %v480, 1
    %v485 = vsel %vm483, %v484, %v480
    %v486 = vadd.s32 %v481, %v485
    %v487 = vadd.s32 %v486, 536870912
    %v488 = vshrl.u32 %v487, 30
    %v489 = vshll.u32 %v488, 30
    %v490 = vsub.s32 %v486, %v489
    %vm491 = vcmp.lt.s32.totalorder %v490, 0
    %v492 = vsub.s32 0, %v490
    %v493 = vsel %vm491, %v492, %v490
    %v494 = vclz %v493
    %v495 = vsub.s32 %v494, 2
    %vm496 = vcmp.gt.s32.totalorder 0, %v495
    %v497 = vsel %vm496, 0, %v495
    %v498 = vsub.s32 32, %v497
    %v499 = vshll.u32 %v490, %v497
    %v500 = vshrl.u32 %v482, %v498
    %v501 = vor.u32 %v499, %v500
    %v502 = vsub.s32 4294967266, %v497
    %v503 = vadd.s32 %v502, 127
    %v504 = vshll.u32 %v503, 23
    %v505 = vor.u32 4788187, %v504
    %v506 = vand.u32 2147483647, %v505
    %v508 = vcvt.s32.f32 %v501
    %v509 = vmul.f32 %v508, %v506
    %v510 = vxor.u32 %v509, 2147483648
    %v511 = vsel %vm428, %v510, %v509
    %v512 = vsub.s32 4, %v488
    %v513 = vsel %vm428, %v512, %v488
    %v514 = vsel %vm427, %v204, %v511
    %v515 = vsel %vm427, 0, %v513
    %v516 = vcosq.f32.pop %v514
    %v517 = vsinq.f32.pop %v514
    %vm518 = vweird.f32 %v204
    %v519 = vadd.s32 %v515, 3
    %v520 = vand.u32 %v519, 3
    %vm521 = vcmp.lt.s32.totalorder %v520, 2
    %vm522 = vcmp.eq.s32.totalorder %v520, 0
    %v523 = vxor.u32 %v517, 2147483648
    %v524 = vsel %vm522, %v516, %v523
    %vm525 = vcmp.eq.s32.totalorder %v520, 2
    %v526 = vxor.u32 %v516, 2147483648
    %v527 = vsel %vm525, %v526, %v517
    %v528 = vsel %vm521, %v524, %v527
    %v529 = vsel %vm518, nan, %v528
    %v530 = vand.u32 2147483647, %v205
    %vm531 = vcmp.le.f32.partialorder %v530, 0.7853982
    %vm532 = vcmp.lt.s32.totalorder %v205, 0
    %v533 = vand.u32 %v205, 2139095040
    %v534 = vshrl.u32 %v533, 23
    %v535 = vsub.s32 %v534, 127
    %v536 = vand.u32 2147483647, %v205
    %v537 = vand.u32 %v536, 8388607
    %v538 = vor.u32 %v537, 8388608
    %v539 = vsub.s32 0, %v538
    %v540 = vadd.s32 %v535, 1
    %vm541 = vcmp.gt.s32.totalorder %v540, 0
    %v542 = vsel %vm541, %v540, 0
    %v543 = vshrl.u32 %v542, 5
    %v544 = vand.u32 %v542, 31
    %v545 = vsub.s32 32, %v544
    %v546 = vshrl.u32 683565275, %v545
    %v547 = vshll.u32 683565275, %v544
    %v548 = vshrl.u32 2475754826, %v545
    %v549 = vor.u32 %v547, %v548
    %v550 = vshll.u32 2475754826, %v544
    %v551 = vshrl.u32 2131351028, %v545
    %v552 = vor.u32 %v550, %v551
    %v553 = vshll.u32 2131351028, %v544
    %v554 = vshrl.u32 2102212464, %v545
    %v555 = vor.u32 %v553, %v554
    %v556 = vshll.u32 2102212464, %v544
    %v557 = vshrl.u32 920167782, %v545
    %v558 = vor.u32 %v556, %v557
    %v559 = vshll.u32 920167782, %v544
    %v560 = vshrl.u32 1326507024, %v545
    %v561 = vor.u32 %v559, %v560
    %vm562 = vcmp.lt.s32.totalorder %v543, 1
    %vm563 = vcmp.lt.s32.totalorder %v543, 2
    %vm564 = vcmp.lt.s32.totalorder %v543, 3
    %vm565 = vcmp.lt.s32.totalorder %v543, 4
    %v566 = vsel %vm562, %v546, %v549
    %v567 = vsel %vm565, %v555, 2102212464
    %v568 = vsel %vm564, %v552, %v567
    %v569 = vsel %vm563, %v566, %v568
    %v570 = vsel %vm562, %v549, %v552
    %v571 = vsel %vm565, %v558, 920167782
    %v572 = vsel %vm564, %v555, %v571
    %v573 = vsel %vm563, %v570, %v572
    %v574 = vsel %vm562, %v552, %v555
    %v575 = vsel %vm565, %v561, 1326507024
    %v576 = vsel %vm564, %v558, %v575
    %v577 = vsel %vm563, %v574, %v576
    %v578 = vshll.u32 %v538, 8
    %v579 = vmul.u32.u64.compose %v578, %v577
    %v580 = vextract.low.u32 %v579
    %v581 = vextract.high.u32 %v579
    %v582 = vmul.u32.u64.compose %v578, %v573
    %v583 = vextract.low.u32 %v582
    %v584 = vextract.high.u32 %v582
    %v585 = vmul.u32 %v578, %v569
    %v586 = vadd.s32 %v581, %v583
    %vm587 = vc.u32 %v581, %v583
    %v588 = vadd.s32 %v584, 1
    %v589 = vsel %vm587, %v588, %v584
    %v590 = vadd.s32 %v585, %v589
    %v591 = vadd.s32 %v590, 536870912
    %v592 = vshrl.u32 %v591, 30
    %v593 = vshll.u32 %v592, 30
    %v594 = vsub.s32 %v590, %v593
    %vm595 = vcmp.lt.s32.totalorder %v594, 0
    %v596 = vsub.s32 0, %v594
    %v597 = vsel %vm595, %v596, %v594
    %v598 = vclz %v597
    %v599 = vsub.s32 %v598, 2
    %vm600 = vcmp.gt.s32.totalorder 0, %v599
    %v601 = vsel %vm600, 0, %v599
    %v602 = vsub.s32 32, %v601
    %v603 = vshll.u32 %v594, %v601
    %v604 = vshrl.u32 %v586, %v602
    %v605 = vor.u32 %v603, %v604
    %v606 = vsub.s32 4294967266, %v601
    %v607 = vadd.s32 %v606, 127
    %v608 = vshll.u32 %v607, 23
    %v609 = vor.u32 4788187, %v608
    %v610 = vand.u32 2147483647, %v609
    %v612 = vcvt.s32.f32 %v605
    %v613 = vmul.f32 %v612, %v610
    %v614 = vxor.u32 %v613, 2147483648
    %v615 = vsel %vm532, %v614, %v613
    %v616 = vsub.s32 4, %v592
    %v617 = vsel %vm532, %v616, %v592
    %v618 = vsel %vm531, %v205, %v615
    %v619 = vsel %vm531, 0, %v617
    %v620 = vcosq.f32.pop %v618
    %v621 = vsinq.f32.pop %v618
    %vm622 = vweird.f32 %v205
    %v623 = vadd.s32 %v619, 3
    %v624 = vand.u32 %v623, 3
    %vm625 = vcmp.lt.s32.totalorder %v624, 2
    %vm626 = vcmp.eq.s32.totalorder %v624, 0
    %v627 = vxor.u32 %v621, 2147483648
    %v628 = vsel %vm626, %v620, %v627
    %vm629 = vcmp.eq.s32.totalorder %v624, 2
    %v630 = vxor.u32 %v620, 2147483648
    %v631 = vsel %vm629, %v630, %v621
    %v632 = vsel %vm625, %v628, %v631
    %v633 = vsel %vm622, nan, %v632
    %v634 = vand.u32 2147483647, %v214
    %vm635 = vcmp.le.f32.partialorder %v634, 0.7853982
    %vm636 = vcmp.lt.s32.totalorder %v214, 0
    %v637 = vand.u32 %v214, 2139095040
    %v638 = vshrl.u32 %v637, 23
    %v639 = vsub.s32 %v638, 127
    %v640 = vand.u32 2147483647, %v214
    %v641 = vand.u32 %v640, 8388607
    %v642 = vor.u32 %v641, 8388608
    %v643 = vsub.s32 0, %v642
    %v644 = vadd.s32 %v639, 1
    %vm645 = vcmp.gt.s32.totalorder %v644, 0
    %v646 = vsel %vm645, %v644, 0
    %v647 = vshrl.u32 %v646, 5
    %v648 = vand.u32 %v646, 31
    %v649 = vsub.s32 32, %v648
    %v650 = vshrl.u32 683565275, %v649
    %v651 = vshll.u32 683565275, %v648
    %v652 = vshrl.u32 2475754826, %v649
    %v653 = vor.u32 %v651, %v652
    %v654 = vshll.u32 2475754826, %v648
    %v655 = vshrl.u32 2131351028, %v649
    %v656 = vor.u32 %v654, %v655
    %v657 = vshll.u32 2131351028, %v648
    %v658 = vshrl.u32 2102212464, %v649
    %v659 = vor.u32 %v657, %v658
    %v660 = vshll.u32 2102212464, %v648
    %v661 = vshrl.u32 920167782, %v649
    %v662 = vor.u32 %v660, %v661
    %v663 = vshll.u32 920167782, %v648
    %v664 = vshrl.u32 1326507024, %v649
    %v665 = vor.u32 %v663, %v664
    %vm666 = vcmp.lt.s32.totalorder %v647, 1
    %vm667 = vcmp.lt.s32.totalorder %v647, 2
    %vm668 = vcmp.lt.s32.totalorder %v647, 3
    %vm669 = vcmp.lt.s32.totalorder %v647, 4
    %v670 = vsel %vm666, %v650, %v653
    %v671 = vsel %vm669, %v659, 2102212464
    %v672 = vsel %vm668, %v656, %v671
    %v673 = vsel %vm667, %v670, %v672
    %v674 = vsel %vm666, %v653, %v656
    %v675 = vsel %vm669, %v662, 920167782
    %v676 = vsel %vm668, %v659, %v675
    %v677 = vsel %vm667, %v674, %v676
    %v678 = vsel %vm666, %v656, %v659
    %v679 = vsel %vm669, %v665, 1326507024
    %v680 = vsel %vm668, %v662, %v679
    %v681 = vsel %vm667, %v678, %v680
    %v682 = vshll.u32 %v642, 8
    %v683 = vmul.u32.u64.compose %v682, %v681
    %v684 = vextract.low.u32 %v683
    %v685 = vextract.high.u32 %v683
    %v686 = vmul.u32.u64.compose %v682, %v677
    %v687 = vextract.low.u32 %v686
    %v688 = vextract.high.u32 %v686
    %v689 = vmul.u32 %v682, %v673
    %v690 = vadd.s32 %v685, %v687
    %vm691 = vc.u32 %v685, %v687
    %v692 = vadd.s32 %v688, 1
    %v693 = vsel %vm691, %v692, %v688
    %v694 = vadd.s32 %v689, %v693
    %v695 = vadd.s32 %v694, 536870912
    %v696 = vshrl.u32 %v695, 30
    %v697 = vshll.u32 %v696, 30
    %v698 = vsub.s32 %v694, %v697
    %vm699 = vcmp.lt.s32.totalorder %v698, 0
    %v700 = vsub.s32 0, %v698
    %v701 = vsel %vm699, %v700, %v698
    %v702 = vclz %v701
    %v703 = vsub.s32 %v702, 2
    %vm704 = vcmp.gt.s32.totalorder 0, %v703
    %v705 = vsel %vm704, 0, %v703
    %v706 = vsub.s32 32, %v705
    %v707 = vshll.u32 %v698, %v705
    %v708 = vshrl.u32 %v690, %v706
    %v709 = vor.u32 %v707, %v708
    %v710 = vsub.s32 4294967266, %v705
    %v711 = vadd.s32 %v710, 127
    %v712 = vshll.u32 %v711, 23
    %v713 = vor.u32 4788187, %v712
    %v714 = vand.u32 2147483647, %v713
    %v716 = vcvt.s32.f32 %v709
    %v717 = vmul.f32 %v716, %v714
    %v718 = vxor.u32 %v717, 2147483648
    %v719 = vsel %vm636, %v718, %v717
    %v720 = vsub.s32 4, %v696
    %v721 = vsel %vm636, %v720, %v696
    %v722 = vsel %vm635, %v214, %v719
    %v723 = vsel %vm635, 0, %v721
    %v724 = vcosq.f32.pop %v722
    %v725 = vsinq.f32.pop %v722
    %vm726 = vweird.f32 %v214
    %v727 = vadd.s32 %v723, 3
    %v728 = vand.u32 %v727, 3
    %vm729 = vcmp.lt.s32.totalorder %v728, 2
    %vm730 = vcmp.eq.s32.totalorder %v728, 0
    %v731 = vxor.u32 %v725, 2147483648
    %v732 = vsel %vm730, %v724, %v731
    %vm733 = vcmp.eq.s32.totalorder %v728, 2
    %v734 = vxor.u32 %v724, 2147483648
    %v735 = vsel %vm733, %v734, %v725
    %v736 = vsel %vm729, %v732, %v735
    %v737 = vsel %vm726, nan, %v736
    %v738 = vand.u32 2147483647, %v215
    %vm739 = vcmp.le.f32.partialorder %v738, 0.7853982
    %vm740 = vcmp.lt.s32.totalorder %v215, 0
    %v741 = vand.u32 %v215, 2139095040
    %v742 = vshrl.u32 %v741, 23
    %v743 = vsub.s32 %v742, 127
    %v744 = vand.u32 2147483647, %v215
    %v745 = vand.u32 %v744, 8388607
    %v746 = vor.u32 %v745, 8388608
    %v747 = vsub.s32 0, %v746
    %v748 = vadd.s32 %v743, 1
    %vm749 = vcmp.gt.s32.totalorder %v748, 0
    %v750 = vsel %vm749, %v748, 0
    %v751 = vshrl.u32 %v750, 5
    %v752 = vand.u32 %v750, 31
    %v753 = vsub.s32 32, %v752
    %v754 = vshrl.u32 683565275, %v753
    %v755 = vshll.u32 683565275, %v752
    %v756 = vshrl.u32 2475754826, %v753
    %v757 = vor.u32 %v755, %v756
    %v758 = vshll.u32 2475754826, %v752
    %v759 = vshrl.u32 2131351028, %v753
    %v760 = vor.u32 %v758, %v759
    %v761 = vshll.u32 2131351028, %v752
    %v762 = vshrl.u32 2102212464, %v753
    %v763 = vor.u32 %v761, %v762
    %v764 = vshll.u32 2102212464, %v752
    %v765 = vshrl.u32 920167782, %v753
    %v766 = vor.u32 %v764, %v765
    %v767 = vshll.u32 920167782, %v752
    %v768 = vshrl.u32 1326507024, %v753
    %v769 = vor.u32 %v767, %v768
    %vm770 = vcmp.lt.s32.totalorder %v751, 1
    %vm771 = vcmp.lt.s32.totalorder %v751, 2
    %vm772 = vcmp.lt.s32.totalorder %v751, 3
    %vm773 = vcmp.lt.s32.totalorder %v751, 4
    %v774 = vsel %vm770, %v754, %v757
    %v775 = vsel %vm773, %v763, 2102212464
    %v776 = vsel %vm772, %v760, %v775
    %v777 = vsel %vm771, %v774, %v776
    %v778 = vsel %vm770, %v757, %v760
    %v779 = vsel %vm773, %v766, 920167782
    %v780 = vsel %vm772, %v763, %v779
    %v781 = vsel %vm771, %v778, %v780
    %v782 = vsel %vm770, %v760, %v763
    %v783 = vsel %vm773, %v769, 1326507024
    %v784 = vsel %vm772, %v766, %v783
    %v785 = vsel %vm771, %v782, %v784
    %v786 = vshll.u32 %v746, 8
    %v787 = vmul.u32.u64.compose %v786, %v785
    %v788 = vextract.low.u32 %v787
    %v789 = vextract.high.u32 %v787
    %v790 = vmul.u32.u64.compose %v786, %v781
    %v791 = vextract.low.u32 %v790
    %v792 = vextract.high.u32 %v790
    %v793 = vmul.u32 %v786, %v777
    %v794 = vadd.s32 %v789, %v791
    %vm795 = vc.u32 %v789, %v791
    %v796 = vadd.s32 %v792, 1
    %v797 = vsel %vm795, %v796, %v792
    %v798 = vadd.s32 %v793, %v797
    %v799 = vadd.s32 %v798, 536870912
    %v800 = vshrl.u32 %v799, 30
    %v801 = vshll.u32 %v800, 30
    %v802 = vsub.s32 %v798, %v801
    %vm803 = vcmp.lt.s32.totalorder %v802, 0
    %v804 = vsub.s32 0, %v802
    %v805 = vsel %vm803, %v804, %v802
    %v806 = vclz %v805
    %v807 = vsub.s32 %v806, 2
    %vm808 = vcmp.gt.s32.totalorder 0, %v807
    %v809 = vsel %vm808, 0, %v807
    %v810 = vsub.s32 32, %v809
    %v811 = vshll.u32 %v802, %v809
    %v812 = vshrl.u32 %v794, %v810
    %v813 = vor.u32 %v811, %v812
    %v814 = vsub.s32 4294967266, %v809
    %v815 = vadd.s32 %v814, 127
    %v816 = vshll.u32 %v815, 23
    %v817 = vor.u32 4788187, %v816
    %v818 = vand.u32 2147483647, %v817
    %v820 = vcvt.s32.f32 %v813
    %v821 = vmul.f32 %v820, %v818
    %v822 = vxor.u32 %v821, 2147483648
    %v823 = vsel %vm740, %v822, %v821
    %v824 = vsub.s32 4, %v800
    %v825 = vsel %vm740, %v824, %v800
    %v826 = vsel %vm739, %v215, %v823
    %v827 = vsel %vm739, 0, %v825
    %v828 = vcosq.f32.pop %v826
    %v829 = vsinq.f32.pop %v826
    %vm830 = vweird.f32 %v215
    %v831 = vadd.s32 %v827, 3
    %v832 = vand.u32 %v831, 3
    %vm833 = vcmp.lt.s32.totalorder %v832, 2
    %vm834 = vcmp.eq.s32.totalorder %v832, 0
    %v835 = vxor.u32 %v829, 2147483648
    %v836 = vsel %vm834, %v828, %v835
    %vm837 = vcmp.eq.s32.totalorder %v832, 2
    %v838 = vxor.u32 %v828, 2147483648
    %v839 = vsel %vm837, %v838, %v829
    %v840 = vsel %vm833, %v836, %v839
    %v841 = vsel %vm830, nan, %v840
    %v842 = vand.u32 2147483647, %v216
    %vm843 = vcmp.le.f32.partialorder %v842, 0.7853982
    %vm844 = vcmp.lt.s32.totalorder %v216, 0
    %v845 = vand.u32 %v216, 2139095040
    %v846 = vshrl.u32 %v845, 23
    %v847 = vsub.s32 %v846, 127
    %v848 = vand.u32 2147483647, %v216
    %v849 = vand.u32 %v848, 8388607
    %v850 = vor.u32 %v849, 8388608
    %v851 = vsub.s32 0, %v850
    %v852 = vadd.s32 %v847, 1
    %vm853 = vcmp.gt.s32.totalorder %v852, 0
    %v854 = vsel %vm853, %v852, 0
    %v855 = vshrl.u32 %v854, 5
    %v856 = vand.u32 %v854, 31
    %v857 = vsub.s32 32, %v856
    %v858 = vshrl.u32 683565275, %v857
    %v859 = vshll.u32 683565275, %v856
    %v860 = vshrl.u32 2475754826, %v857
    %v861 = vor.u32 %v859, %v860
    %v862 = vshll.u32 2475754826, %v856
    %v863 = vshrl.u32 2131351028, %v857
    %v864 = vor.u32 %v862, %v863
    %v865 = vshll.u32 2131351028, %v856
    %v866 = vshrl.u32 2102212464, %v857
    %v867 = vor.u32 %v865, %v866
    %v868 = vshll.u32 2102212464, %v856
    %v869 = vshrl.u32 920167782, %v857
    %v870 = vor.u32 %v868, %v869
    %v871 = vshll.u32 920167782, %v856
    %v872 = vshrl.u32 1326507024, %v857
    %v873 = vor.u32 %v871, %v872
    %vm874 = vcmp.lt.s32.totalorder %v855, 1
    %vm875 = vcmp.lt.s32.totalorder %v855, 2
    %vm876 = vcmp.lt.s32.totalorder %v855, 3
    %vm877 = vcmp.lt.s32.totalorder %v855, 4
    %v878 = vsel %vm874, %v858, %v861
    %v879 = vsel %vm877, %v867, 2102212464
    %v880 = vsel %vm876, %v864, %v879
    %v881 = vsel %vm875, %v878, %v880
    %v882 = vsel %vm874, %v861, %v864
    %v883 = vsel %vm877, %v870, 920167782
    %v884 = vsel %vm876, %v867, %v883
    %v885 = vsel %vm875, %v882, %v884
    %v886 = vsel %vm874, %v864, %v867
    %v887 = vsel %vm877, %v873, 1326507024
    %v888 = vsel %vm876, %v870, %v887
    %v889 = vsel %vm875, %v886, %v888
    %v890 = vshll.u32 %v850, 8
    %v891 = vmul.u32.u64.compose %v890, %v889
    %v892 = vextract.low.u32 %v891
    %v893 = vextract.high.u32 %v891
    %v894 = vmul.u32.u64.compose %v890, %v885
    %v895 = vextract.low.u32 %v894
    %v896 = vextract.high.u32 %v894
    %v897 = vmul.u32 %v890, %v881
    %v898 = vadd.s32 %v893, %v895
    %vm899 = vc.u32 %v893, %v895
    %v900 = vadd.s32 %v896, 1
    %v901 = vsel %vm899, %v900, %v896
    %v902 = vadd.s32 %v897, %v901
    %v903 = vadd.s32 %v902, 536870912
    %v904 = vshrl.u32 %v903, 30
    %v905 = vshll.u32 %v904, 30
    %v906 = vsub.s32 %v902, %v905
    %vm907 = vcmp.lt.s32.totalorder %v906, 0
    %v908 = vsub.s32 0, %v906
    %v909 = vsel %vm907, %v908, %v906
    %v910 = vclz %v909
    %v911 = vsub.s32 %v910, 2
    %vm912 = vcmp.gt.s32.totalorder 0, %v911
    %v913 = vsel %vm912, 0, %v911
    %v914 = vsub.s32 32, %v913
    %v915 = vshll.u32 %v906, %v913
    %v916 = vshrl.u32 %v898, %v914
    %v917 = vor.u32 %v915, %v916
    %v918 = vsub.s32 4294967266, %v913
    %v919 = vadd.s32 %v918, 127
    %v920 = vshll.u32 %v919, 23
    %v921 = vor.u32 4788187, %v920
    %v922 = vand.u32 2147483647, %v921
    %v924 = vcvt.s32.f32 %v917
    %v925 = vmul.f32 %v924, %v922
    %v926 = vxor.u32 %v925, 2147483648
    %v927 = vsel %vm844, %v926, %v925
    %v928 = vsub.s32 4, %v904
    %v929 = vsel %vm844, %v928, %v904
    %v930 = vsel %vm843, %v216, %v927
    %v931 = vsel %vm843, 0, %v929
    %v932 = vcosq.f32.pop %v930
    %v933 = vsinq.f32.pop %v930
    %vm934 = vweird.f32 %v216
    %v935 = vadd.s32 %v931, 3
    %v936 = vand.u32 %v935, 3
    %vm937 = vcmp.lt.s32.totalorder %v936, 2
    %vm938 = vcmp.eq.s32.totalorder %v936, 0
    %v939 = vxor.u32 %v933, 2147483648
    %v940 = vsel %vm938, %v932, %v939
    %vm941 = vcmp.eq.s32.totalorder %v936, 2
    %v942 = vxor.u32 %v932, 2147483648
    %v943 = vsel %vm941, %v942, %v933
    %v944 = vsel %vm937, %v940, %v943
    %v945 = vsel %vm934, nan, %v944
    %v946 = vand.u32 2147483647, %v217
    %vm947 = vcmp.le.f32.partialorder %v946, 0.7853982
    %vm948 = vcmp.lt.s32.totalorder %v217, 0
    %v949 = vand.u32 %v217, 2139095040
    %v950 = vshrl.u32 %v949, 23
    %v951 = vsub.s32 %v950, 127
    %v952 = vand.u32 2147483647, %v217
    %v953 = vand.u32 %v952, 8388607
    %v954 = vor.u32 %v953, 8388608
    %v955 = vsub.s32 0, %v954
    %v956 = vadd.s32 %v951, 1
    %vm957 = vcmp.gt.s32.totalorder %v956, 0
    %v958 = vsel %vm957, %v956, 0
    %v959 = vshrl.u32 %v958, 5
    %v960 = vand.u32 %v958, 31
    %v961 = vsub.s32 32, %v960
    %v962 = vshrl.u32 683565275, %v961
    %v963 = vshll.u32 683565275, %v960
    %v964 = vshrl.u32 2475754826, %v961
    %v965 = vor.u32 %v963, %v964
    %v966 = vshll.u32 2475754826, %v960
    %v967 = vshrl.u32 2131351028, %v961
    %v968 = vor.u32 %v966, %v967
    %v969 = vshll.u32 2131351028, %v960
    %v970 = vshrl.u32 2102212464, %v961
    %v971 = vor.u32 %v969, %v970
    %v972 = vshll.u32 2102212464, %v960
    %v973 = vshrl.u32 920167782, %v961
    %v974 = vor.u32 %v972, %v973
    %v975 = vshll.u32 920167782, %v960
    %v976 = vshrl.u32 1326507024, %v961
    %v977 = vor.u32 %v975, %v976
    %vm978 = vcmp.lt.s32.totalorder %v959, 1
    %vm979 = vcmp.lt.s32.totalorder %v959, 2
    %vm980 = vcmp.lt.s32.totalorder %v959, 3
    %vm981 = vcmp.lt.s32.totalorder %v959, 4
    %v982 = vsel %vm978, %v962, %v965
    %v983 = vsel %vm981, %v971, 2102212464
    %v984 = vsel %vm980, %v968, %v983
    %v985 = vsel %vm979, %v982, %v984
    %v986 = vsel %vm978, %v965, %v968
    %v987 = vsel %vm981, %v974, 920167782
    %v988 = vsel %vm980, %v971, %v987
    %v989 = vsel %vm979, %v986, %v988
    %v990 = vsel %vm978, %v968, %v971
    %v991 = vsel %vm981, %v977, 1326507024
    %v992 = vsel %vm980, %v974, %v991
    %v993 = vsel %vm979, %v990, %v992
    %v994 = vshll.u32 %v954, 8
    %v995 = vmul.u32.u64.compose %v994, %v993
    %v996 = vextract.low.u32 %v995
    %v997 = vextract.high.u32 %v995
    %v998 = vmul.u32.u64.compose %v994, %v989
    %v999 = vextract.low.u32 %v998
    %v1000 = vextract.high.u32 %v998
    %v1001 = vmul.u32 %v994, %v985
    %v1002 = vadd.s32 %v997, %v999
    %vm1003 = vc.u32 %v997, %v999
    %v1004 = vadd.s32 %v1000, 1
    %v1005 = vsel %vm1003, %v1004, %v1000
    %v1006 = vadd.s32 %v1001, %v1005
    %v1007 = vadd.s32 %v1006, 536870912
    %v1008 = vshrl.u32 %v1007, 30
    %v1009 = vshll.u32 %v1008, 30
    %v1010 = vsub.s32 %v1006, %v1009
    %vm1011 = vcmp.lt.s32.totalorder %v1010, 0
    %v1012 = vsub.s32 0, %v1010
    %v1013 = vsel %vm1011, %v1012, %v1010
    %v1014 = vclz %v1013
    %v1015 = vsub.s32 %v1014, 2
    %vm1016 = vcmp.gt.s32.totalorder 0, %v1015
    %v1017 = vsel %vm1016, 0, %v1015
    %v1018 = vsub.s32 32, %v1017
    %v1019 = vshll.u32 %v1010, %v1017
    %v1020 = vshrl.u32 %v1002, %v1018
    %v1021 = vor.u32 %v1019, %v1020
    %v1022 = vsub.s32 4294967266, %v1017
    %v1023 = vadd.s32 %v1022, 127
    %v1024 = vshll.u32 %v1023, 23
    %v1025 = vor.u32 4788187, %v1024
    %v1026 = vand.u32 2147483647, %v1025
    %v1028 = vcvt.s32.f32 %v1021
    %v1029 = vmul.f32 %v1028, %v1026
    %v1030 = vxor.u32 %v1029, 2147483648
    %v1031 = vsel %vm948, %v1030, %v1029
    %v1032 = vsub.s32 4, %v1008
    %v1033 = vsel %vm948, %v1032, %v1008
    %v1034 = vsel %vm947, %v217, %v1031
    %v1035 = vsel %vm947, 0, %v1033
    %v1036 = vcosq.f32.pop %v1034
    %v1037 = vsinq.f32.pop %v1034
    %vm1038 = vweird.f32 %v217
    %v1039 = vadd.s32 %v1035, 3
    %v1040 = vand.u32 %v1039, 3
    %vm1041 = vcmp.lt.s32.totalorder %v1040, 2
    %vm1042 = vcmp.eq.s32.totalorder %v1040, 0
    %v1043 = vxor.u32 %v1037, 2147483648
    %v1044 = vsel %vm1042, %v1036, %v1043
    %vm1045 = vcmp.eq.s32.totalorder %v1040, 2
    %v1046 = vxor.u32 %v1036, 2147483648
    %v1047 = vsel %vm1045, %v1046, %v1037
    %v1048 = vsel %vm1041, %v1044, %v1047
    %v1049 = vsel %vm1038, nan, %v1048
    %v1050 = vand.u32 2147483647, %v202
    %vm1051 = vcmp.le.f32.partialorder %v1050, 0.7853982
    %vm1052 = vcmp.lt.s32.totalorder %v202, 0
    %v1053 = vand.u32 %v202, 2139095040
    %v1054 = vshrl.u32 %v1053, 23
    %v1055 = vsub.s32 %v1054, 127
    %v1056 = vand.u32 2147483647, %v202
    %v1057 = vand.u32 %v1056, 8388607
    %v1058 = vor.u32 %v1057, 8388608
    %v1059 = vsub.s32 0, %v1058
    %v1060 = vadd.s32 %v1055, 1
    %vm1061 = vcmp.gt.s32.totalorder %v1060, 0
    %v1062 = vsel %vm1061, %v1060, 0
    %v1063 = vshrl.u32 %v1062, 5
    %v1064 = vand.u32 %v1062, 31
    %v1065 = vsub.s32 32, %v1064
    %v1066 = vshrl.u32 683565275, %v1065
    %v1067 = vshll.u32 683565275, %v1064
    %v1068 = vshrl.u32 2475754826, %v1065
    %v1069 = vor.u32 %v1067, %v1068
    %v1070 = vshll.u32 2475754826, %v1064
    %v1071 = vshrl.u32 2131351028, %v1065
    %v1072 = vor.u32 %v1070, %v1071
    %v1073 = vshll.u32 2131351028, %v1064
    %v1074 = vshrl.u32 2102212464, %v1065
    %v1075 = vor.u32 %v1073, %v1074
    %v1076 = vshll.u32 2102212464, %v1064
    %v1077 = vshrl.u32 920167782, %v1065
    %v1078 = vor.u32 %v1076, %v1077
    %v1079 = vshll.u32 920167782, %v1064
    %v1080 = vshrl.u32 1326507024, %v1065
    %v1081 = vor.u32 %v1079, %v1080
    %vm1082 = vcmp.lt.s32.totalorder %v1063, 1
    %vm1083 = vcmp.lt.s32.totalorder %v1063, 2
    %vm1084 = vcmp.lt.s32.totalorder %v1063, 3
    %vm1085 = vcmp.lt.s32.totalorder %v1063, 4
    %v1086 = vsel %vm1082, %v1066, %v1069
    %v1087 = vsel %vm1085, %v1075, 2102212464
    %v1088 = vsel %vm1084, %v1072, %v1087
    %v1089 = vsel %vm1083, %v1086, %v1088
    %v1090 = vsel %vm1082, %v1069, %v1072
    %v1091 = vsel %vm1085, %v1078, 920167782
    %v1092 = vsel %vm1084, %v1075, %v1091
    %v1093 = vsel %vm1083, %v1090, %v1092
    %v1094 = vsel %vm1082, %v1072, %v1075
    %v1095 = vsel %vm1085, %v1081, 1326507024
    %v1096 = vsel %vm1084, %v1078, %v1095
    %v1097 = vsel %vm1083, %v1094, %v1096
    %v1098 = vshll.u32 %v1058, 8
    %v1099 = vmul.u32.u64.compose %v1098, %v1097
    %v1100 = vextract.low.u32 %v1099
    %v1101 = vextract.high.u32 %v1099
    %v1102 = vmul.u32.u64.compose %v1098, %v1093
    %v1103 = vextract.low.u32 %v1102
    %v1104 = vextract.high.u32 %v1102
    %v1105 = vmul.u32 %v1098, %v1089
    %v1106 = vadd.s32 %v1101, %v1103
    %vm1107 = vc.u32 %v1101, %v1103
    %v1108 = vadd.s32 %v1104, 1
    %v1109 = vsel %vm1107, %v1108, %v1104
    %v1110 = vadd.s32 %v1105, %v1109
    %v1111 = vadd.s32 %v1110, 536870912
    %v1112 = vshrl.u32 %v1111, 30
    %v1113 = vshll.u32 %v1112, 30
    %v1114 = vsub.s32 %v1110, %v1113
    %vm1115 = vcmp.lt.s32.totalorder %v1114, 0
    %v1116 = vsub.s32 0, %v1114
    %v1117 = vsel %vm1115, %v1116, %v1114
    %v1118 = vclz %v1117
    %v1119 = vsub.s32 %v1118, 2
    %vm1120 = vcmp.gt.s32.totalorder 0, %v1119
    %v1121 = vsel %vm1120, 0, %v1119
    %v1122 = vsub.s32 32, %v1121
    %v1123 = vshll.u32 %v1114, %v1121
    %v1124 = vshrl.u32 %v1106, %v1122
    %v1125 = vor.u32 %v1123, %v1124
    %v1126 = vsub.s32 4294967266, %v1121
    %v1127 = vadd.s32 %v1126, 127
    %v1128 = vshll.u32 %v1127, 23
    %v1129 = vor.u32 4788187, %v1128
    %v1130 = vand.u32 2147483647, %v1129
    %v1132 = vcvt.s32.f32 %v1125
    %v1133 = vmul.f32 %v1132, %v1130
    %v1134 = vxor.u32 %v1133, 2147483648
    %v1135 = vsel %vm1052, %v1134, %v1133
    %v1136 = vsub.s32 4, %v1112
    %v1137 = vsel %vm1052, %v1136, %v1112
    %v1138 = vsel %vm1051, %v202, %v1135
    %v1139 = vsel %vm1051, 0, %v1137
    %v1140 = vcosq.f32.pop %v1138
    %v1141 = vsinq.f32.pop %v1138
    %vm1142 = vweird.f32 %v202
    %v1143 = vand.u32 %v1139, 3
    %vm1144 = vcmp.lt.s32.totalorder %v1143, 2
    %vm1145 = vcmp.eq.s32.totalorder %v1143, 0
    %v1146 = vxor.u32 %v1141, 2147483648
    %v1147 = vsel %vm1145, %v1140, %v1146
    %vm1148 = vcmp.eq.s32.totalorder %v1143, 2
    %v1149 = vxor.u32 %v1140, 2147483648
    %v1150 = vsel %vm1148, %v1149, %v1141
    %v1151 = vsel %vm1144, %v1147, %v1150
    %v1152 = vsel %vm1142, nan, %v1151
    %v1153 = vand.u32 2147483647, %v203
    %vm1154 = vcmp.le.f32.partialorder %v1153, 0.7853982
    %vm1155 = vcmp.lt.s32.totalorder %v203, 0
    %v1156 = vand.u32 %v203, 2139095040
    %v1157 = vshrl.u32 %v1156, 23
    %v1158 = vsub.s32 %v1157, 127
    %v1159 = vand.u32 2147483647, %v203
    %v1160 = vand.u32 %v1159, 8388607
    %v1161 = vor.u32 %v1160, 8388608
    %v1162 = vsub.s32 0, %v1161
    %v1163 = vadd.s32 %v1158, 1
    %vm1164 = vcmp.gt.s32.totalorder %v1163, 0
    %v1165 = vsel %vm1164, %v1163, 0
    %v1166 = vshrl.u32 %v1165, 5
    %v1167 = vand.u32 %v1165, 31
    %v1168 = vsub.s32 32, %v1167
    %v1169 = vshrl.u32 683565275, %v1168
    %v1170 = vshll.u32 683565275, %v1167
    %v1171 = vshrl.u32 2475754826, %v1168
    %v1172 = vor.u32 %v1170, %v1171
    %v1173 = vshll.u32 2475754826, %v1167
    %v1174 = vshrl.u32 2131351028, %v1168
    %v1175 = vor.u32 %v1173, %v1174
    %v1176 = vshll.u32 2131351028, %v1167
    %v1177 = vshrl.u32 2102212464, %v1168
    %v1178 = vor.u32 %v1176, %v1177
    %v1179 = vshll.u32 2102212464, %v1167
    %v1180 = vshrl.u32 920167782, %v1168
    %v1181 = vor.u32 %v1179, %v1180
    %v1182 = vshll.u32 920167782, %v1167
    %v1183 = vshrl.u32 1326507024, %v1168
    %v1184 = vor.u32 %v1182, %v1183
    %vm1185 = vcmp.lt.s32.totalorder %v1166, 1
    %vm1186 = vcmp.lt.s32.totalorder %v1166, 2
    %vm1187 = vcmp.lt.s32.totalorder %v1166, 3
    %vm1188 = vcmp.lt.s32.totalorder %v1166, 4
    %v1189 = vsel %vm1185, %v1169, %v1172
    %v1190 = vsel %vm1188, %v1178, 2102212464
    %v1191 = vsel %vm1187, %v1175, %v1190
    %v1192 = vsel %vm1186, %v1189, %v1191
    %v1193 = vsel %vm1185, %v1172, %v1175
    %v1194 = vsel %vm1188, %v1181, 920167782
    %v1195 = vsel %vm1187, %v1178, %v1194
    %v1196 = vsel %vm1186, %v1193, %v1195
    %v1197 = vsel %vm1185, %v1175, %v1178
    %v1198 = vsel %vm1188, %v1184, 1326507024
    %v1199 = vsel %vm1187, %v1181, %v1198
    %v1200 = vsel %vm1186, %v1197, %v1199
    %v1201 = vshll.u32 %v1161, 8
    %v1202 = vmul.u32.u64.compose %v1201, %v1200
    %v1203 = vextract.low.u32 %v1202
    %v1204 = vextract.high.u32 %v1202
    %v1205 = vmul.u32.u64.compose %v1201, %v1196
    %v1206 = vextract.low.u32 %v1205
    %v1207 = vextract.high.u32 %v1205
    %v1208 = vmul.u32 %v1201, %v1192
    %v1209 = vadd.s32 %v1204, %v1206
    %vm1210 = vc.u32 %v1204, %v1206
    %v1211 = vadd.s32 %v1207, 1
    %v1212 = vsel %vm1210, %v1211, %v1207
    %v1213 = vadd.s32 %v1208, %v1212
    %v1214 = vadd.s32 %v1213, 536870912
    %v1215 = vshrl.u32 %v1214, 30
    %v1216 = vshll.u32 %v1215, 30
    %v1217 = vsub.s32 %v1213, %v1216
    %vm1218 = vcmp.lt.s32.totalorder %v1217, 0
    %v1219 = vsub.s32 0, %v1217
    %v1220 = vsel %vm1218, %v1219, %v1217
    %v1221 = vclz %v1220
    %v1222 = vsub.s32 %v1221, 2
    %vm1223 = vcmp.gt.s32.totalorder 0, %v1222
    %v1224 = vsel %vm1223, 0, %v1222
    %v1225 = vsub.s32 32, %v1224
    %v1226 = vshll.u32 %v1217, %v1224
    %v1227 = vshrl.u32 %v1209, %v1225
    %v1228 = vor.u32 %v1226, %v1227
    %v1229 = vsub.s32 4294967266, %v1224
    %v1230 = vadd.s32 %v1229, 127
    %v1231 = vshll.u32 %v1230, 23
    %v1232 = vor.u32 4788187, %v1231
    %v1233 = vand.u32 2147483647, %v1232
    %v1235 = vcvt.s32.f32 %v1228
    %v1236 = vmul.f32 %v1235, %v1233
    %v1237 = vxor.u32 %v1236, 2147483648
    %v1238 = vsel %vm1155, %v1237, %v1236
    %v1239 = vsub.s32 4, %v1215
    %v1240 = vsel %vm1155, %v1239, %v1215
    %v1241 = vsel %vm1154, %v203, %v1238
    %v1242 = vsel %vm1154, 0, %v1240
    %v1243 = vcosq.f32.pop %v1241
    %v1244 = vsinq.f32.pop %v1241
    %vm1245 = vweird.f32 %v203
    %v1246 = vand.u32 %v1242, 3
    %vm1247 = vcmp.lt.s32.totalorder %v1246, 2
    %vm1248 = vcmp.eq.s32.totalorder %v1246, 0
    %v1249 = vxor.u32 %v1244, 2147483648
    %v1250 = vsel %vm1248, %v1243, %v1249
    %vm1251 = vcmp.eq.s32.totalorder %v1246, 2
    %v1252 = vxor.u32 %v1243, 2147483648
    %v1253 = vsel %vm1251, %v1252, %v1244
    %v1254 = vsel %vm1247, %v1250, %v1253
    %v1255 = vsel %vm1245, nan, %v1254
    %v1256 = vand.u32 2147483647, %v204
    %vm1257 = vcmp.le.f32.partialorder %v1256, 0.7853982
    %vm1258 = vcmp.lt.s32.totalorder %v204, 0
    %v1259 = vand.u32 %v204, 2139095040
    %v1260 = vshrl.u32 %v1259, 23
    %v1261 = vsub.s32 %v1260, 127
    %v1262 = vand.u32 2147483647, %v204
    %v1263 = vand.u32 %v1262, 8388607
    %v1264 = vor.u32 %v1263, 8388608
    %v1265 = vsub.s32 0, %v1264
    %v1266 = vadd.s32 %v1261, 1
    %vm1267 = vcmp.gt.s32.totalorder %v1266, 0
    %v1268 = vsel %vm1267, %v1266, 0
    %v1269 = vshrl.u32 %v1268, 5
    %v1270 = vand.u32 %v1268, 31
    %v1271 = vsub.s32 32, %v1270
    %v1272 = vshrl.u32 683565275, %v1271
    %v1273 = vshll.u32 683565275, %v1270
    %v1274 = vshrl.u32 2475754826, %v1271
    %v1275 = vor.u32 %v1273, %v1274
    %v1276 = vshll.u32 2475754826, %v1270
    %v1277 = vshrl.u32 2131351028, %v1271
    %v1278 = vor.u32 %v1276, %v1277
    %v1279 = vshll.u32 2131351028, %v1270
    %v1280 = vshrl.u32 2102212464, %v1271
    %v1281 = vor.u32 %v1279, %v1280
    %v1282 = vshll.u32 2102212464, %v1270
    %v1283 = vshrl.u32 920167782, %v1271
    %v1284 = vor.u32 %v1282, %v1283
    %v1285 = vshll.u32 920167782, %v1270
    %v1286 = vshrl.u32 1326507024, %v1271
    %v1287 = vor.u32 %v1285, %v1286
    %vm1288 = vcmp.lt.s32.totalorder %v1269, 1
    %vm1289 = vcmp.lt.s32.totalorder %v1269, 2
    %vm1290 = vcmp.lt.s32.totalorder %v1269, 3
    %vm1291 = vcmp.lt.s32.totalorder %v1269, 4
    %v1292 = vsel %vm1288, %v1272, %v1275
    %v1293 = vsel %vm1291, %v1281, 2102212464
    %v1294 = vsel %vm1290, %v1278, %v1293
    %v1295 = vsel %vm1289, %v1292, %v1294
    %v1296 = vsel %vm1288, %v1275, %v1278
    %v1297 = vsel %vm1291, %v1284, 920167782
    %v1298 = vsel %vm1290, %v1281, %v1297
    %v1299 = vsel %vm1289, %v1296, %v1298
    %v1300 = vsel %vm1288, %v1278, %v1281
    %v1301 = vsel %vm1291, %v1287, 1326507024
    %v1302 = vsel %vm1290, %v1284, %v1301
    %v1303 = vsel %vm1289, %v1300, %v1302
    %v1304 = vshll.u32 %v1264, 8
    %v1305 = vmul.u32.u64.compose %v1304, %v1303
    %v1306 = vextract.low.u32 %v1305
    %v1307 = vextract.high.u32 %v1305
    %v1308 = vmul.u32.u64.compose %v1304, %v1299
    %v1309 = vextract.low.u32 %v1308
    %v1310 = vextract.high.u32 %v1308
    %v1311 = vmul.u32 %v1304, %v1295
    %v1312 = vadd.s32 %v1307, %v1309
    %vm1313 = vc.u32 %v1307, %v1309
    %v1314 = vadd.s32 %v1310, 1
    %v1315 = vsel %vm1313, %v1314, %v1310
    %v1316 = vadd.s32 %v1311, %v1315
    %v1317 = vadd.s32 %v1316, 536870912
    %v1318 = vshrl.u32 %v1317, 30
    %v1319 = vshll.u32 %v1318, 30
    %v1320 = vsub.s32 %v1316, %v1319
    %vm1321 = vcmp.lt.s32.totalorder %v1320, 0
    %v1322 = vsub.s32 0, %v1320
    %v1323 = vsel %vm1321, %v1322, %v1320
    %v1324 = vclz %v1323
    %v1325 = vsub.s32 %v1324, 2
    %vm1326 = vcmp.gt.s32.totalorder 0, %v1325
    %v1327 = vsel %vm1326, 0, %v1325
    %v1328 = vsub.s32 32, %v1327
    %v1329 = vshll.u32 %v1320, %v1327
    %v1330 = vshrl.u32 %v1312, %v1328
    %v1331 = vor.u32 %v1329, %v1330
    %v1332 = vsub.s32 4294967266, %v1327
    %v1333 = vadd.s32 %v1332, 127
    %v1334 = vshll.u32 %v1333, 23
    %v1335 = vor.u32 4788187, %v1334
    %v1336 = vand.u32 2147483647, %v1335
    %v1338 = vcvt.s32.f32 %v1331
    %v1339 = vmul.f32 %v1338, %v1336
    %v1340 = vxor.u32 %v1339, 2147483648
    %v1341 = vsel %vm1258, %v1340, %v1339
    %v1342 = vsub.s32 4, %v1318
    %v1343 = vsel %vm1258, %v1342, %v1318
    %v1344 = vsel %vm1257, %v204, %v1341
    %v1345 = vsel %vm1257, 0, %v1343
    %v1346 = vcosq.f32.pop %v1344
    %v1347 = vsinq.f32.pop %v1344
    %vm1348 = vweird.f32 %v204
    %v1349 = vand.u32 %v1345, 3
    %vm1350 = vcmp.lt.s32.totalorder %v1349, 2
    %vm1351 = vcmp.eq.s32.totalorder %v1349, 0
    %v1352 = vxor.u32 %v1347, 2147483648
    %v1353 = vsel %vm1351, %v1346, %v1352
    %vm1354 = vcmp.eq.s32.totalorder %v1349, 2
    %v1355 = vxor.u32 %v1346, 2147483648
    %v1356 = vsel %vm1354, %v1355, %v1347
    %v1357 = vsel %vm1350, %v1353, %v1356
    %v1358 = vsel %vm1348, nan, %v1357
    %v1359 = vand.u32 2147483647, %v205
    %vm1360 = vcmp.le.f32.partialorder %v1359, 0.7853982
    %vm1361 = vcmp.lt.s32.totalorder %v205, 0
    %v1362 = vand.u32 %v205, 2139095040
    %v1363 = vshrl.u32 %v1362, 23
    %v1364 = vsub.s32 %v1363, 127
    %v1365 = vand.u32 2147483647, %v205
    %v1366 = vand.u32 %v1365, 8388607
    %v1367 = vor.u32 %v1366, 8388608
    %v1368 = vsub.s32 0, %v1367
    %v1369 = vadd.s32 %v1364, 1
    %vm1370 = vcmp.gt.s32.totalorder %v1369, 0
    %v1371 = vsel %vm1370, %v1369, 0
    %v1372 = vshrl.u32 %v1371, 5
    %v1373 = vand.u32 %v1371, 31
    %v1374 = vsub.s32 32, %v1373
    %v1375 = vshrl.u32 683565275, %v1374
    %v1376 = vshll.u32 683565275, %v1373
    %v1377 = vshrl.u32 2475754826, %v1374
    %v1378 = vor.u32 %v1376, %v1377
    %v1379 = vshll.u32 2475754826, %v1373
    %v1380 = vshrl.u32 2131351028, %v1374
    %v1381 = vor.u32 %v1379, %v1380
    %v1382 = vshll.u32 2131351028, %v1373
    %v1383 = vshrl.u32 2102212464, %v1374
    %v1384 = vor.u32 %v1382, %v1383
    %v1385 = vshll.u32 2102212464, %v1373
    %v1386 = vshrl.u32 920167782, %v1374
    %v1387 = vor.u32 %v1385, %v1386
    %v1388 = vshll.u32 920167782, %v1373
    %v1389 = vshrl.u32 1326507024, %v1374
    %v1390 = vor.u32 %v1388, %v1389
    %vm1391 = vcmp.lt.s32.totalorder %v1372, 1
    %vm1392 = vcmp.lt.s32.totalorder %v1372, 2
    %vm1393 = vcmp.lt.s32.totalorder %v1372, 3
    %vm1394 = vcmp.lt.s32.totalorder %v1372, 4
    %v1395 = vsel %vm1391, %v1375, %v1378
    %v1396 = vsel %vm1394, %v1384, 2102212464
    %v1397 = vsel %vm1393, %v1381, %v1396
    %v1398 = vsel %vm1392, %v1395, %v1397
    %v1399 = vsel %vm1391, %v1378, %v1381
    %v1400 = vsel %vm1394, %v1387, 920167782
    %v1401 = vsel %vm1393, %v1384, %v1400
    %v1402 = vsel %vm1392, %v1399, %v1401
    %v1403 = vsel %vm1391, %v1381, %v1384
    %v1404 = vsel %vm1394, %v1390, 1326507024
    %v1405 = vsel %vm1393, %v1387, %v1404
    %v1406 = vsel %vm1392, %v1403, %v1405
    %v1407 = vshll.u32 %v1367, 8
    %v1408 = vmul.u32.u64.compose %v1407, %v1406
    %v1409 = vextract.low.u32 %v1408
    %v1410 = vextract.high.u32 %v1408
    %v1411 = vmul.u32.u64.compose %v1407, %v1402
    %v1412 = vextract.low.u32 %v1411
    %v1413 = vextract.high.u32 %v1411
    %v1414 = vmul.u32 %v1407, %v1398
    %v1415 = vadd.s32 %v1410, %v1412
    %vm1416 = vc.u32 %v1410, %v1412
    %v1417 = vadd.s32 %v1413, 1
    %v1418 = vsel %vm1416, %v1417, %v1413
    %v1419 = vadd.s32 %v1414, %v1418
    %v1420 = vadd.s32 %v1419, 536870912
    %v1421 = vshrl.u32 %v1420, 30
    %v1422 = vshll.u32 %v1421, 30
    %v1423 = vsub.s32 %v1419, %v1422
    %vm1424 = vcmp.lt.s32.totalorder %v1423, 0
    %v1425 = vsub.s32 0, %v1423
    %v1426 = vsel %vm1424, %v1425, %v1423
    %v1427 = vclz %v1426
    %v1428 = vsub.s32 %v1427, 2
    %vm1429 = vcmp.gt.s32.totalorder 0, %v1428
    %v1430 = vsel %vm1429, 0, %v1428
    %v1431 = vsub.s32 32, %v1430
    %v1432 = vshll.u32 %v1423, %v1430
    %v1433 = vshrl.u32 %v1415, %v1431
    %v1434 = vor.u32 %v1432, %v1433
    %v1435 = vsub.s32 4294967266, %v1430
    %v1436 = vadd.s32 %v1435, 127
    %v1437 = vshll.u32 %v1436, 23
    %v1438 = vor.u32 4788187, %v1437
    %v1439 = vand.u32 2147483647, %v1438
    %v1441 = vcvt.s32.f32 %v1434
    %v1442 = vmul.f32 %v1441, %v1439
    %v1443 = vxor.u32 %v1442, 2147483648
    %v1444 = vsel %vm1361, %v1443, %v1442
    %v1445 = vsub.s32 4, %v1421
    %v1446 = vsel %vm1361, %v1445, %v1421
    %v1447 = vsel %vm1360, %v205, %v1444
    %v1448 = vsel %vm1360, 0, %v1446
    %v1449 = vcosq.f32.pop %v1447
    %v1450 = vsinq.f32.pop %v1447
    %vm1451 = vweird.f32 %v205
    %v1452 = vand.u32 %v1448, 3
    %vm1453 = vcmp.lt.s32.totalorder %v1452, 2
    %vm1454 = vcmp.eq.s32.totalorder %v1452, 0
    %v1455 = vxor.u32 %v1450, 2147483648
    %v1456 = vsel %vm1454, %v1449, %v1455
    %vm1457 = vcmp.eq.s32.totalorder %v1452, 2
    %v1458 = vxor.u32 %v1449, 2147483648
    %v1459 = vsel %vm1457, %v1458, %v1450
    %v1460 = vsel %vm1453, %v1456, %v1459
    %v1461 = vsel %vm1451, nan, %v1460
    %v1462 = vand.u32 2147483647, %v214
    %vm1463 = vcmp.le.f32.partialorder %v1462, 0.7853982
    %vm1464 = vcmp.lt.s32.totalorder %v214, 0
    %v1465 = vand.u32 %v214, 2139095040
    %v1466 = vshrl.u32 %v1465, 23
    %v1467 = vsub.s32 %v1466, 127
    %v1468 = vand.u32 2147483647, %v214
    %v1469 = vand.u32 %v1468, 8388607
    %v1470 = vor.u32 %v1469, 8388608
    %v1471 = vsub.s32 0, %v1470
    %v1472 = vadd.s32 %v1467, 1
    %vm1473 = vcmp.gt.s32.totalorder %v1472, 0
    %v1474 = vsel %vm1473, %v1472, 0
    %v1475 = vshrl.u32 %v1474, 5
    %v1476 = vand.u32 %v1474, 31
    %v1477 = vsub.s32 32, %v1476
    %v1478 = vshrl.u32 683565275, %v1477
    %v1479 = vshll.u32 683565275, %v1476
    %v1480 = vshrl.u32 2475754826, %v1477
    %v1481 = vor.u32 %v1479, %v1480
    %v1482 = vshll.u32 2475754826, %v1476
    %v1483 = vshrl.u32 2131351028, %v1477
    %v1484 = vor.u32 %v1482, %v1483
    %v1485 = vshll.u32 2131351028, %v1476
    %v1486 = vshrl.u32 2102212464, %v1477
    %v1487 = vor.u32 %v1485, %v1486
    %v1488 = vshll.u32 2102212464, %v1476
    %v1489 = vshrl.u32 920167782, %v1477
    %v1490 = vor.u32 %v1488, %v1489
    %v1491 = vshll.u32 920167782, %v1476
    %v1492 = vshrl.u32 1326507024, %v1477
    %v1493 = vor.u32 %v1491, %v1492
    %vm1494 = vcmp.lt.s32.totalorder %v1475, 1
    %vm1495 = vcmp.lt.s32.totalorder %v1475, 2
    %vm1496 = vcmp.lt.s32.totalorder %v1475, 3
    %vm1497 = vcmp.lt.s32.totalorder %v1475, 4
    %v1498 = vsel %vm1494, %v1478, %v1481
    %v1499 = vsel %vm1497, %v1487, 2102212464
    %v1500 = vsel %vm1496, %v1484, %v1499
    %v1501 = vsel %vm1495, %v1498, %v1500
    %v1502 = vsel %vm1494, %v1481, %v1484
    %v1503 = vsel %vm1497, %v1490, 920167782
    %v1504 = vsel %vm1496, %v1487, %v1503
    %v1505 = vsel %vm1495, %v1502, %v1504
    %v1506 = vsel %vm1494, %v1484, %v1487
    %v1507 = vsel %vm1497, %v1493, 1326507024
    %v1508 = vsel %vm1496, %v1490, %v1507
    %v1509 = vsel %vm1495, %v1506, %v1508
    %v1510 = vshll.u32 %v1470, 8
    %v1511 = vmul.u32.u64.compose %v1510, %v1509
    %v1512 = vextract.low.u32 %v1511
    %v1513 = vextract.high.u32 %v1511
    %v1514 = vmul.u32.u64.compose %v1510, %v1505
    %v1515 = vextract.low.u32 %v1514
    %v1516 = vextract.high.u32 %v1514
    %v1517 = vmul.u32 %v1510, %v1501
    %v1518 = vadd.s32 %v1513, %v1515
    %vm1519 = vc.u32 %v1513, %v1515
    %v1520 = vadd.s32 %v1516, 1
    %v1521 = vsel %vm1519, %v1520, %v1516
    %v1522 = vadd.s32 %v1517, %v1521
    %v1523 = vadd.s32 %v1522, 536870912
    %v1524 = vshrl.u32 %v1523, 30
    %v1525 = vshll.u32 %v1524, 30
    %v1526 = vsub.s32 %v1522, %v1525
    %vm1527 = vcmp.lt.s32.totalorder %v1526, 0
    %v1528 = vsub.s32 0, %v1526
    %v1529 = vsel %vm1527, %v1528, %v1526
    %v1530 = vclz %v1529
    %v1531 = vsub.s32 %v1530, 2
    %vm1532 = vcmp.gt.s32.totalorder 0, %v1531
    %v1533 = vsel %vm1532, 0, %v1531
    %v1534 = vsub.s32 32, %v1533
    %v1535 = vshll.u32 %v1526, %v1533
    %v1536 = vshrl.u32 %v1518, %v1534
    %v1537 = vor.u32 %v1535, %v1536
    %v1538 = vsub.s32 4294967266, %v1533
    %v1539 = vadd.s32 %v1538, 127
    %v1540 = vshll.u32 %v1539, 23
    %v1541 = vor.u32 4788187, %v1540
    %v1542 = vand.u32 2147483647, %v1541
    %v1544 = vcvt.s32.f32 %v1537
    %v1545 = vmul.f32 %v1544, %v1542
    %v1546 = vxor.u32 %v1545, 2147483648
    %v1547 = vsel %vm1464, %v1546, %v1545
    %v1548 = vsub.s32 4, %v1524
    %v1549 = vsel %vm1464, %v1548, %v1524
    %v1550 = vsel %vm1463, %v214, %v1547
    %v1551 = vsel %vm1463, 0, %v1549
    %v1552 = vcosq.f32.pop %v1550
    %v1553 = vsinq.f32.pop %v1550
    %vm1554 = vweird.f32 %v214
    %v1555 = vand.u32 %v1551, 3
    %vm1556 = vcmp.lt.s32.totalorder %v1555, 2
    %vm1557 = vcmp.eq.s32.totalorder %v1555, 0
    %v1558 = vxor.u32 %v1553, 2147483648
    %v1559 = vsel %vm1557, %v1552, %v1558
    %vm1560 = vcmp.eq.s32.totalorder %v1555, 2
    %v1561 = vxor.u32 %v1552, 2147483648
    %v1562 = vsel %vm1560, %v1561, %v1553
    %v1563 = vsel %vm1556, %v1559, %v1562
    %v1564 = vsel %vm1554, nan, %v1563
    %v1565 = vand.u32 2147483647, %v215
    %vm1566 = vcmp.le.f32.partialorder %v1565, 0.7853982
    %vm1567 = vcmp.lt.s32.totalorder %v215, 0
    %v1568 = vand.u32 %v215, 2139095040
    %v1569 = vshrl.u32 %v1568, 23
    %v1570 = vsub.s32 %v1569, 127
    %v1571 = vand.u32 2147483647, %v215
    %v1572 = vand.u32 %v1571, 8388607
    %v1573 = vor.u32 %v1572, 8388608
    %v1574 = vsub.s32 0, %v1573
    %v1575 = vadd.s32 %v1570, 1
    %vm1576 = vcmp.gt.s32.totalorder %v1575, 0
    %v1577 = vsel %vm1576, %v1575, 0
    %v1578 = vshrl.u32 %v1577, 5
    %v1579 = vand.u32 %v1577, 31
    %v1580 = vsub.s32 32, %v1579
    %v1581 = vshrl.u32 683565275, %v1580
    %v1582 = vshll.u32 683565275, %v1579
    %v1583 = vshrl.u32 2475754826, %v1580
    %v1584 = vor.u32 %v1582, %v1583
    %v1585 = vshll.u32 2475754826, %v1579
    %v1586 = vshrl.u32 2131351028, %v1580
    %v1587 = vor.u32 %v1585, %v1586
    %v1588 = vshll.u32 2131351028, %v1579
    %v1589 = vshrl.u32 2102212464, %v1580
    %v1590 = vor.u32 %v1588, %v1589
    %v1591 = vshll.u32 2102212464, %v1579
    %v1592 = vshrl.u32 920167782, %v1580
    %v1593 = vor.u32 %v1591, %v1592
    %v1594 = vshll.u32 920167782, %v1579
    %v1595 = vshrl.u32 1326507024, %v1580
    %v1596 = vor.u32 %v1594, %v1595
    %vm1597 = vcmp.lt.s32.totalorder %v1578, 1
    %vm1598 = vcmp.lt.s32.totalorder %v1578, 2
    %vm1599 = vcmp.lt.s32.totalorder %v1578, 3
    %vm1600 = vcmp.lt.s32.totalorder %v1578, 4
    %v1601 = vsel %vm1597, %v1581, %v1584
    %v1602 = vsel %vm1600, %v1590, 2102212464
    %v1603 = vsel %vm1599, %v1587, %v1602
    %v1604 = vsel %vm1598, %v1601, %v1603
    %v1605 = vsel %vm1597, %v1584, %v1587
    %v1606 = vsel %vm1600, %v1593, 920167782
    %v1607 = vsel %vm1599, %v1590, %v1606
    %v1608 = vsel %vm1598, %v1605, %v1607
    %v1609 = vsel %vm1597, %v1587, %v1590
    %v1610 = vsel %vm1600, %v1596, 1326507024
    %v1611 = vsel %vm1599, %v1593, %v1610
    %v1612 = vsel %vm1598, %v1609, %v1611
    %v1613 = vshll.u32 %v1573, 8
    %v1614 = vmul.u32.u64.compose %v1613, %v1612
    %v1615 = vextract.low.u32 %v1614
    %v1616 = vextract.high.u32 %v1614
    %v1617 = vmul.u32.u64.compose %v1613, %v1608
    %v1618 = vextract.low.u32 %v1617
    %v1619 = vextract.high.u32 %v1617
    %v1620 = vmul.u32 %v1613, %v1604
    %v1621 = vadd.s32 %v1616, %v1618
    %vm1622 = vc.u32 %v1616, %v1618
    %v1623 = vadd.s32 %v1619, 1
    %v1624 = vsel %vm1622, %v1623, %v1619
    %v1625 = vadd.s32 %v1620, %v1624
    %v1626 = vadd.s32 %v1625, 536870912
    %v1627 = vshrl.u32 %v1626, 30
    %v1628 = vshll.u32 %v1627, 30
    %v1629 = vsub.s32 %v1625, %v1628
    %vm1630 = vcmp.lt.s32.totalorder %v1629, 0
    %v1631 = vsub.s32 0, %v1629
    %v1632 = vsel %vm1630, %v1631, %v1629
    %v1633 = vclz %v1632
    %v1634 = vsub.s32 %v1633, 2
    %vm1635 = vcmp.gt.s32.totalorder 0, %v1634
    %v1636 = vsel %vm1635, 0, %v1634
    %v1637 = vsub.s32 32, %v1636
    %v1638 = vshll.u32 %v1629, %v1636
    %v1639 = vshrl.u32 %v1621, %v1637
    %v1640 = vor.u32 %v1638, %v1639
    %v1641 = vsub.s32 4294967266, %v1636
    %v1642 = vadd.s32 %v1641, 127
    %v1643 = vshll.u32 %v1642, 23
    %v1644 = vor.u32 4788187, %v1643
    %v1645 = vand.u32 2147483647, %v1644
    %v1647 = vcvt.s32.f32 %v1640
    %v1648 = vmul.f32 %v1647, %v1645
    %v1649 = vxor.u32 %v1648, 2147483648
    %v1650 = vsel %vm1567, %v1649, %v1648
    %v1651 = vsub.s32 4, %v1627
    %v1652 = vsel %vm1567, %v1651, %v1627
    %v1653 = vsel %vm1566, %v215, %v1650
    %v1654 = vsel %vm1566, 0, %v1652
    %v1655 = vcosq.f32.pop %v1653
    %v1656 = vsinq.f32.pop %v1653
    %vm1657 = vweird.f32 %v215
    %v1658 = vand.u32 %v1654, 3
    %vm1659 = vcmp.lt.s32.totalorder %v1658, 2
    %vm1660 = vcmp.eq.s32.totalorder %v1658, 0
    %v1661 = vxor.u32 %v1656, 2147483648
    %v1662 = vsel %vm1660, %v1655, %v1661
    %vm1663 = vcmp.eq.s32.totalorder %v1658, 2
    %v1664 = vxor.u32 %v1655, 2147483648
    %v1665 = vsel %vm1663, %v1664, %v1656
    %v1666 = vsel %vm1659, %v1662, %v1665
    %v1667 = vsel %vm1657, nan, %v1666
    %v1668 = vand.u32 2147483647, %v216
    %vm1669 = vcmp.le.f32.partialorder %v1668, 0.7853982
    %vm1670 = vcmp.lt.s32.totalorder %v216, 0
    %v1671 = vand.u32 %v216, 2139095040
    %v1672 = vshrl.u32 %v1671, 23
    %v1673 = vsub.s32 %v1672, 127
    %v1674 = vand.u32 2147483647, %v216
    %v1675 = vand.u32 %v1674, 8388607
    %v1676 = vor.u32 %v1675, 8388608
    %v1677 = vsub.s32 0, %v1676
    %v1678 = vadd.s32 %v1673, 1
    %vm1679 = vcmp.gt.s32.totalorder %v1678, 0
    %v1680 = vsel %vm1679, %v1678, 0
    %v1681 = vshrl.u32 %v1680, 5
    %v1682 = vand.u32 %v1680, 31
    %v1683 = vsub.s32 32, %v1682
    %v1684 = vshrl.u32 683565275, %v1683
    %v1685 = vshll.u32 683565275, %v1682
    %v1686 = vshrl.u32 2475754826, %v1683
    %v1687 = vor.u32 %v1685, %v1686
    %v1688 = vshll.u32 2475754826, %v1682
    %v1689 = vshrl.u32 2131351028, %v1683
    %v1690 = vor.u32 %v1688, %v1689
    %v1691 = vshll.u32 2131351028, %v1682
    %v1692 = vshrl.u32 2102212464, %v1683
    %v1693 = vor.u32 %v1691, %v1692
    %v1694 = vshll.u32 2102212464, %v1682
    %v1695 = vshrl.u32 920167782, %v1683
    %v1696 = vor.u32 %v1694, %v1695
    %v1697 = vshll.u32 920167782, %v1682
    %v1698 = vshrl.u32 1326507024, %v1683
    %v1699 = vor.u32 %v1697, %v1698
    %vm1700 = vcmp.lt.s32.totalorder %v1681, 1
    %vm1701 = vcmp.lt.s32.totalorder %v1681, 2
    %vm1702 = vcmp.lt.s32.totalorder %v1681, 3
    %vm1703 = vcmp.lt.s32.totalorder %v1681, 4
    %v1704 = vsel %vm1700, %v1684, %v1687
    %v1705 = vsel %vm1703, %v1693, 2102212464
    %v1706 = vsel %vm1702, %v1690, %v1705
    %v1707 = vsel %vm1701, %v1704, %v1706
    %v1708 = vsel %vm1700, %v1687, %v1690
    %v1709 = vsel %vm1703, %v1696, 920167782
    %v1710 = vsel %vm1702, %v1693, %v1709
    %v1711 = vsel %vm1701, %v1708, %v1710
    %v1712 = vsel %vm1700, %v1690, %v1693
    %v1713 = vsel %vm1703, %v1699, 1326507024
    %v1714 = vsel %vm1702, %v1696, %v1713
    %v1715 = vsel %vm1701, %v1712, %v1714
    %v1716 = vshll.u32 %v1676, 8
    %v1717 = vmul.u32.u64.compose %v1716, %v1715
    %v1718 = vextract.low.u32 %v1717
    %v1719 = vextract.high.u32 %v1717
    %v1720 = vmul.u32.u64.compose %v1716, %v1711
    %v1721 = vextract.low.u32 %v1720
    %v1722 = vextract.high.u32 %v1720
    %v1723 = vmul.u32 %v1716, %v1707
    %v1724 = vadd.s32 %v1719, %v1721
    %vm1725 = vc.u32 %v1719, %v1721
    %v1726 = vadd.s32 %v1722, 1
    %v1727 = vsel %vm1725, %v1726, %v1722
    %v1728 = vadd.s32 %v1723, %v1727
    %v1729 = vadd.s32 %v1728, 536870912
    %v1730 = vshrl.u32 %v1729, 30
    %v1731 = vshll.u32 %v1730, 30
    %v1732 = vsub.s32 %v1728, %v1731
    %vm1733 = vcmp.lt.s32.totalorder %v1732, 0
    %v1734 = vsub.s32 0, %v1732
    %v1735 = vsel %vm1733, %v1734, %v1732
    %v1736 = vclz %v1735
    %v1737 = vsub.s32 %v1736, 2
    %vm1738 = vcmp.gt.s32.totalorder 0, %v1737
    %v1739 = vsel %vm1738, 0, %v1737
    %v1740 = vsub.s32 32, %v1739
    %v1741 = vshll.u32 %v1732, %v1739
    %v1742 = vshrl.u32 %v1724, %v1740
    %v1743 = vor.u32 %v1741, %v1742
    %v1744 = vsub.s32 4294967266, %v1739
    %v1745 = vadd.s32 %v1744, 127
    %v1746 = vshll.u32 %v1745, 23
    %v1747 = vor.u32 4788187, %v1746
    %v1748 = vand.u32 2147483647, %v1747
    %v1750 = vcvt.s32.f32 %v1743
    %v1751 = vmul.f32 %v1750, %v1748
    %v1752 = vxor.u32 %v1751, 2147483648
    %v1753 = vsel %vm1670, %v1752, %v1751
    %v1754 = vsub.s32 4, %v1730
    %v1755 = vsel %vm1670, %v1754, %v1730
    %v1756 = vsel %vm1669, %v216, %v1753
    %v1757 = vsel %vm1669, 0, %v1755
    %v1758 = vcosq.f32.pop %v1756
    %v1759 = vsinq.f32.pop %v1756
    %vm1760 = vweird.f32 %v216
    %v1761 = vand.u32 %v1757, 3
    %vm1762 = vcmp.lt.s32.totalorder %v1761, 2
    %vm1763 = vcmp.eq.s32.totalorder %v1761, 0
    %v1764 = vxor.u32 %v1759, 2147483648
    %v1765 = vsel %vm1763, %v1758, %v1764
    %vm1766 = vcmp.eq.s32.totalorder %v1761, 2
    %v1767 = vxor.u32 %v1758, 2147483648
    %v1768 = vsel %vm1766, %v1767, %v1759
    %v1769 = vsel %vm1762, %v1765, %v1768
    %v1770 = vsel %vm1760, nan, %v1769
    %v1771 = vand.u32 2147483647, %v217
    %vm1772 = vcmp.le.f32.partialorder %v1771, 0.7853982
    %vm1773 = vcmp.lt.s32.totalorder %v217, 0
    %v1774 = vand.u32 %v217, 2139095040
    %v1775 = vshrl.u32 %v1774, 23
    %v1776 = vsub.s32 %v1775, 127
    %v1777 = vand.u32 2147483647, %v217
    %v1778 = vand.u32 %v1777, 8388607
    %v1779 = vor.u32 %v1778, 8388608
    %v1780 = vsub.s32 0, %v1779
    %v1781 = vadd.s32 %v1776, 1
    %vm1782 = vcmp.gt.s32.totalorder %v1781, 0
    %v1783 = vsel %vm1782, %v1781, 0
    %v1784 = vshrl.u32 %v1783, 5
    %v1785 = vand.u32 %v1783, 31
    %v1786 = vsub.s32 32, %v1785
    %v1787 = vshrl.u32 683565275, %v1786
    %v1788 = vshll.u32 683565275, %v1785
    %v1789 = vshrl.u32 2475754826, %v1786
    %v1790 = vor.u32 %v1788, %v1789
    %v1791 = vshll.u32 2475754826, %v1785
    %v1792 = vshrl.u32 2131351028, %v1786
    %v1793 = vor.u32 %v1791, %v1792
    %v1794 = vshll.u32 2131351028, %v1785
    %v1795 = vshrl.u32 2102212464, %v1786
    %v1796 = vor.u32 %v1794, %v1795
    %v1797 = vshll.u32 2102212464, %v1785
    %v1798 = vshrl.u32 920167782, %v1786
    %v1799 = vor.u32 %v1797, %v1798
    %v1800 = vshll.u32 920167782, %v1785
    %v1801 = vshrl.u32 1326507024, %v1786
    %v1802 = vor.u32 %v1800, %v1801
    %vm1803 = vcmp.lt.s32.totalorder %v1784, 1
    %vm1804 = vcmp.lt.s32.totalorder %v1784, 2
    %vm1805 = vcmp.lt.s32.totalorder %v1784, 3
    %vm1806 = vcmp.lt.s32.totalorder %v1784, 4
    %v1807 = vsel %vm1803, %v1787, %v1790
    %v1808 = vsel %vm1806, %v1796, 2102212464
    %v1809 = vsel %vm1805, %v1793, %v1808
    %v1810 = vsel %vm1804, %v1807, %v1809
    %v1811 = vsel %vm1803, %v1790, %v1793
    %v1812 = vsel %vm1806, %v1799, 920167782
    %v1813 = vsel %vm1805, %v1796, %v1812
    %v1814 = vsel %vm1804, %v1811, %v1813
    %v1815 = vsel %vm1803, %v1793, %v1796
    %v1816 = vsel %vm1806, %v1802, 1326507024
    %v1817 = vsel %vm1805, %v1799, %v1816
    %v1818 = vsel %vm1804, %v1815, %v1817
    %v1819 = vshll.u32 %v1779, 8
    %v1820 = vmul.u32.u64.compose %v1819, %v1818
    %v1821 = vextract.low.u32 %v1820
    %v1822 = vextract.high.u32 %v1820
    %v1823 = vmul.u32.u64.compose %v1819, %v1814
    %v1824 = vextract.low.u32 %v1823
    %v1825 = vextract.high.u32 %v1823
    %v1826 = vmul.u32 %v1819, %v1810
    %v1827 = vadd.s32 %v1822, %v1824
    %vm1828 = vc.u32 %v1822, %v1824
    %v1829 = vadd.s32 %v1825, 1
    %v1830 = vsel %vm1828, %v1829, %v1825
    %v1831 = vadd.s32 %v1826, %v1830
    %v1832 = vadd.s32 %v1831, 536870912
    %v1833 = vshrl.u32 %v1832, 30
    %v1834 = vshll.u32 %v1833, 30
    %v1835 = vsub.s32 %v1831, %v1834
    %vm1836 = vcmp.lt.s32.totalorder %v1835, 0
    %v1837 = vsub.s32 0, %v1835
    %v1838 = vsel %vm1836, %v1837, %v1835
    %v1839 = vclz %v1838
    %v1840 = vsub.s32 %v1839, 2
    %vm1841 = vcmp.gt.s32.totalorder 0, %v1840
    %v1842 = vsel %vm1841, 0, %v1840
    %v1843 = vsub.s32 32, %v1842
    %v1844 = vshll.u32 %v1835, %v1842
    %v1845 = vshrl.u32 %v1827, %v1843
    %v1846 = vor.u32 %v1844, %v1845
    %v1847 = vsub.s32 4294967266, %v1842
    %v1848 = vadd.s32 %v1847, 127
    %v1849 = vshll.u32 %v1848, 23
    %v1850 = vor.u32 4788187, %v1849
    %v1851 = vand.u32 2147483647, %v1850
    %v1853 = vcvt.s32.f32 %v1846
    %v1854 = vmul.f32 %v1853, %v1851
    %v1855 = vxor.u32 %v1854, 2147483648
    %v1856 = vsel %vm1773, %v1855, %v1854
    %v1857 = vsub.s32 4, %v1833
    %v1858 = vsel %vm1773, %v1857, %v1833
    %v1859 = vsel %vm1772, %v217, %v1856
    %v1860 = vsel %vm1772, 0, %v1858
    %v1861 = vcosq.f32.pop %v1859
    %v1862 = vsinq.f32.pop %v1859
    %vm1863 = vweird.f32 %v217
    %v1864 = vand.u32 %v1860, 3
    %vm1865 = vcmp.lt.s32.totalorder %v1864, 2
    %vm1866 = vcmp.eq.s32.totalorder %v1864, 0
    %v1867 = vxor.u32 %v1862, 2147483648
    %v1868 = vsel %vm1866, %v1861, %v1867
    %vm1869 = vcmp.eq.s32.totalorder %v1864, 2
    %v1870 = vxor.u32 %v1861, 2147483648
    %v1871 = vsel %vm1869, %v1870, %v1862
    %v1872 = vsel %vm1865, %v1868, %v1871
    %v1873 = vsel %vm1863, nan, %v1872
    %v1878 = vrot.slane %v321, 5
    %v1879 = vrot.slane %v425, 5
    %v1880 = vrot.slane %v529, 5
    %v1881 = vrot.slane %v633, 5
    %v1890 = vrot.slane %v1152, 1
    %v1891 = vrot.slane %v1255, 1
    %v1892 = vrot.slane %v1358, 1
    %v1893 = vrot.slane %v1461, 1
    %v1898 = vrot.slane %v321, 1
    %v1899 = vrot.slane %v425, 1
    %v1900 = vrot.slane %v529, 1
    %v1901 = vrot.slane %v633, 1
    %v1906 = vrot.slane %v1152, 5
    %v1907 = vrot.slane %v1255, 5
    %v1908 = vrot.slane %v1358, 5
    %v1909 = vrot.slane %v1461, 5
    %v1918 = vrot.slane %v737, 5
    %v1919 = vrot.slane %v841, 5
    %v1920 = vrot.slane %v945, 5
    %v1921 = vrot.slane %v1049, 5
    %v1930 = vrot.slane %v1564, 1
    %v1931 = vrot.slane %v1667, 1
    %v1932 = vrot.slane %v1770, 1
    %v1933 = vrot.slane %v1873, 1
    %v1938 = vsel %vm181, %v55, %v1878
    %v1939 = vsel %vm181, %v56, %v1879
    %v1940 = vsel %vm181, %v57, %v1880
    %v1941 = vsel %vm181, %v58, %v1881
    %v1942 = vsel %vm201, %v1938, %v1890
    %v1943 = vsel %vm201, %v1939, %v1891
    %v1944 = vsel %vm201, %v1940, %v1892
    %v1945 = vsel %vm201, %v1941, %v1893
    %v1946 = vsel %vm181, %v1890, %v1898
    %v1947 = vsel %vm181, %v1891, %v1899
    %v1948 = vsel %vm181, %v1892, %v1900
    %v1949 = vsel %vm181, %v1893, %v1901
    %v1950 = vsel %vm201, %v1946, %v1906
    %v1951 = vsel %vm201, %v1947, %v1907
    %v1952 = vsel %vm201, %v1948, %v1908
    %v1953 = vsel %vm201, %v1949, %v1909
    %v1954 = vsel %vm181, %v1906, %v1918
    %v1955 = vsel %vm181, %v1907, %v1919
    %v1956 = vsel %vm181, %v1908, %v1920
    %v1957 = vsel %vm181, %v1909, %v1921
    %v1958 = vsel %vm201, %v1954, %v1930
    %v1959 = vsel %vm201, %v1955, %v1931
    %v1960 = vsel %vm201, %v1956, %v1932
    %v1961 = vsel %vm201, %v1957, %v1933
    %v1962 = vmul.f32 %v1152, 3.1415927
    %v1963 = vmul.f32 %v1255, 3.1415927
    %v1964 = vmul.f32 %v1358, 3.1415927
    %v1965 = vmul.f32 %v1461, 3.1415927
    %v1966 = vmul.f32 %v1152, 6.2831855
    %v1967 = vmul.f32 %v1255, 6.2831855
    %v1968 = vmul.f32 %v1358, 6.2831855
    %v1969 = vmul.f32 %v1461, 6.2831855
    %v1970 = vmul.f32 %v1152, 12.566371
    %v1971 = vmul.f32 %v1255, 12.566371
    %v1972 = vmul.f32 %v1358, 12.566371
    %v1973 = vmul.f32 %v1461, 12.566371
    %v1974 = vmul.f32 %v1152, 25.132742
    %v1975 = vmul.f32 %v1255, 25.132742
    %v1976 = vmul.f32 %v1358, 25.132742
    %v1977 = vmul.f32 %v1461, 25.132742
    %v1978 = vmul.f32 %v1564, 3.1415927
    %v1979 = vmul.f32 %v1667, 3.1415927
    %v1980 = vmul.f32 %v1770, 3.1415927
    %v1981 = vmul.f32 %v1873, 3.1415927
    %v1982 = vmul.f32 %v1564, 6.2831855
    %v1983 = vmul.f32 %v1667, 6.2831855
    %v1984 = vmul.f32 %v1770, 6.2831855
    %v1985 = vmul.f32 %v1873, 6.2831855
    %v1986 = vmul.f32 %v1564, 12.566371
    %v1987 = vmul.f32 %v1667, 12.566371
    %v1988 = vmul.f32 %v1770, 12.566371
    %v1989 = vmul.f32 %v1873, 12.566371
    %v1990 = vmul.f32 %v1564, 25.132742
    %v1991 = vmul.f32 %v1667, 25.132742
    %v1992 = vmul.f32 %v1770, 25.132742
    %v1993 = vmul.f32 %v1873, 25.132742
    %v1994 = vsel %vm171, %v1962, %v1966
    %v1995 = vsel %vm171, %v1963, %v1967
    %v1996 = vsel %vm171, %v1964, %v1968
    %v1997 = vsel %vm171, %v1965, %v1969
    %v1998 = vsel %vm176, %v1994, %v1970
    %v1999 = vsel %vm176, %v1995, %v1971
    %v2000 = vsel %vm176, %v1996, %v1972
    %v2001 = vsel %vm176, %v1997, %v1973
    %v2002 = vsel %vm181, %v1998, %v1974
    %v2003 = vsel %vm181, %v1999, %v1975
    %v2004 = vsel %vm181, %v2000, %v1976
    %v2005 = vsel %vm181, %v2001, %v1977
    %v2006 = vsel %vm186, %v2002, %v1962
    %v2007 = vsel %vm186, %v2003, %v1963
    %v2008 = vsel %vm186, %v2004, %v1964
    %v2009 = vsel %vm186, %v2005, %v1965
    %v2010 = vsel %vm191, %v2006, %v1966
    %v2011 = vsel %vm191, %v2007, %v1967
    %v2012 = vsel %vm191, %v2008, %v1968
    %v2013 = vsel %vm191, %v2009, %v1969
    %v2014 = vsel %vm196, %v2010, %v1970
    %v2015 = vsel %vm196, %v2011, %v1971
    %v2016 = vsel %vm196, %v2012, %v1972
    %v2017 = vsel %vm196, %v2013, %v1973
    %v2018 = vsel %vm201, %v2014, %v1974
    %v2019 = vsel %vm201, %v2015, %v1975
    %v2020 = vsel %vm201, %v2016, %v1976
    %v2021 = vsel %vm201, %v2017, %v1977
    %v2022 = vsel %vm171, %v1978, %v1982
    %v2023 = vsel %vm171, %v1979, %v1983
    %v2024 = vsel %vm171, %v1980, %v1984
    %v2025 = vsel %vm171, %v1981, %v1985
    %v2026 = vsel %vm176, %v2022, %v1986
    %v2027 = vsel %vm176, %v2023, %v1987
    %v2028 = vsel %vm176, %v2024, %v1988
    %v2029 = vsel %vm176, %v2025, %v1989
    %v2030 = vsel %vm181, %v2026, %v1990
    %v2031 = vsel %vm181, %v2027, %v1991
    %v2032 = vsel %vm181, %v2028, %v1992
    %v2033 = vsel %vm181, %v2029, %v1993
    %v2034 = vmul.f32 %v321, -3.1415927
    %v2035 = vmul.f32 %v425, -3.1415927
    %v2036 = vmul.f32 %v529, -3.1415927
    %v2037 = vmul.f32 %v633, -3.1415927
    %v2038 = vmul.f32 %v321, -6.2831855
    %v2039 = vmul.f32 %v425, -6.2831855
    %v2040 = vmul.f32 %v529, -6.2831855
    %v2041 = vmul.f32 %v633, -6.2831855
    %v2042 = vmul.f32 %v321, -12.566371
    %v2043 = vmul.f32 %v425, -12.566371
    %v2044 = vmul.f32 %v529, -12.566371
    %v2045 = vmul.f32 %v633, -12.566371
    %v2046 = vmul.f32 %v321, -25.132742
    %v2047 = vmul.f32 %v425, -25.132742
    %v2048 = vmul.f32 %v529, -25.132742
    %v2049 = vmul.f32 %v633, -25.132742
    %v2050 = vmul.f32 %v737, -3.1415927
    %v2051 = vmul.f32 %v841, -3.1415927
    %v2052 = vmul.f32 %v945, -3.1415927
    %v2053 = vmul.f32 %v1049, -3.1415927
    %v2054 = vmul.f32 %v737, -6.2831855
    %v2055 = vmul.f32 %v841, -6.2831855
    %v2056 = vmul.f32 %v945, -6.2831855
    %v2057 = vmul.f32 %v1049, -6.2831855
    %v2058 = vmul.f32 %v737, -12.566371
    %v2059 = vmul.f32 %v841, -12.566371
    %v2060 = vmul.f32 %v945, -12.566371
    %v2061 = vmul.f32 %v1049, -12.566371
    %v2062 = vmul.f32 %v737, -25.132742
    %v2063 = vmul.f32 %v841, -25.132742
    %v2064 = vmul.f32 %v945, -25.132742
    %v2065 = vmul.f32 %v1049, -25.132742
    %v2066 = vsel %vm171, %v2034, %v2038
    %v2067 = vsel %vm171, %v2035, %v2039
    %v2068 = vsel %vm171, %v2036, %v2040
    %v2069 = vsel %vm171, %v2037, %v2041
    %v2070 = vsel %vm176, %v2066, %v2042
    %v2071 = vsel %vm176, %v2067, %v2043
    %v2072 = vsel %vm176, %v2068, %v2044
    %v2073 = vsel %vm176, %v2069, %v2045
    %v2074 = vsel %vm181, %v2070, %v2046
    %v2075 = vsel %vm181, %v2071, %v2047
    %v2076 = vsel %vm181, %v2072, %v2048
    %v2077 = vsel %vm181, %v2073, %v2049
    %v2078 = vsel %vm186, %v2074, %v2034
    %v2079 = vsel %vm186, %v2075, %v2035
    %v2080 = vsel %vm186, %v2076, %v2036
    %v2081 = vsel %vm186, %v2077, %v2037
    %v2082 = vsel %vm191, %v2078, %v2038
    %v2083 = vsel %vm191, %v2079, %v2039
    %v2084 = vsel %vm191, %v2080, %v2040
    %v2085 = vsel %vm191, %v2081, %v2041
    %v2086 = vsel %vm196, %v2082, %v2042
    %v2087 = vsel %vm196, %v2083, %v2043
    %v2088 = vsel %vm196, %v2084, %v2044
    %v2089 = vsel %vm196, %v2085, %v2045
    %v2090 = vsel %vm201, %v2086, %v2046
    %v2091 = vsel %vm201, %v2087, %v2047
    %v2092 = vsel %vm201, %v2088, %v2048
    %v2093 = vsel %vm201, %v2089, %v2049
    %v2094 = vsel %vm171, %v2050, %v2054
    %v2095 = vsel %vm171, %v2051, %v2055
    %v2096 = vsel %vm171, %v2052, %v2056
    %v2097 = vsel %vm171, %v2053, %v2057
    %v2098 = vsel %vm176, %v2094, %v2058
    %v2099 = vsel %vm176, %v2095, %v2059
    %v2100 = vsel %vm176, %v2096, %v2060
    %v2101 = vsel %vm176, %v2097, %v2061
    %v2102 = vsel %vm181, %v2098, %v2062
    %v2103 = vsel %vm181, %v2099, %v2063
    %v2104 = vsel %vm181, %v2100, %v2064
    %v2105 = vsel %vm181, %v2101, %v2065
    %v2106 = vlaneseq
    %v2107 = vshrl.u32 %v2106, 7
    %vm2108 = vcmp.eq.s32.totalorder %v2107, 0
    %v2109 = vsel %vm2108, 1.0, 0.0
    %v2114 = vrot.slane %v2090, 4
    %v2115 = vrot.slane %v2091, 4
    %v2116 = vrot.slane %v2092, 4
    %v2117 = vrot.slane %v2093, 4
    %v2122 = vsel %vm186, %v2018, %v2114
    %v2123 = vsel %vm186, %v2019, %v2115
    %v2124 = vsel %vm186, %v2020, %v2116
    %v2125 = vsel %vm186, %v2021, %v2117
    %v2130 = vrot.slane %v2122, 5
    %v2131 = vrot.slane %v2123, 5
    %v2132 = vrot.slane %v2124, 5
    %v2133 = vrot.slane %v2125, 5
    %v2138 = vsel %vm181, %v2109, %v2130
    %v2139 = vsel %vm181, %v2109, %v2131
    %v2140 = vsel %vm181, %v2109, %v2132
    %v2141 = vsel %vm181, %v2109, %v2133
    %v2142 = vsel %vm181, %v2130, 0.0
    %v2143 = vsel %vm181, %v2131, 0.0
    %v2144 = vsel %vm181, %v2132, 0.0
    %v2145 = vsel %vm181, %v2133, 0.0
    %vm2146 = vcmp.eq.s32.totalorder %v2107, 1
    %v2147 = vsel %vm2146, 1.0, 0.0
    %v2152 = vrot.slane %v2018, 4
    %v2153 = vrot.slane %v2019, 4
    %v2154 = vrot.slane %v2020, 4
    %v2155 = vrot.slane %v2021, 4
    %v2160 = vsel %vm186, %v2152, %v2090
    %v2161 = vsel %vm186, %v2153, %v2091
    %v2162 = vsel %vm186, %v2154, %v2092
    %v2163 = vsel %vm186, %v2155, %v2093
    %v2168 = vrot.slane %v2160, 5
    %v2169 = vrot.slane %v2161, 5
    %v2170 = vrot.slane %v2162, 5
    %v2171 = vrot.slane %v2163, 5
    %v2176 = vsel %vm181, %v2147, 0.0
    %v2177 = vsel %vm181, 0.0, %v2168
    %v2178 = vsel %vm181, 0.0, %v2169
    %v2179 = vsel %vm181, 0.0, %v2170
    %v2180 = vsel %vm181, 0.0, %v2171
    %v2181 = vsel %vm181, %v2168, 0.0
    %v2182 = vsel %vm181, %v2169, 0.0
    %v2183 = vsel %vm181, %v2170, 0.0
    %v2184 = vsel %vm181, %v2171, 0.0
    %vm2185 = vcmp.eq.s32.totalorder %v2107, 2
    %v2186 = vsel %vm2185, 1.0, 0.0
    %v2191 = vrot.slane %v2102, 4
    %v2192 = vrot.slane %v2103, 4
    %v2193 = vrot.slane %v2104, 4
    %v2194 = vrot.slane %v2105, 4
    %v2199 = vsel %vm186, %v2030, %v2191
    %v2200 = vsel %vm186, %v2031, %v2192
    %v2201 = vsel %vm186, %v2032, %v2193
    %v2202 = vsel %vm186, %v2033, %v2194
    %v2207 = vrot.slane %v2199, 5
    %v2208 = vrot.slane %v2200, 5
    %v2209 = vrot.slane %v2201, 5
    %v2210 = vrot.slane %v2202, 5
    %v2215 = vsel %vm181, %v2186, 0.0
    %v2216 = vsel %vm181, 0.0, %v2207
    %v2217 = vsel %vm181, 0.0, %v2208
    %v2218 = vsel %vm181, 0.0, %v2209
    %v2219 = vsel %vm181, 0.0, %v2210
    %v2220 = vlaneseq
    %v2221 = vand.u32 %v2220, 127
    %v2222 = vadd.s32 %v2221, 128
    %v2223 = vadd.s32 %v2221, 256
    %v2224 = vadd.s32 %v2221, 384
    %v2225 = vadd.s32 %v2221, 512
    %v2226 = vadd.s32 %v2221, 640
    %v2227 = vadd.s32 %v2221, 768
    %v2228 = vadd.s32 %v2221, 896
    %v2229 = vadd.s32 %v2221, 1024
    %v2230 = vadd.s32 %v2221, 1152
    %v2231 = vadd.s32 %v2221, 1280
    %v2232 = vadd.s32 %v2221, 1408
    %v2233 = vadd.s32 %v2221, 1536
    %v2234 = vadd.s32 %v2221, 1664
    %v2235 = vadd.s32 %v2221, 1792
    %v2236 = vadd.s32 %v2221, 1920
    %vm2237 = vcmp.lt.s32.totalorder %v2221, 512
    %vm2238 = vcmp.lt.s32.totalorder %v2222, 512
    %vm2239 = vcmp.lt.s32.totalorder %v2223, 512
    %vm2240 = vcmp.lt.s32.totalorder %v2224, 512
    %vm2241 = vcmp.lt.s32.totalorder %v2225, 512
    %vm2242 = vcmp.lt.s32.totalorder %v2226, 512
    %vm2243 = vcmp.lt.s32.totalorder %v2227, 512
    %vm2244 = vcmp.lt.s32.totalorder %v2228, 512
    %vm2245 = vcmp.lt.s32.totalorder %v2229, 512
    %vm2246 = vcmp.lt.s32.totalorder %v2230, 512
    %vm2247 = vcmp.lt.s32.totalorder %v2231, 512
    %vm2248 = vcmp.lt.s32.totalorder %v2232, 512
    %vm2249 = vcmp.lt.s32.totalorder %v2233, 512
    %vm2250 = vcmp.lt.s32.totalorder %v2234, 512
    %vm2251 = vcmp.lt.s32.totalorder %v2235, 512
    %vm2252 = vcmp.lt.s32.totalorder %v2236, 512
    %v2253 = vsel %vm2237, 1, 0
    %v2254 = vsel %vm2238, 1, 0
    %v2255 = vsel %vm2239, 1, 0
    %v2256 = vsel %vm2240, 1, 0
    %v2257 = vsel %vm2241, 1, 0
    %v2258 = vsel %vm2242, 1, 0
    %v2259 = vsel %vm2243, 1, 0
    %v2260 = vsel %vm2244, 1, 0
    %v2261 = vsel %vm2245, 1, 0
    %v2262 = vsel %vm2246, 1, 0
    %v2263 = vsel %vm2247, 1, 0
    %v2264 = vsel %vm2248, 1, 0
    %v2265 = vsel %vm2249, 1, 0
    %v2266 = vsel %vm2250, 1, 0
    %v2267 = vsel %vm2251, 1, 0
    %v2268 = vsel %vm2252, 1, 0
    %v2269 = vcvt.s32.f32 %v2253
    %v2270 = vcvt.s32.f32 %v2254
    %v2271 = vcvt.s32.f32 %v2255
    %v2272 = vcvt.s32.f32 %v2256
    %v2273 = vcvt.s32.f32 %v2257
    %v2274 = vcvt.s32.f32 %v2258
    %v2275 = vcvt.s32.f32 %v2259
    %v2276 = vcvt.s32.f32 %v2260
    %v2277 = vcvt.s32.f32 %v2261
    %v2278 = vcvt.s32.f32 %v2262
    %v2279 = vcvt.s32.f32 %v2263
    %v2280 = vcvt.s32.f32 %v2264
    %v2281 = vcvt.s32.f32 %v2265
    %v2282 = vcvt.s32.f32 %v2266
    %v2283 = vcvt.s32.f32 %v2267
    %v2284 = vcvt.s32.f32 %v2268
    %v2285 = vld [vmem:[%s1] sm:$0xff]
    %v2286 = vld [vmem:[%s1 + $0x8] sm:$0xff]
    %v2287 = vld [vmem:[%s1 + $0x10] sm:$0xff]
    %v2288 = vld [vmem:[%s1 + $0x18] sm:$0xff]
    %v2289 = vld [vmem:[%s1 + $0x20] sm:$0xff]
    %v2290 = vld [vmem:[%s1 + $0x28] sm:$0xff]
    %v2291 = vld [vmem:[%s1 + $0x30] sm:$0xff]
    %v2292 = vld [vmem:[%s1 + $0x38] sm:$0xff]
    %v2293 = vld [vmem:[%s2] sm:$0xff]
    %v2294 = vld [vmem:[%s2 + $0x8] sm:$0xff]
    %v2295 = vld [vmem:[%s2 + $0x10] sm:$0xff]
    %v2296 = vld [vmem:[%s2 + $0x18] sm:$0xff]
    %v2297 = vld [vmem:[%s2 + $0x20] sm:$0xff]
    %v2298 = vld [vmem:[%s2 + $0x28] sm:$0xff]
    %v2299 = vld [vmem:[%s2 + $0x30] sm:$0xff]
    %v2300 = vld [vmem:[%s2 + $0x38] sm:$0xff]
    %2302 = vset.pattern.permute.xlu0 0
    %2303 = vperm.xlu0 %2302, %v2293
    %v2304 = vpop.permute.xlu0 %2303
    %2307 = vset.pattern.permute.xlu0 0
    %2308 = vperm.xlu0 %2307, %v2294
    %v2309 = vpop.permute.xlu0 %2308
    %2312 = vset.pattern.permute.xlu0 0
    %2313 = vperm.xlu0 %2312, %v2295
    %v2314 = vpop.permute.xlu0 %2313
    %2317 = vset.pattern.permute.xlu0 0
    %2318 = vperm.xlu0 %2317, %v2296
    %v2319 = vpop.permute.xlu0 %2318
    %2322 = vset.pattern.permute.xlu0 0
    %2323 = vperm.xlu0 %2322, %v2297
    %v2324 = vpop.permute.xlu0 %2323
    %2327 = vset.pattern.permute.xlu0 0
    %2328 = vperm.xlu0 %2327, %v2298
    %v2329 = vpop.permute.xlu0 %2328
    %2332 = vset.pattern.permute.xlu0 0
    %2333 = vperm.xlu0 %2332, %v2299
    %v2334 = vpop.permute.xlu0 %2333
    %2337 = vset.pattern.permute.xlu0 0
    %2338 = vperm.xlu0 %2337, %v2300
    %v2339 = vpop.permute.xlu0 %2338
    %v2341 = vmul.f32 %v2304, %v2269
    %v2342 = vmul.f32 %v2304, %v2270
    %v2343 = vmul.f32 %v2304, %v2271
    %v2344 = vmul.f32 %v2304, %v2272
    %v2345 = vmul.f32 %v2304, %v2273
    %v2346 = vmul.f32 %v2304, %v2274
    %v2347 = vmul.f32 %v2304, %v2275
    %v2348 = vmul.f32 %v2304, %v2276
    %v2349 = vmul.f32 %v2304, %v2277
    %v2350 = vmul.f32 %v2304, %v2278
    %v2351 = vmul.f32 %v2304, %v2279
    %v2352 = vmul.f32 %v2304, %v2280
    %v2353 = vmul.f32 %v2304, %v2281
    %v2354 = vmul.f32 %v2304, %v2282
    %v2355 = vmul.f32 %v2304, %v2283
    %v2356 = vmul.f32 %v2304, %v2284
    %v2357 = vmul.f32 %v2309, %v2269
    %v2358 = vmul.f32 %v2309, %v2270
    %v2359 = vmul.f32 %v2309, %v2271
    %v2360 = vmul.f32 %v2309, %v2272
    %v2361 = vmul.f32 %v2309, %v2273
    %v2362 = vmul.f32 %v2309, %v2274
    %v2363 = vmul.f32 %v2309, %v2275
    %v2364 = vmul.f32 %v2309, %v2276
    %v2365 = vmul.f32 %v2309, %v2277
    %v2366 = vmul.f32 %v2309, %v2278
    %v2367 = vmul.f32 %v2309, %v2279
    %v2368 = vmul.f32 %v2309, %v2280
    %v2369 = vmul.f32 %v2309, %v2281
    %v2370 = vmul.f32 %v2309, %v2282
    %v2371 = vmul.f32 %v2309, %v2283
    %v2372 = vmul.f32 %v2309, %v2284
    %v2373 = vmul.f32 %v2314, %v2269
    %v2374 = vmul.f32 %v2314, %v2270
    %v2375 = vmul.f32 %v2314, %v2271
    %v2376 = vmul.f32 %v2314, %v2272
    %v2377 = vmul.f32 %v2314, %v2273
    %v2378 = vmul.f32 %v2314, %v2274
    %v2379 = vmul.f32 %v2314, %v2275
    %v2380 = vmul.f32 %v2314, %v2276
    %v2381 = vmul.f32 %v2314, %v2277
    %v2382 = vmul.f32 %v2314, %v2278
    %v2383 = vmul.f32 %v2314, %v2279
    %v2384 = vmul.f32 %v2314, %v2280
    %v2385 = vmul.f32 %v2314, %v2281
    %v2386 = vmul.f32 %v2314, %v2282
    %v2387 = vmul.f32 %v2314, %v2283
    %v2388 = vmul.f32 %v2314, %v2284
    %v2389 = vmul.f32 %v2319, %v2269
    %v2390 = vmul.f32 %v2319, %v2270
    %v2391 = vmul.f32 %v2319, %v2271
    %v2392 = vmul.f32 %v2319, %v2272
    %v2393 = vmul.f32 %v2319, %v2273
    %v2394 = vmul.f32 %v2319, %v2274
    %v2395 = vmul.f32 %v2319, %v2275
    %v2396 = vmul.f32 %v2319, %v2276
    %v2397 = vmul.f32 %v2319, %v2277
    %v2398 = vmul.f32 %v2319, %v2278
    %v2399 = vmul.f32 %v2319, %v2279
    %v2400 = vmul.f32 %v2319, %v2280
    %v2401 = vmul.f32 %v2319, %v2281
    %v2402 = vmul.f32 %v2319, %v2282
    %v2403 = vmul.f32 %v2319, %v2283
    %v2404 = vmul.f32 %v2319, %v2284
    %v2405 = vmul.f32 %v2324, %v2269
    %v2406 = vmul.f32 %v2324, %v2270
    %v2407 = vmul.f32 %v2324, %v2271
    %v2408 = vmul.f32 %v2324, %v2272
    %v2409 = vmul.f32 %v2324, %v2273
    %v2410 = vmul.f32 %v2324, %v2274
    %v2411 = vmul.f32 %v2324, %v2275
    %v2412 = vmul.f32 %v2324, %v2276
    %v2413 = vmul.f32 %v2324, %v2277
    %v2414 = vmul.f32 %v2324, %v2278
    %v2415 = vmul.f32 %v2324, %v2279
    %v2416 = vmul.f32 %v2324, %v2280
    %v2417 = vmul.f32 %v2324, %v2281
    %v2418 = vmul.f32 %v2324, %v2282
    %v2419 = vmul.f32 %v2324, %v2283
    %v2420 = vmul.f32 %v2324, %v2284
    %v2421 = vmul.f32 %v2329, %v2269
    %v2422 = vmul.f32 %v2329, %v2270
    %v2423 = vmul.f32 %v2329, %v2271
    %v2424 = vmul.f32 %v2329, %v2272
    %v2425 = vmul.f32 %v2329, %v2273
    %v2426 = vmul.f32 %v2329, %v2274
    %v2427 = vmul.f32 %v2329, %v2275
    %v2428 = vmul.f32 %v2329, %v2276
    %v2429 = vmul.f32 %v2329, %v2277
    %v2430 = vmul.f32 %v2329, %v2278
    %v2431 = vmul.f32 %v2329, %v2279
    %v2432 = vmul.f32 %v2329, %v2280
    %v2433 = vmul.f32 %v2329, %v2281
    %v2434 = vmul.f32 %v2329, %v2282
    %v2435 = vmul.f32 %v2329, %v2283
    %v2436 = vmul.f32 %v2329, %v2284
    %v2437 = vmul.f32 %v2334, %v2269
    %v2438 = vmul.f32 %v2334, %v2270
    %v2439 = vmul.f32 %v2334, %v2271
    %v2440 = vmul.f32 %v2334, %v2272
    %v2441 = vmul.f32 %v2334, %v2273
    %v2442 = vmul.f32 %v2334, %v2274
    %v2443 = vmul.f32 %v2334, %v2275
    %v2444 = vmul.f32 %v2334, %v2276
    %v2445 = vmul.f32 %v2334, %v2277
    %v2446 = vmul.f32 %v2334, %v2278
    %v2447 = vmul.f32 %v2334, %v2279
    %v2448 = vmul.f32 %v2334, %v2280
    %v2449 = vmul.f32 %v2334, %v2281
    %v2450 = vmul.f32 %v2334, %v2282
    %v2451 = vmul.f32 %v2334, %v2283
    %v2452 = vmul.f32 %v2334, %v2284
    %v2453 = vmul.f32 %v2339, %v2269
    %v2454 = vmul.f32 %v2339, %v2270
    %v2455 = vmul.f32 %v2339, %v2271
    %v2456 = vmul.f32 %v2339, %v2272
    %v2457 = vmul.f32 %v2339, %v2273
    %v2458 = vmul.f32 %v2339, %v2274
    %v2459 = vmul.f32 %v2339, %v2275
    %v2460 = vmul.f32 %v2339, %v2276
    %v2461 = vmul.f32 %v2339, %v2277
    %v2462 = vmul.f32 %v2339, %v2278
    %v2463 = vmul.f32 %v2339, %v2279
    %v2464 = vmul.f32 %v2339, %v2280
    %v2465 = vmul.f32 %v2339, %v2281
    %v2466 = vmul.f32 %v2339, %v2282
    %v2467 = vmul.f32 %v2339, %v2283
    %v2468 = vmul.f32 %v2339, %v2284
    %vm2469 = vcmask 220160
    %v2471 = vsel %vm2469, %v2285, 0
    %v2474 = vsel %vm2469, %v2286, 0
    %v2477 = vsel %vm2469, %v2287, 0
    %v2480 = vsel %vm2469, %v2288, 0
    %v2483 = vsel %vm2469, %v2289, 0
    %v2486 = vsel %vm2469, %v2290, 0
    %v2489 = vsel %vm2469, %v2291, 0
    %v2492 = vsel %vm2469, %v2292, 0
    %v2494 = vsel %vm181, %v1930, 0
    %v2496 = vsel %vm181, %v1931, 0
    %v2498 = vsel %vm181, %v1932, 0
    %v2500 = vsel %vm181, %v1933, 0
    %v2503 = vsel %vm181, 0.0, 0
    %v2505 = vsel %vm181, %v2207, 0
    %v2507 = vsel %vm181, %v2208, 0
    %v2509 = vsel %vm181, %v2209, 0
    %v2511 = vsel %vm181, %v2210, 0
    %2513 = vmatprep.subr.mxu0 0.0
    %2514 = vmatpush1.msra.mxu0 0.0
    %2515 = vmatprep.subr.mxu0 0.0
    %2516 = vmatpush1.msra.mxu0 0.0
    %2517 = vmatprep.subr.mxu0 0.0
    %2518 = vmatpush1.msra.mxu0 0.0
    %2519 = vmatprep.subr.mxu0 0.0
    %2520 = vmatpush1.msra.mxu0 0.0
    %2521 = vmatprep.subr.mxu0 0.0
    %2522 = vmatpush1.msra.mxu0 0.0
    %2523 = vmatprep.subr.mxu0 0.0
    %2524 = vmatpush1.msra.mxu0 0.0
    %2525 = vmatprep.subr.mxu0 0.0
    %2526 = vmatpush1.msra.mxu0 0.0
    %2527 = vmatprep.subr.mxu0 0.0
    %2528 = vmatpush1.msra.mxu0 0.0
    %2529 = vmatprep.subr.mxu0 0.0
    %2530 = vmatpush1.msra.mxu0 0.0
    %2531 = vmatprep.subr.mxu0 0.0
    %2532 = vmatpush1.msra.mxu0 0.0
    %2533 = vmatprep.subr.mxu0 0.0
    %2534 = vmatpush1.msra.mxu0 0.0
    %2535 = vmatprep.subr.mxu0 0.0
    %2536 = vmatpush1.msra.mxu0 0.0
    %2537 = vmatprep.subr.mxu0 %v2496
    %2538 = vmatpush1.msra.mxu0 %v2494
    %2539 = vmatprep.subr.mxu0 %v1959
    %2540 = vmatpush1.msra.mxu0 %v1958
    %2541 = vmatprep.subr.mxu0 %v1951
    %2542 = vmatpush1.msra.mxu0 %v1950
    %2543 = vmatprep.subr.mxu0 %v1943
    %2544 = vmatpush1.msra.mxu0 %v1942
    %2545 = vmatprep.subr.mxu0 0.0
    %2546 = vmatpush2.msra.mxu0 0.0
    %2547 = vmatprep.subr.mxu0 0.0
    %2548 = vmatpush2.msra.mxu0 0.0
    %2549 = vmatprep.subr.mxu0 0.0
    %2550 = vmatpush2.msra.mxu0 0.0
    %2551 = vmatprep.subr.mxu0 0.0
    %2552 = vmatpush2.msra.mxu0 0.0
    %2553 = vmatprep.subr.mxu0 0.0
    %2554 = vmatpush2.msra.mxu0 0.0
    %2555 = vmatprep.subr.mxu0 0.0
    %2556 = vmatpush2.msra.mxu0 0.0
    %2557 = vmatprep.subr.mxu0 0.0
    %2558 = vmatpush2.msra.mxu0 0.0
    %2559 = vmatprep.subr.mxu0 0.0
    %2560 = vmatpush2.msra.mxu0 0.0
    %2561 = vmatprep.subr.mxu0 0.0
    %2562 = vmatpush2.msra.mxu0 0.0
    %2563 = vmatprep.subr.mxu0 0.0
    %2564 = vmatpush2.msra.mxu0 0.0
    %2565 = vmatprep.subr.mxu0 0.0
    %2566 = vmatpush2.msra.mxu0 0.0
    %2567 = vmatprep.subr.mxu0 0.0
    %2568 = vmatpush2.msra.mxu0 0.0
    %2569 = vmatprep.subr.mxu0 0.0
    %2570 = vmatpush2.msra.mxu0 0.0
    %2571 = vmatprep.subr.mxu0 0.0
    %2572 = vmatpush2.msra.mxu0 0.0
    %2573 = vmatprep.subr.mxu0 0.0
    %2574 = vmatpush2.msra.mxu0 0.0
    %2575 = vmatprep.subr.mxu0 0.0
    %2576 = vmatpush2.msra.mxu0 0.0
    %2577 = vmatprep.mubr.f32.mxu0 0.0
    %2578 = vmatmul.mubr.f32.gmra.mxu0 %v2471
    %v2579 = vpop.f32.mrf.mxu0
    %v2580 = vadd.f32 %v2341, %v2579
    %v2581 = vpop.f32.mrf.mxu0
    %v2582 = vadd.f32 %v2342, %v2581
    %2583 = vmatprep.mubr.f32.mxu0 0.0
    %2584 = vmatmul.mubr.f32.gmra.mxu0 %v2474
    %v2585 = vpop.f32.mrf.mxu0
    %v2586 = vadd.f32 %v2357, %v2585
    %v2587 = vpop.f32.mrf.mxu0
    %v2588 = vadd.f32 %v2358, %v2587
    %2589 = vmatprep.mubr.f32.mxu0 0.0
    %2590 = vmatmul.mubr.f32.gmra.mxu0 %v2477
    %v2591 = vpop.f32.mrf.mxu0
    %v2592 = vadd.f32 %v2373, %v2591
    %v2593 = vpop.f32.mrf.mxu0
    %v2594 = vadd.f32 %v2374, %v2593
    %2595 = vmatprep.mubr.f32.mxu0 0.0
    %2596 = vmatmul.mubr.f32.gmra.mxu0 %v2480
    %v2597 = vpop.f32.mrf.mxu0
    %v2598 = vadd.f32 %v2389, %v2597
    %v2599 = vpop.f32.mrf.mxu0
    %v2600 = vadd.f32 %v2390, %v2599
    %2601 = vmatprep.mubr.f32.mxu0 0.0
    %2602 = vmatmul.mubr.f32.gmra.mxu0 %v2483
    %v2603 = vpop.f32.mrf.mxu0
    %v2604 = vadd.f32 %v2405, %v2603
    %v2605 = vpop.f32.mrf.mxu0
    %v2606 = vadd.f32 %v2406, %v2605
    %2607 = vmatprep.mubr.f32.mxu0 0.0
    %2608 = vmatmul.mubr.f32.gmra.mxu0 %v2486
    %v2609 = vpop.f32.mrf.mxu0
    %v2610 = vadd.f32 %v2421, %v2609
    %v2611 = vpop.f32.mrf.mxu0
    %v2612 = vadd.f32 %v2422, %v2611
    %2613 = vmatprep.mubr.f32.mxu0 0.0
    %2614 = vmatmul.mubr.f32.gmra.mxu0 %v2489
    %v2615 = vpop.f32.mrf.mxu0
    %v2616 = vadd.f32 %v2437, %v2615
    %v2617 = vpop.f32.mrf.mxu0
    %v2618 = vadd.f32 %v2438, %v2617
    %2619 = vmatprep.mubr.f32.mxu0 0.0
    %2620 = vmatmul.mubr.f32.gmra.mxu0 %v2492
    %v2621 = vpop.f32.mrf.mxu0
    %v2622 = vadd.f32 %v2453, %v2621
    %v2623 = vpop.f32.mrf.mxu0
    %v2624 = vadd.f32 %v2454, %v2623
    %2625 = vdwg.mxu0
    %2626 = vmatprep.subr.mxu0 0.0
    %2627 = vmatpush1.msra.mxu0 0.0
    %2628 = vmatprep.subr.mxu0 0.0
    %2629 = vmatpush1.msra.mxu0 0.0
    %2630 = vmatprep.subr.mxu0 0.0
    %2631 = vmatpush1.msra.mxu0 0.0
    %2632 = vmatprep.subr.mxu0 0.0
    %2633 = vmatpush1.msra.mxu0 0.0
    %2634 = vmatprep.subr.mxu0 0.0
    %2635 = vmatpush1.msra.mxu0 0.0
    %2636 = vmatprep.subr.mxu0 0.0
    %2637 = vmatpush1.msra.mxu0 0.0
    %2638 = vmatprep.subr.mxu0 0.0
    %2639 = vmatpush1.msra.mxu0 0.0
    %2640 = vmatprep.subr.mxu0 0.0
    %2641 = vmatpush1.msra.mxu0 0.0
    %2642 = vmatprep.subr.mxu0 0.0
    %2643 = vmatpush1.msra.mxu0 0.0
    %2644 = vmatprep.subr.mxu0 0.0
    %2645 = vmatpush1.msra.mxu0 0.0
    %2646 = vmatprep.subr.mxu0 0.0
    %2647 = vmatpush1.msra.mxu0 0.0
    %2648 = vmatprep.subr.mxu0 0.0
    %2649 = vmatpush1.msra.mxu0 0.0
    %2650 = vmatprep.subr.mxu0 %v2500
    %2651 = vmatpush1.msra.mxu0 %v2498
    %2652 = vmatprep.subr.mxu0 %v1961
    %2653 = vmatpush1.msra.mxu0 %v1960
    %2654 = vmatprep.subr.mxu0 %v1953
    %2655 = vmatpush1.msra.mxu0 %v1952
    %2656 = vmatprep.subr.mxu0 %v1945
    %2657 = vmatpush1.msra.mxu0 %v1944
    %2658 = vmatprep.subr.mxu0 0.0
    %2659 = vmatpush2.msra.mxu0 0.0
    %2660 = vmatprep.subr.mxu0 0.0
    %2661 = vmatpush2.msra.mxu0 0.0
    %2662 = vmatprep.subr.mxu0 0.0
    %2663 = vmatpush2.msra.mxu0 0.0
    %2664 = vmatprep.subr.mxu0 0.0
    %2665 = vmatpush2.msra.mxu0 0.0
    %2666 = vmatprep.subr.mxu0 0.0
    %2667 = vmatpush2.msra.mxu0 0.0
    %2668 = vmatprep.subr.mxu0 0.0
    %2669 = vmatpush2.msra.mxu0 0.0
    %2670 = vmatprep.subr.mxu0 0.0
    %2671 = vmatpush2.msra.mxu0 0.0
    %2672 = vmatprep.subr.mxu0 0.0
    %2673 = vmatpush2.msra.mxu0 0.0
    %2674 = vmatprep.subr.mxu0 0.0
    %2675 = vmatpush2.msra.mxu0 0.0
    %2676 = vmatprep.subr.mxu0 0.0
    %2677 = vmatpush2.msra.mxu0 0.0
    %2678 = vmatprep.subr.mxu0 0.0
    %2679 = vmatpush2.msra.mxu0 0.0
    %2680 = vmatprep.subr.mxu0 0.0
    %2681 = vmatpush2.msra.mxu0 0.0
    %2682 = vmatprep.subr.mxu0 0.0
    %2683 = vmatpush2.msra.mxu0 0.0
    %2684 = vmatprep.subr.mxu0 0.0
    %2685 = vmatpush2.msra.mxu0 0.0
    %2686 = vmatprep.subr.mxu0 0.0
    %2687 = vmatpush2.msra.mxu0 0.0
    %2688 = vmatprep.subr.mxu0 0.0
    %2689 = vmatpush2.msra.mxu0 0.0
    %2690 = vmatprep.mubr.f32.mxu0 0.0
    %2691 = vmatmul.mubr.f32.gmra.mxu0 %v2471
    %v2692 = vpop.f32.mrf.mxu0
    %v2693 = vadd.f32 %v2343, %v2692
    %v2694 = vpop.f32.mrf.mxu0
    %v2695 = vadd.f32 %v2344, %v2694
    %2696 = vmatprep.mubr.f32.mxu0 0.0
    %2697 = vmatmul.mubr.f32.gmra.mxu0 %v2474
    %v2698 = vpop.f32.mrf.mxu0
    %v2699 = vadd.f32 %v2359, %v2698
    %v2700 = vpop.f32.mrf.mxu0
    %v2701 = vadd.f32 %v2360, %v2700
    %2702 = vmatprep.mubr.f32.mxu0 0.0
    %2703 = vmatmul.mubr.f32.gmra.mxu0 %v2477
    %v2704 = vpop.f32.mrf.mxu0
    %v2705 = vadd.f32 %v2375, %v2704
    %v2706 = vpop.f32.mrf.mxu0
    %v2707 = vadd.f32 %v2376, %v2706
    %2708 = vmatprep.mubr.f32.mxu0 0.0
    %2709 = vmatmul.mubr.f32.gmra.mxu0 %v2480
    %v2710 = vpop.f32.mrf.mxu0
    %v2711 = vadd.f32 %v2391, %v2710
    %v2712 = vpop.f32.mrf.mxu0
    %v2713 = vadd.f32 %v2392, %v2712
    %2714 = vmatprep.mubr.f32.mxu0 0.0
    %2715 = vmatmul.mubr.f32.gmra.mxu0 %v2483
    %v2716 = vpop.f32.mrf.mxu0
    %v2717 = vadd.f32 %v2407, %v2716
    %v2718 = vpop.f32.mrf.mxu0
    %v2719 = vadd.f32 %v2408, %v2718
    %2720 = vmatprep.mubr.f32.mxu0 0.0
    %2721 = vmatmul.mubr.f32.gmra.mxu0 %v2486
    %v2722 = vpop.f32.mrf.mxu0
    %v2723 = vadd.f32 %v2423, %v2722
    %v2724 = vpop.f32.mrf.mxu0
    %v2725 = vadd.f32 %v2424, %v2724
    %2726 = vmatprep.mubr.f32.mxu0 0.0
    %2727 = vmatmul.mubr.f32.gmra.mxu0 %v2489
    %v2728 = vpop.f32.mrf.mxu0
    %v2729 = vadd.f32 %v2439, %v2728
    %v2730 = vpop.f32.mrf.mxu0
    %v2731 = vadd.f32 %v2440, %v2730
    %2732 = vmatprep.mubr.f32.mxu0 0.0
    %2733 = vmatmul.mubr.f32.gmra.mxu0 %v2492
    %v2734 = vpop.f32.mrf.mxu0
    %v2735 = vadd.f32 %v2455, %v2734
    %v2736 = vpop.f32.mrf.mxu0
    %v2737 = vadd.f32 %v2456, %v2736
    %2738 = vdwg.mxu0
    %2739 = vmatprep.subr.mxu0 0.0
    %2740 = vmatpush1.msra.mxu0 0.0
    %2741 = vmatprep.subr.mxu0 0.0
    %2742 = vmatpush1.msra.mxu0 0.0
    %2743 = vmatprep.subr.mxu0 0.0
    %2744 = vmatpush1.msra.mxu0 0.0
    %2745 = vmatprep.subr.mxu0 0.0
    %2746 = vmatpush1.msra.mxu0 0.0
    %2747 = vmatprep.subr.mxu0 0.0
    %2748 = vmatpush1.msra.mxu0 0.0
    %2749 = vmatprep.subr.mxu0 0.0
    %2750 = vmatpush1.msra.mxu0 0.0
    %2751 = vmatprep.subr.mxu0 0.0
    %2752 = vmatpush1.msra.mxu0 0.0
    %2753 = vmatprep.subr.mxu0 0.0
    %2754 = vmatpush1.msra.mxu0 0.0
    %2755 = vmatprep.subr.mxu0 0.0
    %2756 = vmatpush1.msra.mxu0 0.0
    %2757 = vmatprep.subr.mxu0 0.0
    %2758 = vmatpush1.msra.mxu0 0.0
    %2759 = vmatprep.subr.mxu0 0.0
    %2760 = vmatpush1.msra.mxu0 0.0
    %2761 = vmatprep.subr.mxu0 0.0
    %2762 = vmatpush1.msra.mxu0 0.0
    %2763 = vmatprep.subr.mxu0 %v2503
    %2764 = vmatpush1.msra.mxu0 %v2503
    %2765 = vmatprep.subr.mxu0 0.0
    %2766 = vmatpush1.msra.mxu0 0.0
    %2767 = vmatprep.subr.mxu0 %v2143
    %2768 = vmatpush1.msra.mxu0 %v2142
    %2769 = vmatprep.subr.mxu0 %v2139
    %2770 = vmatpush1.msra.mxu0 %v2138
    %2771 = vmatprep.subr.mxu0 0.0
    %2772 = vmatpush2.msra.mxu0 0.0
    %2773 = vmatprep.subr.mxu0 0.0
    %2774 = vmatpush2.msra.mxu0 0.0
    %2775 = vmatprep.subr.mxu0 0.0
    %2776 = vmatpush2.msra.mxu0 0.0
    %2777 = vmatprep.subr.mxu0 0.0
    %2778 = vmatpush2.msra.mxu0 0.0
    %2779 = vmatprep.subr.mxu0 0.0
    %2780 = vmatpush2.msra.mxu0 0.0
    %2781 = vmatprep.subr.mxu0 0.0
    %2782 = vmatpush2.msra.mxu0 0.0
    %2783 = vmatprep.subr.mxu0 0.0
    %2784 = vmatpush2.msra.mxu0 0.0
    %2785 = vmatprep.subr.mxu0 0.0
    %2786 = vmatpush2.msra.mxu0 0.0
    %2787 = vmatprep.subr.mxu0 0.0
    %2788 = vmatpush2.msra.mxu0 0.0
    %2789 = vmatprep.subr.mxu0 0.0
    %2790 = vmatpush2.msra.mxu0 0.0
    %2791 = vmatprep.subr.mxu0 0.0
    %2792 = vmatpush2.msra.mxu0 0.0
    %2793 = vmatprep.subr.mxu0 0.0
    %2794 = vmatpush2.msra.mxu0 0.0
    %2795 = vmatprep.subr.mxu0 0.0
    %2796 = vmatpush2.msra.mxu0 0.0
    %2797 = vmatprep.subr.mxu0 0.0
    %2798 = vmatpush2.msra.mxu0 0.0
    %2799 = vmatprep.subr.mxu0 0.0
    %2800 = vmatpush2.msra.mxu0 0.0
    %2801 = vmatprep.subr.mxu0 0.0
    %2802 = vmatpush2.msra.mxu0 0.0
    %2803 = vmatprep.mubr.f32.mxu0 0.0
    %2804 = vmatmul.mubr.f32.gmra.mxu0 %v2471
    %v2805 = vpop.f32.mrf.mxu0
    %v2806 = vadd.f32 %v2345, %v2805
    %v2807 = vpop.f32.mrf.mxu0
    %v2808 = vadd.f32 %v2346, %v2807
    %2809 = vmatprep.mubr.f32.mxu0 0.0
    %2810 = vmatmul.mubr.f32.gmra.mxu0 %v2474
    %v2811 = vpop.f32.mrf.mxu0
    %v2812 = vadd.f32 %v2361, %v2811
    %v2813 = vpop.f32.mrf.mxu0
    %v2814 = vadd.f32 %v2362, %v2813
    %2815 = vmatprep.mubr.f32.mxu0 0.0
    %2816 = vmatmul.mubr.f32.gmra.mxu0 %v2477
    %v2817 = vpop.f32.mrf.mxu0
    %v2818 = vadd.f32 %v2377, %v2817
    %v2819 = vpop.f32.mrf.mxu0
    %v2820 = vadd.f32 %v2378, %v2819
    %2821 = vmatprep.mubr.f32.mxu0 0.0
    %2822 = vmatmul.mubr.f32.gmra.mxu0 %v2480
    %v2823 = vpop.f32.mrf.mxu0
    %v2824 = vadd.f32 %v2393, %v2823
    %v2825 = vpop.f32.mrf.mxu0
    %v2826 = vadd.f32 %v2394, %v2825
    %2827 = vmatprep.mubr.f32.mxu0 0.0
    %2828 = vmatmul.mubr.f32.gmra.mxu0 %v2483
    %v2829 = vpop.f32.mrf.mxu0
    %v2830 = vadd.f32 %v2409, %v2829
    %v2831 = vpop.f32.mrf.mxu0
    %v2832 = vadd.f32 %v2410, %v2831
    %2833 = vmatprep.mubr.f32.mxu0 0.0
    %2834 = vmatmul.mubr.f32.gmra.mxu0 %v2486
    %v2835 = vpop.f32.mrf.mxu0
    %v2836 = vadd.f32 %v2425, %v2835
    %v2837 = vpop.f32.mrf.mxu0
    %v2838 = vadd.f32 %v2426, %v2837
    %2839 = vmatprep.mubr.f32.mxu0 0.0
    %2840 = vmatmul.mubr.f32.gmra.mxu0 %v2489
    %v2841 = vpop.f32.mrf.mxu0
    %v2842 = vadd.f32 %v2441, %v2841
    %v2843 = vpop.f32.mrf.mxu0
    %v2844 = vadd.f32 %v2442, %v2843
    %2845 = vmatprep.mubr.f32.mxu0 0.0
    %2846 = vmatmul.mubr.f32.gmra.mxu0 %v2492
    %v2847 = vpop.f32.mrf.mxu0
    %v2848 = vadd.f32 %v2457, %v2847
    %v2849 = vpop.f32.mrf.mxu0
    %v2850 = vadd.f32 %v2458, %v2849
    %2851 = vdwg.mxu0
    %2852 = vmatprep.subr.mxu0 0.0
    %2853 = vmatpush1.msra.mxu0 0.0
    %2854 = vmatprep.subr.mxu0 0.0
    %2855 = vmatpush1.msra.mxu0 0.0
    %2856 = vmatprep.subr.mxu0 0.0
    %2857 = vmatpush1.msra.mxu0 0.0
    %2858 = vmatprep.subr.mxu0 0.0
    %2859 = vmatpush1.msra.mxu0 0.0
    %2860 = vmatprep.subr.mxu0 0.0
    %2861 = vmatpush1.msra.mxu0 0.0
    %2862 = vmatprep.subr.mxu0 0.0
    %2863 = vmatpush1.msra.mxu0 0.0
    %2864 = vmatprep.subr.mxu0 0.0
    %2865 = vmatpush1.msra.mxu0 0.0
    %2866 = vmatprep.subr.mxu0 0.0
    %2867 = vmatpush1.msra.mxu0 0.0
    %2868 = vmatprep.subr.mxu0 0.0
    %2869 = vmatpush1.msra.mxu0 0.0
    %2870 = vmatprep.subr.mxu0 0.0
    %2871 = vmatpush1.msra.mxu0 0.0
    %2872 = vmatprep.subr.mxu0 0.0
    %2873 = vmatpush1.msra.mxu0 0.0
    %2874 = vmatprep.subr.mxu0 0.0
    %2875 = vmatpush1.msra.mxu0 0.0
    %2876 = vmatprep.subr.mxu0 %v2503
    %2877 = vmatpush1.msra.mxu0 %v2503
    %2878 = vmatprep.subr.mxu0 0.0
    %2879 = vmatpush1.msra.mxu0 0.0
    %2880 = vmatprep.subr.mxu0 %v2145
    %2881 = vmatpush1.msra.mxu0 %v2144
    %2882 = vmatprep.subr.mxu0 %v2141
    %2883 = vmatpush1.msra.mxu0 %v2140
    %2884 = vmatprep.subr.mxu0 0.0
    %2885 = vmatpush2.msra.mxu0 0.0
    %2886 = vmatprep.subr.mxu0 0.0
    %2887 = vmatpush2.msra.mxu0 0.0
    %2888 = vmatprep.subr.mxu0 0.0
    %2889 = vmatpush2.msra.mxu0 0.0
    %2890 = vmatprep.subr.mxu0 0.0
    %2891 = vmatpush2.msra.mxu0 0.0
    %2892 = vmatprep.subr.mxu0 0.0
    %2893 = vmatpush2.msra.mxu0 0.0
    %2894 = vmatprep.subr.mxu0 0.0
    %2895 = vmatpush2.msra.mxu0 0.0
    %2896 = vmatprep.subr.mxu0 0.0
    %2897 = vmatpush2.msra.mxu0 0.0
    %2898 = vmatprep.subr.mxu0 0.0
    %2899 = vmatpush2.msra.mxu0 0.0
    %2900 = vmatprep.subr.mxu0 0.0
    %2901 = vmatpush2.msra.mxu0 0.0
    %2902 = vmatprep.subr.mxu0 0.0
    %2903 = vmatpush2.msra.mxu0 0.0
    %2904 = vmatprep.subr.mxu0 0.0
    %2905 = vmatpush2.msra.mxu0 0.0
    %2906 = vmatprep.subr.mxu0 0.0
    %2907 = vmatpush2.msra.mxu0 0.0
    %2908 = vmatprep.subr.mxu0 0.0
    %2909 = vmatpush2.msra.mxu0 0.0
    %2910 = vmatprep.subr.mxu0 0.0
    %2911 = vmatpush2.msra.mxu0 0.0
    %2912 = vmatprep.subr.mxu0 0.0
    %2913 = vmatpush2.msra.mxu0 0.0
    %2914 = vmatprep.subr.mxu0 0.0
    %2915 = vmatpush2.msra.mxu0 0.0
    %2916 = vmatprep.mubr.f32.mxu0 0.0
    %2917 = vmatmul.mubr.f32.gmra.mxu0 %v2471
    %v2918 = vpop.f32.mrf.mxu0
    %v2919 = vadd.f32 %v2347, %v2918
    %v2920 = vpop.f32.mrf.mxu0
    %v2921 = vadd.f32 %v2348, %v2920
    %2922 = vmatprep.mubr.f32.mxu0 0.0
    %2923 = vmatmul.mubr.f32.gmra.mxu0 %v2474
    %v2924 = vpop.f32.mrf.mxu0
    %v2925 = vadd.f32 %v2363, %v2924
    %v2926 = vpop.f32.mrf.mxu0
    %v2927 = vadd.f32 %v2364, %v2926
    %2928 = vmatprep.mubr.f32.mxu0 0.0
    %2929 = vmatmul.mubr.f32.gmra.mxu0 %v2477
    %v2930 = vpop.f32.mrf.mxu0
    %v2931 = vadd.f32 %v2379, %v2930
    %v2932 = vpop.f32.mrf.mxu0
    %v2933 = vadd.f32 %v2380, %v2932
    %2934 = vmatprep.mubr.f32.mxu0 0.0
    %2935 = vmatmul.mubr.f32.gmra.mxu0 %v2480
    %v2936 = vpop.f32.mrf.mxu0
    %v2937 = vadd.f32 %v2395, %v2936
    %v2938 = vpop.f32.mrf.mxu0
    %v2939 = vadd.f32 %v2396, %v2938
    %2940 = vmatprep.mubr.f32.mxu0 0.0
    %2941 = vmatmul.mubr.f32.gmra.mxu0 %v2483
    %v2942 = vpop.f32.mrf.mxu0
    %v2943 = vadd.f32 %v2411, %v2942
    %v2944 = vpop.f32.mrf.mxu0
    %v2945 = vadd.f32 %v2412, %v2944
    %2946 = vmatprep.mubr.f32.mxu0 0.0
    %2947 = vmatmul.mubr.f32.gmra.mxu0 %v2486
    %v2948 = vpop.f32.mrf.mxu0
    %v2949 = vadd.f32 %v2427, %v2948
    %v2950 = vpop.f32.mrf.mxu0
    %v2951 = vadd.f32 %v2428, %v2950
    %2952 = vmatprep.mubr.f32.mxu0 0.0
    %2953 = vmatmul.mubr.f32.gmra.mxu0 %v2489
    %v2954 = vpop.f32.mrf.mxu0
    %v2955 = vadd.f32 %v2443, %v2954
    %v2956 = vpop.f32.mrf.mxu0
    %v2957 = vadd.f32 %v2444, %v2956
    %2958 = vmatprep.mubr.f32.mxu0 0.0
    %2959 = vmatmul.mubr.f32.gmra.mxu0 %v2492
    %v2960 = vpop.f32.mrf.mxu0
    %v2961 = vadd.f32 %v2459, %v2960
    %v2962 = vpop.f32.mrf.mxu0
    %v2963 = vadd.f32 %v2460, %v2962
    %2964 = vdwg.mxu0
    %2965 = vmatprep.subr.mxu0 0.0
    %2966 = vmatpush1.msra.mxu0 0.0
    %2967 = vmatprep.subr.mxu0 0.0
    %2968 = vmatpush1.msra.mxu0 0.0
    %2969 = vmatprep.subr.mxu0 0.0
    %2970 = vmatpush1.msra.mxu0 0.0
    %2971 = vmatprep.subr.mxu0 0.0
    %2972 = vmatpush1.msra.mxu0 0.0
    %2973 = vmatprep.subr.mxu0 0.0
    %2974 = vmatpush1.msra.mxu0 0.0
    %2975 = vmatprep.subr.mxu0 0.0
    %2976 = vmatpush1.msra.mxu0 0.0
    %2977 = vmatprep.subr.mxu0 0.0
    %2978 = vmatpush1.msra.mxu0 0.0
    %2979 = vmatprep.subr.mxu0 0.0
    %2980 = vmatpush1.msra.mxu0 0.0
    %2981 = vmatprep.subr.mxu0 0.0
    %2982 = vmatpush1.msra.mxu0 0.0
    %2983 = vmatprep.subr.mxu0 0.0
    %2984 = vmatpush1.msra.mxu0 0.0
    %2985 = vmatprep.subr.mxu0 0.0
    %2986 = vmatpush1.msra.mxu0 0.0
    %2987 = vmatprep.subr.mxu0 0.0
    %2988 = vmatpush1.msra.mxu0 0.0
    %2989 = vmatprep.subr.mxu0 %v2503
    %2990 = vmatpush1.msra.mxu0 %v2503
    %2991 = vmatprep.subr.mxu0 %v2182
    %2992 = vmatpush1.msra.mxu0 %v2181
    %2993 = vmatprep.subr.mxu0 %v2178
    %2994 = vmatpush1.msra.mxu0 %v2177
    %2995 = vmatprep.subr.mxu0 %v2176
    %2996 = vmatpush1.msra.mxu0 %v2176
    %2997 = vmatprep.subr.mxu0 0.0
    %2998 = vmatpush2.msra.mxu0 0.0
    %2999 = vmatprep.subr.mxu0 0.0
    %3000 = vmatpush2.msra.mxu0 0.0
    %3001 = vmatprep.subr.mxu0 0.0
    %3002 = vmatpush2.msra.mxu0 0.0
    %3003 = vmatprep.subr.mxu0 0.0
    %3004 = vmatpush2.msra.mxu0 0.0
    %3005 = vmatprep.subr.mxu0 0.0
    %3006 = vmatpush2.msra.mxu0 0.0
    %3007 = vmatprep.subr.mxu0 0.0
    %3008 = vmatpush2.msra.mxu0 0.0
    %3009 = vmatprep.subr.mxu0 0.0
    %3010 = vmatpush2.msra.mxu0 0.0
    %3011 = vmatprep.subr.mxu0 0.0
    %3012 = vmatpush2.msra.mxu0 0.0
    %3013 = vmatprep.subr.mxu0 0.0
    %3014 = vmatpush2.msra.mxu0 0.0
    %3015 = vmatprep.subr.mxu0 0.0
    %3016 = vmatpush2.msra.mxu0 0.0
    %3017 = vmatprep.subr.mxu0 0.0
    %3018 = vmatpush2.msra.mxu0 0.0
    %3019 = vmatprep.subr.mxu0 0.0
    %3020 = vmatpush2.msra.mxu0 0.0
    %3021 = vmatprep.subr.mxu0 0.0
    %3022 = vmatpush2.msra.mxu0 0.0
    %3023 = vmatprep.subr.mxu0 0.0
    %3024 = vmatpush2.msra.mxu0 0.0
    %3025 = vmatprep.subr.mxu0 0.0
    %3026 = vmatpush2.msra.mxu0 0.0
    %3027 = vmatprep.subr.mxu0 0.0
    %3028 = vmatpush2.msra.mxu0 0.0
    %3029 = vmatprep.mubr.f32.mxu0 0.0
    %3030 = vmatmul.mubr.f32.gmra.mxu0 %v2471
    %v3031 = vpop.f32.mrf.mxu0
    %v3032 = vadd.f32 %v2349, %v3031
    %v3033 = vpop.f32.mrf.mxu0
    %v3034 = vadd.f32 %v2350, %v3033
    %3035 = vmatprep.mubr.f32.mxu0 0.0
    %3036 = vmatmul.mubr.f32.gmra.mxu0 %v2474
    %v3037 = vpop.f32.mrf.mxu0
    %v3038 = vadd.f32 %v2365, %v3037
    %v3039 = vpop.f32.mrf.mxu0
    %v3040 = vadd.f32 %v2366, %v3039
    %3041 = vmatprep.mubr.f32.mxu0 0.0
    %3042 = vmatmul.mubr.f32.gmra.mxu0 %v2477
    %v3043 = vpop.f32.mrf.mxu0
    %v3044 = vadd.f32 %v2381, %v3043
    %v3045 = vpop.f32.mrf.mxu0
    %v3046 = vadd.f32 %v2382, %v3045
    %3047 = vmatprep.mubr.f32.mxu0 0.0
    %3048 = vmatmul.mubr.f32.gmra.mxu0 %v2480
    %v3049 = vpop.f32.mrf.mxu0
    %v3050 = vadd.f32 %v2397, %v3049
    %v3051 = vpop.f32.mrf.mxu0
    %v3052 = vadd.f32 %v2398, %v3051
    %3053 = vmatprep.mubr.f32.mxu0 0.0
    %3054 = vmatmul.mubr.f32.gmra.mxu0 %v2483
    %v3055 = vpop.f32.mrf.mxu0
    %v3056 = vadd.f32 %v2413, %v3055
    %v3057 = vpop.f32.mrf.mxu0
    %v3058 = vadd.f32 %v2414, %v3057
    %3059 = vmatprep.mubr.f32.mxu0 0.0
    %3060 = vmatmul.mubr.f32.gmra.mxu0 %v2486
    %v3061 = vpop.f32.mrf.mxu0
    %v3062 = vadd.f32 %v2429, %v3061
    %v3063 = vpop.f32.mrf.mxu0
    %v3064 = vadd.f32 %v2430, %v3063
    %3065 = vmatprep.mubr.f32.mxu0 0.0
    %3066 = vmatmul.mubr.f32.gmra.mxu0 %v2489
    %v3067 = vpop.f32.mrf.mxu0
    %v3068 = vadd.f32 %v2445, %v3067
    %v3069 = vpop.f32.mrf.mxu0
    %v3070 = vadd.f32 %v2446, %v3069
    %3071 = vmatprep.mubr.f32.mxu0 0.0
    %3072 = vmatmul.mubr.f32.gmra.mxu0 %v2492
    %v3073 = vpop.f32.mrf.mxu0
    %v3074 = vadd.f32 %v2461, %v3073
    %v3075 = vpop.f32.mrf.mxu0
    %v3076 = vadd.f32 %v2462, %v3075
    %3077 = vdwg.mxu0
    %3078 = vmatprep.subr.mxu0 0.0
    %3079 = vmatpush1.msra.mxu0 0.0
    %3080 = vmatprep.subr.mxu0 0.0
    %3081 = vmatpush1.msra.mxu0 0.0
    %3082 = vmatprep.subr.mxu0 0.0
    %3083 = vmatpush1.msra.mxu0 0.0
    %3084 = vmatprep.subr.mxu0 0.0
    %3085 = vmatpush1.msra.mxu0 0.0
    %3086 = vmatprep.subr.mxu0 0.0
    %3087 = vmatpush1.msra.mxu0 0.0
    %3088 = vmatprep.subr.mxu0 0.0
    %3089 = vmatpush1.msra.mxu0 0.0
    %3090 = vmatprep.subr.mxu0 0.0
    %3091 = vmatpush1.msra.mxu0 0.0
    %3092 = vmatprep.subr.mxu0 0.0
    %3093 = vmatpush1.msra.mxu0 0.0
    %3094 = vmatprep.subr.mxu0 0.0
    %3095 = vmatpush1.msra.mxu0 0.0
    %3096 = vmatprep.subr.mxu0 0.0
    %3097 = vmatpush1.msra.mxu0 0.0
    %3098 = vmatprep.subr.mxu0 0.0
    %3099 = vmatpush1.msra.mxu0 0.0
    %3100 = vmatprep.subr.mxu0 0.0
    %3101 = vmatpush1.msra.mxu0 0.0
    %3102 = vmatprep.subr.mxu0 %v2503
    %3103 = vmatpush1.msra.mxu0 %v2503
    %3104 = vmatprep.subr.mxu0 %v2184
    %3105 = vmatpush1.msra.mxu0 %v2183
    %3106 = vmatprep.subr.mxu0 %v2180
    %3107 = vmatpush1.msra.mxu0 %v2179
    %3108 = vmatprep.subr.mxu0 %v2176
    %3109 = vmatpush1.msra.mxu0 %v2176
    %3110 = vmatprep.subr.mxu0 0.0
    %3111 = vmatpush2.msra.mxu0 0.0
    %3112 = vmatprep.subr.mxu0 0.0
    %3113 = vmatpush2.msra.mxu0 0.0
    %3114 = vmatprep.subr.mxu0 0.0
    %3115 = vmatpush2.msra.mxu0 0.0
    %3116 = vmatprep.subr.mxu0 0.0
    %3117 = vmatpush2.msra.mxu0 0.0
    %3118 = vmatprep.subr.mxu0 0.0
    %3119 = vmatpush2.msra.mxu0 0.0
    %3120 = vmatprep.subr.mxu0 0.0
    %3121 = vmatpush2.msra.mxu0 0.0
    %3122 = vmatprep.subr.mxu0 0.0
    %3123 = vmatpush2.msra.mxu0 0.0
    %3124 = vmatprep.subr.mxu0 0.0
    %3125 = vmatpush2.msra.mxu0 0.0
    %3126 = vmatprep.subr.mxu0 0.0
    %3127 = vmatpush2.msra.mxu0 0.0
    %3128 = vmatprep.subr.mxu0 0.0
    %3129 = vmatpush2.msra.mxu0 0.0
    %3130 = vmatprep.subr.mxu0 0.0
    %3131 = vmatpush2.msra.mxu0 0.0
    %3132 = vmatprep.subr.mxu0 0.0
    %3133 = vmatpush2.msra.mxu0 0.0
    %3134 = vmatprep.subr.mxu0 0.0
    %3135 = vmatpush2.msra.mxu0 0.0
    %3136 = vmatprep.subr.mxu0 0.0
    %3137 = vmatpush2.msra.mxu0 0.0
    %3138 = vmatprep.subr.mxu0 0.0
    %3139 = vmatpush2.msra.mxu0 0.0
    %3140 = vmatprep.subr.mxu0 0.0
    %3141 = vmatpush2.msra.mxu0 0.0
    %3142 = vmatprep.mubr.f32.mxu0 0.0
    %3143 = vmatmul.mubr.f32.gmra.mxu0 %v2471
    %v3144 = vpop.f32.mrf.mxu0
    %v3145 = vadd.f32 %v2351, %v3144
    %v3146 = vpop.f32.mrf.mxu0
    %v3147 = vadd.f32 %v2352, %v3146
    %3148 = vmatprep.mubr.f32.mxu0 0.0
    %3149 = vmatmul.mubr.f32.gmra.mxu0 %v2474
    %v3150 = vpop.f32.mrf.mxu0
    %v3151 = vadd.f32 %v2367, %v3150
    %v3152 = vpop.f32.mrf.mxu0
    %v3153 = vadd.f32 %v2368, %v3152
    %3154 = vmatprep.mubr.f32.mxu0 0.0
    %3155 = vmatmul.mubr.f32.gmra.mxu0 %v2477
    %v3156 = vpop.f32.mrf.mxu0
    %v3157 = vadd.f32 %v2383, %v3156
    %v3158 = vpop.f32.mrf.mxu0
    %v3159 = vadd.f32 %v2384, %v3158
    %3160 = vmatprep.mubr.f32.mxu0 0.0
    %3161 = vmatmul.mubr.f32.gmra.mxu0 %v2480
    %v3162 = vpop.f32.mrf.mxu0
    %v3163 = vadd.f32 %v2399, %v3162
    %v3164 = vpop.f32.mrf.mxu0
    %v3165 = vadd.f32 %v2400, %v3164
    %3166 = vmatprep.mubr.f32.mxu0 0.0
    %3167 = vmatmul.mubr.f32.gmra.mxu0 %v2483
    %v3168 = vpop.f32.mrf.mxu0
    %v3169 = vadd.f32 %v2415, %v3168
    %v3170 = vpop.f32.mrf.mxu0
    %v3171 = vadd.f32 %v2416, %v3170
    %3172 = vmatprep.mubr.f32.mxu0 0.0
    %3173 = vmatmul.mubr.f32.gmra.mxu0 %v2486
    %v3174 = vpop.f32.mrf.mxu0
    %v3175 = vadd.f32 %v2431, %v3174
    %v3176 = vpop.f32.mrf.mxu0
    %v3177 = vadd.f32 %v2432, %v3176
    %3178 = vmatprep.mubr.f32.mxu0 0.0
    %3179 = vmatmul.mubr.f32.gmra.mxu0 %v2489
    %v3180 = vpop.f32.mrf.mxu0
    %v3181 = vadd.f32 %v2447, %v3180
    %v3182 = vpop.f32.mrf.mxu0
    %v3183 = vadd.f32 %v2448, %v3182
    %3184 = vmatprep.mubr.f32.mxu0 0.0
    %3185 = vmatmul.mubr.f32.gmra.mxu0 %v2492
    %v3186 = vpop.f32.mrf.mxu0
    %v3187 = vadd.f32 %v2463, %v3186
    %v3188 = vpop.f32.mrf.mxu0
    %v3189 = vadd.f32 %v2464, %v3188
    %3190 = vdwg.mxu0
    %3191 = vmatprep.subr.mxu0 0.0
    %3192 = vmatpush1.msra.mxu0 0.0
    %3193 = vmatprep.subr.mxu0 0.0
    %3194 = vmatpush1.msra.mxu0 0.0
    %3195 = vmatprep.subr.mxu0 0.0
    %3196 = vmatpush1.msra.mxu0 0.0
    %3197 = vmatprep.subr.mxu0 0.0
    %3198 = vmatpush1.msra.mxu0 0.0
    %3199 = vmatprep.subr.mxu0 0.0
    %3200 = vmatpush1.msra.mxu0 0.0
    %3201 = vmatprep.subr.mxu0 0.0
    %3202 = vmatpush1.msra.mxu0 0.0
    %3203 = vmatprep.subr.mxu0 0.0
    %3204 = vmatpush1.msra.mxu0 0.0
    %3205 = vmatprep.subr.mxu0 0.0
    %3206 = vmatpush1.msra.mxu0 0.0
    %3207 = vmatprep.subr.mxu0 0.0
    %3208 = vmatpush1.msra.mxu0 0.0
    %3209 = vmatprep.subr.mxu0 0.0
    %3210 = vmatpush1.msra.mxu0 0.0
    %3211 = vmatprep.subr.mxu0 0.0
    %3212 = vmatpush1.msra.mxu0 0.0
    %3213 = vmatprep.subr.mxu0 0.0
    %3214 = vmatpush1.msra.mxu0 0.0
    %3215 = vmatprep.subr.mxu0 %v2507
    %3216 = vmatpush1.msra.mxu0 %v2505
    %3217 = vmatprep.subr.mxu0 %v2217
    %3218 = vmatpush1.msra.mxu0 %v2216
    %3219 = vmatprep.subr.mxu0 0.0
    %3220 = vmatpush1.msra.mxu0 0.0
    %3221 = vmatprep.subr.mxu0 %v2215
    %3222 = vmatpush1.msra.mxu0 %v2215
    %3223 = vmatprep.subr.mxu0 0.0
    %3224 = vmatpush2.msra.mxu0 0.0
    %3225 = vmatprep.subr.mxu0 0.0
    %3226 = vmatpush2.msra.mxu0 0.0
    %3227 = vmatprep.subr.mxu0 0.0
    %3228 = vmatpush2.msra.mxu0 0.0
    %3229 = vmatprep.subr.mxu0 0.0
    %3230 = vmatpush2.msra.mxu0 0.0
    %3231 = vmatprep.subr.mxu0 0.0
    %3232 = vmatpush2.msra.mxu0 0.0
    %3233 = vmatprep.subr.mxu0 0.0
    %3234 = vmatpush2.msra.mxu0 0.0
    %3235 = vmatprep.subr.mxu0 0.0
    %3236 = vmatpush2.msra.mxu0 0.0
    %3237 = vmatprep.subr.mxu0 0.0
    %3238 = vmatpush2.msra.mxu0 0.0
    %3239 = vmatprep.subr.mxu0 0.0
    %3240 = vmatpush2.msra.mxu0 0.0
    %3241 = vmatprep.subr.mxu0 0.0
    %3242 = vmatpush2.msra.mxu0 0.0
    %3243 = vmatprep.subr.mxu0 0.0
    %3244 = vmatpush2.msra.mxu0 0.0
    %3245 = vmatprep.subr.mxu0 0.0
    %3246 = vmatpush2.msra.mxu0 0.0
    %3247 = vmatprep.subr.mxu0 0.0
    %3248 = vmatpush2.msra.mxu0 0.0
    %3249 = vmatprep.subr.mxu0 0.0
    %3250 = vmatpush2.msra.mxu0 0.0
    %3251 = vmatprep.subr.mxu0 0.0
    %3252 = vmatpush2.msra.mxu0 0.0
    %3253 = vmatprep.subr.mxu0 0.0
    %3254 = vmatpush2.msra.mxu0 0.0
    %3255 = vmatprep.mubr.f32.mxu0 0.0
    %3256 = vmatmul.mubr.f32.gmra.mxu0 %v2471
    %v3257 = vpop.f32.mrf.mxu0
    %v3258 = vadd.f32 %v2353, %v3257
    %v3259 = vpop.f32.mrf.mxu0
    %v3260 = vadd.f32 %v2354, %v3259
    %3261 = vmatprep.mubr.f32.mxu0 0.0
    %3262 = vmatmul.mubr.f32.gmra.mxu0 %v2474
    %v3263 = vpop.f32.mrf.mxu0
    %v3264 = vadd.f32 %v2369, %v3263
    %v3265 = vpop.f32.mrf.mxu0
    %v3266 = vadd.f32 %v2370, %v3265
    %3267 = vmatprep.mubr.f32.mxu0 0.0
    %3268 = vmatmul.mubr.f32.gmra.mxu0 %v2477
    %v3269 = vpop.f32.mrf.mxu0
    %v3270 = vadd.f32 %v2385, %v3269
    %v3271 = vpop.f32.mrf.mxu0
    %v3272 = vadd.f32 %v2386, %v3271
    %3273 = vmatprep.mubr.f32.mxu0 0.0
    %3274 = vmatmul.mubr.f32.gmra.mxu0 %v2480
    %v3275 = vpop.f32.mrf.mxu0
    %v3276 = vadd.f32 %v2401, %v3275
    %v3277 = vpop.f32.mrf.mxu0
    %v3278 = vadd.f32 %v2402, %v3277
    %3279 = vmatprep.mubr.f32.mxu0 0.0
    %3280 = vmatmul.mubr.f32.gmra.mxu0 %v2483
    %v3281 = vpop.f32.mrf.mxu0
    %v3282 = vadd.f32 %v2417, %v3281
    %v3283 = vpop.f32.mrf.mxu0
    %v3284 = vadd.f32 %v2418, %v3283
    %3285 = vmatprep.mubr.f32.mxu0 0.0
    %3286 = vmatmul.mubr.f32.gmra.mxu0 %v2486
    %v3287 = vpop.f32.mrf.mxu0
    %v3288 = vadd.f32 %v2433, %v3287
    %v3289 = vpop.f32.mrf.mxu0
    %v3290 = vadd.f32 %v2434, %v3289
    %3291 = vmatprep.mubr.f32.mxu0 0.0
    %3292 = vmatmul.mubr.f32.gmra.mxu0 %v2489
    %v3293 = vpop.f32.mrf.mxu0
    %v3294 = vadd.f32 %v2449, %v3293
    %v3295 = vpop.f32.mrf.mxu0
    %v3296 = vadd.f32 %v2450, %v3295
    %3297 = vmatprep.mubr.f32.mxu0 0.0
    %3298 = vmatmul.mubr.f32.gmra.mxu0 %v2492
    %v3299 = vpop.f32.mrf.mxu0
    %v3300 = vadd.f32 %v2465, %v3299
    %v3301 = vpop.f32.mrf.mxu0
    %v3302 = vadd.f32 %v2466, %v3301
    %3303 = vdwg.mxu0
    %3304 = vmatprep.subr.mxu0 0.0
    %3305 = vmatpush1.msra.mxu0 0.0
    %3306 = vmatprep.subr.mxu0 0.0
    %3307 = vmatpush1.msra.mxu0 0.0
    %3308 = vmatprep.subr.mxu0 0.0
    %3309 = vmatpush1.msra.mxu0 0.0
    %3310 = vmatprep.subr.mxu0 0.0
    %3311 = vmatpush1.msra.mxu0 0.0
    %3312 = vmatprep.subr.mxu0 0.0
    %3313 = vmatpush1.msra.mxu0 0.0
    %3314 = vmatprep.subr.mxu0 0.0
    %3315 = vmatpush1.msra.mxu0 0.0
    %3316 = vmatprep.subr.mxu0 0.0
    %3317 = vmatpush1.msra.mxu0 0.0
    %3318 = vmatprep.subr.mxu0 0.0
    %3319 = vmatpush1.msra.mxu0 0.0
    %3320 = vmatprep.subr.mxu0 0.0
    %3321 = vmatpush1.msra.mxu0 0.0
    %3322 = vmatprep.subr.mxu0 0.0
    %3323 = vmatpush1.msra.mxu0 0.0
    %3324 = vmatprep.subr.mxu0 0.0
    %3325 = vmatpush1.msra.mxu0 0.0
    %3326 = vmatprep.subr.mxu0 0.0
    %3327 = vmatpush1.msra.mxu0 0.0
    %3328 = vmatprep.subr.mxu0 %v2511
    %3329 = vmatpush1.msra.mxu0 %v2509
    %3330 = vmatprep.subr.mxu0 %v2219
    %3331 = vmatpush1.msra.mxu0 %v2218
    %3332 = vmatprep.subr.mxu0 0.0
    %3333 = vmatpush1.msra.mxu0 0.0
    %3334 = vmatprep.subr.mxu0 %v2215
    %3335 = vmatpush1.msra.mxu0 %v2215
    %3336 = vmatprep.subr.mxu0 0.0
    %3337 = vmatpush2.msra.mxu0 0.0
    %3338 = vmatprep.subr.mxu0 0.0
    %3339 = vmatpush2.msra.mxu0 0.0
    %3340 = vmatprep.subr.mxu0 0.0
    %3341 = vmatpush2.msra.mxu0 0.0
    %3342 = vmatprep.subr.mxu0 0.0
    %3343 = vmatpush2.msra.mxu0 0.0
    %3344 = vmatprep.subr.mxu0 0.0
    %3345 = vmatpush2.msra.mxu0 0.0
    %3346 = vmatprep.subr.mxu0 0.0
    %3347 = vmatpush2.msra.mxu0 0.0
    %3348 = vmatprep.subr.mxu0 0.0
    %3349 = vmatpush2.msra.mxu0 0.0
    %3350 = vmatprep.subr.mxu0 0.0
    %3351 = vmatpush2.msra.mxu0 0.0
    %3352 = vmatprep.subr.mxu0 0.0
    %3353 = vmatpush2.msra.mxu0 0.0
    %3354 = vmatprep.subr.mxu0 0.0
    %3355 = vmatpush2.msra.mxu0 0.0
    %3356 = vmatprep.subr.mxu0 0.0
    %3357 = vmatpush2.msra.mxu0 0.0
    %3358 = vmatprep.subr.mxu0 0.0
    %3359 = vmatpush2.msra.mxu0 0.0
    %3360 = vmatprep.subr.mxu0 0.0
    %3361 = vmatpush2.msra.mxu0 0.0
    %3362 = vmatprep.subr.mxu0 0.0
    %3363 = vmatpush2.msra.mxu0 0.0
    %3364 = vmatprep.subr.mxu0 0.0
    %3365 = vmatpush2.msra.mxu0 0.0
    %3366 = vmatprep.subr.mxu0 0.0
    %3367 = vmatpush2.msra.mxu0 0.0
    %3368 = vmatprep.mubr.f32.mxu0 0.0
    %3369 = vmatmul.mubr.f32.gmra.mxu0 %v2471
    %v3370 = vpop.f32.mrf.mxu0
    %v3371 = vadd.f32 %v2355, %v3370
    %v3372 = vpop.f32.mrf.mxu0
    %v3373 = vadd.f32 %v2356, %v3372
    %3374 = vmatprep.mubr.f32.mxu0 0.0
    %3375 = vmatmul.mubr.f32.gmra.mxu0 %v2474
    %v3376 = vpop.f32.mrf.mxu0
    %v3377 = vadd.f32 %v2371, %v3376
    %v3378 = vpop.f32.mrf.mxu0
    %v3379 = vadd.f32 %v2372, %v3378
    %3380 = vmatprep.mubr.f32.mxu0 0.0
    %3381 = vmatmul.mubr.f32.gmra.mxu0 %v2477
    %v3382 = vpop.f32.mrf.mxu0
    %v3383 = vadd.f32 %v2387, %v3382
    %v3384 = vpop.f32.mrf.mxu0
    %v3385 = vadd.f32 %v2388, %v3384
    %3386 = vmatprep.mubr.f32.mxu0 0.0
    %3387 = vmatmul.mubr.f32.gmra.mxu0 %v2480
    %v3388 = vpop.f32.mrf.mxu0
    %v3389 = vadd.f32 %v2403, %v3388
    %v3390 = vpop.f32.mrf.mxu0
    %v3391 = vadd.f32 %v2404, %v3390
    %3392 = vmatprep.mubr.f32.mxu0 0.0
    %3393 = vmatmul.mubr.f32.gmra.mxu0 %v2483
    %v3394 = vpop.f32.mrf.mxu0
    %v3395 = vadd.f32 %v2419, %v3394
    %v3396 = vpop.f32.mrf.mxu0
    %v3397 = vadd.f32 %v2420, %v3396
    %3398 = vmatprep.mubr.f32.mxu0 0.0
    %3399 = vmatmul.mubr.f32.gmra.mxu0 %v2486
    %v3400 = vpop.f32.mrf.mxu0
    %v3401 = vadd.f32 %v2435, %v3400
    %v3402 = vpop.f32.mrf.mxu0
    %v3403 = vadd.f32 %v2436, %v3402
    %3404 = vmatprep.mubr.f32.mxu0 0.0
    %3405 = vmatmul.mubr.f32.gmra.mxu0 %v2489
    %v3406 = vpop.f32.mrf.mxu0
    %v3407 = vadd.f32 %v2451, %v3406
    %v3408 = vpop.f32.mrf.mxu0
    %v3409 = vadd.f32 %v2452, %v3408
    %3410 = vmatprep.mubr.f32.mxu0 0.0
    %3411 = vmatmul.mubr.f32.gmra.mxu0 %v2492
    %v3412 = vpop.f32.mrf.mxu0
    %v3413 = vadd.f32 %v2467, %v3412
    %v3414 = vpop.f32.mrf.mxu0
    %v3415 = vadd.f32 %v2468, %v3414
    %3416 = vdwg.mxu0
    %v3417 = vmul.f32 %v2580, 100.0
    %v3418 = vmul.f32 %v2582, 100.0
    %v3419 = vmul.f32 %v2693, 100.0
    %v3420 = vmul.f32 %v2695, 100.0
    %v3421 = vmul.f32 %v2586, 100.0
    %v3422 = vmul.f32 %v2588, 100.0
    %v3423 = vmul.f32 %v2699, 100.0
    %v3424 = vmul.f32 %v2701, 100.0
    %v3425 = vmul.f32 %v2592, 100.0
    %v3426 = vmul.f32 %v2594, 100.0
    %v3427 = vmul.f32 %v2705, 100.0
    %v3428 = vmul.f32 %v2707, 100.0
    %v3429 = vmul.f32 %v2598, 100.0
    %v3430 = vmul.f32 %v2600, 100.0
    %v3431 = vmul.f32 %v2711, 100.0
    %v3432 = vmul.f32 %v2713, 100.0
    %v3433 = vmul.f32 %v2604, 100.0
    %v3434 = vmul.f32 %v2606, 100.0
    %v3435 = vmul.f32 %v2717, 100.0
    %v3436 = vmul.f32 %v2719, 100.0
    %v3437 = vmul.f32 %v2610, 100.0
    %v3438 = vmul.f32 %v2612, 100.0
    %v3439 = vmul.f32 %v2723, 100.0
    %v3440 = vmul.f32 %v2725, 100.0
    %v3441 = vmul.f32 %v2616, 100.0
    %v3442 = vmul.f32 %v2618, 100.0
    %v3443 = vmul.f32 %v2729, 100.0
    %v3444 = vmul.f32 %v2731, 100.0
    %v3445 = vmul.f32 %v2622, 100.0
    %v3446 = vmul.f32 %v2624, 100.0
    %v3447 = vmul.f32 %v2735, 100.0
    %v3448 = vmul.f32 %v2737, 100.0
    %v3449 = vmin.f32 %v3417, 20.0
    %v3450 = vmin.f32 %v3418, 20.0
    %v3451 = vmin.f32 %v3419, 20.0
    %v3452 = vmin.f32 %v3420, 20.0
    %v3453 = vmin.f32 %v3421, 20.0
    %v3454 = vmin.f32 %v3422, 20.0
    %v3455 = vmin.f32 %v3423, 20.0
    %v3456 = vmin.f32 %v3424, 20.0
    %v3457 = vmin.f32 %v3425, 20.0
    %v3458 = vmin.f32 %v3426, 20.0
    %v3459 = vmin.f32 %v3427, 20.0
    %v3460 = vmin.f32 %v3428, 20.0
    %v3461 = vmin.f32 %v3429, 20.0
    %v3462 = vmin.f32 %v3430, 20.0
    %v3463 = vmin.f32 %v3431, 20.0
    %v3464 = vmin.f32 %v3432, 20.0
    %v3465 = vmin.f32 %v3433, 20.0
    %v3466 = vmin.f32 %v3434, 20.0
    %v3467 = vmin.f32 %v3435, 20.0
    %v3468 = vmin.f32 %v3436, 20.0
    %v3469 = vmin.f32 %v3437, 20.0
    %v3470 = vmin.f32 %v3438, 20.0
    %v3471 = vmin.f32 %v3439, 20.0
    %v3472 = vmin.f32 %v3440, 20.0
    %v3473 = vmin.f32 %v3441, 20.0
    %v3474 = vmin.f32 %v3442, 20.0
    %v3475 = vmin.f32 %v3443, 20.0
    %v3476 = vmin.f32 %v3444, 20.0
    %v3477 = vmin.f32 %v3445, 20.0
    %v3478 = vmin.f32 %v3446, 20.0
    %v3479 = vmin.f32 %v3447, 20.0
    %v3480 = vmin.f32 %v3448, 20.0
    %v3481 = vmul.f32 %v3449, 1.442695
    %v3482 = vpow.pop %v3481
    %v3483 = vmul.f32 %v3450, 1.442695
    %v3484 = vpow.pop %v3483
    %v3485 = vmul.f32 %v3451, 1.442695
    %v3486 = vpow.pop %v3485
    %v3487 = vmul.f32 %v3452, 1.442695
    %v3488 = vpow.pop %v3487
    %v3489 = vmul.f32 %v3453, 1.442695
    %v3490 = vpow.pop %v3489
    %v3491 = vmul.f32 %v3454, 1.442695
    %v3492 = vpow.pop %v3491
    %v3493 = vmul.f32 %v3455, 1.442695
    %v3494 = vpow.pop %v3493
    %v3495 = vmul.f32 %v3456, 1.442695
    %v3496 = vpow.pop %v3495
    %v3497 = vmul.f32 %v3457, 1.442695
    %v3498 = vpow.pop %v3497
    %v3499 = vmul.f32 %v3458, 1.442695
    %v3500 = vpow.pop %v3499
    %v3501 = vmul.f32 %v3459, 1.442695
    %v3502 = vpow.pop %v3501
    %v3503 = vmul.f32 %v3460, 1.442695
    %v3504 = vpow.pop %v3503
    %v3505 = vmul.f32 %v3461, 1.442695
    %v3506 = vpow.pop %v3505
    %v3507 = vmul.f32 %v3462, 1.442695
    %v3508 = vpow.pop %v3507
    %v3509 = vmul.f32 %v3463, 1.442695
    %v3510 = vpow.pop %v3509
    %v3511 = vmul.f32 %v3464, 1.442695
    %v3512 = vpow.pop %v3511
    %v3513 = vmul.f32 %v3465, 1.442695
    %v3514 = vpow.pop %v3513
    %v3515 = vmul.f32 %v3466, 1.442695
    %v3516 = vpow.pop %v3515
    %v3517 = vmul.f32 %v3467, 1.442695
    %v3518 = vpow.pop %v3517
    %v3519 = vmul.f32 %v3468, 1.442695
    %v3520 = vpow.pop %v3519
    %v3521 = vmul.f32 %v3469, 1.442695
    %v3522 = vpow.pop %v3521
    %v3523 = vmul.f32 %v3470, 1.442695
    %v3524 = vpow.pop %v3523
    %v3525 = vmul.f32 %v3471, 1.442695
    %v3526 = vpow.pop %v3525
    %v3527 = vmul.f32 %v3472, 1.442695
    %v3528 = vpow.pop %v3527
    %v3529 = vmul.f32 %v3473, 1.442695
    %v3530 = vpow.pop %v3529
    %v3531 = vmul.f32 %v3474, 1.442695
    %v3532 = vpow.pop %v3531
    %v3533 = vmul.f32 %v3475, 1.442695
    %v3534 = vpow.pop %v3533
    %v3535 = vmul.f32 %v3476, 1.442695
    %v3536 = vpow.pop %v3535
    %v3537 = vmul.f32 %v3477, 1.442695
    %v3538 = vpow.pop %v3537
    %v3539 = vmul.f32 %v3478, 1.442695
    %v3540 = vpow.pop %v3539
    %v3541 = vmul.f32 %v3479, 1.442695
    %v3542 = vpow.pop %v3541
    %v3543 = vmul.f32 %v3480, 1.442695
    %v3544 = vpow.pop %v3543
    %vm3545 = vcmp.gt.f32.partialorder %v3417, 20.0
    %vm3546 = vcmp.gt.f32.partialorder %v3418, 20.0
    %vm3547 = vcmp.gt.f32.partialorder %v3419, 20.0
    %vm3548 = vcmp.gt.f32.partialorder %v3420, 20.0
    %vm3549 = vcmp.gt.f32.partialorder %v3421, 20.0
    %vm3550 = vcmp.gt.f32.partialorder %v3422, 20.0
    %vm3551 = vcmp.gt.f32.partialorder %v3423, 20.0
    %vm3552 = vcmp.gt.f32.partialorder %v3424, 20.0
    %vm3553 = vcmp.gt.f32.partialorder %v3425, 20.0
    %vm3554 = vcmp.gt.f32.partialorder %v3426, 20.0
    %vm3555 = vcmp.gt.f32.partialorder %v3427, 20.0
    %vm3556 = vcmp.gt.f32.partialorder %v3428, 20.0
    %vm3557 = vcmp.gt.f32.partialorder %v3429, 20.0
    %vm3558 = vcmp.gt.f32.partialorder %v3430, 20.0
    %vm3559 = vcmp.gt.f32.partialorder %v3431, 20.0
    %vm3560 = vcmp.gt.f32.partialorder %v3432, 20.0
    %vm3561 = vcmp.gt.f32.partialorder %v3433, 20.0
    %vm3562 = vcmp.gt.f32.partialorder %v3434, 20.0
    %vm3563 = vcmp.gt.f32.partialorder %v3435, 20.0
    %vm3564 = vcmp.gt.f32.partialorder %v3436, 20.0
    %vm3565 = vcmp.gt.f32.partialorder %v3437, 20.0
    %vm3566 = vcmp.gt.f32.partialorder %v3438, 20.0
    %vm3567 = vcmp.gt.f32.partialorder %v3439, 20.0
    %vm3568 = vcmp.gt.f32.partialorder %v3440, 20.0
    %vm3569 = vcmp.gt.f32.partialorder %v3441, 20.0
    %vm3570 = vcmp.gt.f32.partialorder %v3442, 20.0
    %vm3571 = vcmp.gt.f32.partialorder %v3443, 20.0
    %vm3572 = vcmp.gt.f32.partialorder %v3444, 20.0
    %vm3573 = vcmp.gt.f32.partialorder %v3445, 20.0
    %vm3574 = vcmp.gt.f32.partialorder %v3446, 20.0
    %vm3575 = vcmp.gt.f32.partialorder %v3447, 20.0
    %vm3576 = vcmp.gt.f32.partialorder %v3448, 20.0
    %v3577 = vadd.f32 %v3482, 1.0
    %v3578 = vadd.f32 %v3484, 1.0
    %v3579 = vadd.f32 %v3486, 1.0
    %v3580 = vadd.f32 %v3488, 1.0
    %v3581 = vadd.f32 %v3490, 1.0
    %v3582 = vadd.f32 %v3492, 1.0
    %v3583 = vadd.f32 %v3494, 1.0
    %v3584 = vadd.f32 %v3496, 1.0
    %v3585 = vadd.f32 %v3498, 1.0
    %v3586 = vadd.f32 %v3500, 1.0
    %v3587 = vadd.f32 %v3502, 1.0
    %v3588 = vadd.f32 %v3504, 1.0
    %v3589 = vadd.f32 %v3506, 1.0
    %v3590 = vadd.f32 %v3508, 1.0
    %v3591 = vadd.f32 %v3510, 1.0
    %v3592 = vadd.f32 %v3512, 1.0
    %v3593 = vadd.f32 %v3514, 1.0
    %v3594 = vadd.f32 %v3516, 1.0
    %v3595 = vadd.f32 %v3518, 1.0
    %v3596 = vadd.f32 %v3520, 1.0
    %v3597 = vadd.f32 %v3522, 1.0
    %v3598 = vadd.f32 %v3524, 1.0
    %v3599 = vadd.f32 %v3526, 1.0
    %v3600 = vadd.f32 %v3528, 1.0
    %v3601 = vadd.f32 %v3530, 1.0
    %v3602 = vadd.f32 %v3532, 1.0
    %v3603 = vadd.f32 %v3534, 1.0
    %v3604 = vadd.f32 %v3536, 1.0
    %v3605 = vadd.f32 %v3538, 1.0
    %v3606 = vadd.f32 %v3540, 1.0
    %v3607 = vadd.f32 %v3542, 1.0
    %v3608 = vadd.f32 %v3544, 1.0
    %v3609 = vlog2.pop %v3577
    %v3610 = vmul.f32 %v3609, 0.6931472
    %v3611 = vlog2.pop %v3578
    %v3612 = vmul.f32 %v3611, 0.6931472
    %v3613 = vlog2.pop %v3579
    %v3614 = vmul.f32 %v3613, 0.6931472
    %v3615 = vlog2.pop %v3580
    %v3616 = vmul.f32 %v3615, 0.6931472
    %v3617 = vlog2.pop %v3581
    %v3618 = vmul.f32 %v3617, 0.6931472
    %v3619 = vlog2.pop %v3582
    %v3620 = vmul.f32 %v3619, 0.6931472
    %v3621 = vlog2.pop %v3583
    %v3622 = vmul.f32 %v3621, 0.6931472
    %v3623 = vlog2.pop %v3584
    %v3624 = vmul.f32 %v3623, 0.6931472
    %v3625 = vlog2.pop %v3585
    %v3626 = vmul.f32 %v3625, 0.6931472
    %v3627 = vlog2.pop %v3586
    %v3628 = vmul.f32 %v3627, 0.6931472
    %v3629 = vlog2.pop %v3587
    %v3630 = vmul.f32 %v3629, 0.6931472
    %v3631 = vlog2.pop %v3588
    %v3632 = vmul.f32 %v3631, 0.6931472
    %v3633 = vlog2.pop %v3589
    %v3634 = vmul.f32 %v3633, 0.6931472
    %v3635 = vlog2.pop %v3590
    %v3636 = vmul.f32 %v3635, 0.6931472
    %v3637 = vlog2.pop %v3591
    %v3638 = vmul.f32 %v3637, 0.6931472
    %v3639 = vlog2.pop %v3592
    %v3640 = vmul.f32 %v3639, 0.6931472
    %v3641 = vlog2.pop %v3593
    %v3642 = vmul.f32 %v3641, 0.6931472
    %v3643 = vlog2.pop %v3594
    %v3644 = vmul.f32 %v3643, 0.6931472
    %v3645 = vlog2.pop %v3595
    %v3646 = vmul.f32 %v3645, 0.6931472
    %v3647 = vlog2.pop %v3596
    %v3648 = vmul.f32 %v3647, 0.6931472
    %v3649 = vlog2.pop %v3597
    %v3650 = vmul.f32 %v3649, 0.6931472
    %v3651 = vlog2.pop %v3598
    %v3652 = vmul.f32 %v3651, 0.6931472
    %v3653 = vlog2.pop %v3599
    %v3654 = vmul.f32 %v3653, 0.6931472
    %v3655 = vlog2.pop %v3600
    %v3656 = vmul.f32 %v3655, 0.6931472
    %v3657 = vlog2.pop %v3601
    %v3658 = vmul.f32 %v3657, 0.6931472
    %v3659 = vlog2.pop %v3602
    %v3660 = vmul.f32 %v3659, 0.6931472
    %v3661 = vlog2.pop %v3603
    %v3662 = vmul.f32 %v3661, 0.6931472
    %v3663 = vlog2.pop %v3604
    %v3664 = vmul.f32 %v3663, 0.6931472
    %v3665 = vlog2.pop %v3605
    %v3666 = vmul.f32 %v3665, 0.6931472
    %v3667 = vlog2.pop %v3606
    %v3668 = vmul.f32 %v3667, 0.6931472
    %v3669 = vlog2.pop %v3607
    %v3670 = vmul.f32 %v3669, 0.6931472
    %v3671 = vlog2.pop %v3608
    %v3672 = vmul.f32 %v3671, 0.6931472
    %v3673 = vmul.f32 %v3610, 0.01
    %v3674 = vmul.f32 %v3612, 0.01
    %v3675 = vmul.f32 %v3614, 0.01
    %v3676 = vmul.f32 %v3616, 0.01
    %v3677 = vmul.f32 %v3618, 0.01
    %v3678 = vmul.f32 %v3620, 0.01
    %v3679 = vmul.f32 %v3622, 0.01
    %v3680 = vmul.f32 %v3624, 0.01
    %v3681 = vmul.f32 %v3626, 0.01
    %v3682 = vmul.f32 %v3628, 0.01
    %v3683 = vmul.f32 %v3630, 0.01
    %v3684 = vmul.f32 %v3632, 0.01
    %v3685 = vmul.f32 %v3634, 0.01
    %v3686 = vmul.f32 %v3636, 0.01
    %v3687 = vmul.f32 %v3638, 0.01
    %v3688 = vmul.f32 %v3640, 0.01
    %v3689 = vmul.f32 %v3642, 0.01
    %v3690 = vmul.f32 %v3644, 0.01
    %v3691 = vmul.f32 %v3646, 0.01
    %v3692 = vmul.f32 %v3648, 0.01
    %v3693 = vmul.f32 %v3650, 0.01
    %v3694 = vmul.f32 %v3652, 0.01
    %v3695 = vmul.f32 %v3654, 0.01
    %v3696 = vmul.f32 %v3656, 0.01
    %v3697 = vmul.f32 %v3658, 0.01
    %v3698 = vmul.f32 %v3660, 0.01
    %v3699 = vmul.f32 %v3662, 0.01
    %v3700 = vmul.f32 %v3664, 0.01
    %v3701 = vmul.f32 %v3666, 0.01
    %v3702 = vmul.f32 %v3668, 0.01
    %v3703 = vmul.f32 %v3670, 0.01
    %v3704 = vmul.f32 %v3672, 0.01
    %v3705 = vsel %vm3545, %v2580, %v3673
    %v3706 = vsel %vm3546, %v2582, %v3674
    %v3707 = vsel %vm3547, %v2693, %v3675
    %v3708 = vsel %vm3548, %v2695, %v3676
    %v3709 = vsel %vm3549, %v2586, %v3677
    %v3710 = vsel %vm3550, %v2588, %v3678
    %v3711 = vsel %vm3551, %v2699, %v3679
    %v3712 = vsel %vm3552, %v2701, %v3680
    %v3713 = vsel %vm3553, %v2592, %v3681
    %v3714 = vsel %vm3554, %v2594, %v3682
    %v3715 = vsel %vm3555, %v2705, %v3683
    %v3716 = vsel %vm3556, %v2707, %v3684
    %v3717 = vsel %vm3557, %v2598, %v3685
    %v3718 = vsel %vm3558, %v2600, %v3686
    %v3719 = vsel %vm3559, %v2711, %v3687
    %v3720 = vsel %vm3560, %v2713, %v3688
    %v3721 = vsel %vm3561, %v2604, %v3689
    %v3722 = vsel %vm3562, %v2606, %v3690
    %v3723 = vsel %vm3563, %v2717, %v3691
    %v3724 = vsel %vm3564, %v2719, %v3692
    %v3725 = vsel %vm3565, %v2610, %v3693
    %v3726 = vsel %vm3566, %v2612, %v3694
    %v3727 = vsel %vm3567, %v2723, %v3695
    %v3728 = vsel %vm3568, %v2725, %v3696
    %v3729 = vsel %vm3569, %v2616, %v3697
    %v3730 = vsel %vm3570, %v2618, %v3698
    %v3731 = vsel %vm3571, %v2729, %v3699
    %v3732 = vsel %vm3572, %v2731, %v3700
    %v3733 = vsel %vm3573, %v2622, %v3701
    %v3734 = vsel %vm3574, %v2624, %v3702
    %v3735 = vsel %vm3575, %v2735, %v3703
    %v3736 = vsel %vm3576, %v2737, %v3704
    %v3737 = vrcp.pop %v3577
    %v3738 = vmul.f32 %v3482, %v3737
    %v3739 = vrcp.pop %v3578
    %v3740 = vmul.f32 %v3484, %v3739
    %v3741 = vrcp.pop %v3579
    %v3742 = vmul.f32 %v3486, %v3741
    %v3743 = vrcp.pop %v3580
    %v3744 = vmul.f32 %v3488, %v3743
    %v3745 = vrcp.pop %v3581
    %v3746 = vmul.f32 %v3490, %v3745
    %v3747 = vrcp.pop %v3582
    %v3748 = vmul.f32 %v3492, %v3747
    %v3749 = vrcp.pop %v3583
    %v3750 = vmul.f32 %v3494, %v3749
    %v3751 = vrcp.pop %v3584
    %v3752 = vmul.f32 %v3496, %v3751
    %v3753 = vrcp.pop %v3585
    %v3754 = vmul.f32 %v3498, %v3753
    %v3755 = vrcp.pop %v3586
    %v3756 = vmul.f32 %v3500, %v3755
    %v3757 = vrcp.pop %v3587
    %v3758 = vmul.f32 %v3502, %v3757
    %v3759 = vrcp.pop %v3588
    %v3760 = vmul.f32 %v3504, %v3759
    %v3761 = vrcp.pop %v3589
    %v3762 = vmul.f32 %v3506, %v3761
    %v3763 = vrcp.pop %v3590
    %v3764 = vmul.f32 %v3508, %v3763
    %v3765 = vrcp.pop %v3591
    %v3766 = vmul.f32 %v3510, %v3765
    %v3767 = vrcp.pop %v3592
    %v3768 = vmul.f32 %v3512, %v3767
    %v3769 = vrcp.pop %v3593
    %v3770 = vmul.f32 %v3514, %v3769
    %v3771 = vrcp.pop %v3594
    %v3772 = vmul.f32 %v3516, %v3771
    %v3773 = vrcp.pop %v3595
    %v3774 = vmul.f32 %v3518, %v3773
    %v3775 = vrcp.pop %v3596
    %v3776 = vmul.f32 %v3520, %v3775
    %v3777 = vrcp.pop %v3597
    %v3778 = vmul.f32 %v3522, %v3777
    %v3779 = vrcp.pop %v3598
    %v3780 = vmul.f32 %v3524, %v3779
    %v3781 = vrcp.pop %v3599
    %v3782 = vmul.f32 %v3526, %v3781
    %v3783 = vrcp.pop %v3600
    %v3784 = vmul.f32 %v3528, %v3783
    %v3785 = vrcp.pop %v3601
    %v3786 = vmul.f32 %v3530, %v3785
    %v3787 = vrcp.pop %v3602
    %v3788 = vmul.f32 %v3532, %v3787
    %v3789 = vrcp.pop %v3603
    %v3790 = vmul.f32 %v3534, %v3789
    %v3791 = vrcp.pop %v3604
    %v3792 = vmul.f32 %v3536, %v3791
    %v3793 = vrcp.pop %v3605
    %v3794 = vmul.f32 %v3538, %v3793
    %v3795 = vrcp.pop %v3606
    %v3796 = vmul.f32 %v3540, %v3795
    %v3797 = vrcp.pop %v3607
    %v3798 = vmul.f32 %v3542, %v3797
    %v3799 = vrcp.pop %v3608
    %v3800 = vmul.f32 %v3544, %v3799
    %v3801 = vsel %vm3545, 1.0, %v3738
    %v3802 = vsel %vm3546, 1.0, %v3740
    %v3803 = vsel %vm3547, 1.0, %v3742
    %v3804 = vsel %vm3548, 1.0, %v3744
    %v3805 = vsel %vm3549, 1.0, %v3746
    %v3806 = vsel %vm3550, 1.0, %v3748
    %v3807 = vsel %vm3551, 1.0, %v3750
    %v3808 = vsel %vm3552, 1.0, %v3752
    %v3809 = vsel %vm3553, 1.0, %v3754
    %v3810 = vsel %vm3554, 1.0, %v3756
    %v3811 = vsel %vm3555, 1.0, %v3758
    %v3812 = vsel %vm3556, 1.0, %v3760
    %v3813 = vsel %vm3557, 1.0, %v3762
    %v3814 = vsel %vm3558, 1.0, %v3764
    %v3815 = vsel %vm3559, 1.0, %v3766
    %v3816 = vsel %vm3560, 1.0, %v3768
    %v3817 = vsel %vm3561, 1.0, %v3770
    %v3818 = vsel %vm3562, 1.0, %v3772
    %v3819 = vsel %vm3563, 1.0, %v3774
    %v3820 = vsel %vm3564, 1.0, %v3776
    %v3821 = vsel %vm3565, 1.0, %v3778
    %v3822 = vsel %vm3566, 1.0, %v3780
    %v3823 = vsel %vm3567, 1.0, %v3782
    %v3824 = vsel %vm3568, 1.0, %v3784
    %v3825 = vsel %vm3569, 1.0, %v3786
    %v3826 = vsel %vm3570, 1.0, %v3788
    %v3827 = vsel %vm3571, 1.0, %v3790
    %v3828 = vsel %vm3572, 1.0, %v3792
    %v3829 = vsel %vm3573, 1.0, %v3794
    %v3830 = vsel %vm3574, 1.0, %v3796
    %v3831 = vsel %vm3575, 1.0, %v3798
    %v3832 = vsel %vm3576, 1.0, %v3800
    %v3833 = vmul.f32 %v2806, %v3801
    %v3834 = vmul.f32 %v2808, %v3802
    %v3835 = vmul.f32 %v2919, %v3803
    %v3836 = vmul.f32 %v2921, %v3804
    %v3837 = vmul.f32 %v3032, %v3801
    %v3838 = vmul.f32 %v3034, %v3802
    %v3839 = vmul.f32 %v3145, %v3803
    %v3840 = vmul.f32 %v3147, %v3804
    %v3841 = vmul.f32 %v3258, %v3801
    %v3842 = vmul.f32 %v3260, %v3802
    %v3843 = vmul.f32 %v3371, %v3803
    %v3844 = vmul.f32 %v3373, %v3804
    %v3845 = vmul.f32 %v2812, %v3805
    %v3846 = vmul.f32 %v2814, %v3806
    %v3847 = vmul.f32 %v2925, %v3807
    %v3848 = vmul.f32 %v2927, %v3808
    %v3849 = vmul.f32 %v3038, %v3805
    %v3850 = vmul.f32 %v3040, %v3806
    %v3851 = vmul.f32 %v3151, %v3807
    %v3852 = vmul.f32 %v3153, %v3808
    %v3853 = vmul.f32 %v3264, %v3805
    %v3854 = vmul.f32 %v3266, %v3806
    %v3855 = vmul.f32 %v3377, %v3807
    %v3856 = vmul.f32 %v3379, %v3808
    %v3857 = vmul.f32 %v2818, %v3809
    %v3858 = vmul.f32 %v2820, %v3810
    %v3859 = vmul.f32 %v2931, %v3811
    %v3860 = vmul.f32 %v2933, %v3812
    %v3861 = vmul.f32 %v3044, %v3809
    %v3862 = vmul.f32 %v3046, %v3810
    %v3863 = vmul.f32 %v3157, %v3811
    %v3864 = vmul.f32 %v3159, %v3812
    %v3865 = vmul.f32 %v3270, %v3809
    %v3866 = vmul.f32 %v3272, %v3810
    %v3867 = vmul.f32 %v3383, %v3811
    %v3868 = vmul.f32 %v3385, %v3812
    %v3869 = vmul.f32 %v2824, %v3813
    %v3870 = vmul.f32 %v2826, %v3814
    %v3871 = vmul.f32 %v2937, %v3815
    %v3872 = vmul.f32 %v2939, %v3816
    %v3873 = vmul.f32 %v3050, %v3813
    %v3874 = vmul.f32 %v3052, %v3814
    %v3875 = vmul.f32 %v3163, %v3815
    %v3876 = vmul.f32 %v3165, %v3816
    %v3877 = vmul.f32 %v3276, %v3813
    %v3878 = vmul.f32 %v3278, %v3814
    %v3879 = vmul.f32 %v3389, %v3815
    %v3880 = vmul.f32 %v3391, %v3816
    %v3881 = vmul.f32 %v2830, %v3817
    %v3882 = vmul.f32 %v2832, %v3818
    %v3883 = vmul.f32 %v2943, %v3819
    %v3884 = vmul.f32 %v2945, %v3820
    %v3885 = vmul.f32 %v3056, %v3817
    %v3886 = vmul.f32 %v3058, %v3818
    %v3887 = vmul.f32 %v3169, %v3819
    %v3888 = vmul.f32 %v3171, %v3820
    %v3889 = vmul.f32 %v3282, %v3817
    %v3890 = vmul.f32 %v3284, %v3818
    %v3891 = vmul.f32 %v3395, %v3819
    %v3892 = vmul.f32 %v3397, %v3820
    %v3893 = vmul.f32 %v2836, %v3821
    %v3894 = vmul.f32 %v2838, %v3822
    %v3895 = vmul.f32 %v2949, %v3823
    %v3896 = vmul.f32 %v2951, %v3824
    %v3897 = vmul.f32 %v3062, %v3821
    %v3898 = vmul.f32 %v3064, %v3822
    %v3899 = vmul.f32 %v3175, %v3823
    %v3900 = vmul.f32 %v3177, %v3824
    %v3901 = vmul.f32 %v3288, %v3821
    %v3902 = vmul.f32 %v3290, %v3822
    %v3903 = vmul.f32 %v3401, %v3823
    %v3904 = vmul.f32 %v3403, %v3824
    %v3905 = vmul.f32 %v2842, %v3825
    %v3906 = vmul.f32 %v2844, %v3826
    %v3907 = vmul.f32 %v2955, %v3827
    %v3908 = vmul.f32 %v2957, %v3828
    %v3909 = vmul.f32 %v3068, %v3825
    %v3910 = vmul.f32 %v3070, %v3826
    %v3911 = vmul.f32 %v3181, %v3827
    %v3912 = vmul.f32 %v3183, %v3828
    %v3913 = vmul.f32 %v3294, %v3825
    %v3914 = vmul.f32 %v3296, %v3826
    %v3915 = vmul.f32 %v3407, %v3827
    %v3916 = vmul.f32 %v3409, %v3828
    %v3917 = vmul.f32 %v2848, %v3829
    %v3918 = vmul.f32 %v2850, %v3830
    %v3919 = vmul.f32 %v2961, %v3831
    %v3920 = vmul.f32 %v2963, %v3832
    %v3921 = vmul.f32 %v3074, %v3829
    %v3922 = vmul.f32 %v3076, %v3830
    %v3923 = vmul.f32 %v3187, %v3831
    %v3924 = vmul.f32 %v3189, %v3832
    %v3925 = vmul.f32 %v3300, %v3829
    %v3926 = vmul.f32 %v3302, %v3830
    %v3927 = vmul.f32 %v3413, %v3831
    %v3928 = vmul.f32 %v3415, %v3832
    %v3929 = vld [vmem:[%s3] sm:$0xff]
    %v3930 = vld [vmem:[%s3 + $0x8] sm:$0xff]
    %v3931 = vld [vmem:[%s3 + $0x10] sm:$0xff]
    %v3932 = vld [vmem:[%s3 + $0x18] sm:$0xff]
    %v3933 = vld [vmem:[%s3 + $0x20] sm:$0xff]
    %v3934 = vld [vmem:[%s3 + $0x28] sm:$0xff]
    %v3935 = vld [vmem:[%s3 + $0x30] sm:$0xff]
    %v3936 = vld [vmem:[%s3 + $0x38] sm:$0xff]
    %v3937 = vld [vmem:[%s4] sm:$0xff]
    %v3938 = vld [vmem:[%s4 + $0x8] sm:$0xff]
    %v3939 = vld [vmem:[%s4 + $0x10] sm:$0xff]
    %v3940 = vld [vmem:[%s4 + $0x18] sm:$0xff]
    %v3941 = vld [vmem:[%s4 + $0x20] sm:$0xff]
    %v3942 = vld [vmem:[%s4 + $0x28] sm:$0xff]
    %v3943 = vld [vmem:[%s4 + $0x30] sm:$0xff]
    %v3944 = vld [vmem:[%s4 + $0x38] sm:$0xff]
    %3946 = vset.pattern.permute.xlu0 0
    %3947 = vperm.xlu0 %3946, %v3937
    %v3948 = vpop.permute.xlu0 %3947
    %3951 = vset.pattern.permute.xlu0 0
    %3952 = vperm.xlu0 %3951, %v3938
    %v3953 = vpop.permute.xlu0 %3952
    %3956 = vset.pattern.permute.xlu0 0
    %3957 = vperm.xlu0 %3956, %v3939
    %v3958 = vpop.permute.xlu0 %3957
    %3961 = vset.pattern.permute.xlu0 0
    %3962 = vperm.xlu0 %3961, %v3940
    %v3963 = vpop.permute.xlu0 %3962
    %3966 = vset.pattern.permute.xlu0 0
    %3967 = vperm.xlu0 %3966, %v3941
    %v3968 = vpop.permute.xlu0 %3967
    %3971 = vset.pattern.permute.xlu0 0
    %3972 = vperm.xlu0 %3971, %v3942
    %v3973 = vpop.permute.xlu0 %3972
    %3976 = vset.pattern.permute.xlu0 0
    %3977 = vperm.xlu0 %3976, %v3943
    %v3978 = vpop.permute.xlu0 %3977
    %3981 = vset.pattern.permute.xlu0 0
    %3982 = vperm.xlu0 %3981, %v3944
    %v3983 = vpop.permute.xlu0 %3982
    %v3985 = vmul.f32 %v3948, %v2269
    %v3986 = vmul.f32 %v3948, %v2270
    %v3987 = vmul.f32 %v3948, %v2271
    %v3988 = vmul.f32 %v3948, %v2272
    %v3989 = vmul.f32 %v3948, %v2273
    %v3990 = vmul.f32 %v3948, %v2274
    %v3991 = vmul.f32 %v3948, %v2275
    %v3992 = vmul.f32 %v3948, %v2276
    %v3993 = vmul.f32 %v3948, %v2277
    %v3994 = vmul.f32 %v3948, %v2278
    %v3995 = vmul.f32 %v3948, %v2279
    %v3996 = vmul.f32 %v3948, %v2280
    %v3997 = vmul.f32 %v3948, %v2281
    %v3998 = vmul.f32 %v3948, %v2282
    %v3999 = vmul.f32 %v3948, %v2283
    %v4000 = vmul.f32 %v3948, %v2284
    %v4001 = vmul.f32 %v3953, %v2269
    %v4002 = vmul.f32 %v3953, %v2270
    %v4003 = vmul.f32 %v3953, %v2271
    %v4004 = vmul.f32 %v3953, %v2272
    %v4005 = vmul.f32 %v3953, %v2273
    %v4006 = vmul.f32 %v3953, %v2274
    %v4007 = vmul.f32 %v3953, %v2275
    %v4008 = vmul.f32 %v3953, %v2276
    %v4009 = vmul.f32 %v3953, %v2277
    %v4010 = vmul.f32 %v3953, %v2278
    %v4011 = vmul.f32 %v3953, %v2279
    %v4012 = vmul.f32 %v3953, %v2280
    %v4013 = vmul.f32 %v3953, %v2281
    %v4014 = vmul.f32 %v3953, %v2282
    %v4015 = vmul.f32 %v3953, %v2283
    %v4016 = vmul.f32 %v3953, %v2284
    %v4017 = vmul.f32 %v3958, %v2269
    %v4018 = vmul.f32 %v3958, %v2270
    %v4019 = vmul.f32 %v3958, %v2271
    %v4020 = vmul.f32 %v3958, %v2272
    %v4021 = vmul.f32 %v3958, %v2273
    %v4022 = vmul.f32 %v3958, %v2274
    %v4023 = vmul.f32 %v3958, %v2275
    %v4024 = vmul.f32 %v3958, %v2276
    %v4025 = vmul.f32 %v3958, %v2277
    %v4026 = vmul.f32 %v3958, %v2278
    %v4027 = vmul.f32 %v3958, %v2279
    %v4028 = vmul.f32 %v3958, %v2280
    %v4029 = vmul.f32 %v3958, %v2281
    %v4030 = vmul.f32 %v3958, %v2282
    %v4031 = vmul.f32 %v3958, %v2283
    %v4032 = vmul.f32 %v3958, %v2284
    %v4033 = vmul.f32 %v3963, %v2269
    %v4034 = vmul.f32 %v3963, %v2270
    %v4035 = vmul.f32 %v3963, %v2271
    %v4036 = vmul.f32 %v3963, %v2272
    %v4037 = vmul.f32 %v3963, %v2273
    %v4038 = vmul.f32 %v3963, %v2274
    %v4039 = vmul.f32 %v3963, %v2275
    %v4040 = vmul.f32 %v3963, %v2276
    %v4041 = vmul.f32 %v3963, %v2277
    %v4042 = vmul.f32 %v3963, %v2278
    %v4043 = vmul.f32 %v3963, %v2279
    %v4044 = vmul.f32 %v3963, %v2280
    %v4045 = vmul.f32 %v3963, %v2281
    %v4046 = vmul.f32 %v3963, %v2282
    %v4047 = vmul.f32 %v3963, %v2283
    %v4048 = vmul.f32 %v3963, %v2284
    %v4049 = vmul.f32 %v3968, %v2269
    %v4050 = vmul.f32 %v3968, %v2270
    %v4051 = vmul.f32 %v3968, %v2271
    %v4052 = vmul.f32 %v3968, %v2272
    %v4053 = vmul.f32 %v3968, %v2273
    %v4054 = vmul.f32 %v3968, %v2274
    %v4055 = vmul.f32 %v3968, %v2275
    %v4056 = vmul.f32 %v3968, %v2276
    %v4057 = vmul.f32 %v3968, %v2277
    %v4058 = vmul.f32 %v3968, %v2278
    %v4059 = vmul.f32 %v3968, %v2279
    %v4060 = vmul.f32 %v3968, %v2280
    %v4061 = vmul.f32 %v3968, %v2281
    %v4062 = vmul.f32 %v3968, %v2282
    %v4063 = vmul.f32 %v3968, %v2283
    %v4064 = vmul.f32 %v3968, %v2284
    %v4065 = vmul.f32 %v3973, %v2269
    %v4066 = vmul.f32 %v3973, %v2270
    %v4067 = vmul.f32 %v3973, %v2271
    %v4068 = vmul.f32 %v3973, %v2272
    %v4069 = vmul.f32 %v3973, %v2273
    %v4070 = vmul.f32 %v3973, %v2274
    %v4071 = vmul.f32 %v3973, %v2275
    %v4072 = vmul.f32 %v3973, %v2276
    %v4073 = vmul.f32 %v3973, %v2277
    %v4074 = vmul.f32 %v3973, %v2278
    %v4075 = vmul.f32 %v3973, %v2279
    %v4076 = vmul.f32 %v3973, %v2280
    %v4077 = vmul.f32 %v3973, %v2281
    %v4078 = vmul.f32 %v3973, %v2282
    %v4079 = vmul.f32 %v3973, %v2283
    %v4080 = vmul.f32 %v3973, %v2284
    %v4081 = vmul.f32 %v3978, %v2269
    %v4082 = vmul.f32 %v3978, %v2270
    %v4083 = vmul.f32 %v3978, %v2271
    %v4084 = vmul.f32 %v3978, %v2272
    %v4085 = vmul.f32 %v3978, %v2273
    %v4086 = vmul.f32 %v3978, %v2274
    %v4087 = vmul.f32 %v3978, %v2275
    %v4088 = vmul.f32 %v3978, %v2276
    %v4089 = vmul.f32 %v3978, %v2277
    %v4090 = vmul.f32 %v3978, %v2278
    %v4091 = vmul.f32 %v3978, %v2279
    %v4092 = vmul.f32 %v3978, %v2280
    %v4093 = vmul.f32 %v3978, %v2281
    %v4094 = vmul.f32 %v3978, %v2282
    %v4095 = vmul.f32 %v3978, %v2283
    %v4096 = vmul.f32 %v3978, %v2284
    %v4097 = vmul.f32 %v3983, %v2269
    %v4098 = vmul.f32 %v3983, %v2270
    %v4099 = vmul.f32 %v3983, %v2271
    %v4100 = vmul.f32 %v3983, %v2272
    %v4101 = vmul.f32 %v3983, %v2273
    %v4102 = vmul.f32 %v3983, %v2274
    %v4103 = vmul.f32 %v3983, %v2275
    %v4104 = vmul.f32 %v3983, %v2276
    %v4105 = vmul.f32 %v3983, %v2277
    %v4106 = vmul.f32 %v3983, %v2278
    %v4107 = vmul.f32 %v3983, %v2279
    %v4108 = vmul.f32 %v3983, %v2280
    %v4109 = vmul.f32 %v3983, %v2281
    %v4110 = vmul.f32 %v3983, %v2282
    %v4111 = vmul.f32 %v3983, %v2283
    %v4112 = vmul.f32 %v3983, %v2284
    %vm4113 = vcmask 523264
    %v4115 = vsel %vm4113, %v3929, 0
    %v4118 = vsel %vm4113, %v3930, 0
    %v4121 = vsel %vm4113, %v3931, 0
    %v4124 = vsel %vm4113, %v3932, 0
    %v4127 = vsel %vm4113, %v3933, 0
    %v4130 = vsel %vm4113, %v3934, 0
    %v4133 = vsel %vm4113, %v3935, 0
    %v4136 = vsel %vm4113, %v3936, 0
    %4138 = vmatprep.subr.mxu0 0.0
    %4139 = vmatpush1.msra.mxu0 0.0
    %4140 = vmatprep.subr.mxu0 0.0
    %4141 = vmatpush1.msra.mxu0 0.0
    %4142 = vmatprep.subr.mxu0 0.0
    %4143 = vmatpush1.msra.mxu0 0.0
    %4144 = vmatprep.subr.mxu0 0.0
    %4145 = vmatpush1.msra.mxu0 0.0
    %4146 = vmatprep.subr.mxu0 0.0
    %4147 = vmatpush1.msra.mxu0 0.0
    %4148 = vmatprep.subr.mxu0 0.0
    %4149 = vmatpush1.msra.mxu0 0.0
    %4150 = vmatprep.subr.mxu0 0.0
    %4151 = vmatpush1.msra.mxu0 0.0
    %4152 = vmatprep.subr.mxu0 0.0
    %4153 = vmatpush1.msra.mxu0 0.0
    %4154 = vmatprep.subr.mxu0 %v3734
    %4155 = vmatpush1.msra.mxu0 %v3733
    %4156 = vmatprep.subr.mxu0 %v3730
    %4157 = vmatpush1.msra.mxu0 %v3729
    %4158 = vmatprep.subr.mxu0 %v3726
    %4159 = vmatpush1.msra.mxu0 %v3725
    %4160 = vmatprep.subr.mxu0 %v3722
    %4161 = vmatpush1.msra.mxu0 %v3721
    %4162 = vmatprep.subr.mxu0 %v3718
    %4163 = vmatpush1.msra.mxu0 %v3717
    %4164 = vmatprep.subr.mxu0 %v3714
    %4165 = vmatpush1.msra.mxu0 %v3713
    %4166 = vmatprep.subr.mxu0 %v3710
    %4167 = vmatpush1.msra.mxu0 %v3709
    %4168 = vmatprep.subr.mxu0 %v3706
    %4169 = vmatpush1.msra.mxu0 %v3705
    %4170 = vmatprep.subr.mxu0 0.0
    %4171 = vmatpush2.msra.mxu0 0.0
    %4172 = vmatprep.subr.mxu0 0.0
    %4173 = vmatpush2.msra.mxu0 0.0
    %4174 = vmatprep.subr.mxu0 0.0
    %4175 = vmatpush2.msra.mxu0 0.0
    %4176 = vmatprep.subr.mxu0 0.0
    %4177 = vmatpush2.msra.mxu0 0.0
    %4178 = vmatprep.subr.mxu0 0.0
    %4179 = vmatpush2.msra.mxu0 0.0
    %4180 = vmatprep.subr.mxu0 0.0
    %4181 = vmatpush2.msra.mxu0 0.0
    %4182 = vmatprep.subr.mxu0 0.0
    %4183 = vmatpush2.msra.mxu0 0.0
    %4184 = vmatprep.subr.mxu0 0.0
    %4185 = vmatpush2.msra.mxu0 0.0
    %4186 = vmatprep.subr.mxu0 0.0
    %4187 = vmatpush2.msra.mxu0 0.0
    %4188 = vmatprep.subr.mxu0 0.0
    %4189 = vmatpush2.msra.mxu0 0.0
    %4190 = vmatprep.subr.mxu0 0.0
    %4191 = vmatpush2.msra.mxu0 0.0
    %4192 = vmatprep.subr.mxu0 0.0
    %4193 = vmatpush2.msra.mxu0 0.0
    %4194 = vmatprep.subr.mxu0 0.0
    %4195 = vmatpush2.msra.mxu0 0.0
    %4196 = vmatprep.subr.mxu0 0.0
    %4197 = vmatpush2.msra.mxu0 0.0
    %4198 = vmatprep.subr.mxu0 0.0
    %4199 = vmatpush2.msra.mxu0 0.0
    %4200 = vmatprep.subr.mxu0 0.0
    %4201 = vmatpush2.msra.mxu0 0.0
    %4202 = vmatprep.mubr.f32.mxu0 0.0
    %4203 = vmatmul.mubr.f32.gmra.mxu0 %v4115
    %v4204 = vpop.f32.mrf.mxu0
    %v4205 = vadd.f32 %v3985, %v4204
    %v4206 = vpop.f32.mrf.mxu0
    %v4207 = vadd.f32 %v3986, %v4206
    %4208 = vmatprep.mubr.f32.mxu0 0.0
    %4209 = vmatmul.mubr.f32.gmra.mxu0 %v4118
    %v4210 = vpop.f32.mrf.mxu0
    %v4211 = vadd.f32 %v4001, %v4210
    %v4212 = vpop.f32.mrf.mxu0
    %v4213 = vadd.f32 %v4002, %v4212
    %4214 = vmatprep.mubr.f32.mxu0 0.0
    %4215 = vmatmul.mubr.f32.gmra.mxu0 %v4121
    %v4216 = vpop.f32.mrf.mxu0
    %v4217 = vadd.f32 %v4017, %v4216
    %v4218 = vpop.f32.mrf.mxu0
    %v4219 = vadd.f32 %v4018, %v4218
    %4220 = vmatprep.mubr.f32.mxu0 0.0
    %4221 = vmatmul.mubr.f32.gmra.mxu0 %v4124
    %v4222 = vpop.f32.mrf.mxu0
    %v4223 = vadd.f32 %v4033, %v4222
    %v4224 = vpop.f32.mrf.mxu0
    %v4225 = vadd.f32 %v4034, %v4224
    %4226 = vmatprep.mubr.f32.mxu0 0.0
    %4227 = vmatmul.mubr.f32.gmra.mxu0 %v4127
    %v4228 = vpop.f32.mrf.mxu0
    %v4229 = vadd.f32 %v4049, %v4228
    %v4230 = vpop.f32.mrf.mxu0
    %v4231 = vadd.f32 %v4050, %v4230
    %4232 = vmatprep.mubr.f32.mxu0 0.0
    %4233 = vmatmul.mubr.f32.gmra.mxu0 %v4130
    %v4234 = vpop.f32.mrf.mxu0
    %v4235 = vadd.f32 %v4065, %v4234
    %v4236 = vpop.f32.mrf.mxu0
    %v4237 = vadd.f32 %v4066, %v4236
    %4238 = vmatprep.mubr.f32.mxu0 0.0
    %4239 = vmatmul.mubr.f32.gmra.mxu0 %v4133
    %v4240 = vpop.f32.mrf.mxu0
    %v4241 = vadd.f32 %v4081, %v4240
    %v4242 = vpop.f32.mrf.mxu0
    %v4243 = vadd.f32 %v4082, %v4242
    %4244 = vmatprep.mubr.f32.mxu0 0.0
    %4245 = vmatmul.mubr.f32.gmra.mxu0 %v4136
    %v4246 = vpop.f32.mrf.mxu0
    %v4247 = vadd.f32 %v4097, %v4246
    %v4248 = vpop.f32.mrf.mxu0
    %v4249 = vadd.f32 %v4098, %v4248
    %4250 = vdwg.mxu0
    %4251 = vmatprep.subr.mxu0 0.0
    %4252 = vmatpush1.msra.mxu0 0.0
    %4253 = vmatprep.subr.mxu0 0.0
    %4254 = vmatpush1.msra.mxu0 0.0
    %4255 = vmatprep.subr.mxu0 0.0
    %4256 = vmatpush1.msra.mxu0 0.0
    %4257 = vmatprep.subr.mxu0 0.0
    %4258 = vmatpush1.msra.mxu0 0.0
    %4259 = vmatprep.subr.mxu0 0.0
    %4260 = vmatpush1.msra.mxu0 0.0
    %4261 = vmatprep.subr.mxu0 0.0
    %4262 = vmatpush1.msra.mxu0 0.0
    %4263 = vmatprep.subr.mxu0 0.0
    %4264 = vmatpush1.msra.mxu0 0.0
    %4265 = vmatprep.subr.mxu0 0.0
    %4266 = vmatpush1.msra.mxu0 0.0
    %4267 = vmatprep.subr.mxu0 %v3736
    %4268 = vmatpush1.msra.mxu0 %v3735
    %4269 = vmatprep.subr.mxu0 %v3732
    %4270 = vmatpush1.msra.mxu0 %v3731
    %4271 = vmatprep.subr.mxu0 %v3728
    %4272 = vmatpush1.msra.mxu0 %v3727
    %4273 = vmatprep.subr.mxu0 %v3724
    %4274 = vmatpush1.msra.mxu0 %v3723
    %4275 = vmatprep.subr.mxu0 %v3720
    %4276 = vmatpush1.msra.mxu0 %v3719
    %4277 = vmatprep.subr.mxu0 %v3716
    %4278 = vmatpush1.msra.mxu0 %v3715
    %4279 = vmatprep.subr.mxu0 %v3712
    %4280 = vmatpush1.msra.mxu0 %v3711
    %4281 = vmatprep.subr.mxu0 %v3708
    %4282 = vmatpush1.msra.mxu0 %v3707
    %4283 = vmatprep.subr.mxu0 0.0
    %4284 = vmatpush2.msra.mxu0 0.0
    %4285 = vmatprep.subr.mxu0 0.0
    %4286 = vmatpush2.msra.mxu0 0.0
    %4287 = vmatprep.subr.mxu0 0.0
    %4288 = vmatpush2.msra.mxu0 0.0
    %4289 = vmatprep.subr.mxu0 0.0
    %4290 = vmatpush2.msra.mxu0 0.0
    %4291 = vmatprep.subr.mxu0 0.0
    %4292 = vmatpush2.msra.mxu0 0.0
    %4293 = vmatprep.subr.mxu0 0.0
    %4294 = vmatpush2.msra.mxu0 0.0
    %4295 = vmatprep.subr.mxu0 0.0
    %4296 = vmatpush2.msra.mxu0 0.0
    %4297 = vmatprep.subr.mxu0 0.0
    %4298 = vmatpush2.msra.mxu0 0.0
    %4299 = vmatprep.subr.mxu0 0.0
    %4300 = vmatpush2.msra.mxu0 0.0
    %4301 = vmatprep.subr.mxu0 0.0
    %4302 = vmatpush2.msra.mxu0 0.0
    %4303 = vmatprep.subr.mxu0 0.0
    %4304 = vmatpush2.msra.mxu0 0.0
    %4305 = vmatprep.subr.mxu0 0.0
    %4306 = vmatpush2.msra.mxu0 0.0
    %4307 = vmatprep.subr.mxu0 0.0
    %4308 = vmatpush2.msra.mxu0 0.0
    %4309 = vmatprep.subr.mxu0 0.0
    %4310 = vmatpush2.msra.mxu0 0.0
    %4311 = vmatprep.subr.mxu0 0.0
    %4312 = vmatpush2.msra.mxu0 0.0
    %4313 = vmatprep.subr.mxu0 0.0
    %4314 = vmatpush2.msra.mxu0 0.0
    %4315 = vmatprep.mubr.f32.mxu0 0.0
    %4316 = vmatmul.mubr.f32.gmra.mxu0 %v4115
    %v4317 = vpop.f32.mrf.mxu0
    %v4318 = vadd.f32 %v3987, %v4317
    %v4319 = vpop.f32.mrf.mxu0
    %v4320 = vadd.f32 %v3988, %v4319
    %4321 = vmatprep.mubr.f32.mxu0 0.0
    %4322 = vmatmul.mubr.f32.gmra.mxu0 %v4118
    %v4323 = vpop.f32.mrf.mxu0
    %v4324 = vadd.f32 %v4003, %v4323
    %v4325 = vpop.f32.mrf.mxu0
    %v4326 = vadd.f32 %v4004, %v4325
    %4327 = vmatprep.mubr.f32.mxu0 0.0
    %4328 = vmatmul.mubr.f32.gmra.mxu0 %v4121
    %v4329 = vpop.f32.mrf.mxu0
    %v4330 = vadd.f32 %v4019, %v4329
    %v4331 = vpop.f32.mrf.mxu0
    %v4332 = vadd.f32 %v4020, %v4331
    %4333 = vmatprep.mubr.f32.mxu0 0.0
    %4334 = vmatmul.mubr.f32.gmra.mxu0 %v4124
    %v4335 = vpop.f32.mrf.mxu0
    %v4336 = vadd.f32 %v4035, %v4335
    %v4337 = vpop.f32.mrf.mxu0
    %v4338 = vadd.f32 %v4036, %v4337
    %4339 = vmatprep.mubr.f32.mxu0 0.0
    %4340 = vmatmul.mubr.f32.gmra.mxu0 %v4127
    %v4341 = vpop.f32.mrf.mxu0
    %v4342 = vadd.f32 %v4051, %v4341
    %v4343 = vpop.f32.mrf.mxu0
    %v4344 = vadd.f32 %v4052, %v4343
    %4345 = vmatprep.mubr.f32.mxu0 0.0
    %4346 = vmatmul.mubr.f32.gmra.mxu0 %v4130
    %v4347 = vpop.f32.mrf.mxu0
    %v4348 = vadd.f32 %v4067, %v4347
    %v4349 = vpop.f32.mrf.mxu0
    %v4350 = vadd.f32 %v4068, %v4349
    %4351 = vmatprep.mubr.f32.mxu0 0.0
    %4352 = vmatmul.mubr.f32.gmra.mxu0 %v4133
    %v4353 = vpop.f32.mrf.mxu0
    %v4354 = vadd.f32 %v4083, %v4353
    %v4355 = vpop.f32.mrf.mxu0
    %v4356 = vadd.f32 %v4084, %v4355
    %4357 = vmatprep.mubr.f32.mxu0 0.0
    %4358 = vmatmul.mubr.f32.gmra.mxu0 %v4136
    %v4359 = vpop.f32.mrf.mxu0
    %v4360 = vadd.f32 %v4099, %v4359
    %v4361 = vpop.f32.mrf.mxu0
    %v4362 = vadd.f32 %v4100, %v4361
    %4363 = vdwg.mxu0
    %4364 = vmatprep.subr.mxu0 0.0
    %4365 = vmatpush1.msra.mxu0 0.0
    %4366 = vmatprep.subr.mxu0 0.0
    %4367 = vmatpush1.msra.mxu0 0.0
    %4368 = vmatprep.subr.mxu0 0.0
    %4369 = vmatpush1.msra.mxu0 0.0
    %4370 = vmatprep.subr.mxu0 0.0
    %4371 = vmatpush1.msra.mxu0 0.0
    %4372 = vmatprep.subr.mxu0 0.0
    %4373 = vmatpush1.msra.mxu0 0.0
    %4374 = vmatprep.subr.mxu0 0.0
    %4375 = vmatpush1.msra.mxu0 0.0
    %4376 = vmatprep.subr.mxu0 0.0
    %4377 = vmatpush1.msra.mxu0 0.0
    %4378 = vmatprep.subr.mxu0 0.0
    %4379 = vmatpush1.msra.mxu0 0.0
    %4380 = vmatprep.subr.mxu0 %v3918
    %4381 = vmatpush1.msra.mxu0 %v3917
    %4382 = vmatprep.subr.mxu0 %v3906
    %4383 = vmatpush1.msra.mxu0 %v3905
    %4384 = vmatprep.subr.mxu0 %v3894
    %4385 = vmatpush1.msra.mxu0 %v3893
    %4386 = vmatprep.subr.mxu0 %v3882
    %4387 = vmatpush1.msra.mxu0 %v3881
    %4388 = vmatprep.subr.mxu0 %v3870
    %4389 = vmatpush1.msra.mxu0 %v3869
    %4390 = vmatprep.subr.mxu0 %v3858
    %4391 = vmatpush1.msra.mxu0 %v3857
    %4392 = vmatprep.subr.mxu0 %v3846
    %4393 = vmatpush1.msra.mxu0 %v3845
    %4394 = vmatprep.subr.mxu0 %v3834
    %4395 = vmatpush1.msra.mxu0 %v3833
    %4396 = vmatprep.subr.mxu0 0.0
    %4397 = vmatpush2.msra.mxu0 0.0
    %4398 = vmatprep.subr.mxu0 0.0
    %4399 = vmatpush2.msra.mxu0 0.0
    %4400 = vmatprep.subr.mxu0 0.0
    %4401 = vmatpush2.msra.mxu0 0.0
    %4402 = vmatprep.subr.mxu0 0.0
    %4403 = vmatpush2.msra.mxu0 0.0
    %4404 = vmatprep.subr.mxu0 0.0
    %4405 = vmatpush2.msra.mxu0 0.0
    %4406 = vmatprep.subr.mxu0 0.0
    %4407 = vmatpush2.msra.mxu0 0.0
    %4408 = vmatprep.subr.mxu0 0.0
    %4409 = vmatpush2.msra.mxu0 0.0
    %4410 = vmatprep.subr.mxu0 0.0
    %4411 = vmatpush2.msra.mxu0 0.0
    %4412 = vmatprep.subr.mxu0 0.0
    %4413 = vmatpush2.msra.mxu0 0.0
    %4414 = vmatprep.subr.mxu0 0.0
    %4415 = vmatpush2.msra.mxu0 0.0
    %4416 = vmatprep.subr.mxu0 0.0
    %4417 = vmatpush2.msra.mxu0 0.0
    %4418 = vmatprep.subr.mxu0 0.0
    %4419 = vmatpush2.msra.mxu0 0.0
    %4420 = vmatprep.subr.mxu0 0.0
    %4421 = vmatpush2.msra.mxu0 0.0
    %4422 = vmatprep.subr.mxu0 0.0
    %4423 = vmatpush2.msra.mxu0 0.0
    %4424 = vmatprep.subr.mxu0 0.0
    %4425 = vmatpush2.msra.mxu0 0.0
    %4426 = vmatprep.subr.mxu0 0.0
    %4427 = vmatpush2.msra.mxu0 0.0
    %4428 = vmatprep.mubr.f32.mxu0 0.0
    %4429 = vmatmul.mubr.f32.gmra.mxu0 %v4115
    %v4430 = vpop.f32.mrf.mxu0
    %v4431 = vadd.f32 %v3989, %v4430
    %v4432 = vpop.f32.mrf.mxu0
    %v4433 = vadd.f32 %v3990, %v4432
    %4434 = vmatprep.mubr.f32.mxu0 0.0
    %4435 = vmatmul.mubr.f32.gmra.mxu0 %v4118
    %v4436 = vpop.f32.mrf.mxu0
    %v4437 = vadd.f32 %v4005, %v4436
    %v4438 = vpop.f32.mrf.mxu0
    %v4439 = vadd.f32 %v4006, %v4438
    %4440 = vmatprep.mubr.f32.mxu0 0.0
    %4441 = vmatmul.mubr.f32.gmra.mxu0 %v4121
    %v4442 = vpop.f32.mrf.mxu0
    %v4443 = vadd.f32 %v4021, %v4442
    %v4444 = vpop.f32.mrf.mxu0
    %v4445 = vadd.f32 %v4022, %v4444
    %4446 = vmatprep.mubr.f32.mxu0 0.0
    %4447 = vmatmul.mubr.f32.gmra.mxu0 %v4124
    %v4448 = vpop.f32.mrf.mxu0
    %v4449 = vadd.f32 %v4037, %v4448
    %v4450 = vpop.f32.mrf.mxu0
    %v4451 = vadd.f32 %v4038, %v4450
    %4452 = vmatprep.mubr.f32.mxu0 0.0
    %4453 = vmatmul.mubr.f32.gmra.mxu0 %v4127
    %v4454 = vpop.f32.mrf.mxu0
    %v4455 = vadd.f32 %v4053, %v4454
    %v4456 = vpop.f32.mrf.mxu0
    %v4457 = vadd.f32 %v4054, %v4456
    %4458 = vmatprep.mubr.f32.mxu0 0.0
    %4459 = vmatmul.mubr.f32.gmra.mxu0 %v4130
    %v4460 = vpop.f32.mrf.mxu0
    %v4461 = vadd.f32 %v4069, %v4460
    %v4462 = vpop.f32.mrf.mxu0
    %v4463 = vadd.f32 %v4070, %v4462
    %4464 = vmatprep.mubr.f32.mxu0 0.0
    %4465 = vmatmul.mubr.f32.gmra.mxu0 %v4133
    %v4466 = vpop.f32.mrf.mxu0
    %v4467 = vadd.f32 %v4085, %v4466
    %v4468 = vpop.f32.mrf.mxu0
    %v4469 = vadd.f32 %v4086, %v4468
    %4470 = vmatprep.mubr.f32.mxu0 0.0
    %4471 = vmatmul.mubr.f32.gmra.mxu0 %v4136
    %v4472 = vpop.f32.mrf.mxu0
    %v4473 = vadd.f32 %v4101, %v4472
    %v4474 = vpop.f32.mrf.mxu0
    %v4475 = vadd.f32 %v4102, %v4474
    %4476 = vdwg.mxu0
    %4477 = vmatprep.subr.mxu0 0.0
    %4478 = vmatpush1.msra.mxu0 0.0
    %4479 = vmatprep.subr.mxu0 0.0
    %4480 = vmatpush1.msra.mxu0 0.0
    %4481 = vmatprep.subr.mxu0 0.0
    %4482 = vmatpush1.msra.mxu0 0.0
    %4483 = vmatprep.subr.mxu0 0.0
    %4484 = vmatpush1.msra.mxu0 0.0
    %4485 = vmatprep.subr.mxu0 0.0
    %4486 = vmatpush1.msra.mxu0 0.0
    %4487 = vmatprep.subr.mxu0 0.0
    %4488 = vmatpush1.msra.mxu0 0.0
    %4489 = vmatprep.subr.mxu0 0.0
    %4490 = vmatpush1.msra.mxu0 0.0
    %4491 = vmatprep.subr.mxu0 0.0
    %4492 = vmatpush1.msra.mxu0 0.0
    %4493 = vmatprep.subr.mxu0 %v3920
    %4494 = vmatpush1.msra.mxu0 %v3919
    %4495 = vmatprep.subr.mxu0 %v3908
    %4496 = vmatpush1.msra.mxu0 %v3907
    %4497 = vmatprep.subr.mxu0 %v3896
    %4498 = vmatpush1.msra.mxu0 %v3895
    %4499 = vmatprep.subr.mxu0 %v3884
    %4500 = vmatpush1.msra.mxu0 %v3883
    %4501 = vmatprep.subr.mxu0 %v3872
    %4502 = vmatpush1.msra.mxu0 %v3871
    %4503 = vmatprep.subr.mxu0 %v3860
    %4504 = vmatpush1.msra.mxu0 %v3859
    %4505 = vmatprep.subr.mxu0 %v3848
    %4506 = vmatpush1.msra.mxu0 %v3847
    %4507 = vmatprep.subr.mxu0 %v3836
    %4508 = vmatpush1.msra.mxu0 %v3835
    %4509 = vmatprep.subr.mxu0 0.0
    %4510 = vmatpush2.msra.mxu0 0.0
    %4511 = vmatprep.subr.mxu0 0.0
    %4512 = vmatpush2.msra.mxu0 0.0
    %4513 = vmatprep.subr.mxu0 0.0
    %4514 = vmatpush2.msra.mxu0 0.0
    %4515 = vmatprep.subr.mxu0 0.0
    %4516 = vmatpush2.msra.mxu0 0.0
    %4517 = vmatprep.subr.mxu0 0.0
    %4518 = vmatpush2.msra.mxu0 0.0
    %4519 = vmatprep.subr.mxu0 0.0
    %4520 = vmatpush2.msra.mxu0 0.0
    %4521 = vmatprep.subr.mxu0 0.0
    %4522 = vmatpush2.msra.mxu0 0.0
    %4523 = vmatprep.subr.mxu0 0.0
    %4524 = vmatpush2.msra.mxu0 0.0
    %4525 = vmatprep.subr.mxu0 0.0
    %4526 = vmatpush2.msra.mxu0 0.0
    %4527 = vmatprep.subr.mxu0 0.0
    %4528 = vmatpush2.msra.mxu0 0.0
    %4529 = vmatprep.subr.mxu0 0.0
    %4530 = vmatpush2.msra.mxu0 0.0
    %4531 = vmatprep.subr.mxu0 0.0
    %4532 = vmatpush2.msra.mxu0 0.0
    %4533 = vmatprep.subr.mxu0 0.0
    %4534 = vmatpush2.msra.mxu0 0.0
    %4535 = vmatprep.subr.mxu0 0.0
    %4536 = vmatpush2.msra.mxu0 0.0
    %4537 = vmatprep.subr.mxu0 0.0
    %4538 = vmatpush2.msra.mxu0 0.0
    %4539 = vmatprep.subr.mxu0 0.0
    %4540 = vmatpush2.msra.mxu0 0.0
    %4541 = vmatprep.mubr.f32.mxu0 0.0
    %4542 = vmatmul.mubr.f32.gmra.mxu0 %v4115
    %v4543 = vpop.f32.mrf.mxu0
    %v4544 = vadd.f32 %v3991, %v4543
    %v4545 = vpop.f32.mrf.mxu0
    %v4546 = vadd.f32 %v3992, %v4545
    %4547 = vmatprep.mubr.f32.mxu0 0.0
    %4548 = vmatmul.mubr.f32.gmra.mxu0 %v4118
    %v4549 = vpop.f32.mrf.mxu0
    %v4550 = vadd.f32 %v4007, %v4549
    %v4551 = vpop.f32.mrf.mxu0
    %v4552 = vadd.f32 %v4008, %v4551
    %4553 = vmatprep.mubr.f32.mxu0 0.0
    %4554 = vmatmul.mubr.f32.gmra.mxu0 %v4121
    %v4555 = vpop.f32.mrf.mxu0
    %v4556 = vadd.f32 %v4023, %v4555
    %v4557 = vpop.f32.mrf.mxu0
    %v4558 = vadd.f32 %v4024, %v4557
    %4559 = vmatprep.mubr.f32.mxu0 0.0
    %4560 = vmatmul.mubr.f32.gmra.mxu0 %v4124
    %v4561 = vpop.f32.mrf.mxu0
    %v4562 = vadd.f32 %v4039, %v4561
    %v4563 = vpop.f32.mrf.mxu0
    %v4564 = vadd.f32 %v4040, %v4563
    %4565 = vmatprep.mubr.f32.mxu0 0.0
    %4566 = vmatmul.mubr.f32.gmra.mxu0 %v4127
    %v4567 = vpop.f32.mrf.mxu0
    %v4568 = vadd.f32 %v4055, %v4567
    %v4569 = vpop.f32.mrf.mxu0
    %v4570 = vadd.f32 %v4056, %v4569
    %4571 = vmatprep.mubr.f32.mxu0 0.0
    %4572 = vmatmul.mubr.f32.gmra.mxu0 %v4130
    %v4573 = vpop.f32.mrf.mxu0
    %v4574 = vadd.f32 %v4071, %v4573
    %v4575 = vpop.f32.mrf.mxu0
    %v4576 = vadd.f32 %v4072, %v4575
    %4577 = vmatprep.mubr.f32.mxu0 0.0
    %4578 = vmatmul.mubr.f32.gmra.mxu0 %v4133
    %v4579 = vpop.f32.mrf.mxu0
    %v4580 = vadd.f32 %v4087, %v4579
    %v4581 = vpop.f32.mrf.mxu0
    %v4582 = vadd.f32 %v4088, %v4581
    %4583 = vmatprep.mubr.f32.mxu0 0.0
    %4584 = vmatmul.mubr.f32.gmra.mxu0 %v4136
    %v4585 = vpop.f32.mrf.mxu0
    %v4586 = vadd.f32 %v4103, %v4585
    %v4587 = vpop.f32.mrf.mxu0
    %v4588 = vadd.f32 %v4104, %v4587
    %4589 = vdwg.mxu0
    %4590 = vmatprep.subr.mxu0 0.0
    %4591 = vmatpush1.msra.mxu0 0.0
    %4592 = vmatprep.subr.mxu0 0.0
    %4593 = vmatpush1.msra.mxu0 0.0
    %4594 = vmatprep.subr.mxu0 0.0
    %4595 = vmatpush1.msra.mxu0 0.0
    %4596 = vmatprep.subr.mxu0 0.0
    %4597 = vmatpush1.msra.mxu0 0.0
    %4598 = vmatprep.subr.mxu0 0.0
    %4599 = vmatpush1.msra.mxu0 0.0
    %4600 = vmatprep.subr.mxu0 0.0
    %4601 = vmatpush1.msra.mxu0 0.0
    %4602 = vmatprep.subr.mxu0 0.0
    %4603 = vmatpush1.msra.mxu0 0.0
    %4604 = vmatprep.subr.mxu0 0.0
    %4605 = vmatpush1.msra.mxu0 0.0
    %4606 = vmatprep.subr.mxu0 %v3922
    %4607 = vmatpush1.msra.mxu0 %v3921
    %4608 = vmatprep.subr.mxu0 %v3910
    %4609 = vmatpush1.msra.mxu0 %v3909
    %4610 = vmatprep.subr.mxu0 %v3898
    %4611 = vmatpush1.msra.mxu0 %v3897
    %4612 = vmatprep.subr.mxu0 %v3886
    %4613 = vmatpush1.msra.mxu0 %v3885
    %4614 = vmatprep.subr.mxu0 %v3874
    %4615 = vmatpush1.msra.mxu0 %v3873
    %4616 = vmatprep.subr.mxu0 %v3862
    %4617 = vmatpush1.msra.mxu0 %v3861
    %4618 = vmatprep.subr.mxu0 %v3850
    %4619 = vmatpush1.msra.mxu0 %v3849
    %4620 = vmatprep.subr.mxu0 %v3838
    %4621 = vmatpush1.msra.mxu0 %v3837
    %4622 = vmatprep.subr.mxu0 0.0
    %4623 = vmatpush2.msra.mxu0 0.0
    %4624 = vmatprep.subr.mxu0 0.0
    %4625 = vmatpush2.msra.mxu0 0.0
    %4626 = vmatprep.subr.mxu0 0.0
    %4627 = vmatpush2.msra.mxu0 0.0
    %4628 = vmatprep.subr.mxu0 0.0
    %4629 = vmatpush2.msra.mxu0 0.0
    %4630 = vmatprep.subr.mxu0 0.0
    %4631 = vmatpush2.msra.mxu0 0.0
    %4632 = vmatprep.subr.mxu0 0.0
    %4633 = vmatpush2.msra.mxu0 0.0
    %4634 = vmatprep.subr.mxu0 0.0
    %4635 = vmatpush2.msra.mxu0 0.0
    %4636 = vmatprep.subr.mxu0 0.0
    %4637 = vmatpush2.msra.mxu0 0.0
    %4638 = vmatprep.subr.mxu0 0.0
    %4639 = vmatpush2.msra.mxu0 0.0
    %4640 = vmatprep.subr.mxu0 0.0
    %4641 = vmatpush2.msra.mxu0 0.0
    %4642 = vmatprep.subr.mxu0 0.0
    %4643 = vmatpush2.msra.mxu0 0.0
    %4644 = vmatprep.subr.mxu0 0.0
    %4645 = vmatpush2.msra.mxu0 0.0
    %4646 = vmatprep.subr.mxu0 0.0
    %4647 = vmatpush2.msra.mxu0 0.0
    %4648 = vmatprep.subr.mxu0 0.0
    %4649 = vmatpush2.msra.mxu0 0.0
    %4650 = vmatprep.subr.mxu0 0.0
    %4651 = vmatpush2.msra.mxu0 0.0
    %4652 = vmatprep.subr.mxu0 0.0
    %4653 = vmatpush2.msra.mxu0 0.0
    %4654 = vmatprep.mubr.f32.mxu0 0.0
    %4655 = vmatmul.mubr.f32.gmra.mxu0 %v4115
    %v4656 = vpop.f32.mrf.mxu0
    %v4657 = vadd.f32 %v3993, %v4656
    %v4658 = vpop.f32.mrf.mxu0
    %v4659 = vadd.f32 %v3994, %v4658
    %4660 = vmatprep.mubr.f32.mxu0 0.0
    %4661 = vmatmul.mubr.f32.gmra.mxu0 %v4118
    %v4662 = vpop.f32.mrf.mxu0
    %v4663 = vadd.f32 %v4009, %v4662
    %v4664 = vpop.f32.mrf.mxu0
    %v4665 = vadd.f32 %v4010, %v4664
    %4666 = vmatprep.mubr.f32.mxu0 0.0
    %4667 = vmatmul.mubr.f32.gmra.mxu0 %v4121
    %v4668 = vpop.f32.mrf.mxu0
    %v4669 = vadd.f32 %v4025, %v4668
    %v4670 = vpop.f32.mrf.mxu0
    %v4671 = vadd.f32 %v4026, %v4670
    %4672 = vmatprep.mubr.f32.mxu0 0.0
    %4673 = vmatmul.mubr.f32.gmra.mxu0 %v4124
    %v4674 = vpop.f32.mrf.mxu0
    %v4675 = vadd.f32 %v4041, %v4674
    %v4676 = vpop.f32.mrf.mxu0
    %v4677 = vadd.f32 %v4042, %v4676
    %4678 = vmatprep.mubr.f32.mxu0 0.0
    %4679 = vmatmul.mubr.f32.gmra.mxu0 %v4127
    %v4680 = vpop.f32.mrf.mxu0
    %v4681 = vadd.f32 %v4057, %v4680
    %v4682 = vpop.f32.mrf.mxu0
    %v4683 = vadd.f32 %v4058, %v4682
    %4684 = vmatprep.mubr.f32.mxu0 0.0
    %4685 = vmatmul.mubr.f32.gmra.mxu0 %v4130
    %v4686 = vpop.f32.mrf.mxu0
    %v4687 = vadd.f32 %v4073, %v4686
    %v4688 = vpop.f32.mrf.mxu0
    %v4689 = vadd.f32 %v4074, %v4688
    %4690 = vmatprep.mubr.f32.mxu0 0.0
    %4691 = vmatmul.mubr.f32.gmra.mxu0 %v4133
    %v4692 = vpop.f32.mrf.mxu0
    %v4693 = vadd.f32 %v4089, %v4692
    %v4694 = vpop.f32.mrf.mxu0
    %v4695 = vadd.f32 %v4090, %v4694
    %4696 = vmatprep.mubr.f32.mxu0 0.0
    %4697 = vmatmul.mubr.f32.gmra.mxu0 %v4136
    %v4698 = vpop.f32.mrf.mxu0
    %v4699 = vadd.f32 %v4105, %v4698
    %v4700 = vpop.f32.mrf.mxu0
    %v4701 = vadd.f32 %v4106, %v4700
    %4702 = vdwg.mxu0
    %4703 = vmatprep.subr.mxu0 0.0
    %4704 = vmatpush1.msra.mxu0 0.0
    %4705 = vmatprep.subr.mxu0 0.0
    %4706 = vmatpush1.msra.mxu0 0.0
    %4707 = vmatprep.subr.mxu0 0.0
    %4708 = vmatpush1.msra.mxu0 0.0
    %4709 = vmatprep.subr.mxu0 0.0
    %4710 = vmatpush1.msra.mxu0 0.0
    %4711 = vmatprep.subr.mxu0 0.0
    %4712 = vmatpush1.msra.mxu0 0.0
    %4713 = vmatprep.subr.mxu0 0.0
    %4714 = vmatpush1.msra.mxu0 0.0
    %4715 = vmatprep.subr.mxu0 0.0
    %4716 = vmatpush1.msra.mxu0 0.0
    %4717 = vmatprep.subr.mxu0 0.0
    %4718 = vmatpush1.msra.mxu0 0.0
    %4719 = vmatprep.subr.mxu0 %v3924
    %4720 = vmatpush1.msra.mxu0 %v3923
    %4721 = vmatprep.subr.mxu0 %v3912
    %4722 = vmatpush1.msra.mxu0 %v3911
    %4723 = vmatprep.subr.mxu0 %v3900
    %4724 = vmatpush1.msra.mxu0 %v3899
    %4725 = vmatprep.subr.mxu0 %v3888
    %4726 = vmatpush1.msra.mxu0 %v3887
    %4727 = vmatprep.subr.mxu0 %v3876
    %4728 = vmatpush1.msra.mxu0 %v3875
    %4729 = vmatprep.subr.mxu0 %v3864
    %4730 = vmatpush1.msra.mxu0 %v3863
    %4731 = vmatprep.subr.mxu0 %v3852
    %4732 = vmatpush1.msra.mxu0 %v3851
    %4733 = vmatprep.subr.mxu0 %v3840
    %4734 = vmatpush1.msra.mxu0 %v3839
    %4735 = vmatprep.subr.mxu0 0.0
    %4736 = vmatpush2.msra.mxu0 0.0
    %4737 = vmatprep.subr.mxu0 0.0
    %4738 = vmatpush2.msra.mxu0 0.0
    %4739 = vmatprep.subr.mxu0 0.0
    %4740 = vmatpush2.msra.mxu0 0.0
    %4741 = vmatprep.subr.mxu0 0.0
    %4742 = vmatpush2.msra.mxu0 0.0
    %4743 = vmatprep.subr.mxu0 0.0
    %4744 = vmatpush2.msra.mxu0 0.0
    %4745 = vmatprep.subr.mxu0 0.0
    %4746 = vmatpush2.msra.mxu0 0.0
    %4747 = vmatprep.subr.mxu0 0.0
    %4748 = vmatpush2.msra.mxu0 0.0
    %4749 = vmatprep.subr.mxu0 0.0
    %4750 = vmatpush2.msra.mxu0 0.0
    %4751 = vmatprep.subr.mxu0 0.0
    %4752 = vmatpush2.msra.mxu0 0.0
    %4753 = vmatprep.subr.mxu0 0.0
    %4754 = vmatpush2.msra.mxu0 0.0
    %4755 = vmatprep.subr.mxu0 0.0
    %4756 = vmatpush2.msra.mxu0 0.0
    %4757 = vmatprep.subr.mxu0 0.0
    %4758 = vmatpush2.msra.mxu0 0.0
    %4759 = vmatprep.subr.mxu0 0.0
    %4760 = vmatpush2.msra.mxu0 0.0
    %4761 = vmatprep.subr.mxu0 0.0
    %4762 = vmatpush2.msra.mxu0 0.0
    %4763 = vmatprep.subr.mxu0 0.0
    %4764 = vmatpush2.msra.mxu0 0.0
    %4765 = vmatprep.subr.mxu0 0.0
    %4766 = vmatpush2.msra.mxu0 0.0
    %4767 = vmatprep.mubr.f32.mxu0 0.0
    %4768 = vmatmul.mubr.f32.gmra.mxu0 %v4115
    %v4769 = vpop.f32.mrf.mxu0
    %v4770 = vadd.f32 %v3995, %v4769
    %v4771 = vpop.f32.mrf.mxu0
    %v4772 = vadd.f32 %v3996, %v4771
    %4773 = vmatprep.mubr.f32.mxu0 0.0
    %4774 = vmatmul.mubr.f32.gmra.mxu0 %v4118
    %v4775 = vpop.f32.mrf.mxu0
    %v4776 = vadd.f32 %v4011, %v4775
    %v4777 = vpop.f32.mrf.mxu0
    %v4778 = vadd.f32 %v4012, %v4777
    %4779 = vmatprep.mubr.f32.mxu0 0.0
    %4780 = vmatmul.mubr.f32.gmra.mxu0 %v4121
    %v4781 = vpop.f32.mrf.mxu0
    %v4782 = vadd.f32 %v4027, %v4781
    %v4783 = vpop.f32.mrf.mxu0
    %v4784 = vadd.f32 %v4028, %v4783
    %4785 = vmatprep.mubr.f32.mxu0 0.0
    %4786 = vmatmul.mubr.f32.gmra.mxu0 %v4124
    %v4787 = vpop.f32.mrf.mxu0
    %v4788 = vadd.f32 %v4043, %v4787
    %v4789 = vpop.f32.mrf.mxu0
    %v4790 = vadd.f32 %v4044, %v4789
    %4791 = vmatprep.mubr.f32.mxu0 0.0
    %4792 = vmatmul.mubr.f32.gmra.mxu0 %v4127
    %v4793 = vpop.f32.mrf.mxu0
    %v4794 = vadd.f32 %v4059, %v4793
    %v4795 = vpop.f32.mrf.mxu0
    %v4796 = vadd.f32 %v4060, %v4795
    %4797 = vmatprep.mubr.f32.mxu0 0.0
    %4798 = vmatmul.mubr.f32.gmra.mxu0 %v4130
    %v4799 = vpop.f32.mrf.mxu0
    %v4800 = vadd.f32 %v4075, %v4799
    %v4801 = vpop.f32.mrf.mxu0
    %v4802 = vadd.f32 %v4076, %v4801
    %4803 = vmatprep.mubr.f32.mxu0 0.0
    %4804 = vmatmul.mubr.f32.gmra.mxu0 %v4133
    %v4805 = vpop.f32.mrf.mxu0
    %v4806 = vadd.f32 %v4091, %v4805
    %v4807 = vpop.f32.mrf.mxu0
    %v4808 = vadd.f32 %v4092, %v4807
    %4809 = vmatprep.mubr.f32.mxu0 0.0
    %4810 = vmatmul.mubr.f32.gmra.mxu0 %v4136
    %v4811 = vpop.f32.mrf.mxu0
    %v4812 = vadd.f32 %v4107, %v4811
    %v4813 = vpop.f32.mrf.mxu0
    %v4814 = vadd.f32 %v4108, %v4813
    %4815 = vdwg.mxu0
    %4816 = vmatprep.subr.mxu0 0.0
    %4817 = vmatpush1.msra.mxu0 0.0
    %4818 = vmatprep.subr.mxu0 0.0
    %4819 = vmatpush1.msra.mxu0 0.0
    %4820 = vmatprep.subr.mxu0 0.0
    %4821 = vmatpush1.msra.mxu0 0.0
    %4822 = vmatprep.subr.mxu0 0.0
    %4823 = vmatpush1.msra.mxu0 0.0
    %4824 = vmatprep.subr.mxu0 0.0
    %4825 = vmatpush1.msra.mxu0 0.0
    %4826 = vmatprep.subr.mxu0 0.0
    %4827 = vmatpush1.msra.mxu0 0.0
    %4828 = vmatprep.subr.mxu0 0.0
    %4829 = vmatpush1.msra.mxu0 0.0
    %4830 = vmatprep.subr.mxu0 0.0
    %4831 = vmatpush1.msra.mxu0 0.0
    %4832 = vmatprep.subr.mxu0 %v3926
    %4833 = vmatpush1.msra.mxu0 %v3925
    %4834 = vmatprep.subr.mxu0 %v3914
    %4835 = vmatpush1.msra.mxu0 %v3913
    %4836 = vmatprep.subr.mxu0 %v3902
    %4837 = vmatpush1.msra.mxu0 %v3901
    %4838 = vmatprep.subr.mxu0 %v3890
    %4839 = vmatpush1.msra.mxu0 %v3889
    %4840 = vmatprep.subr.mxu0 %v3878
    %4841 = vmatpush1.msra.mxu0 %v3877
    %4842 = vmatprep.subr.mxu0 %v3866
    %4843 = vmatpush1.msra.mxu0 %v3865
    %4844 = vmatprep.subr.mxu0 %v3854
    %4845 = vmatpush1.msra.mxu0 %v3853
    %4846 = vmatprep.subr.mxu0 %v3842
    %4847 = vmatpush1.msra.mxu0 %v3841
    %4848 = vmatprep.subr.mxu0 0.0
    %4849 = vmatpush2.msra.mxu0 0.0
    %4850 = vmatprep.subr.mxu0 0.0
    %4851 = vmatpush2.msra.mxu0 0.0
    %4852 = vmatprep.subr.mxu0 0.0
    %4853 = vmatpush2.msra.mxu0 0.0
    %4854 = vmatprep.subr.mxu0 0.0
    %4855 = vmatpush2.msra.mxu0 0.0
    %4856 = vmatprep.subr.mxu0 0.0
    %4857 = vmatpush2.msra.mxu0 0.0
    %4858 = vmatprep.subr.mxu0 0.0
    %4859 = vmatpush2.msra.mxu0 0.0
    %4860 = vmatprep.subr.mxu0 0.0
    %4861 = vmatpush2.msra.mxu0 0.0
    %4862 = vmatprep.subr.mxu0 0.0
    %4863 = vmatpush2.msra.mxu0 0.0
    %4864 = vmatprep.subr.mxu0 0.0
    %4865 = vmatpush2.msra.mxu0 0.0
    %4866 = vmatprep.subr.mxu0 0.0
    %4867 = vmatpush2.msra.mxu0 0.0
    %4868 = vmatprep.subr.mxu0 0.0
    %4869 = vmatpush2.msra.mxu0 0.0
    %4870 = vmatprep.subr.mxu0 0.0
    %4871 = vmatpush2.msra.mxu0 0.0
    %4872 = vmatprep.subr.mxu0 0.0
    %4873 = vmatpush2.msra.mxu0 0.0
    %4874 = vmatprep.subr.mxu0 0.0
    %4875 = vmatpush2.msra.mxu0 0.0
    %4876 = vmatprep.subr.mxu0 0.0
    %4877 = vmatpush2.msra.mxu0 0.0
    %4878 = vmatprep.subr.mxu0 0.0
    %4879 = vmatpush2.msra.mxu0 0.0
    %4880 = vmatprep.mubr.f32.mxu0 0.0
    %4881 = vmatmul.mubr.f32.gmra.mxu0 %v4115
    %v4882 = vpop.f32.mrf.mxu0
    %v4883 = vadd.f32 %v3997, %v4882
    %v4884 = vpop.f32.mrf.mxu0
    %v4885 = vadd.f32 %v3998, %v4884
    %4886 = vmatprep.mubr.f32.mxu0 0.0
    %4887 = vmatmul.mubr.f32.gmra.mxu0 %v4118
    %v4888 = vpop.f32.mrf.mxu0
    %v4889 = vadd.f32 %v4013, %v4888
    %v4890 = vpop.f32.mrf.mxu0
    %v4891 = vadd.f32 %v4014, %v4890
    %4892 = vmatprep.mubr.f32.mxu0 0.0
    %4893 = vmatmul.mubr.f32.gmra.mxu0 %v4121
    %v4894 = vpop.f32.mrf.mxu0
    %v4895 = vadd.f32 %v4029, %v4894
    %v4896 = vpop.f32.mrf.mxu0
    %v4897 = vadd.f32 %v4030, %v4896
    %4898 = vmatprep.mubr.f32.mxu0 0.0
    %4899 = vmatmul.mubr.f32.gmra.mxu0 %v4124
    %v4900 = vpop.f32.mrf.mxu0
    %v4901 = vadd.f32 %v4045, %v4900
    %v4902 = vpop.f32.mrf.mxu0
    %v4903 = vadd.f32 %v4046, %v4902
    %4904 = vmatprep.mubr.f32.mxu0 0.0
    %4905 = vmatmul.mubr.f32.gmra.mxu0 %v4127
    %v4906 = vpop.f32.mrf.mxu0
    %v4907 = vadd.f32 %v4061, %v4906
    %v4908 = vpop.f32.mrf.mxu0
    %v4909 = vadd.f32 %v4062, %v4908
    %4910 = vmatprep.mubr.f32.mxu0 0.0
    %4911 = vmatmul.mubr.f32.gmra.mxu0 %v4130
    %v4912 = vpop.f32.mrf.mxu0
    %v4913 = vadd.f32 %v4077, %v4912
    %v4914 = vpop.f32.mrf.mxu0
    %v4915 = vadd.f32 %v4078, %v4914
    %4916 = vmatprep.mubr.f32.mxu0 0.0
    %4917 = vmatmul.mubr.f32.gmra.mxu0 %v4133
    %v4918 = vpop.f32.mrf.mxu0
    %v4919 = vadd.f32 %v4093, %v4918
    %v4920 = vpop.f32.mrf.mxu0
    %v4921 = vadd.f32 %v4094, %v4920
    %4922 = vmatprep.mubr.f32.mxu0 0.0
    %4923 = vmatmul.mubr.f32.gmra.mxu0 %v4136
    %v4924 = vpop.f32.mrf.mxu0
    %v4925 = vadd.f32 %v4109, %v4924
    %v4926 = vpop.f32.mrf.mxu0
    %v4927 = vadd.f32 %v4110, %v4926
    %4928 = vdwg.mxu0
    %4929 = vmatprep.subr.mxu0 0.0
    %4930 = vmatpush1.msra.mxu0 0.0
    %4931 = vmatprep.subr.mxu0 0.0
    %4932 = vmatpush1.msra.mxu0 0.0
    %4933 = vmatprep.subr.mxu0 0.0
    %4934 = vmatpush1.msra.mxu0 0.0
    %4935 = vmatprep.subr.mxu0 0.0
    %4936 = vmatpush1.msra.mxu0 0.0
    %4937 = vmatprep.subr.mxu0 0.0
    %4938 = vmatpush1.msra.mxu0 0.0
    %4939 = vmatprep.subr.mxu0 0.0
    %4940 = vmatpush1.msra.mxu0 0.0
    %4941 = vmatprep.subr.mxu0 0.0
    %4942 = vmatpush1.msra.mxu0 0.0
    %4943 = vmatprep.subr.mxu0 0.0
    %4944 = vmatpush1.msra.mxu0 0.0
    %4945 = vmatprep.subr.mxu0 %v3928
    %4946 = vmatpush1.msra.mxu0 %v3927
    %4947 = vmatprep.subr.mxu0 %v3916
    %4948 = vmatpush1.msra.mxu0 %v3915
    %4949 = vmatprep.subr.mxu0 %v3904
    %4950 = vmatpush1.msra.mxu0 %v3903
    %4951 = vmatprep.subr.mxu0 %v3892
    %4952 = vmatpush1.msra.mxu0 %v3891
    %4953 = vmatprep.subr.mxu0 %v3880
    %4954 = vmatpush1.msra.mxu0 %v3879
    %4955 = vmatprep.subr.mxu0 %v3868
    %4956 = vmatpush1.msra.mxu0 %v3867
    %4957 = vmatprep.subr.mxu0 %v3856
    %4958 = vmatpush1.msra.mxu0 %v3855
    %4959 = vmatprep.subr.mxu0 %v3844
    %4960 = vmatpush1.msra.mxu0 %v3843
    %4961 = vmatprep.subr.mxu0 0.0
    %4962 = vmatpush2.msra.mxu0 0.0
    %4963 = vmatprep.subr.mxu0 0.0
    %4964 = vmatpush2.msra.mxu0 0.0
    %4965 = vmatprep.subr.mxu0 0.0
    %4966 = vmatpush2.msra.mxu0 0.0
    %4967 = vmatprep.subr.mxu0 0.0
    %4968 = vmatpush2.msra.mxu0 0.0
    %4969 = vmatprep.subr.mxu0 0.0
    %4970 = vmatpush2.msra.mxu0 0.0
    %4971 = vmatprep.subr.mxu0 0.0
    %4972 = vmatpush2.msra.mxu0 0.0
    %4973 = vmatprep.subr.mxu0 0.0
    %4974 = vmatpush2.msra.mxu0 0.0
    %4975 = vmatprep.subr.mxu0 0.0
    %4976 = vmatpush2.msra.mxu0 0.0
    %4977 = vmatprep.subr.mxu0 0.0
    %4978 = vmatpush2.msra.mxu0 0.0
    %4979 = vmatprep.subr.mxu0 0.0
    %4980 = vmatpush2.msra.mxu0 0.0
    %4981 = vmatprep.subr.mxu0 0.0
    %4982 = vmatpush2.msra.mxu0 0.0
    %4983 = vmatprep.subr.mxu0 0.0
    %4984 = vmatpush2.msra.mxu0 0.0
    %4985 = vmatprep.subr.mxu0 0.0
    %4986 = vmatpush2.msra.mxu0 0.0
    %4987 = vmatprep.subr.mxu0 0.0
    %4988 = vmatpush2.msra.mxu0 0.0
    %4989 = vmatprep.subr.mxu0 0.0
    %4990 = vmatpush2.msra.mxu0 0.0
    %4991 = vmatprep.subr.mxu0 0.0
    %4992 = vmatpush2.msra.mxu0 0.0
    %4993 = vmatprep.mubr.f32.mxu0 0.0
    %4994 = vmatmul.mubr.f32.gmra.mxu0 %v4115
    %v4995 = vpop.f32.mrf.mxu0
    %v4996 = vadd.f32 %v3999, %v4995
    %v4997 = vpop.f32.mrf.mxu0
    %v4998 = vadd.f32 %v4000, %v4997
    %4999 = vmatprep.mubr.f32.mxu0 0.0
    %5000 = vmatmul.mubr.f32.gmra.mxu0 %v4118
    %v5001 = vpop.f32.mrf.mxu0
    %v5002 = vadd.f32 %v4015, %v5001
    %v5003 = vpop.f32.mrf.mxu0
    %v5004 = vadd.f32 %v4016, %v5003
    %5005 = vmatprep.mubr.f32.mxu0 0.0
    %5006 = vmatmul.mubr.f32.gmra.mxu0 %v4121
    %v5007 = vpop.f32.mrf.mxu0
    %v5008 = vadd.f32 %v4031, %v5007
    %v5009 = vpop.f32.mrf.mxu0
    %v5010 = vadd.f32 %v4032, %v5009
    %5011 = vmatprep.mubr.f32.mxu0 0.0
    %5012 = vmatmul.mubr.f32.gmra.mxu0 %v4124
    %v5013 = vpop.f32.mrf.mxu0
    %v5014 = vadd.f32 %v4047, %v5013
    %v5015 = vpop.f32.mrf.mxu0
    %v5016 = vadd.f32 %v4048, %v5015
    %5017 = vmatprep.mubr.f32.mxu0 0.0
    %5018 = vmatmul.mubr.f32.gmra.mxu0 %v4127
    %v5019 = vpop.f32.mrf.mxu0
    %v5020 = vadd.f32 %v4063, %v5019
    %v5021 = vpop.f32.mrf.mxu0
    %v5022 = vadd.f32 %v4064, %v5021
    %5023 = vmatprep.mubr.f32.mxu0 0.0
    %5024 = vmatmul.mubr.f32.gmra.mxu0 %v4130
    %v5025 = vpop.f32.mrf.mxu0
    %v5026 = vadd.f32 %v4079, %v5025
    %v5027 = vpop.f32.mrf.mxu0
    %v5028 = vadd.f32 %v4080, %v5027
    %5029 = vmatprep.mubr.f32.mxu0 0.0
    %5030 = vmatmul.mubr.f32.gmra.mxu0 %v4133
    %v5031 = vpop.f32.mrf.mxu0
    %v5032 = vadd.f32 %v4095, %v5031
    %v5033 = vpop.f32.mrf.mxu0
    %v5034 = vadd.f32 %v4096, %v5033
    %5035 = vmatprep.mubr.f32.mxu0 0.0
    %5036 = vmatmul.mubr.f32.gmra.mxu0 %v4136
    %v5037 = vpop.f32.mrf.mxu0
    %v5038 = vadd.f32 %v4111, %v5037
    %v5039 = vpop.f32.mrf.mxu0
    %v5040 = vadd.f32 %v4112, %v5039
    %5041 = vdwg.mxu0
    %v5042 = vmul.f32 %v4205, 100.0
    %v5043 = vmul.f32 %v4207, 100.0
    %v5044 = vmul.f32 %v4318, 100.0
    %v5045 = vmul.f32 %v4320, 100.0
    %v5046 = vmul.f32 %v4211, 100.0
    %v5047 = vmul.f32 %v4213, 100.0
    %v5048 = vmul.f32 %v4324, 100.0
    %v5049 = vmul.f32 %v4326, 100.0
    %v5050 = vmul.f32 %v4217, 100.0
    %v5051 = vmul.f32 %v4219, 100.0
    %v5052 = vmul.f32 %v4330, 100.0
    %v5053 = vmul.f32 %v4332, 100.0
    %v5054 = vmul.f32 %v4223, 100.0
    %v5055 = vmul.f32 %v4225, 100.0
    %v5056 = vmul.f32 %v4336, 100.0
    %v5057 = vmul.f32 %v4338, 100.0
    %v5058 = vmul.f32 %v4229, 100.0
    %v5059 = vmul.f32 %v4231, 100.0
    %v5060 = vmul.f32 %v4342, 100.0
    %v5061 = vmul.f32 %v4344, 100.0
    %v5062 = vmul.f32 %v4235, 100.0
    %v5063 = vmul.f32 %v4237, 100.0
    %v5064 = vmul.f32 %v4348, 100.0
    %v5065 = vmul.f32 %v4350, 100.0
    %v5066 = vmul.f32 %v4241, 100.0
    %v5067 = vmul.f32 %v4243, 100.0
    %v5068 = vmul.f32 %v4354, 100.0
    %v5069 = vmul.f32 %v4356, 100.0
    %v5070 = vmul.f32 %v4247, 100.0
    %v5071 = vmul.f32 %v4249, 100.0
    %v5072 = vmul.f32 %v4360, 100.0
    %v5073 = vmul.f32 %v4362, 100.0
    %v5074 = vmin.f32 %v5042, 20.0
    %v5075 = vmin.f32 %v5043, 20.0
    %v5076 = vmin.f32 %v5044, 20.0
    %v5077 = vmin.f32 %v5045, 20.0
    %v5078 = vmin.f32 %v5046, 20.0
    %v5079 = vmin.f32 %v5047, 20.0
    %v5080 = vmin.f32 %v5048, 20.0
    %v5081 = vmin.f32 %v5049, 20.0
    %v5082 = vmin.f32 %v5050, 20.0
    %v5083 = vmin.f32 %v5051, 20.0
    %v5084 = vmin.f32 %v5052, 20.0
    %v5085 = vmin.f32 %v5053, 20.0
    %v5086 = vmin.f32 %v5054, 20.0
    %v5087 = vmin.f32 %v5055, 20.0
    %v5088 = vmin.f32 %v5056, 20.0
    %v5089 = vmin.f32 %v5057, 20.0
    %v5090 = vmin.f32 %v5058, 20.0
    %v5091 = vmin.f32 %v5059, 20.0
    %v5092 = vmin.f32 %v5060, 20.0
    %v5093 = vmin.f32 %v5061, 20.0
    %v5094 = vmin.f32 %v5062, 20.0
    %v5095 = vmin.f32 %v5063, 20.0
    %v5096 = vmin.f32 %v5064, 20.0
    %v5097 = vmin.f32 %v5065, 20.0
    %v5098 = vmin.f32 %v5066, 20.0
    %v5099 = vmin.f32 %v5067, 20.0
    %v5100 = vmin.f32 %v5068, 20.0
    %v5101 = vmin.f32 %v5069, 20.0
    %v5102 = vmin.f32 %v5070, 20.0
    %v5103 = vmin.f32 %v5071, 20.0
    %v5104 = vmin.f32 %v5072, 20.0
    %v5105 = vmin.f32 %v5073, 20.0
    %v5106 = vmul.f32 %v5074, 1.442695
    %v5107 = vpow.pop %v5106
    %v5108 = vmul.f32 %v5075, 1.442695
    %v5109 = vpow.pop %v5108
    %v5110 = vmul.f32 %v5076, 1.442695
    %v5111 = vpow.pop %v5110
    %v5112 = vmul.f32 %v5077, 1.442695
    %v5113 = vpow.pop %v5112
    %v5114 = vmul.f32 %v5078, 1.442695
    %v5115 = vpow.pop %v5114
    %v5116 = vmul.f32 %v5079, 1.442695
    %v5117 = vpow.pop %v5116
    %v5118 = vmul.f32 %v5080, 1.442695
    %v5119 = vpow.pop %v5118
    %v5120 = vmul.f32 %v5081, 1.442695
    %v5121 = vpow.pop %v5120
    %v5122 = vmul.f32 %v5082, 1.442695
    %v5123 = vpow.pop %v5122
    %v5124 = vmul.f32 %v5083, 1.442695
    %v5125 = vpow.pop %v5124
    %v5126 = vmul.f32 %v5084, 1.442695
    %v5127 = vpow.pop %v5126
    %v5128 = vmul.f32 %v5085, 1.442695
    %v5129 = vpow.pop %v5128
    %v5130 = vmul.f32 %v5086, 1.442695
    %v5131 = vpow.pop %v5130
    %v5132 = vmul.f32 %v5087, 1.442695
    %v5133 = vpow.pop %v5132
    %v5134 = vmul.f32 %v5088, 1.442695
    %v5135 = vpow.pop %v5134
    %v5136 = vmul.f32 %v5089, 1.442695
    %v5137 = vpow.pop %v5136
    %v5138 = vmul.f32 %v5090, 1.442695
    %v5139 = vpow.pop %v5138
    %v5140 = vmul.f32 %v5091, 1.442695
    %v5141 = vpow.pop %v5140
    %v5142 = vmul.f32 %v5092, 1.442695
    %v5143 = vpow.pop %v5142
    %v5144 = vmul.f32 %v5093, 1.442695
    %v5145 = vpow.pop %v5144
    %v5146 = vmul.f32 %v5094, 1.442695
    %v5147 = vpow.pop %v5146
    %v5148 = vmul.f32 %v5095, 1.442695
    %v5149 = vpow.pop %v5148
    %v5150 = vmul.f32 %v5096, 1.442695
    %v5151 = vpow.pop %v5150
    %v5152 = vmul.f32 %v5097, 1.442695
    %v5153 = vpow.pop %v5152
    %v5154 = vmul.f32 %v5098, 1.442695
    %v5155 = vpow.pop %v5154
    %v5156 = vmul.f32 %v5099, 1.442695
    %v5157 = vpow.pop %v5156
    %v5158 = vmul.f32 %v5100, 1.442695
    %v5159 = vpow.pop %v5158
    %v5160 = vmul.f32 %v5101, 1.442695
    %v5161 = vpow.pop %v5160
    %v5162 = vmul.f32 %v5102, 1.442695
    %v5163 = vpow.pop %v5162
    %v5164 = vmul.f32 %v5103, 1.442695
    %v5165 = vpow.pop %v5164
    %v5166 = vmul.f32 %v5104, 1.442695
    %v5167 = vpow.pop %v5166
    %v5168 = vmul.f32 %v5105, 1.442695
    %v5169 = vpow.pop %v5168
    %vm5170 = vcmp.gt.f32.partialorder %v5042, 20.0
    %vm5171 = vcmp.gt.f32.partialorder %v5043, 20.0
    %vm5172 = vcmp.gt.f32.partialorder %v5044, 20.0
    %vm5173 = vcmp.gt.f32.partialorder %v5045, 20.0
    %vm5174 = vcmp.gt.f32.partialorder %v5046, 20.0
    %vm5175 = vcmp.gt.f32.partialorder %v5047, 20.0
    %vm5176 = vcmp.gt.f32.partialorder %v5048, 20.0
    %vm5177 = vcmp.gt.f32.partialorder %v5049, 20.0
    %vm5178 = vcmp.gt.f32.partialorder %v5050, 20.0
    %vm5179 = vcmp.gt.f32.partialorder %v5051, 20.0
    %vm5180 = vcmp.gt.f32.partialorder %v5052, 20.0
    %vm5181 = vcmp.gt.f32.partialorder %v5053, 20.0
    %vm5182 = vcmp.gt.f32.partialorder %v5054, 20.0
    %vm5183 = vcmp.gt.f32.partialorder %v5055, 20.0
    %vm5184 = vcmp.gt.f32.partialorder %v5056, 20.0
    %vm5185 = vcmp.gt.f32.partialorder %v5057, 20.0
    %vm5186 = vcmp.gt.f32.partialorder %v5058, 20.0
    %vm5187 = vcmp.gt.f32.partialorder %v5059, 20.0
    %vm5188 = vcmp.gt.f32.partialorder %v5060, 20.0
    %vm5189 = vcmp.gt.f32.partialorder %v5061, 20.0
    %vm5190 = vcmp.gt.f32.partialorder %v5062, 20.0
    %vm5191 = vcmp.gt.f32.partialorder %v5063, 20.0
    %vm5192 = vcmp.gt.f32.partialorder %v5064, 20.0
    %vm5193 = vcmp.gt.f32.partialorder %v5065, 20.0
    %vm5194 = vcmp.gt.f32.partialorder %v5066, 20.0
    %vm5195 = vcmp.gt.f32.partialorder %v5067, 20.0
    %vm5196 = vcmp.gt.f32.partialorder %v5068, 20.0
    %vm5197 = vcmp.gt.f32.partialorder %v5069, 20.0
    %vm5198 = vcmp.gt.f32.partialorder %v5070, 20.0
    %vm5199 = vcmp.gt.f32.partialorder %v5071, 20.0
    %vm5200 = vcmp.gt.f32.partialorder %v5072, 20.0
    %vm5201 = vcmp.gt.f32.partialorder %v5073, 20.0
    %v5202 = vadd.f32 %v5107, 1.0
    %v5203 = vadd.f32 %v5109, 1.0
    %v5204 = vadd.f32 %v5111, 1.0
    %v5205 = vadd.f32 %v5113, 1.0
    %v5206 = vadd.f32 %v5115, 1.0
    %v5207 = vadd.f32 %v5117, 1.0
    %v5208 = vadd.f32 %v5119, 1.0
    %v5209 = vadd.f32 %v5121, 1.0
    %v5210 = vadd.f32 %v5123, 1.0
    %v5211 = vadd.f32 %v5125, 1.0
    %v5212 = vadd.f32 %v5127, 1.0
    %v5213 = vadd.f32 %v5129, 1.0
    %v5214 = vadd.f32 %v5131, 1.0
    %v5215 = vadd.f32 %v5133, 1.0
    %v5216 = vadd.f32 %v5135, 1.0
    %v5217 = vadd.f32 %v5137, 1.0
    %v5218 = vadd.f32 %v5139, 1.0
    %v5219 = vadd.f32 %v5141, 1.0
    %v5220 = vadd.f32 %v5143, 1.0
    %v5221 = vadd.f32 %v5145, 1.0
    %v5222 = vadd.f32 %v5147, 1.0
    %v5223 = vadd.f32 %v5149, 1.0
    %v5224 = vadd.f32 %v5151, 1.0
    %v5225 = vadd.f32 %v5153, 1.0
    %v5226 = vadd.f32 %v5155, 1.0
    %v5227 = vadd.f32 %v5157, 1.0
    %v5228 = vadd.f32 %v5159, 1.0
    %v5229 = vadd.f32 %v5161, 1.0
    %v5230 = vadd.f32 %v5163, 1.0
    %v5231 = vadd.f32 %v5165, 1.0
    %v5232 = vadd.f32 %v5167, 1.0
    %v5233 = vadd.f32 %v5169, 1.0
    %v5234 = vlog2.pop %v5202
    %v5235 = vmul.f32 %v5234, 0.6931472
    %v5236 = vlog2.pop %v5203
    %v5237 = vmul.f32 %v5236, 0.6931472
    %v5238 = vlog2.pop %v5204
    %v5239 = vmul.f32 %v5238, 0.6931472
    %v5240 = vlog2.pop %v5205
    %v5241 = vmul.f32 %v5240, 0.6931472
    %v5242 = vlog2.pop %v5206
    %v5243 = vmul.f32 %v5242, 0.6931472
    %v5244 = vlog2.pop %v5207
    %v5245 = vmul.f32 %v5244, 0.6931472
    %v5246 = vlog2.pop %v5208
    %v5247 = vmul.f32 %v5246, 0.6931472
    %v5248 = vlog2.pop %v5209
    %v5249 = vmul.f32 %v5248, 0.6931472
    %v5250 = vlog2.pop %v5210
    %v5251 = vmul.f32 %v5250, 0.6931472
    %v5252 = vlog2.pop %v5211
    %v5253 = vmul.f32 %v5252, 0.6931472
    %v5254 = vlog2.pop %v5212
    %v5255 = vmul.f32 %v5254, 0.6931472
    %v5256 = vlog2.pop %v5213
    %v5257 = vmul.f32 %v5256, 0.6931472
    %v5258 = vlog2.pop %v5214
    %v5259 = vmul.f32 %v5258, 0.6931472
    %v5260 = vlog2.pop %v5215
    %v5261 = vmul.f32 %v5260, 0.6931472
    %v5262 = vlog2.pop %v5216
    %v5263 = vmul.f32 %v5262, 0.6931472
    %v5264 = vlog2.pop %v5217
    %v5265 = vmul.f32 %v5264, 0.6931472
    %v5266 = vlog2.pop %v5218
    %v5267 = vmul.f32 %v5266, 0.6931472
    %v5268 = vlog2.pop %v5219
    %v5269 = vmul.f32 %v5268, 0.6931472
    %v5270 = vlog2.pop %v5220
    %v5271 = vmul.f32 %v5270, 0.6931472
    %v5272 = vlog2.pop %v5221
    %v5273 = vmul.f32 %v5272, 0.6931472
    %v5274 = vlog2.pop %v5222
    %v5275 = vmul.f32 %v5274, 0.6931472
    %v5276 = vlog2.pop %v5223
    %v5277 = vmul.f32 %v5276, 0.6931472
    %v5278 = vlog2.pop %v5224
    %v5279 = vmul.f32 %v5278, 0.6931472
    %v5280 = vlog2.pop %v5225
    %v5281 = vmul.f32 %v5280, 0.6931472
    %v5282 = vlog2.pop %v5226
    %v5283 = vmul.f32 %v5282, 0.6931472
    %v5284 = vlog2.pop %v5227
    %v5285 = vmul.f32 %v5284, 0.6931472
    %v5286 = vlog2.pop %v5228
    %v5287 = vmul.f32 %v5286, 0.6931472
    %v5288 = vlog2.pop %v5229
    %v5289 = vmul.f32 %v5288, 0.6931472
    %v5290 = vlog2.pop %v5230
    %v5291 = vmul.f32 %v5290, 0.6931472
    %v5292 = vlog2.pop %v5231
    %v5293 = vmul.f32 %v5292, 0.6931472
    %v5294 = vlog2.pop %v5232
    %v5295 = vmul.f32 %v5294, 0.6931472
    %v5296 = vlog2.pop %v5233
    %v5297 = vmul.f32 %v5296, 0.6931472
    %v5298 = vmul.f32 %v5235, 0.01
    %v5299 = vmul.f32 %v5237, 0.01
    %v5300 = vmul.f32 %v5239, 0.01
    %v5301 = vmul.f32 %v5241, 0.01
    %v5302 = vmul.f32 %v5243, 0.01
    %v5303 = vmul.f32 %v5245, 0.01
    %v5304 = vmul.f32 %v5247, 0.01
    %v5305 = vmul.f32 %v5249, 0.01
    %v5306 = vmul.f32 %v5251, 0.01
    %v5307 = vmul.f32 %v5253, 0.01
    %v5308 = vmul.f32 %v5255, 0.01
    %v5309 = vmul.f32 %v5257, 0.01
    %v5310 = vmul.f32 %v5259, 0.01
    %v5311 = vmul.f32 %v5261, 0.01
    %v5312 = vmul.f32 %v5263, 0.01
    %v5313 = vmul.f32 %v5265, 0.01
    %v5314 = vmul.f32 %v5267, 0.01
    %v5315 = vmul.f32 %v5269, 0.01
    %v5316 = vmul.f32 %v5271, 0.01
    %v5317 = vmul.f32 %v5273, 0.01
    %v5318 = vmul.f32 %v5275, 0.01
    %v5319 = vmul.f32 %v5277, 0.01
    %v5320 = vmul.f32 %v5279, 0.01
    %v5321 = vmul.f32 %v5281, 0.01
    %v5322 = vmul.f32 %v5283, 0.01
    %v5323 = vmul.f32 %v5285, 0.01
    %v5324 = vmul.f32 %v5287, 0.01
    %v5325 = vmul.f32 %v5289, 0.01
    %v5326 = vmul.f32 %v5291, 0.01
    %v5327 = vmul.f32 %v5293, 0.01
    %v5328 = vmul.f32 %v5295, 0.01
    %v5329 = vmul.f32 %v5297, 0.01
    %v5330 = vsel %vm5170, %v4205, %v5298
    %v5331 = vsel %vm5171, %v4207, %v5299
    %v5332 = vsel %vm5172, %v4318, %v5300
    %v5333 = vsel %vm5173, %v4320, %v5301
    %v5334 = vsel %vm5174, %v4211, %v5302
    %v5335 = vsel %vm5175, %v4213, %v5303
    %v5336 = vsel %vm5176, %v4324, %v5304
    %v5337 = vsel %vm5177, %v4326, %v5305
    %v5338 = vsel %vm5178, %v4217, %v5306
    %v5339 = vsel %vm5179, %v4219, %v5307
    %v5340 = vsel %vm5180, %v4330, %v5308
    %v5341 = vsel %vm5181, %v4332, %v5309
    %v5342 = vsel %vm5182, %v4223, %v5310
    %v5343 = vsel %vm5183, %v4225, %v5311
    %v5344 = vsel %vm5184, %v4336, %v5312
    %v5345 = vsel %vm5185, %v4338, %v5313
    %v5346 = vsel %vm5186, %v4229, %v5314
    %v5347 = vsel %vm5187, %v4231, %v5315
    %v5348 = vsel %vm5188, %v4342, %v5316
    %v5349 = vsel %vm5189, %v4344, %v5317
    %v5350 = vsel %vm5190, %v4235, %v5318
    %v5351 = vsel %vm5191, %v4237, %v5319
    %v5352 = vsel %vm5192, %v4348, %v5320
    %v5353 = vsel %vm5193, %v4350, %v5321
    %v5354 = vsel %vm5194, %v4241, %v5322
    %v5355 = vsel %vm5195, %v4243, %v5323
    %v5356 = vsel %vm5196, %v4354, %v5324
    %v5357 = vsel %vm5197, %v4356, %v5325
    %v5358 = vsel %vm5198, %v4247, %v5326
    %v5359 = vsel %vm5199, %v4249, %v5327
    %v5360 = vsel %vm5200, %v4360, %v5328
    %v5361 = vsel %vm5201, %v4362, %v5329
    %v5362 = vrcp.pop %v5202
    %v5363 = vmul.f32 %v5107, %v5362
    %v5364 = vrcp.pop %v5203
    %v5365 = vmul.f32 %v5109, %v5364
    %v5366 = vrcp.pop %v5204
    %v5367 = vmul.f32 %v5111, %v5366
    %v5368 = vrcp.pop %v5205
    %v5369 = vmul.f32 %v5113, %v5368
    %v5370 = vrcp.pop %v5206
    %v5371 = vmul.f32 %v5115, %v5370
    %v5372 = vrcp.pop %v5207
    %v5373 = vmul.f32 %v5117, %v5372
    %v5374 = vrcp.pop %v5208
    %v5375 = vmul.f32 %v5119, %v5374
    %v5376 = vrcp.pop %v5209
    %v5377 = vmul.f32 %v5121, %v5376
    %v5378 = vrcp.pop %v5210
    %v5379 = vmul.f32 %v5123, %v5378
    %v5380 = vrcp.pop %v5211
    %v5381 = vmul.f32 %v5125, %v5380
    %v5382 = vrcp.pop %v5212
    %v5383 = vmul.f32 %v5127, %v5382
    %v5384 = vrcp.pop %v5213
    %v5385 = vmul.f32 %v5129, %v5384
    %v5386 = vrcp.pop %v5214
    %v5387 = vmul.f32 %v5131, %v5386
    %v5388 = vrcp.pop %v5215
    %v5389 = vmul.f32 %v5133, %v5388
    %v5390 = vrcp.pop %v5216
    %v5391 = vmul.f32 %v5135, %v5390
    %v5392 = vrcp.pop %v5217
    %v5393 = vmul.f32 %v5137, %v5392
    %v5394 = vrcp.pop %v5218
    %v5395 = vmul.f32 %v5139, %v5394
    %v5396 = vrcp.pop %v5219
    %v5397 = vmul.f32 %v5141, %v5396
    %v5398 = vrcp.pop %v5220
    %v5399 = vmul.f32 %v5143, %v5398
    %v5400 = vrcp.pop %v5221
    %v5401 = vmul.f32 %v5145, %v5400
    %v5402 = vrcp.pop %v5222
    %v5403 = vmul.f32 %v5147, %v5402
    %v5404 = vrcp.pop %v5223
    %v5405 = vmul.f32 %v5149, %v5404
    %v5406 = vrcp.pop %v5224
    %v5407 = vmul.f32 %v5151, %v5406
    %v5408 = vrcp.pop %v5225
    %v5409 = vmul.f32 %v5153, %v5408
    %v5410 = vrcp.pop %v5226
    %v5411 = vmul.f32 %v5155, %v5410
    %v5412 = vrcp.pop %v5227
    %v5413 = vmul.f32 %v5157, %v5412
    %v5414 = vrcp.pop %v5228
    %v5415 = vmul.f32 %v5159, %v5414
    %v5416 = vrcp.pop %v5229
    %v5417 = vmul.f32 %v5161, %v5416
    %v5418 = vrcp.pop %v5230
    %v5419 = vmul.f32 %v5163, %v5418
    %v5420 = vrcp.pop %v5231
    %v5421 = vmul.f32 %v5165, %v5420
    %v5422 = vrcp.pop %v5232
    %v5423 = vmul.f32 %v5167, %v5422
    %v5424 = vrcp.pop %v5233
    %v5425 = vmul.f32 %v5169, %v5424
    %v5426 = vsel %vm5170, 1.0, %v5363
    %v5427 = vsel %vm5171, 1.0, %v5365
    %v5428 = vsel %vm5172, 1.0, %v5367
    %v5429 = vsel %vm5173, 1.0, %v5369
    %v5430 = vsel %vm5174, 1.0, %v5371
    %v5431 = vsel %vm5175, 1.0, %v5373
    %v5432 = vsel %vm5176, 1.0, %v5375
    %v5433 = vsel %vm5177, 1.0, %v5377
    %v5434 = vsel %vm5178, 1.0, %v5379
    %v5435 = vsel %vm5179, 1.0, %v5381
    %v5436 = vsel %vm5180, 1.0, %v5383
    %v5437 = vsel %vm5181, 1.0, %v5385
    %v5438 = vsel %vm5182, 1.0, %v5387
    %v5439 = vsel %vm5183, 1.0, %v5389
    %v5440 = vsel %vm5184, 1.0, %v5391
    %v5441 = vsel %vm5185, 1.0, %v5393
    %v5442 = vsel %vm5186, 1.0, %v5395
    %v5443 = vsel %vm5187, 1.0, %v5397
    %v5444 = vsel %vm5188, 1.0, %v5399
    %v5445 = vsel %vm5189, 1.0, %v5401
    %v5446 = vsel %vm5190, 1.0, %v5403
    %v5447 = vsel %vm5191, 1.0, %v5405
    %v5448 = vsel %vm5192, 1.0, %v5407
    %v5449 = vsel %vm5193, 1.0, %v5409
    %v5450 = vsel %vm5194, 1.0, %v5411
    %v5451 = vsel %vm5195, 1.0, %v5413
    %v5452 = vsel %vm5196, 1.0, %v5415
    %v5453 = vsel %vm5197, 1.0, %v5417
    %v5454 = vsel %vm5198, 1.0, %v5419
    %v5455 = vsel %vm5199, 1.0, %v5421
    %v5456 = vsel %vm5200, 1.0, %v5423
    %v5457 = vsel %vm5201, 1.0, %v5425
    %v5458 = vmul.f32 %v4431, %v5426
    %v5459 = vmul.f32 %v4433, %v5427
    %v5460 = vmul.f32 %v4544, %v5428
    %v5461 = vmul.f32 %v4546, %v5429
    %v5462 = vmul.f32 %v4657, %v5426
    %v5463 = vmul.f32 %v4659, %v5427
    %v5464 = vmul.f32 %v4770, %v5428
    %v5465 = vmul.f32 %v4772, %v5429
    %v5466 = vmul.f32 %v4883, %v5426
    %v5467 = vmul.f32 %v4885, %v5427
    %v5468 = vmul.f32 %v4996, %v5428
    %v5469 = vmul.f32 %v4998, %v5429
    %v5470 = vmul.f32 %v4437, %v5430
    %v5471 = vmul.f32 %v4439, %v5431
    %v5472 = vmul.f32 %v4550, %v5432
    %v5473 = vmul.f32 %v4552, %v5433
    %v5474 = vmul.f32 %v4663, %v5430
    %v5475 = vmul.f32 %v4665, %v5431
    %v5476 = vmul.f32 %v4776, %v5432
    %v5477 = vmul.f32 %v4778, %v5433
    %v5478 = vmul.f32 %v4889, %v5430
    %v5479 = vmul.f32 %v4891, %v5431
    %v5480 = vmul.f32 %v5002, %v5432
    %v5481 = vmul.f32 %v5004, %v5433
    %v5482 = vmul.f32 %v4443, %v5434
    %v5483 = vmul.f32 %v4445, %v5435
    %v5484 = vmul.f32 %v4556, %v5436
    %v5485 = vmul.f32 %v4558, %v5437
    %v5486 = vmul.f32 %v4669, %v5434
    %v5487 = vmul.f32 %v4671, %v5435
    %v5488 = vmul.f32 %v4782, %v5436
    %v5489 = vmul.f32 %v4784, %v5437
    %v5490 = vmul.f32 %v4895, %v5434
    %v5491 = vmul.f32 %v4897, %v5435
    %v5492 = vmul.f32 %v5008, %v5436
    %v5493 = vmul.f32 %v5010, %v5437
    %v5494 = vmul.f32 %v4449, %v5438
    %v5495 = vmul.f32 %v4451, %v5439
    %v5496 = vmul.f32 %v4562, %v5440
    %v5497 = vmul.f32 %v4564, %v5441
    %v5498 = vmul.f32 %v4675, %v5438
    %v5499 = vmul.f32 %v4677, %v5439
    %v5500 = vmul.f32 %v4788, %v5440
    %v5501 = vmul.f32 %v4790, %v5441
    %v5502 = vmul.f32 %v4901, %v5438
    %v5503 = vmul.f32 %v4903, %v5439
    %v5504 = vmul.f32 %v5014, %v5440
    %v5505 = vmul.f32 %v5016, %v5441
    %v5506 = vmul.f32 %v4455, %v5442
    %v5507 = vmul.f32 %v4457, %v5443
    %v5508 = vmul.f32 %v4568, %v5444
    %v5509 = vmul.f32 %v4570, %v5445
    %v5510 = vmul.f32 %v4681, %v5442
    %v5511 = vmul.f32 %v4683, %v5443
    %v5512 = vmul.f32 %v4794, %v5444
    %v5513 = vmul.f32 %v4796, %v5445
    %v5514 = vmul.f32 %v4907, %v5442
    %v5515 = vmul.f32 %v4909, %v5443
    %v5516 = vmul.f32 %v5020, %v5444
    %v5517 = vmul.f32 %v5022, %v5445
    %v5518 = vmul.f32 %v4461, %v5446
    %v5519 = vmul.f32 %v4463, %v5447
    %v5520 = vmul.f32 %v4574, %v5448
    %v5521 = vmul.f32 %v4576, %v5449
    %v5522 = vmul.f32 %v4687, %v5446
    %v5523 = vmul.f32 %v4689, %v5447
    %v5524 = vmul.f32 %v4800, %v5448
    %v5525 = vmul.f32 %v4802, %v5449
    %v5526 = vmul.f32 %v4913, %v5446
    %v5527 = vmul.f32 %v4915, %v5447
    %v5528 = vmul.f32 %v5026, %v5448
    %v5529 = vmul.f32 %v5028, %v5449
    %v5530 = vmul.f32 %v4467, %v5450
    %v5531 = vmul.f32 %v4469, %v5451
    %v5532 = vmul.f32 %v4580, %v5452
    %v5533 = vmul.f32 %v4582, %v5453
    %v5534 = vmul.f32 %v4693, %v5450
    %v5535 = vmul.f32 %v4695, %v5451
    %v5536 = vmul.f32 %v4806, %v5452
    %v5537 = vmul.f32 %v4808, %v5453
    %v5538 = vmul.f32 %v4919, %v5450
    %v5539 = vmul.f32 %v4921, %v5451
    %v5540 = vmul.f32 %v5032, %v5452
    %v5541 = vmul.f32 %v5034, %v5453
    %v5542 = vmul.f32 %v4473, %v5454
    %v5543 = vmul.f32 %v4475, %v5455
    %v5544 = vmul.f32 %v4586, %v5456
    %v5545 = vmul.f32 %v4588, %v5457
    %v5546 = vmul.f32 %v4699, %v5454
    %v5547 = vmul.f32 %v4701, %v5455
    %v5548 = vmul.f32 %v4812, %v5456
    %v5549 = vmul.f32 %v4814, %v5457
    %v5550 = vmul.f32 %v4925, %v5454
    %v5551 = vmul.f32 %v4927, %v5455
    %v5552 = vmul.f32 %v5038, %v5456
    %v5553 = vmul.f32 %v5040, %v5457
    %v5554 = vmul.f32 %v5330, 0.70710677
    %v5555 = vmul.f32 %v5331, 0.70710677
    %v5556 = vmul.f32 %v5332, 0.70710677
    %v5557 = vmul.f32 %v5333, 0.70710677
    %v5558 = vmul.f32 %v5458, 0.70710677
    %v5559 = vmul.f32 %v5459, 0.70710677
    %v5560 = vmul.f32 %v5460, 0.70710677
    %v5561 = vmul.f32 %v5461, 0.70710677
    %v5562 = vmul.f32 %v5462, 0.70710677
    %v5563 = vmul.f32 %v5463, 0.70710677
    %v5564 = vmul.f32 %v5464, 0.70710677
    %v5565 = vmul.f32 %v5465, 0.70710677
    %v5566 = vmul.f32 %v5466, 0.70710677
    %v5567 = vmul.f32 %v5467, 0.70710677
    %v5568 = vmul.f32 %v5468, 0.70710677
    %v5569 = vmul.f32 %v5469, 0.70710677
    %v5570 = vmul.f32 %v5334, 0.70710677
    %v5571 = vmul.f32 %v5335, 0.70710677
    %v5572 = vmul.f32 %v5336, 0.70710677
    %v5573 = vmul.f32 %v5337, 0.70710677
    %v5574 = vmul.f32 %v5470, 0.70710677
    %v5575 = vmul.f32 %v5471, 0.70710677
    %v5576 = vmul.f32 %v5472, 0.70710677
    %v5577 = vmul.f32 %v5473, 0.70710677
    %v5578 = vmul.f32 %v5474, 0.70710677
    %v5579 = vmul.f32 %v5475, 0.70710677
    %v5580 = vmul.f32 %v5476, 0.70710677
    %v5581 = vmul.f32 %v5477, 0.70710677
    %v5582 = vmul.f32 %v5478, 0.70710677
    %v5583 = vmul.f32 %v5479, 0.70710677
    %v5584 = vmul.f32 %v5480, 0.70710677
    %v5585 = vmul.f32 %v5481, 0.70710677
    %v5586 = vmul.f32 %v5338, 0.70710677
    %v5587 = vmul.f32 %v5339, 0.70710677
    %v5588 = vmul.f32 %v5340, 0.70710677
    %v5589 = vmul.f32 %v5341, 0.70710677
    %v5590 = vmul.f32 %v5482, 0.70710677
    %v5591 = vmul.f32 %v5483, 0.70710677
    %v5592 = vmul.f32 %v5484, 0.70710677
    %v5593 = vmul.f32 %v5485, 0.70710677
    %v5594 = vmul.f32 %v5486, 0.70710677
    %v5595 = vmul.f32 %v5487, 0.70710677
    %v5596 = vmul.f32 %v5488, 0.70710677
    %v5597 = vmul.f32 %v5489, 0.70710677
    %v5598 = vmul.f32 %v5490, 0.70710677
    %v5599 = vmul.f32 %v5491, 0.70710677
    %v5600 = vmul.f32 %v5492, 0.70710677
    %v5601 = vmul.f32 %v5493, 0.70710677
    %v5602 = vmul.f32 %v5342, 0.70710677
    %v5603 = vmul.f32 %v5343, 0.70710677
    %v5604 = vmul.f32 %v5344, 0.70710677
    %v5605 = vmul.f32 %v5345, 0.70710677
    %v5606 = vmul.f32 %v5494, 0.70710677
    %v5607 = vmul.f32 %v5495, 0.70710677
    %v5608 = vmul.f32 %v5496, 0.70710677
    %v5609 = vmul.f32 %v5497, 0.70710677
    %v5610 = vmul.f32 %v5498, 0.70710677
    %v5611 = vmul.f32 %v5499, 0.70710677
    %v5612 = vmul.f32 %v5500, 0.70710677
    %v5613 = vmul.f32 %v5501, 0.70710677
    %v5614 = vmul.f32 %v5502, 0.70710677
    %v5615 = vmul.f32 %v5503, 0.70710677
    %v5616 = vmul.f32 %v5504, 0.70710677
    %v5617 = vmul.f32 %v5505, 0.70710677
    %v5618 = vmul.f32 %v5346, 0.70710677
    %v5619 = vmul.f32 %v5347, 0.70710677
    %v5620 = vmul.f32 %v5348, 0.70710677
    %v5621 = vmul.f32 %v5349, 0.70710677
    %v5622 = vmul.f32 %v5506, 0.70710677
    %v5623 = vmul.f32 %v5507, 0.70710677
    %v5624 = vmul.f32 %v5508, 0.70710677
    %v5625 = vmul.f32 %v5509, 0.70710677
    %v5626 = vmul.f32 %v5510, 0.70710677
    %v5627 = vmul.f32 %v5511, 0.70710677
    %v5628 = vmul.f32 %v5512, 0.70710677
    %v5629 = vmul.f32 %v5513, 0.70710677
    %v5630 = vmul.f32 %v5514, 0.70710677
    %v5631 = vmul.f32 %v5515, 0.70710677
    %v5632 = vmul.f32 %v5516, 0.70710677
    %v5633 = vmul.f32 %v5517, 0.70710677
    %v5634 = vmul.f32 %v5350, 0.70710677
    %v5635 = vmul.f32 %v5351, 0.70710677
    %v5636 = vmul.f32 %v5352, 0.70710677
    %v5637 = vmul.f32 %v5353, 0.70710677
    %v5638 = vmul.f32 %v5518, 0.70710677
    %v5639 = vmul.f32 %v5519, 0.70710677
    %v5640 = vmul.f32 %v5520, 0.70710677
    %v5641 = vmul.f32 %v5521, 0.70710677
    %v5642 = vmul.f32 %v5522, 0.70710677
    %v5643 = vmul.f32 %v5523, 0.70710677
    %v5644 = vmul.f32 %v5524, 0.70710677
    %v5645 = vmul.f32 %v5525, 0.70710677
    %v5646 = vmul.f32 %v5526, 0.70710677
    %v5647 = vmul.f32 %v5527, 0.70710677
    %v5648 = vmul.f32 %v5528, 0.70710677
    %v5649 = vmul.f32 %v5529, 0.70710677
    %v5650 = vmul.f32 %v5354, 0.70710677
    %v5651 = vmul.f32 %v5355, 0.70710677
    %v5652 = vmul.f32 %v5356, 0.70710677
    %v5653 = vmul.f32 %v5357, 0.70710677
    %v5654 = vmul.f32 %v5530, 0.70710677
    %v5655 = vmul.f32 %v5531, 0.70710677
    %v5656 = vmul.f32 %v5532, 0.70710677
    %v5657 = vmul.f32 %v5533, 0.70710677
    %v5658 = vmul.f32 %v5534, 0.70710677
    %v5659 = vmul.f32 %v5535, 0.70710677
    %v5660 = vmul.f32 %v5536, 0.70710677
    %v5661 = vmul.f32 %v5537, 0.70710677
    %v5662 = vmul.f32 %v5538, 0.70710677
    %v5663 = vmul.f32 %v5539, 0.70710677
    %v5664 = vmul.f32 %v5540, 0.70710677
    %v5665 = vmul.f32 %v5541, 0.70710677
    %v5666 = vmul.f32 %v5358, 0.70710677
    %v5667 = vmul.f32 %v5359, 0.70710677
    %v5668 = vmul.f32 %v5360, 0.70710677
    %v5669 = vmul.f32 %v5361, 0.70710677
    %v5670 = vmul.f32 %v5542, 0.70710677
    %v5671 = vmul.f32 %v5543, 0.70710677
    %v5672 = vmul.f32 %v5544, 0.70710677
    %v5673 = vmul.f32 %v5545, 0.70710677
    %v5674 = vmul.f32 %v5546, 0.70710677
    %v5675 = vmul.f32 %v5547, 0.70710677
    %v5676 = vmul.f32 %v5548, 0.70710677
    %v5677 = vmul.f32 %v5549, 0.70710677
    %v5678 = vmul.f32 %v5550, 0.70710677
    %v5679 = vmul.f32 %v5551, 0.70710677
    %v5680 = vmul.f32 %v5552, 0.70710677
    %v5681 = vmul.f32 %v5553, 0.70710677
    %v5682 = vmul.f32 %v1942, 0.70710677
    %v5683 = vmul.f32 %v1943, 0.70710677
    %v5684 = vmul.f32 %v1944, 0.70710677
    %v5685 = vmul.f32 %v1945, 0.70710677
    %v5686 = vmul.f32 %v2138, 0.70710677
    %v5687 = vmul.f32 %v2139, 0.70710677
    %v5688 = vmul.f32 %v2140, 0.70710677
    %v5689 = vmul.f32 %v2141, 0.70710677
    %v5690 = vmul.f32 %v2176, 0.70710677
    %v5691 = vmul.f32 %v2215, 0.70710677
    %v5692 = vmul.f32 %v1950, 0.70710677
    %v5693 = vmul.f32 %v1951, 0.70710677
    %v5694 = vmul.f32 %v1952, 0.70710677
    %v5695 = vmul.f32 %v1953, 0.70710677
    %v5696 = vmul.f32 %v2142, 0.70710677
    %v5697 = vmul.f32 %v2143, 0.70710677
    %v5698 = vmul.f32 %v2144, 0.70710677
    %v5699 = vmul.f32 %v2145, 0.70710677
    %v5700 = vmul.f32 %v2177, 0.70710677
    %v5701 = vmul.f32 %v2178, 0.70710677
    %v5702 = vmul.f32 %v2179, 0.70710677
    %v5703 = vmul.f32 %v2180, 0.70710677
    %v5704 = vmul.f32 %v1958, 0.70710677
    %v5705 = vmul.f32 %v1959, 0.70710677
    %v5706 = vmul.f32 %v1960, 0.70710677
    %v5707 = vmul.f32 %v1961, 0.70710677
    %v5708 = vmul.f32 %v2181, 0.70710677
    %v5709 = vmul.f32 %v2182, 0.70710677
    %v5710 = vmul.f32 %v2183, 0.70710677
    %v5711 = vmul.f32 %v2184, 0.70710677
    %v5712 = vmul.f32 %v2216, 0.70710677
    %v5713 = vmul.f32 %v2217, 0.70710677
    %v5714 = vmul.f32 %v2218, 0.70710677
    %v5715 = vmul.f32 %v2219, 0.70710677
    %v5716 = vmul.f32 %v1930, 0.70710677
    %v5717 = vmul.f32 %v1931, 0.70710677
    %v5718 = vmul.f32 %v1932, 0.70710677
    %v5719 = vmul.f32 %v1933, 0.70710677
    %v5720 = vmul.f32 %v2207, 0.70710677
    %v5721 = vmul.f32 %v2208, 0.70710677
    %v5722 = vmul.f32 %v2209, 0.70710677
    %v5723 = vmul.f32 %v2210, 0.70710677
    %v5724 = vld [vmem:[%s5] sm:$0xff]
    %v5725 = vld [vmem:[%s5 + $0x8] sm:$0xff]
    %v5726 = vld [vmem:[%s5 + $0x10] sm:$0xff]
    %v5727 = vld [vmem:[%s5 + $0x18] sm:$0xff]
    %v5728 = vld [vmem:[%s5 + $0x20] sm:$0xff]
    %v5729 = vld [vmem:[%s5 + $0x28] sm:$0xff]
    %v5730 = vld [vmem:[%s5 + $0x30] sm:$0xff]
    %v5731 = vld [vmem:[%s5 + $0x38] sm:$0xff]
    %v5732 = vld [vmem:[%s6] sm:$0xff]
    %v5733 = vld [vmem:[%s6 + $0x8] sm:$0xff]
    %v5734 = vld [vmem:[%s6 + $0x10] sm:$0xff]
    %v5735 = vld [vmem:[%s6 + $0x18] sm:$0xff]
    %v5736 = vld [vmem:[%s6 + $0x20] sm:$0xff]
    %v5737 = vld [vmem:[%s6 + $0x28] sm:$0xff]
    %v5738 = vld [vmem:[%s6 + $0x30] sm:$0xff]
    %v5739 = vld [vmem:[%s6 + $0x38] sm:$0xff]
    %5741 = vset.pattern.permute.xlu0 0
    %5742 = vperm.xlu0 %5741, %v5732
    %v5743 = vpop.permute.xlu0 %5742
    %5746 = vset.pattern.permute.xlu0 0
    %5747 = vperm.xlu0 %5746, %v5733
    %v5748 = vpop.permute.xlu0 %5747
    %5751 = vset.pattern.permute.xlu0 0
    %5752 = vperm.xlu0 %5751, %v5734
    %v5753 = vpop.permute.xlu0 %5752
    %5756 = vset.pattern.permute.xlu0 0
    %5757 = vperm.xlu0 %5756, %v5735
    %v5758 = vpop.permute.xlu0 %5757
    %5761 = vset.pattern.permute.xlu0 0
    %5762 = vperm.xlu0 %5761, %v5736
    %v5763 = vpop.permute.xlu0 %5762
    %5766 = vset.pattern.permute.xlu0 0
    %5767 = vperm.xlu0 %5766, %v5737
    %v5768 = vpop.permute.xlu0 %5767
    %5771 = vset.pattern.permute.xlu0 0
    %5772 = vperm.xlu0 %5771, %v5738
    %v5773 = vpop.permute.xlu0 %5772
    %5776 = vset.pattern.permute.xlu0 0
    %5777 = vperm.xlu0 %5776, %v5739
    %v5778 = vpop.permute.xlu0 %5777
    %v5780 = vmul.f32 %v5743, %v2269
    %v5781 = vmul.f32 %v5743, %v2270
    %v5782 = vmul.f32 %v5743, %v2271
    %v5783 = vmul.f32 %v5743, %v2272
    %v5784 = vmul.f32 %v5743, %v2273
    %v5785 = vmul.f32 %v5743, %v2274
    %v5786 = vmul.f32 %v5743, %v2275
    %v5787 = vmul.f32 %v5743, %v2276
    %v5788 = vmul.f32 %v5743, %v2277
    %v5789 = vmul.f32 %v5743, %v2278
    %v5790 = vmul.f32 %v5743, %v2279
    %v5791 = vmul.f32 %v5743, %v2280
    %v5792 = vmul.f32 %v5743, %v2281
    %v5793 = vmul.f32 %v5743, %v2282
    %v5794 = vmul.f32 %v5743, %v2283
    %v5795 = vmul.f32 %v5743, %v2284
    %v5796 = vmul.f32 %v5748, %v2269
    %v5797 = vmul.f32 %v5748, %v2270
    %v5798 = vmul.f32 %v5748, %v2271
    %v5799 = vmul.f32 %v5748, %v2272
    %v5800 = vmul.f32 %v5748, %v2273
    %v5801 = vmul.f32 %v5748, %v2274
    %v5802 = vmul.f32 %v5748, %v2275
    %v5803 = vmul.f32 %v5748, %v2276
    %v5804 = vmul.f32 %v5748, %v2277
    %v5805 = vmul.f32 %v5748, %v2278
    %v5806 = vmul.f32 %v5748, %v2279
    %v5807 = vmul.f32 %v5748, %v2280
    %v5808 = vmul.f32 %v5748, %v2281
    %v5809 = vmul.f32 %v5748, %v2282
    %v5810 = vmul.f32 %v5748, %v2283
    %v5811 = vmul.f32 %v5748, %v2284
    %v5812 = vmul.f32 %v5753, %v2269
    %v5813 = vmul.f32 %v5753, %v2270
    %v5814 = vmul.f32 %v5753, %v2271
    %v5815 = vmul.f32 %v5753, %v2272
    %v5816 = vmul.f32 %v5753, %v2273
    %v5817 = vmul.f32 %v5753, %v2274
    %v5818 = vmul.f32 %v5753, %v2275
    %v5819 = vmul.f32 %v5753, %v2276
    %v5820 = vmul.f32 %v5753, %v2277
    %v5821 = vmul.f32 %v5753, %v2278
    %v5822 = vmul.f32 %v5753, %v2279
    %v5823 = vmul.f32 %v5753, %v2280
    %v5824 = vmul.f32 %v5753, %v2281
    %v5825 = vmul.f32 %v5753, %v2282
    %v5826 = vmul.f32 %v5753, %v2283
    %v5827 = vmul.f32 %v5753, %v2284
    %v5828 = vmul.f32 %v5758, %v2269
    %v5829 = vmul.f32 %v5758, %v2270
    %v5830 = vmul.f32 %v5758, %v2271
    %v5831 = vmul.f32 %v5758, %v2272
    %v5832 = vmul.f32 %v5758, %v2273
    %v5833 = vmul.f32 %v5758, %v2274
    %v5834 = vmul.f32 %v5758, %v2275
    %v5835 = vmul.f32 %v5758, %v2276
    %v5836 = vmul.f32 %v5758, %v2277
    %v5837 = vmul.f32 %v5758, %v2278
    %v5838 = vmul.f32 %v5758, %v2279
    %v5839 = vmul.f32 %v5758, %v2280
    %v5840 = vmul.f32 %v5758, %v2281
    %v5841 = vmul.f32 %v5758, %v2282
    %v5842 = vmul.f32 %v5758, %v2283
    %v5843 = vmul.f32 %v5758, %v2284
    %v5844 = vmul.f32 %v5763, %v2269
    %v5845 = vmul.f32 %v5763, %v2270
    %v5846 = vmul.f32 %v5763, %v2271
    %v5847 = vmul.f32 %v5763, %v2272
    %v5848 = vmul.f32 %v5763, %v2273
    %v5849 = vmul.f32 %v5763, %v2274
    %v5850 = vmul.f32 %v5763, %v2275
    %v5851 = vmul.f32 %v5763, %v2276
    %v5852 = vmul.f32 %v5763, %v2277
    %v5853 = vmul.f32 %v5763, %v2278
    %v5854 = vmul.f32 %v5763, %v2279
    %v5855 = vmul.f32 %v5763, %v2280
    %v5856 = vmul.f32 %v5763, %v2281
    %v5857 = vmul.f32 %v5763, %v2282
    %v5858 = vmul.f32 %v5763, %v2283
    %v5859 = vmul.f32 %v5763, %v2284
    %v5860 = vmul.f32 %v5768, %v2269
    %v5861 = vmul.f32 %v5768, %v2270
    %v5862 = vmul.f32 %v5768, %v2271
    %v5863 = vmul.f32 %v5768, %v2272
    %v5864 = vmul.f32 %v5768, %v2273
    %v5865 = vmul.f32 %v5768, %v2274
    %v5866 = vmul.f32 %v5768, %v2275
    %v5867 = vmul.f32 %v5768, %v2276
    %v5868 = vmul.f32 %v5768, %v2277
    %v5869 = vmul.f32 %v5768, %v2278
    %v5870 = vmul.f32 %v5768, %v2279
    %v5871 = vmul.f32 %v5768, %v2280
    %v5872 = vmul.f32 %v5768, %v2281
    %v5873 = vmul.f32 %v5768, %v2282
    %v5874 = vmul.f32 %v5768, %v2283
    %v5875 = vmul.f32 %v5768, %v2284
    %v5876 = vmul.f32 %v5773, %v2269
    %v5877 = vmul.f32 %v5773, %v2270
    %v5878 = vmul.f32 %v5773, %v2271
    %v5879 = vmul.f32 %v5773, %v2272
    %v5880 = vmul.f32 %v5773, %v2273
    %v5881 = vmul.f32 %v5773, %v2274
    %v5882 = vmul.f32 %v5773, %v2275
    %v5883 = vmul.f32 %v5773, %v2276
    %v5884 = vmul.f32 %v5773, %v2277
    %v5885 = vmul.f32 %v5773, %v2278
    %v5886 = vmul.f32 %v5773, %v2279
    %v5887 = vmul.f32 %v5773, %v2280
    %v5888 = vmul.f32 %v5773, %v2281
    %v5889 = vmul.f32 %v5773, %v2282
    %v5890 = vmul.f32 %v5773, %v2283
    %v5891 = vmul.f32 %v5773, %v2284
    %v5892 = vmul.f32 %v5778, %v2269
    %v5893 = vmul.f32 %v5778, %v2270
    %v5894 = vmul.f32 %v5778, %v2271
    %v5895 = vmul.f32 %v5778, %v2272
    %v5896 = vmul.f32 %v5778, %v2273
    %v5897 = vmul.f32 %v5778, %v2274
    %v5898 = vmul.f32 %v5778, %v2275
    %v5899 = vmul.f32 %v5778, %v2276
    %v5900 = vmul.f32 %v5778, %v2277
    %v5901 = vmul.f32 %v5778, %v2278
    %v5902 = vmul.f32 %v5778, %v2279
    %v5903 = vmul.f32 %v5778, %v2280
    %v5904 = vmul.f32 %v5778, %v2281
    %v5905 = vmul.f32 %v5778, %v2282
    %v5906 = vmul.f32 %v5778, %v2283
    %v5907 = vmul.f32 %v5778, %v2284
    %vm5908 = vcmask 744448
    %v5910 = vsel %vm5908, %v5724, 0
    %v5913 = vsel %vm5908, %v5725, 0
    %v5916 = vsel %vm5908, %v5726, 0
    %v5919 = vsel %vm5908, %v5727, 0
    %v5922 = vsel %vm5908, %v5728, 0
    %v5925 = vsel %vm5908, %v5729, 0
    %v5928 = vsel %vm5908, %v5730, 0
    %v5931 = vsel %vm5908, %v5731, 0
    %v5934 = vsel %vm181, %v5716, 0
    %v5937 = vsel %vm181, %v5717, 0
    %v5940 = vsel %vm181, %v5718, 0
    %v5943 = vsel %vm181, %v5719, 0
    %v5946 = vsel %vm181, %v5720, 0
    %v5949 = vsel %vm181, %v5721, 0
    %v5952 = vsel %vm181, %v5722, 0
    %v5955 = vsel %vm181, %v5723, 0
    %5957 = vmatprep.subr.mxu0 0.0
    %5958 = vmatpush1.msra.mxu0 0.0
    %5959 = vmatprep.subr.mxu0 0.0
    %5960 = vmatpush1.msra.mxu0 0.0
    %5961 = vmatprep.subr.mxu0 0.0
    %5962 = vmatpush1.msra.mxu0 0.0
    %5963 = vmatprep.subr.mxu0 0.0
    %5964 = vmatpush1.msra.mxu0 0.0
    %5965 = vmatprep.subr.mxu0 %v5937
    %5966 = vmatpush1.msra.mxu0 %v5934
    %5967 = vmatprep.subr.mxu0 %v5705
    %5968 = vmatpush1.msra.mxu0 %v5704
    %5969 = vmatprep.subr.mxu0 %v5693
    %5970 = vmatpush1.msra.mxu0 %v5692
    %5971 = vmatprep.subr.mxu0 %v5683
    %5972 = vmatpush1.msra.mxu0 %v5682
    %5973 = vmatprep.subr.mxu0 %v5667
    %5974 = vmatpush1.msra.mxu0 %v5666
    %5975 = vmatprep.subr.mxu0 %v5651
    %5976 = vmatpush1.msra.mxu0 %v5650
    %5977 = vmatprep.subr.mxu0 %v5635
    %5978 = vmatpush1.msra.mxu0 %v5634
    %5979 = vmatprep.subr.mxu0 %v5619
    %5980 = vmatpush1.msra.mxu0 %v5618
    %5981 = vmatprep.subr.mxu0 %v5603
    %5982 = vmatpush1.msra.mxu0 %v5602
    %5983 = vmatprep.subr.mxu0 %v5587
    %5984 = vmatpush1.msra.mxu0 %v5586
    %5985 = vmatprep.subr.mxu0 %v5571
    %5986 = vmatpush1.msra.mxu0 %v5570
    %5987 = vmatprep.subr.mxu0 %v5555
    %5988 = vmatpush1.msra.mxu0 %v5554
    %5989 = vmatprep.subr.mxu0 0.0
    %5990 = vmatpush2.msra.mxu0 0.0
    %5991 = vmatprep.subr.mxu0 0.0
    %5992 = vmatpush2.msra.mxu0 0.0
    %5993 = vmatprep.subr.mxu0 0.0
    %5994 = vmatpush2.msra.mxu0 0.0
    %5995 = vmatprep.subr.mxu0 0.0
    %5996 = vmatpush2.msra.mxu0 0.0
    %5997 = vmatprep.subr.mxu0 0.0
    %5998 = vmatpush2.msra.mxu0 0.0
    %5999 = vmatprep.subr.mxu0 0.0
    %6000 = vmatpush2.msra.mxu0 0.0
    %6001 = vmatprep.subr.mxu0 0.0
    %6002 = vmatpush2.msra.mxu0 0.0
    %6003 = vmatprep.subr.mxu0 0.0
    %6004 = vmatpush2.msra.mxu0 0.0
    %6005 = vmatprep.subr.mxu0 0.0
    %6006 = vmatpush2.msra.mxu0 0.0
    %6007 = vmatprep.subr.mxu0 0.0
    %6008 = vmatpush2.msra.mxu0 0.0
    %6009 = vmatprep.subr.mxu0 0.0
    %6010 = vmatpush2.msra.mxu0 0.0
    %6011 = vmatprep.subr.mxu0 0.0
    %6012 = vmatpush2.msra.mxu0 0.0
    %6013 = vmatprep.subr.mxu0 0.0
    %6014 = vmatpush2.msra.mxu0 0.0
    %6015 = vmatprep.subr.mxu0 0.0
    %6016 = vmatpush2.msra.mxu0 0.0
    %6017 = vmatprep.subr.mxu0 0.0
    %6018 = vmatpush2.msra.mxu0 0.0
    %6019 = vmatprep.subr.mxu0 0.0
    %6020 = vmatpush2.msra.mxu0 0.0
    %6021 = vmatprep.mubr.f32.mxu0 0.0
    %6022 = vmatmul.mubr.f32.gmra.mxu0 %v5910
    %v6023 = vpop.f32.mrf.mxu0
    %v6024 = vadd.f32 %v5780, %v6023
    %v6025 = vpop.f32.mrf.mxu0
    %v6026 = vadd.f32 %v5781, %v6025
    %6027 = vmatprep.mubr.f32.mxu0 0.0
    %6028 = vmatmul.mubr.f32.gmra.mxu0 %v5913
    %v6029 = vpop.f32.mrf.mxu0
    %v6030 = vadd.f32 %v5796, %v6029
    %v6031 = vpop.f32.mrf.mxu0
    %v6032 = vadd.f32 %v5797, %v6031
    %6033 = vmatprep.mubr.f32.mxu0 0.0
    %6034 = vmatmul.mubr.f32.gmra.mxu0 %v5916
    %v6035 = vpop.f32.mrf.mxu0
    %v6036 = vadd.f32 %v5812, %v6035
    %v6037 = vpop.f32.mrf.mxu0
    %v6038 = vadd.f32 %v5813, %v6037
    %6039 = vmatprep.mubr.f32.mxu0 0.0
    %6040 = vmatmul.mubr.f32.gmra.mxu0 %v5919
    %v6041 = vpop.f32.mrf.mxu0
    %v6042 = vadd.f32 %v5828, %v6041
    %v6043 = vpop.f32.mrf.mxu0
    %v6044 = vadd.f32 %v5829, %v6043
    %6045 = vmatprep.mubr.f32.mxu0 0.0
    %6046 = vmatmul.mubr.f32.gmra.mxu0 %v5922
    %v6047 = vpop.f32.mrf.mxu0
    %v6048 = vadd.f32 %v5844, %v6047
    %v6049 = vpop.f32.mrf.mxu0
    %v6050 = vadd.f32 %v5845, %v6049
    %6051 = vmatprep.mubr.f32.mxu0 0.0
    %6052 = vmatmul.mubr.f32.gmra.mxu0 %v5925
    %v6053 = vpop.f32.mrf.mxu0
    %v6054 = vadd.f32 %v5860, %v6053
    %v6055 = vpop.f32.mrf.mxu0
    %v6056 = vadd.f32 %v5861, %v6055
    %6057 = vmatprep.mubr.f32.mxu0 0.0
    %6058 = vmatmul.mubr.f32.gmra.mxu0 %v5928
    %v6059 = vpop.f32.mrf.mxu0
    %v6060 = vadd.f32 %v5876, %v6059
    %v6061 = vpop.f32.mrf.mxu0
    %v6062 = vadd.f32 %v5877, %v6061
    %6063 = vmatprep.mubr.f32.mxu0 0.0
    %6064 = vmatmul.mubr.f32.gmra.mxu0 %v5931
    %v6065 = vpop.f32.mrf.mxu0
    %v6066 = vadd.f32 %v5892, %v6065
    %v6067 = vpop.f32.mrf.mxu0
    %v6068 = vadd.f32 %v5893, %v6067
    %6069 = vdwg.mxu0
    %6070 = vmatprep.subr.mxu0 0.0
    %6071 = vmatpush1.msra.mxu0 0.0
    %6072 = vmatprep.subr.mxu0 0.0
    %6073 = vmatpush1.msra.mxu0 0.0
    %6074 = vmatprep.subr.mxu0 0.0
    %6075 = vmatpush1.msra.mxu0 0.0
    %6076 = vmatprep.subr.mxu0 0.0
    %6077 = vmatpush1.msra.mxu0 0.0
    %6078 = vmatprep.subr.mxu0 %v5943
    %6079 = vmatpush1.msra.mxu0 %v5940
    %6080 = vmatprep.subr.mxu0 %v5707
    %6081 = vmatpush1.msra.mxu0 %v5706
    %6082 = vmatprep.subr.mxu0 %v5695
    %6083 = vmatpush1.msra.mxu0 %v5694
    %6084 = vmatprep.subr.mxu0 %v5685
    %6085 = vmatpush1.msra.mxu0 %v5684
    %6086 = vmatprep.subr.mxu0 %v5669
    %6087 = vmatpush1.msra.mxu0 %v5668
    %6088 = vmatprep.subr.mxu0 %v5653
    %6089 = vmatpush1.msra.mxu0 %v5652
    %6090 = vmatprep.subr.mxu0 %v5637
    %6091 = vmatpush1.msra.mxu0 %v5636
    %6092 = vmatprep.subr.mxu0 %v5621
    %6093 = vmatpush1.msra.mxu0 %v5620
    %6094 = vmatprep.subr.mxu0 %v5605
    %6095 = vmatpush1.msra.mxu0 %v5604
    %6096 = vmatprep.subr.mxu0 %v5589
    %6097 = vmatpush1.msra.mxu0 %v5588
    %6098 = vmatprep.subr.mxu0 %v5573
    %6099 = vmatpush1.msra.mxu0 %v5572
    %6100 = vmatprep.subr.mxu0 %v5557
    %6101 = vmatpush1.msra.mxu0 %v5556
    %6102 = vmatprep.subr.mxu0 0.0
    %6103 = vmatpush2.msra.mxu0 0.0
    %6104 = vmatprep.subr.mxu0 0.0
    %6105 = vmatpush2.msra.mxu0 0.0
    %6106 = vmatprep.subr.mxu0 0.0
    %6107 = vmatpush2.msra.mxu0 0.0
    %6108 = vmatprep.subr.mxu0 0.0
    %6109 = vmatpush2.msra.mxu0 0.0
    %6110 = vmatprep.subr.mxu0 0.0
    %6111 = vmatpush2.msra.mxu0 0.0
    %6112 = vmatprep.subr.mxu0 0.0
    %6113 = vmatpush2.msra.mxu0 0.0
    %6114 = vmatprep.subr.mxu0 0.0
    %6115 = vmatpush2.msra.mxu0 0.0
    %6116 = vmatprep.subr.mxu0 0.0
    %6117 = vmatpush2.msra.mxu0 0.0
    %6118 = vmatprep.subr.mxu0 0.0
    %6119 = vmatpush2.msra.mxu0 0.0
    %6120 = vmatprep.subr.mxu0 0.0
    %6121 = vmatpush2.msra.mxu0 0.0
    %6122 = vmatprep.subr.mxu0 0.0
    %6123 = vmatpush2.msra.mxu0 0.0
    %6124 = vmatprep.subr.mxu0 0.0
    %6125 = vmatpush2.msra.mxu0 0.0
    %6126 = vmatprep.subr.mxu0 0.0
    %6127 = vmatpush2.msra.mxu0 0.0
    %6128 = vmatprep.subr.mxu0 0.0
    %6129 = vmatpush2.msra.mxu0 0.0
    %6130 = vmatprep.subr.mxu0 0.0
    %6131 = vmatpush2.msra.mxu0 0.0
    %6132 = vmatprep.subr.mxu0 0.0
    %6133 = vmatpush2.msra.mxu0 0.0
    %6134 = vmatprep.mubr.f32.mxu0 0.0
    %6135 = vmatmul.mubr.f32.gmra.mxu0 %v5910
    %v6136 = vpop.f32.mrf.mxu0
    %v6137 = vadd.f32 %v5782, %v6136
    %v6138 = vpop.f32.mrf.mxu0
    %v6139 = vadd.f32 %v5783, %v6138
    %6140 = vmatprep.mubr.f32.mxu0 0.0
    %6141 = vmatmul.mubr.f32.gmra.mxu0 %v5913
    %v6142 = vpop.f32.mrf.mxu0
    %v6143 = vadd.f32 %v5798, %v6142
    %v6144 = vpop.f32.mrf.mxu0
    %v6145 = vadd.f32 %v5799, %v6144
    %6146 = vmatprep.mubr.f32.mxu0 0.0
    %6147 = vmatmul.mubr.f32.gmra.mxu0 %v5916
    %v6148 = vpop.f32.mrf.mxu0
    %v6149 = vadd.f32 %v5814, %v6148
    %v6150 = vpop.f32.mrf.mxu0
    %v6151 = vadd.f32 %v5815, %v6150
    %6152 = vmatprep.mubr.f32.mxu0 0.0
    %6153 = vmatmul.mubr.f32.gmra.mxu0 %v5919
    %v6154 = vpop.f32.mrf.mxu0
    %v6155 = vadd.f32 %v5830, %v6154
    %v6156 = vpop.f32.mrf.mxu0
    %v6157 = vadd.f32 %v5831, %v6156
    %6158 = vmatprep.mubr.f32.mxu0 0.0
    %6159 = vmatmul.mubr.f32.gmra.mxu0 %v5922
    %v6160 = vpop.f32.mrf.mxu0
    %v6161 = vadd.f32 %v5846, %v6160
    %v6162 = vpop.f32.mrf.mxu0
    %v6163 = vadd.f32 %v5847, %v6162
    %6164 = vmatprep.mubr.f32.mxu0 0.0
    %6165 = vmatmul.mubr.f32.gmra.mxu0 %v5925
    %v6166 = vpop.f32.mrf.mxu0
    %v6167 = vadd.f32 %v5862, %v6166
    %v6168 = vpop.f32.mrf.mxu0
    %v6169 = vadd.f32 %v5863, %v6168
    %6170 = vmatprep.mubr.f32.mxu0 0.0
    %6171 = vmatmul.mubr.f32.gmra.mxu0 %v5928
    %v6172 = vpop.f32.mrf.mxu0
    %v6173 = vadd.f32 %v5878, %v6172
    %v6174 = vpop.f32.mrf.mxu0
    %v6175 = vadd.f32 %v5879, %v6174
    %6176 = vmatprep.mubr.f32.mxu0 0.0
    %6177 = vmatmul.mubr.f32.gmra.mxu0 %v5931
    %v6178 = vpop.f32.mrf.mxu0
    %v6179 = vadd.f32 %v5894, %v6178
    %v6180 = vpop.f32.mrf.mxu0
    %v6181 = vadd.f32 %v5895, %v6180
    %6182 = vdwg.mxu0
    %6183 = vmatprep.subr.mxu0 0.0
    %6184 = vmatpush1.msra.mxu0 0.0
    %6185 = vmatprep.subr.mxu0 0.0
    %6186 = vmatpush1.msra.mxu0 0.0
    %6187 = vmatprep.subr.mxu0 0.0
    %6188 = vmatpush1.msra.mxu0 0.0
    %6189 = vmatprep.subr.mxu0 0.0
    %6190 = vmatpush1.msra.mxu0 0.0
    %6191 = vmatprep.subr.mxu0 %v2503
    %6192 = vmatpush1.msra.mxu0 %v2503
    %6193 = vmatprep.subr.mxu0 0.0
    %6194 = vmatpush1.msra.mxu0 0.0
    %6195 = vmatprep.subr.mxu0 %v5697
    %6196 = vmatpush1.msra.mxu0 %v5696
    %6197 = vmatprep.subr.mxu0 %v5687
    %6198 = vmatpush1.msra.mxu0 %v5686
    %6199 = vmatprep.subr.mxu0 %v5671
    %6200 = vmatpush1.msra.mxu0 %v5670
    %6201 = vmatprep.subr.mxu0 %v5655
    %6202 = vmatpush1.msra.mxu0 %v5654
    %6203 = vmatprep.subr.mxu0 %v5639
    %6204 = vmatpush1.msra.mxu0 %v5638
    %6205 = vmatprep.subr.mxu0 %v5623
    %6206 = vmatpush1.msra.mxu0 %v5622
    %6207 = vmatprep.subr.mxu0 %v5607
    %6208 = vmatpush1.msra.mxu0 %v5606
    %6209 = vmatprep.subr.mxu0 %v5591
    %6210 = vmatpush1.msra.mxu0 %v5590
    %6211 = vmatprep.subr.mxu0 %v5575
    %6212 = vmatpush1.msra.mxu0 %v5574
    %6213 = vmatprep.subr.mxu0 %v5559
    %6214 = vmatpush1.msra.mxu0 %v5558
    %6215 = vmatprep.subr.mxu0 0.0
    %6216 = vmatpush2.msra.mxu0 0.0
    %6217 = vmatprep.subr.mxu0 0.0
    %6218 = vmatpush2.msra.mxu0 0.0
    %6219 = vmatprep.subr.mxu0 0.0
    %6220 = vmatpush2.msra.mxu0 0.0
    %6221 = vmatprep.subr.mxu0 0.0
    %6222 = vmatpush2.msra.mxu0 0.0
    %6223 = vmatprep.subr.mxu0 0.0
    %6224 = vmatpush2.msra.mxu0 0.0
    %6225 = vmatprep.subr.mxu0 0.0
    %6226 = vmatpush2.msra.mxu0 0.0
    %6227 = vmatprep.subr.mxu0 0.0
    %6228 = vmatpush2.msra.mxu0 0.0
    %6229 = vmatprep.subr.mxu0 0.0
    %6230 = vmatpush2.msra.mxu0 0.0
    %6231 = vmatprep.subr.mxu0 0.0
    %6232 = vmatpush2.msra.mxu0 0.0
    %6233 = vmatprep.subr.mxu0 0.0
    %6234 = vmatpush2.msra.mxu0 0.0
    %6235 = vmatprep.subr.mxu0 0.0
    %6236 = vmatpush2.msra.mxu0 0.0
    %6237 = vmatprep.subr.mxu0 0.0
    %6238 = vmatpush2.msra.mxu0 0.0
    %6239 = vmatprep.subr.mxu0 0.0
    %6240 = vmatpush2.msra.mxu0 0.0
    %6241 = vmatprep.subr.mxu0 0.0
    %6242 = vmatpush2.msra.mxu0 0.0
    %6243 = vmatprep.subr.mxu0 0.0
    %6244 = vmatpush2.msra.mxu0 0.0
    %6245 = vmatprep.subr.mxu0 0.0
    %6246 = vmatpush2.msra.mxu0 0.0
    %6247 = vmatprep.mubr.f32.mxu0 0.0
    %6248 = vmatmul.mubr.f32.gmra.mxu0 %v5910
    %v6249 = vpop.f32.mrf.mxu0
    %v6250 = vadd.f32 %v5784, %v6249
    %v6251 = vpop.f32.mrf.mxu0
    %v6252 = vadd.f32 %v5785, %v6251
    %6253 = vmatprep.mubr.f32.mxu0 0.0
    %6254 = vmatmul.mubr.f32.gmra.mxu0 %v5913
    %v6255 = vpop.f32.mrf.mxu0
    %v6256 = vadd.f32 %v5800, %v6255
    %v6257 = vpop.f32.mrf.mxu0
    %v6258 = vadd.f32 %v5801, %v6257
    %6259 = vmatprep.mubr.f32.mxu0 0.0
    %6260 = vmatmul.mubr.f32.gmra.mxu0 %v5916
    %v6261 = vpop.f32.mrf.mxu0
    %v6262 = vadd.f32 %v5816, %v6261
    %v6263 = vpop.f32.mrf.mxu0
    %v6264 = vadd.f32 %v5817, %v6263
    %6265 = vmatprep.mubr.f32.mxu0 0.0
    %6266 = vmatmul.mubr.f32.gmra.mxu0 %v5919
    %v6267 = vpop.f32.mrf.mxu0
    %v6268 = vadd.f32 %v5832, %v6267
    %v6269 = vpop.f32.mrf.mxu0
    %v6270 = vadd.f32 %v5833, %v6269
    %6271 = vmatprep.mubr.f32.mxu0 0.0
    %6272 = vmatmul.mubr.f32.gmra.mxu0 %v5922
    %v6273 = vpop.f32.mrf.mxu0
    %v6274 = vadd.f32 %v5848, %v6273
    %v6275 = vpop.f32.mrf.mxu0
    %v6276 = vadd.f32 %v5849, %v6275
    %6277 = vmatprep.mubr.f32.mxu0 0.0
    %6278 = vmatmul.mubr.f32.gmra.mxu0 %v5925
    %v6279 = vpop.f32.mrf.mxu0
    %v6280 = vadd.f32 %v5864, %v6279
    %v6281 = vpop.f32.mrf.mxu0
    %v6282 = vadd.f32 %v5865, %v6281
    %6283 = vmatprep.mubr.f32.mxu0 0.0
    %6284 = vmatmul.mubr.f32.gmra.mxu0 %v5928
    %v6285 = vpop.f32.mrf.mxu0
    %v6286 = vadd.f32 %v5880, %v6285
    %v6287 = vpop.f32.mrf.mxu0
    %v6288 = vadd.f32 %v5881, %v6287
    %6289 = vmatprep.mubr.f32.mxu0 0.0
    %6290 = vmatmul.mubr.f32.gmra.mxu0 %v5931
    %v6291 = vpop.f32.mrf.mxu0
    %v6292 = vadd.f32 %v5896, %v6291
    %v6293 = vpop.f32.mrf.mxu0
    %v6294 = vadd.f32 %v5897, %v6293
    %6295 = vdwg.mxu0
    %6296 = vmatprep.subr.mxu0 0.0
    %6297 = vmatpush1.msra.mxu0 0.0
    %6298 = vmatprep.subr.mxu0 0.0
    %6299 = vmatpush1.msra.mxu0 0.0
    %6300 = vmatprep.subr.mxu0 0.0
    %6301 = vmatpush1.msra.mxu0 0.0
    %6302 = vmatprep.subr.mxu0 0.0
    %6303 = vmatpush1.msra.mxu0 0.0
    %6304 = vmatprep.subr.mxu0 %v2503
    %6305 = vmatpush1.msra.mxu0 %v2503
    %6306 = vmatprep.subr.mxu0 0.0
    %6307 = vmatpush1.msra.mxu0 0.0
    %6308 = vmatprep.subr.mxu0 %v5699
    %6309 = vmatpush1.msra.mxu0 %v5698
    %6310 = vmatprep.subr.mxu0 %v5689
    %6311 = vmatpush1.msra.mxu0 %v5688
    %6312 = vmatprep.subr.mxu0 %v5673
    %6313 = vmatpush1.msra.mxu0 %v5672
    %6314 = vmatprep.subr.mxu0 %v5657
    %6315 = vmatpush1.msra.mxu0 %v5656
    %6316 = vmatprep.subr.mxu0 %v5641
    %6317 = vmatpush1.msra.mxu0 %v5640
    %6318 = vmatprep.subr.mxu0 %v5625
    %6319 = vmatpush1.msra.mxu0 %v5624
    %6320 = vmatprep.subr.mxu0 %v5609
    %6321 = vmatpush1.msra.mxu0 %v5608
    %6322 = vmatprep.subr.mxu0 %v5593
    %6323 = vmatpush1.msra.mxu0 %v5592
    %6324 = vmatprep.subr.mxu0 %v5577
    %6325 = vmatpush1.msra.mxu0 %v5576
    %6326 = vmatprep.subr.mxu0 %v5561
    %6327 = vmatpush1.msra.mxu0 %v5560
    %6328 = vmatprep.subr.mxu0 0.0
    %6329 = vmatpush2.msra.mxu0 0.0
    %6330 = vmatprep.subr.mxu0 0.0
    %6331 = vmatpush2.msra.mxu0 0.0
    %6332 = vmatprep.subr.mxu0 0.0
    %6333 = vmatpush2.msra.mxu0 0.0
    %6334 = vmatprep.subr.mxu0 0.0
    %6335 = vmatpush2.msra.mxu0 0.0
    %6336 = vmatprep.subr.mxu0 0.0
    %6337 = vmatpush2.msra.mxu0 0.0
    %6338 = vmatprep.subr.mxu0 0.0
    %6339 = vmatpush2.msra.mxu0 0.0
    %6340 = vmatprep.subr.mxu0 0.0
    %6341 = vmatpush2.msra.mxu0 0.0
    %6342 = vmatprep.subr.mxu0 0.0
    %6343 = vmatpush2.msra.mxu0 0.0
    %6344 = vmatprep.subr.mxu0 0.0
    %6345 = vmatpush2.msra.mxu0 0.0
    %6346 = vmatprep.subr.mxu0 0.0
    %6347 = vmatpush2.msra.mxu0 0.0
    %6348 = vmatprep.subr.mxu0 0.0
    %6349 = vmatpush2.msra.mxu0 0.0
    %6350 = vmatprep.subr.mxu0 0.0
    %6351 = vmatpush2.msra.mxu0 0.0
    %6352 = vmatprep.subr.mxu0 0.0
    %6353 = vmatpush2.msra.mxu0 0.0
    %6354 = vmatprep.subr.mxu0 0.0
    %6355 = vmatpush2.msra.mxu0 0.0
    %6356 = vmatprep.subr.mxu0 0.0
    %6357 = vmatpush2.msra.mxu0 0.0
    %6358 = vmatprep.subr.mxu0 0.0
    %6359 = vmatpush2.msra.mxu0 0.0
    %6360 = vmatprep.mubr.f32.mxu0 0.0
    %6361 = vmatmul.mubr.f32.gmra.mxu0 %v5910
    %v6362 = vpop.f32.mrf.mxu0
    %v6363 = vadd.f32 %v5786, %v6362
    %v6364 = vpop.f32.mrf.mxu0
    %v6365 = vadd.f32 %v5787, %v6364
    %6366 = vmatprep.mubr.f32.mxu0 0.0
    %6367 = vmatmul.mubr.f32.gmra.mxu0 %v5913
    %v6368 = vpop.f32.mrf.mxu0
    %v6369 = vadd.f32 %v5802, %v6368
    %v6370 = vpop.f32.mrf.mxu0
    %v6371 = vadd.f32 %v5803, %v6370
    %6372 = vmatprep.mubr.f32.mxu0 0.0
    %6373 = vmatmul.mubr.f32.gmra.mxu0 %v5916
    %v6374 = vpop.f32.mrf.mxu0
    %v6375 = vadd.f32 %v5818, %v6374
    %v6376 = vpop.f32.mrf.mxu0
    %v6377 = vadd.f32 %v5819, %v6376
    %6378 = vmatprep.mubr.f32.mxu0 0.0
    %6379 = vmatmul.mubr.f32.gmra.mxu0 %v5919
    %v6380 = vpop.f32.mrf.mxu0
    %v6381 = vadd.f32 %v5834, %v6380
    %v6382 = vpop.f32.mrf.mxu0
    %v6383 = vadd.f32 %v5835, %v6382
    %6384 = vmatprep.mubr.f32.mxu0 0.0
    %6385 = vmatmul.mubr.f32.gmra.mxu0 %v5922
    %v6386 = vpop.f32.mrf.mxu0
    %v6387 = vadd.f32 %v5850, %v6386
    %v6388 = vpop.f32.mrf.mxu0
    %v6389 = vadd.f32 %v5851, %v6388
    %6390 = vmatprep.mubr.f32.mxu0 0.0
    %6391 = vmatmul.mubr.f32.gmra.mxu0 %v5925
    %v6392 = vpop.f32.mrf.mxu0
    %v6393 = vadd.f32 %v5866, %v6392
    %v6394 = vpop.f32.mrf.mxu0
    %v6395 = vadd.f32 %v5867, %v6394
    %6396 = vmatprep.mubr.f32.mxu0 0.0
    %6397 = vmatmul.mubr.f32.gmra.mxu0 %v5928
    %v6398 = vpop.f32.mrf.mxu0
    %v6399 = vadd.f32 %v5882, %v6398
    %v6400 = vpop.f32.mrf.mxu0
    %v6401 = vadd.f32 %v5883, %v6400
    %6402 = vmatprep.mubr.f32.mxu0 0.0
    %6403 = vmatmul.mubr.f32.gmra.mxu0 %v5931
    %v6404 = vpop.f32.mrf.mxu0
    %v6405 = vadd.f32 %v5898, %v6404
    %v6406 = vpop.f32.mrf.mxu0
    %v6407 = vadd.f32 %v5899, %v6406
    %6408 = vdwg.mxu0
    %6409 = vmatprep.subr.mxu0 0.0
    %6410 = vmatpush1.msra.mxu0 0.0
    %6411 = vmatprep.subr.mxu0 0.0
    %6412 = vmatpush1.msra.mxu0 0.0
    %6413 = vmatprep.subr.mxu0 0.0
    %6414 = vmatpush1.msra.mxu0 0.0
    %6415 = vmatprep.subr.mxu0 0.0
    %6416 = vmatpush1.msra.mxu0 0.0
    %6417 = vmatprep.subr.mxu0 %v2503
    %6418 = vmatpush1.msra.mxu0 %v2503
    %6419 = vmatprep.subr.mxu0 %v5709
    %6420 = vmatpush1.msra.mxu0 %v5708
    %6421 = vmatprep.subr.mxu0 %v5701
    %6422 = vmatpush1.msra.mxu0 %v5700
    %6423 = vmatprep.subr.mxu0 %v5690
    %6424 = vmatpush1.msra.mxu0 %v5690
    %6425 = vmatprep.subr.mxu0 %v5675
    %6426 = vmatpush1.msra.mxu0 %v5674
    %6427 = vmatprep.subr.mxu0 %v5659
    %6428 = vmatpush1.msra.mxu0 %v5658
    %6429 = vmatprep.subr.mxu0 %v5643
    %6430 = vmatpush1.msra.mxu0 %v5642
    %6431 = vmatprep.subr.mxu0 %v5627
    %6432 = vmatpush1.msra.mxu0 %v5626
    %6433 = vmatprep.subr.mxu0 %v5611
    %6434 = vmatpush1.msra.mxu0 %v5610
    %6435 = vmatprep.subr.mxu0 %v5595
    %6436 = vmatpush1.msra.mxu0 %v5594
    %6437 = vmatprep.subr.mxu0 %v5579
    %6438 = vmatpush1.msra.mxu0 %v5578
    %6439 = vmatprep.subr.mxu0 %v5563
    %6440 = vmatpush1.msra.mxu0 %v5562
    %6441 = vmatprep.subr.mxu0 0.0
    %6442 = vmatpush2.msra.mxu0 0.0
    %6443 = vmatprep.subr.mxu0 0.0
    %6444 = vmatpush2.msra.mxu0 0.0
    %6445 = vmatprep.subr.mxu0 0.0
    %6446 = vmatpush2.msra.mxu0 0.0
    %6447 = vmatprep.subr.mxu0 0.0
    %6448 = vmatpush2.msra.mxu0 0.0
    %6449 = vmatprep.subr.mxu0 0.0
    %6450 = vmatpush2.msra.mxu0 0.0
    %6451 = vmatprep.subr.mxu0 0.0
    %6452 = vmatpush2.msra.mxu0 0.0
    %6453 = vmatprep.subr.mxu0 0.0
    %6454 = vmatpush2.msra.mxu0 0.0
    %6455 = vmatprep.subr.mxu0 0.0
    %6456 = vmatpush2.msra.mxu0 0.0
    %6457 = vmatprep.subr.mxu0 0.0
    %6458 = vmatpush2.msra.mxu0 0.0
    %6459 = vmatprep.subr.mxu0 0.0
    %6460 = vmatpush2.msra.mxu0 0.0
    %6461 = vmatprep.subr.mxu0 0.0
    %6462 = vmatpush2.msra.mxu0 0.0
    %6463 = vmatprep.subr.mxu0 0.0
    %6464 = vmatpush2.msra.mxu0 0.0
    %6465 = vmatprep.subr.mxu0 0.0
    %6466 = vmatpush2.msra.mxu0 0.0
    %6467 = vmatprep.subr.mxu0 0.0
    %6468 = vmatpush2.msra.mxu0 0.0
    %6469 = vmatprep.subr.mxu0 0.0
    %6470 = vmatpush2.msra.mxu0 0.0
    %6471 = vmatprep.subr.mxu0 0.0
    %6472 = vmatpush2.msra.mxu0 0.0
    %6473 = vmatprep.mubr.f32.mxu0 0.0
    %6474 = vmatmul.mubr.f32.gmra.mxu0 %v5910
    %v6475 = vpop.f32.mrf.mxu0
    %v6476 = vadd.f32 %v5788, %v6475
    %v6477 = vpop.f32.mrf.mxu0
    %v6478 = vadd.f32 %v5789, %v6477
    %6479 = vmatprep.mubr.f32.mxu0 0.0
    %6480 = vmatmul.mubr.f32.gmra.mxu0 %v5913
    %v6481 = vpop.f32.mrf.mxu0
    %v6482 = vadd.f32 %v5804, %v6481
    %v6483 = vpop.f32.mrf.mxu0
    %v6484 = vadd.f32 %v5805, %v6483
    %6485 = vmatprep.mubr.f32.mxu0 0.0
    %6486 = vmatmul.mubr.f32.gmra.mxu0 %v5916
    %v6487 = vpop.f32.mrf.mxu0
    %v6488 = vadd.f32 %v5820, %v6487
    %v6489 = vpop.f32.mrf.mxu0
    %v6490 = vadd.f32 %v5821, %v6489
    %6491 = vmatprep.mubr.f32.mxu0 0.0
    %6492 = vmatmul.mubr.f32.gmra.mxu0 %v5919
    %v6493 = vpop.f32.mrf.mxu0
    %v6494 = vadd.f32 %v5836, %v6493
    %v6495 = vpop.f32.mrf.mxu0
    %v6496 = vadd.f32 %v5837, %v6495
    %6497 = vmatprep.mubr.f32.mxu0 0.0
    %6498 = vmatmul.mubr.f32.gmra.mxu0 %v5922
    %v6499 = vpop.f32.mrf.mxu0
    %v6500 = vadd.f32 %v5852, %v6499
    %v6501 = vpop.f32.mrf.mxu0
    %v6502 = vadd.f32 %v5853, %v6501
    %6503 = vmatprep.mubr.f32.mxu0 0.0
    %6504 = vmatmul.mubr.f32.gmra.mxu0 %v5925
    %v6505 = vpop.f32.mrf.mxu0
    %v6506 = vadd.f32 %v5868, %v6505
    %v6507 = vpop.f32.mrf.mxu0
    %v6508 = vadd.f32 %v5869, %v6507
    %6509 = vmatprep.mubr.f32.mxu0 0.0
    %6510 = vmatmul.mubr.f32.gmra.mxu0 %v5928
    %v6511 = vpop.f32.mrf.mxu0
    %v6512 = vadd.f32 %v5884, %v6511
    %v6513 = vpop.f32.mrf.mxu0
    %v6514 = vadd.f32 %v5885, %v6513
    %6515 = vmatprep.mubr.f32.mxu0 0.0
    %6516 = vmatmul.mubr.f32.gmra.mxu0 %v5931
    %v6517 = vpop.f32.mrf.mxu0
    %v6518 = vadd.f32 %v5900, %v6517
    %v6519 = vpop.f32.mrf.mxu0
    %v6520 = vadd.f32 %v5901, %v6519
    %6521 = vdwg.mxu0
    %6522 = vmatprep.subr.mxu0 0.0
    %6523 = vmatpush1.msra.mxu0 0.0
    %6524 = vmatprep.subr.mxu0 0.0
    %6525 = vmatpush1.msra.mxu0 0.0
    %6526 = vmatprep.subr.mxu0 0.0
    %6527 = vmatpush1.msra.mxu0 0.0
    %6528 = vmatprep.subr.mxu0 0.0
    %6529 = vmatpush1.msra.mxu0 0.0
    %6530 = vmatprep.subr.mxu0 %v2503
    %6531 = vmatpush1.msra.mxu0 %v2503
    %6532 = vmatprep.subr.mxu0 %v5711
    %6533 = vmatpush1.msra.mxu0 %v5710
    %6534 = vmatprep.subr.mxu0 %v5703
    %6535 = vmatpush1.msra.mxu0 %v5702
    %6536 = vmatprep.subr.mxu0 %v5690
    %6537 = vmatpush1.msra.mxu0 %v5690
    %6538 = vmatprep.subr.mxu0 %v5677
    %6539 = vmatpush1.msra.mxu0 %v5676
    %6540 = vmatprep.subr.mxu0 %v5661
    %6541 = vmatpush1.msra.mxu0 %v5660
    %6542 = vmatprep.subr.mxu0 %v5645
    %6543 = vmatpush1.msra.mxu0 %v5644
    %6544 = vmatprep.subr.mxu0 %v5629
    %6545 = vmatpush1.msra.mxu0 %v5628
    %6546 = vmatprep.subr.mxu0 %v5613
    %6547 = vmatpush1.msra.mxu0 %v5612
    %6548 = vmatprep.subr.mxu0 %v5597
    %6549 = vmatpush1.msra.mxu0 %v5596
    %6550 = vmatprep.subr.mxu0 %v5581
    %6551 = vmatpush1.msra.mxu0 %v5580
    %6552 = vmatprep.subr.mxu0 %v5565
    %6553 = vmatpush1.msra.mxu0 %v5564
    %6554 = vmatprep.subr.mxu0 0.0
    %6555 = vmatpush2.msra.mxu0 0.0
    %6556 = vmatprep.subr.mxu0 0.0
    %6557 = vmatpush2.msra.mxu0 0.0
    %6558 = vmatprep.subr.mxu0 0.0
    %6559 = vmatpush2.msra.mxu0 0.0
    %6560 = vmatprep.subr.mxu0 0.0
    %6561 = vmatpush2.msra.mxu0 0.0
    %6562 = vmatprep.subr.mxu0 0.0
    %6563 = vmatpush2.msra.mxu0 0.0
    %6564 = vmatprep.subr.mxu0 0.0
    %6565 = vmatpush2.msra.mxu0 0.0
    %6566 = vmatprep.subr.mxu0 0.0
    %6567 = vmatpush2.msra.mxu0 0.0
    %6568 = vmatprep.subr.mxu0 0.0
    %6569 = vmatpush2.msra.mxu0 0.0
    %6570 = vmatprep.subr.mxu0 0.0
    %6571 = vmatpush2.msra.mxu0 0.0
    %6572 = vmatprep.subr.mxu0 0.0
    %6573 = vmatpush2.msra.mxu0 0.0
    %6574 = vmatprep.subr.mxu0 0.0
    %6575 = vmatpush2.msra.mxu0 0.0
    %6576 = vmatprep.subr.mxu0 0.0
    %6577 = vmatpush2.msra.mxu0 0.0
    %6578 = vmatprep.subr.mxu0 0.0
    %6579 = vmatpush2.msra.mxu0 0.0
    %6580 = vmatprep.subr.mxu0 0.0
    %6581 = vmatpush2.msra.mxu0 0.0
    %6582 = vmatprep.subr.mxu0 0.0
    %6583 = vmatpush2.msra.mxu0 0.0
    %6584 = vmatprep.subr.mxu0 0.0
    %6585 = vmatpush2.msra.mxu0 0.0
    %6586 = vmatprep.mubr.f32.mxu0 0.0
    %6587 = vmatmul.mubr.f32.gmra.mxu0 %v5910
    %v6588 = vpop.f32.mrf.mxu0
    %v6589 = vadd.f32 %v5790, %v6588
    %v6590 = vpop.f32.mrf.mxu0
    %v6591 = vadd.f32 %v5791, %v6590
    %6592 = vmatprep.mubr.f32.mxu0 0.0
    %6593 = vmatmul.mubr.f32.gmra.mxu0 %v5913
    %v6594 = vpop.f32.mrf.mxu0
    %v6595 = vadd.f32 %v5806, %v6594
    %v6596 = vpop.f32.mrf.mxu0
    %v6597 = vadd.f32 %v5807, %v6596
    %6598 = vmatprep.mubr.f32.mxu0 0.0
    %6599 = vmatmul.mubr.f32.gmra.mxu0 %v5916
    %v6600 = vpop.f32.mrf.mxu0
    %v6601 = vadd.f32 %v5822, %v6600
    %v6602 = vpop.f32.mrf.mxu0
    %v6603 = vadd.f32 %v5823, %v6602
    %6604 = vmatprep.mubr.f32.mxu0 0.0
    %6605 = vmatmul.mubr.f32.gmra.mxu0 %v5919
    %v6606 = vpop.f32.mrf.mxu0
    %v6607 = vadd.f32 %v5838, %v6606
    %v6608 = vpop.f32.mrf.mxu0
    %v6609 = vadd.f32 %v5839, %v6608
    %6610 = vmatprep.mubr.f32.mxu0 0.0
    %6611 = vmatmul.mubr.f32.gmra.mxu0 %v5922
    %v6612 = vpop.f32.mrf.mxu0
    %v6613 = vadd.f32 %v5854, %v6612
    %v6614 = vpop.f32.mrf.mxu0
    %v6615 = vadd.f32 %v5855, %v6614
    %6616 = vmatprep.mubr.f32.mxu0 0.0
    %6617 = vmatmul.mubr.f32.gmra.mxu0 %v5925
    %v6618 = vpop.f32.mrf.mxu0
    %v6619 = vadd.f32 %v5870, %v6618
    %v6620 = vpop.f32.mrf.mxu0
    %v6621 = vadd.f32 %v5871, %v6620
    %6622 = vmatprep.mubr.f32.mxu0 0.0
    %6623 = vmatmul.mubr.f32.gmra.mxu0 %v5928
    %v6624 = vpop.f32.mrf.mxu0
    %v6625 = vadd.f32 %v5886, %v6624
    %v6626 = vpop.f32.mrf.mxu0
    %v6627 = vadd.f32 %v5887, %v6626
    %6628 = vmatprep.mubr.f32.mxu0 0.0
    %6629 = vmatmul.mubr.f32.gmra.mxu0 %v5931
    %v6630 = vpop.f32.mrf.mxu0
    %v6631 = vadd.f32 %v5902, %v6630
    %v6632 = vpop.f32.mrf.mxu0
    %v6633 = vadd.f32 %v5903, %v6632
    %6634 = vdwg.mxu0
    %6635 = vmatprep.subr.mxu0 0.0
    %6636 = vmatpush1.msra.mxu0 0.0
    %6637 = vmatprep.subr.mxu0 0.0
    %6638 = vmatpush1.msra.mxu0 0.0
    %6639 = vmatprep.subr.mxu0 0.0
    %6640 = vmatpush1.msra.mxu0 0.0
    %6641 = vmatprep.subr.mxu0 0.0
    %6642 = vmatpush1.msra.mxu0 0.0
    %6643 = vmatprep.subr.mxu0 %v5949
    %6644 = vmatpush1.msra.mxu0 %v5946
    %6645 = vmatprep.subr.mxu0 %v5713
    %6646 = vmatpush1.msra.mxu0 %v5712
    %6647 = vmatprep.subr.mxu0 0.0
    %6648 = vmatpush1.msra.mxu0 0.0
    %6649 = vmatprep.subr.mxu0 %v5691
    %6650 = vmatpush1.msra.mxu0 %v5691
    %6651 = vmatprep.subr.mxu0 %v5679
    %6652 = vmatpush1.msra.mxu0 %v5678
    %6653 = vmatprep.subr.mxu0 %v5663
    %6654 = vmatpush1.msra.mxu0 %v5662
    %6655 = vmatprep.subr.mxu0 %v5647
    %6656 = vmatpush1.msra.mxu0 %v5646
    %6657 = vmatprep.subr.mxu0 %v5631
    %6658 = vmatpush1.msra.mxu0 %v5630
    %6659 = vmatprep.subr.mxu0 %v5615
    %6660 = vmatpush1.msra.mxu0 %v5614
    %6661 = vmatprep.subr.mxu0 %v5599
    %6662 = vmatpush1.msra.mxu0 %v5598
    %6663 = vmatprep.subr.mxu0 %v5583
    %6664 = vmatpush1.msra.mxu0 %v5582
    %6665 = vmatprep.subr.mxu0 %v5567
    %6666 = vmatpush1.msra.mxu0 %v5566
    %6667 = vmatprep.subr.mxu0 0.0
    %6668 = vmatpush2.msra.mxu0 0.0
    %6669 = vmatprep.subr.mxu0 0.0
    %6670 = vmatpush2.msra.mxu0 0.0
    %6671 = vmatprep.subr.mxu0 0.0
    %6672 = vmatpush2.msra.mxu0 0.0
    %6673 = vmatprep.subr.mxu0 0.0
    %6674 = vmatpush2.msra.mxu0 0.0
    %6675 = vmatprep.subr.mxu0 0.0
    %6676 = vmatpush2.msra.mxu0 0.0
    %6677 = vmatprep.subr.mxu0 0.0
    %6678 = vmatpush2.msra.mxu0 0.0
    %6679 = vmatprep.subr.mxu0 0.0
    %6680 = vmatpush2.msra.mxu0 0.0
    %6681 = vmatprep.subr.mxu0 0.0
    %6682 = vmatpush2.msra.mxu0 0.0
    %6683 = vmatprep.subr.mxu0 0.0
    %6684 = vmatpush2.msra.mxu0 0.0
    %6685 = vmatprep.subr.mxu0 0.0
    %6686 = vmatpush2.msra.mxu0 0.0
    %6687 = vmatprep.subr.mxu0 0.0
    %6688 = vmatpush2.msra.mxu0 0.0
    %6689 = vmatprep.subr.mxu0 0.0
    %6690 = vmatpush2.msra.mxu0 0.0
    %6691 = vmatprep.subr.mxu0 0.0
    %6692 = vmatpush2.msra.mxu0 0.0
    %6693 = vmatprep.subr.mxu0 0.0
    %6694 = vmatpush2.msra.mxu0 0.0
    %6695 = vmatprep.subr.mxu0 0.0
    %6696 = vmatpush2.msra.mxu0 0.0
    %6697 = vmatprep.subr.mxu0 0.0
    %6698 = vmatpush2.msra.mxu0 0.0
    %6699 = vmatprep.mubr.f32.mxu0 0.0
    %6700 = vmatmul.mubr.f32.gmra.mxu0 %v5910
    %v6701 = vpop.f32.mrf.mxu0
    %v6702 = vadd.f32 %v5792, %v6701
    %v6703 = vpop.f32.mrf.mxu0
    %v6704 = vadd.f32 %v5793, %v6703
    %6705 = vmatprep.mubr.f32.mxu0 0.0
    %6706 = vmatmul.mubr.f32.gmra.mxu0 %v5913
    %v6707 = vpop.f32.mrf.mxu0
    %v6708 = vadd.f32 %v5808, %v6707
    %v6709 = vpop.f32.mrf.mxu0
    %v6710 = vadd.f32 %v5809, %v6709
    %6711 = vmatprep.mubr.f32.mxu0 0.0
    %6712 = vmatmul.mubr.f32.gmra.mxu0 %v5916
    %v6713 = vpop.f32.mrf.mxu0
    %v6714 = vadd.f32 %v5824, %v6713
    %v6715 = vpop.f32.mrf.mxu0
    %v6716 = vadd.f32 %v5825, %v6715
    %6717 = vmatprep.mubr.f32.mxu0 0.0
    %6718 = vmatmul.mubr.f32.gmra.mxu0 %v5919
    %v6719 = vpop.f32.mrf.mxu0
    %v6720 = vadd.f32 %v5840, %v6719
    %v6721 = vpop.f32.mrf.mxu0
    %v6722 = vadd.f32 %v5841, %v6721
    %6723 = vmatprep.mubr.f32.mxu0 0.0
    %6724 = vmatmul.mubr.f32.gmra.mxu0 %v5922
    %v6725 = vpop.f32.mrf.mxu0
    %v6726 = vadd.f32 %v5856, %v6725
    %v6727 = vpop.f32.mrf.mxu0
    %v6728 = vadd.f32 %v5857, %v6727
    %6729 = vmatprep.mubr.f32.mxu0 0.0
    %6730 = vmatmul.mubr.f32.gmra.mxu0 %v5925
    %v6731 = vpop.f32.mrf.mxu0
    %v6732 = vadd.f32 %v5872, %v6731
    %v6733 = vpop.f32.mrf.mxu0
    %v6734 = vadd.f32 %v5873, %v6733
    %6735 = vmatprep.mubr.f32.mxu0 0.0
    %6736 = vmatmul.mubr.f32.gmra.mxu0 %v5928
    %v6737 = vpop.f32.mrf.mxu0
    %v6738 = vadd.f32 %v5888, %v6737
    %v6739 = vpop.f32.mrf.mxu0
    %v6740 = vadd.f32 %v5889, %v6739
    %6741 = vmatprep.mubr.f32.mxu0 0.0
    %6742 = vmatmul.mubr.f32.gmra.mxu0 %v5931
    %v6743 = vpop.f32.mrf.mxu0
    %v6744 = vadd.f32 %v5904, %v6743
    %v6745 = vpop.f32.mrf.mxu0
    %v6746 = vadd.f32 %v5905, %v6745
    %6747 = vdwg.mxu0
    %6748 = vmatprep.subr.mxu0 0.0
    %6749 = vmatpush1.msra.mxu0 0.0
    %6750 = vmatprep.subr.mxu0 0.0
    %6751 = vmatpush1.msra.mxu0 0.0
    %6752 = vmatprep.subr.mxu0 0.0
    %6753 = vmatpush1.msra.mxu0 0.0
    %6754 = vmatprep.subr.mxu0 0.0
    %6755 = vmatpush1.msra.mxu0 0.0
    %6756 = vmatprep.subr.mxu0 %v5955
    %6757 = vmatpush1.msra.mxu0 %v5952
    %6758 = vmatprep.subr.mxu0 %v5715
    %6759 = vmatpush1.msra.mxu0 %v5714
    %6760 = vmatprep.subr.mxu0 0.0
    %6761 = vmatpush1.msra.mxu0 0.0
    %6762 = vmatprep.subr.mxu0 %v5691
    %6763 = vmatpush1.msra.mxu0 %v5691
    %6764 = vmatprep.subr.mxu0 %v5681
    %6765 = vmatpush1.msra.mxu0 %v5680
    %6766 = vmatprep.subr.mxu0 %v5665
    %6767 = vmatpush1.msra.mxu0 %v5664
    %6768 = vmatprep.subr.mxu0 %v5649
    %6769 = vmatpush1.msra.mxu0 %v5648
    %6770 = vmatprep.subr.mxu0 %v5633
    %6771 = vmatpush1.msra.mxu0 %v5632
    %6772 = vmatprep.subr.mxu0 %v5617
    %6773 = vmatpush1.msra.mxu0 %v5616
    %6774 = vmatprep.subr.mxu0 %v5601
    %6775 = vmatpush1.msra.mxu0 %v5600
    %6776 = vmatprep.subr.mxu0 %v5585
    %6777 = vmatpush1.msra.mxu0 %v5584
    %6778 = vmatprep.subr.mxu0 %v5569
    %6779 = vmatpush1.msra.mxu0 %v5568
    %6780 = vmatprep.subr.mxu0 0.0
    %6781 = vmatpush2.msra.mxu0 0.0
    %6782 = vmatprep.subr.mxu0 0.0
    %6783 = vmatpush2.msra.mxu0 0.0
    %6784 = vmatprep.subr.mxu0 0.0
    %6785 = vmatpush2.msra.mxu0 0.0
    %6786 = vmatprep.subr.mxu0 0.0
    %6787 = vmatpush2.msra.mxu0 0.0
    %6788 = vmatprep.subr.mxu0 0.0
    %6789 = vmatpush2.msra.mxu0 0.0
    %6790 = vmatprep.subr.mxu0 0.0
    %6791 = vmatpush2.msra.mxu0 0.0
    %6792 = vmatprep.subr.mxu0 0.0
    %6793 = vmatpush2.msra.mxu0 0.0
    %6794 = vmatprep.subr.mxu0 0.0
    %6795 = vmatpush2.msra.mxu0 0.0
    %6796 = vmatprep.subr.mxu0 0.0
    %6797 = vmatpush2.msra.mxu0 0.0
    %6798 = vmatprep.subr.mxu0 0.0
    %6799 = vmatpush2.msra.mxu0 0.0
    %6800 = vmatprep.subr.mxu0 0.0
    %6801 = vmatpush2.msra.mxu0 0.0
    %6802 = vmatprep.subr.mxu0 0.0
    %6803 = vmatpush2.msra.mxu0 0.0
    %6804 = vmatprep.subr.mxu0 0.0
    %6805 = vmatpush2.msra.mxu0 0.0
    %6806 = vmatprep.subr.mxu0 0.0
    %6807 = vmatpush2.msra.mxu0 0.0
    %6808 = vmatprep.subr.mxu0 0.0
    %6809 = vmatpush2.msra.mxu0 0.0
    %6810 = vmatprep.subr.mxu0 0.0
    %6811 = vmatpush2.msra.mxu0 0.0
    %6812 = vmatprep.mubr.f32.mxu0 0.0
    %6813 = vmatmul.mubr.f32.gmra.mxu0 %v5910
    %v6814 = vpop.f32.mrf.mxu0
    %v6815 = vadd.f32 %v5794, %v6814
    %v6816 = vpop.f32.mrf.mxu0
    %v6817 = vadd.f32 %v5795, %v6816
    %6818 = vmatprep.mubr.f32.mxu0 0.0
    %6819 = vmatmul.mubr.f32.gmra.mxu0 %v5913
    %v6820 = vpop.f32.mrf.mxu0
    %v6821 = vadd.f32 %v5810, %v6820
    %v6822 = vpop.f32.mrf.mxu0
    %v6823 = vadd.f32 %v5811, %v6822
    %6824 = vmatprep.mubr.f32.mxu0 0.0
    %6825 = vmatmul.mubr.f32.gmra.mxu0 %v5916
    %v6826 = vpop.f32.mrf.mxu0
    %v6827 = vadd.f32 %v5826, %v6826
    %v6828 = vpop.f32.mrf.mxu0
    %v6829 = vadd.f32 %v5827, %v6828
    %6830 = vmatprep.mubr.f32.mxu0 0.0
    %6831 = vmatmul.mubr.f32.gmra.mxu0 %v5919
    %v6832 = vpop.f32.mrf.mxu0
    %v6833 = vadd.f32 %v5842, %v6832
    %v6834 = vpop.f32.mrf.mxu0
    %v6835 = vadd.f32 %v5843, %v6834
    %6836 = vmatprep.mubr.f32.mxu0 0.0
    %6837 = vmatmul.mubr.f32.gmra.mxu0 %v5922
    %v6838 = vpop.f32.mrf.mxu0
    %v6839 = vadd.f32 %v5858, %v6838
    %v6840 = vpop.f32.mrf.mxu0
    %v6841 = vadd.f32 %v5859, %v6840
    %6842 = vmatprep.mubr.f32.mxu0 0.0
    %6843 = vmatmul.mubr.f32.gmra.mxu0 %v5925
    %v6844 = vpop.f32.mrf.mxu0
    %v6845 = vadd.f32 %v5874, %v6844
    %v6846 = vpop.f32.mrf.mxu0
    %v6847 = vadd.f32 %v5875, %v6846
    %6848 = vmatprep.mubr.f32.mxu0 0.0
    %6849 = vmatmul.mubr.f32.gmra.mxu0 %v5928
    %v6850 = vpop.f32.mrf.mxu0
    %v6851 = vadd.f32 %v5890, %v6850
    %v6852 = vpop.f32.mrf.mxu0
    %v6853 = vadd.f32 %v5891, %v6852
    %6854 = vmatprep.mubr.f32.mxu0 0.0
    %6855 = vmatmul.mubr.f32.gmra.mxu0 %v5931
    %v6856 = vpop.f32.mrf.mxu0
    %v6857 = vadd.f32 %v5906, %v6856
    %v6858 = vpop.f32.mrf.mxu0
    %v6859 = vadd.f32 %v5907, %v6858
    %6860 = vdwg.mxu0
    %v6861 = vmul.f32 %v6024, 100.0
    %v6862 = vmul.f32 %v6026, 100.0
    %v6863 = vmul.f32 %v6137, 100.0
    %v6864 = vmul.f32 %v6139, 100.0
    %v6865 = vmul.f32 %v6030, 100.0
    %v6866 = vmul.f32 %v6032, 100.0
    %v6867 = vmul.f32 %v6143, 100.0
    %v6868 = vmul.f32 %v6145, 100.0
    %v6869 = vmul.f32 %v6036, 100.0
    %v6870 = vmul.f32 %v6038, 100.0
    %v6871 = vmul.f32 %v6149, 100.0
    %v6872 = vmul.f32 %v6151, 100.0
    %v6873 = vmul.f32 %v6042, 100.0
    %v6874 = vmul.f32 %v6044, 100.0
    %v6875 = vmul.f32 %v6155, 100.0
    %v6876 = vmul.f32 %v6157, 100.0
    %v6877 = vmul.f32 %v6048, 100.0
    %v6878 = vmul.f32 %v6050, 100.0
    %v6879 = vmul.f32 %v6161, 100.0
    %v6880 = vmul.f32 %v6163, 100.0
    %v6881 = vmul.f32 %v6054, 100.0
    %v6882 = vmul.f32 %v6056, 100.0
    %v6883 = vmul.f32 %v6167, 100.0
    %v6884 = vmul.f32 %v6169, 100.0
    %v6885 = vmul.f32 %v6060, 100.0
    %v6886 = vmul.f32 %v6062, 100.0
    %v6887 = vmul.f32 %v6173, 100.0
    %v6888 = vmul.f32 %v6175, 100.0
    %v6889 = vmul.f32 %v6066, 100.0
    %v6890 = vmul.f32 %v6068, 100.0
    %v6891 = vmul.f32 %v6179, 100.0
    %v6892 = vmul.f32 %v6181, 100.0
    %v6893 = vmin.f32 %v6861, 20.0
    %v6894 = vmin.f32 %v6862, 20.0
    %v6895 = vmin.f32 %v6863, 20.0
    %v6896 = vmin.f32 %v6864, 20.0
    %v6897 = vmin.f32 %v6865, 20.0
    %v6898 = vmin.f32 %v6866, 20.0
    %v6899 = vmin.f32 %v6867, 20.0
    %v6900 = vmin.f32 %v6868, 20.0
    %v6901 = vmin.f32 %v6869, 20.0
    %v6902 = vmin.f32 %v6870, 20.0
    %v6903 = vmin.f32 %v6871, 20.0
    %v6904 = vmin.f32 %v6872, 20.0
    %v6905 = vmin.f32 %v6873, 20.0
    %v6906 = vmin.f32 %v6874, 20.0
    %v6907 = vmin.f32 %v6875, 20.0
    %v6908 = vmin.f32 %v6876, 20.0
    %v6909 = vmin.f32 %v6877, 20.0
    %v6910 = vmin.f32 %v6878, 20.0
    %v6911 = vmin.f32 %v6879, 20.0
    %v6912 = vmin.f32 %v6880, 20.0
    %v6913 = vmin.f32 %v6881, 20.0
    %v6914 = vmin.f32 %v6882, 20.0
    %v6915 = vmin.f32 %v6883, 20.0
    %v6916 = vmin.f32 %v6884, 20.0
    %v6917 = vmin.f32 %v6885, 20.0
    %v6918 = vmin.f32 %v6886, 20.0
    %v6919 = vmin.f32 %v6887, 20.0
    %v6920 = vmin.f32 %v6888, 20.0
    %v6921 = vmin.f32 %v6889, 20.0
    %v6922 = vmin.f32 %v6890, 20.0
    %v6923 = vmin.f32 %v6891, 20.0
    %v6924 = vmin.f32 %v6892, 20.0
    %v6925 = vmul.f32 %v6893, 1.442695
    %v6926 = vpow.pop %v6925
    %v6927 = vmul.f32 %v6894, 1.442695
    %v6928 = vpow.pop %v6927
    %v6929 = vmul.f32 %v6895, 1.442695
    %v6930 = vpow.pop %v6929
    %v6931 = vmul.f32 %v6896, 1.442695
    %v6932 = vpow.pop %v6931
    %v6933 = vmul.f32 %v6897, 1.442695
    %v6934 = vpow.pop %v6933
    %v6935 = vmul.f32 %v6898, 1.442695
    %v6936 = vpow.pop %v6935
    %v6937 = vmul.f32 %v6899, 1.442695
    %v6938 = vpow.pop %v6937
    %v6939 = vmul.f32 %v6900, 1.442695
    %v6940 = vpow.pop %v6939
    %v6941 = vmul.f32 %v6901, 1.442695
    %v6942 = vpow.pop %v6941
    %v6943 = vmul.f32 %v6902, 1.442695
    %v6944 = vpow.pop %v6943
    %v6945 = vmul.f32 %v6903, 1.442695
    %v6946 = vpow.pop %v6945
    %v6947 = vmul.f32 %v6904, 1.442695
    %v6948 = vpow.pop %v6947
    %v6949 = vmul.f32 %v6905, 1.442695
    %v6950 = vpow.pop %v6949
    %v6951 = vmul.f32 %v6906, 1.442695
    %v6952 = vpow.pop %v6951
    %v6953 = vmul.f32 %v6907, 1.442695
    %v6954 = vpow.pop %v6953
    %v6955 = vmul.f32 %v6908, 1.442695
    %v6956 = vpow.pop %v6955
    %v6957 = vmul.f32 %v6909, 1.442695
    %v6958 = vpow.pop %v6957
    %v6959 = vmul.f32 %v6910, 1.442695
    %v6960 = vpow.pop %v6959
    %v6961 = vmul.f32 %v6911, 1.442695
    %v6962 = vpow.pop %v6961
    %v6963 = vmul.f32 %v6912, 1.442695
    %v6964 = vpow.pop %v6963
    %v6965 = vmul.f32 %v6913, 1.442695
    %v6966 = vpow.pop %v6965
    %v6967 = vmul.f32 %v6914, 1.442695
    %v6968 = vpow.pop %v6967
    %v6969 = vmul.f32 %v6915, 1.442695
    %v6970 = vpow.pop %v6969
    %v6971 = vmul.f32 %v6916, 1.442695
    %v6972 = vpow.pop %v6971
    %v6973 = vmul.f32 %v6917, 1.442695
    %v6974 = vpow.pop %v6973
    %v6975 = vmul.f32 %v6918, 1.442695
    %v6976 = vpow.pop %v6975
    %v6977 = vmul.f32 %v6919, 1.442695
    %v6978 = vpow.pop %v6977
    %v6979 = vmul.f32 %v6920, 1.442695
    %v6980 = vpow.pop %v6979
    %v6981 = vmul.f32 %v6921, 1.442695
    %v6982 = vpow.pop %v6981
    %v6983 = vmul.f32 %v6922, 1.442695
    %v6984 = vpow.pop %v6983
    %v6985 = vmul.f32 %v6923, 1.442695
    %v6986 = vpow.pop %v6985
    %v6987 = vmul.f32 %v6924, 1.442695
    %v6988 = vpow.pop %v6987
    %vm6989 = vcmp.gt.f32.partialorder %v6861, 20.0
    %vm6990 = vcmp.gt.f32.partialorder %v6862, 20.0
    %vm6991 = vcmp.gt.f32.partialorder %v6863, 20.0
    %vm6992 = vcmp.gt.f32.partialorder %v6864, 20.0
    %vm6993 = vcmp.gt.f32.partialorder %v6865, 20.0
    %vm6994 = vcmp.gt.f32.partialorder %v6866, 20.0
    %vm6995 = vcmp.gt.f32.partialorder %v6867, 20.0
    %vm6996 = vcmp.gt.f32.partialorder %v6868, 20.0
    %vm6997 = vcmp.gt.f32.partialorder %v6869, 20.0
    %vm6998 = vcmp.gt.f32.partialorder %v6870, 20.0
    %vm6999 = vcmp.gt.f32.partialorder %v6871, 20.0
    %vm7000 = vcmp.gt.f32.partialorder %v6872, 20.0
    %vm7001 = vcmp.gt.f32.partialorder %v6873, 20.0
    %vm7002 = vcmp.gt.f32.partialorder %v6874, 20.0
    %vm7003 = vcmp.gt.f32.partialorder %v6875, 20.0
    %vm7004 = vcmp.gt.f32.partialorder %v6876, 20.0
    %vm7005 = vcmp.gt.f32.partialorder %v6877, 20.0
    %vm7006 = vcmp.gt.f32.partialorder %v6878, 20.0
    %vm7007 = vcmp.gt.f32.partialorder %v6879, 20.0
    %vm7008 = vcmp.gt.f32.partialorder %v6880, 20.0
    %vm7009 = vcmp.gt.f32.partialorder %v6881, 20.0
    %vm7010 = vcmp.gt.f32.partialorder %v6882, 20.0
    %vm7011 = vcmp.gt.f32.partialorder %v6883, 20.0
    %vm7012 = vcmp.gt.f32.partialorder %v6884, 20.0
    %vm7013 = vcmp.gt.f32.partialorder %v6885, 20.0
    %vm7014 = vcmp.gt.f32.partialorder %v6886, 20.0
    %vm7015 = vcmp.gt.f32.partialorder %v6887, 20.0
    %vm7016 = vcmp.gt.f32.partialorder %v6888, 20.0
    %vm7017 = vcmp.gt.f32.partialorder %v6889, 20.0
    %vm7018 = vcmp.gt.f32.partialorder %v6890, 20.0
    %vm7019 = vcmp.gt.f32.partialorder %v6891, 20.0
    %vm7020 = vcmp.gt.f32.partialorder %v6892, 20.0
    %v7021 = vadd.f32 %v6926, 1.0
    %v7022 = vadd.f32 %v6928, 1.0
    %v7023 = vadd.f32 %v6930, 1.0
    %v7024 = vadd.f32 %v6932, 1.0
    %v7025 = vadd.f32 %v6934, 1.0
    %v7026 = vadd.f32 %v6936, 1.0
    %v7027 = vadd.f32 %v6938, 1.0
    %v7028 = vadd.f32 %v6940, 1.0
    %v7029 = vadd.f32 %v6942, 1.0
    %v7030 = vadd.f32 %v6944, 1.0
    %v7031 = vadd.f32 %v6946, 1.0
    %v7032 = vadd.f32 %v6948, 1.0
    %v7033 = vadd.f32 %v6950, 1.0
    %v7034 = vadd.f32 %v6952, 1.0
    %v7035 = vadd.f32 %v6954, 1.0
    %v7036 = vadd.f32 %v6956, 1.0
    %v7037 = vadd.f32 %v6958, 1.0
    %v7038 = vadd.f32 %v6960, 1.0
    %v7039 = vadd.f32 %v6962, 1.0
    %v7040 = vadd.f32 %v6964, 1.0
    %v7041 = vadd.f32 %v6966, 1.0
    %v7042 = vadd.f32 %v6968, 1.0
    %v7043 = vadd.f32 %v6970, 1.0
    %v7044 = vadd.f32 %v6972, 1.0
    %v7045 = vadd.f32 %v6974, 1.0
    %v7046 = vadd.f32 %v6976, 1.0
    %v7047 = vadd.f32 %v6978, 1.0
    %v7048 = vadd.f32 %v6980, 1.0
    %v7049 = vadd.f32 %v6982, 1.0
    %v7050 = vadd.f32 %v6984, 1.0
    %v7051 = vadd.f32 %v6986, 1.0
    %v7052 = vadd.f32 %v6988, 1.0
    %v7053 = vlog2.pop %v7021
    %v7054 = vmul.f32 %v7053, 0.6931472
    %v7055 = vlog2.pop %v7022
    %v7056 = vmul.f32 %v7055, 0.6931472
    %v7057 = vlog2.pop %v7023
    %v7058 = vmul.f32 %v7057, 0.6931472
    %v7059 = vlog2.pop %v7024
    %v7060 = vmul.f32 %v7059, 0.6931472
    %v7061 = vlog2.pop %v7025
    %v7062 = vmul.f32 %v7061, 0.6931472
    %v7063 = vlog2.pop %v7026
    %v7064 = vmul.f32 %v7063, 0.6931472
    %v7065 = vlog2.pop %v7027
    %v7066 = vmul.f32 %v7065, 0.6931472
    %v7067 = vlog2.pop %v7028
    %v7068 = vmul.f32 %v7067, 0.6931472
    %v7069 = vlog2.pop %v7029
    %v7070 = vmul.f32 %v7069, 0.6931472
    %v7071 = vlog2.pop %v7030
    %v7072 = vmul.f32 %v7071, 0.6931472
    %v7073 = vlog2.pop %v7031
    %v7074 = vmul.f32 %v7073, 0.6931472
    %v7075 = vlog2.pop %v7032
    %v7076 = vmul.f32 %v7075, 0.6931472
    %v7077 = vlog2.pop %v7033
    %v7078 = vmul.f32 %v7077, 0.6931472
    %v7079 = vlog2.pop %v7034
    %v7080 = vmul.f32 %v7079, 0.6931472
    %v7081 = vlog2.pop %v7035
    %v7082 = vmul.f32 %v7081, 0.6931472
    %v7083 = vlog2.pop %v7036
    %v7084 = vmul.f32 %v7083, 0.6931472
    %v7085 = vlog2.pop %v7037
    %v7086 = vmul.f32 %v7085, 0.6931472
    %v7087 = vlog2.pop %v7038
    %v7088 = vmul.f32 %v7087, 0.6931472
    %v7089 = vlog2.pop %v7039
    %v7090 = vmul.f32 %v7089, 0.6931472
    %v7091 = vlog2.pop %v7040
    %v7092 = vmul.f32 %v7091, 0.6931472
    %v7093 = vlog2.pop %v7041
    %v7094 = vmul.f32 %v7093, 0.6931472
    %v7095 = vlog2.pop %v7042
    %v7096 = vmul.f32 %v7095, 0.6931472
    %v7097 = vlog2.pop %v7043
    %v7098 = vmul.f32 %v7097, 0.6931472
    %v7099 = vlog2.pop %v7044
    %v7100 = vmul.f32 %v7099, 0.6931472
    %v7101 = vlog2.pop %v7045
    %v7102 = vmul.f32 %v7101, 0.6931472
    %v7103 = vlog2.pop %v7046
    %v7104 = vmul.f32 %v7103, 0.6931472
    %v7105 = vlog2.pop %v7047
    %v7106 = vmul.f32 %v7105, 0.6931472
    %v7107 = vlog2.pop %v7048
    %v7108 = vmul.f32 %v7107, 0.6931472
    %v7109 = vlog2.pop %v7049
    %v7110 = vmul.f32 %v7109, 0.6931472
    %v7111 = vlog2.pop %v7050
    %v7112 = vmul.f32 %v7111, 0.6931472
    %v7113 = vlog2.pop %v7051
    %v7114 = vmul.f32 %v7113, 0.6931472
    %v7115 = vlog2.pop %v7052
    %v7116 = vmul.f32 %v7115, 0.6931472
    %v7117 = vmul.f32 %v7054, 0.01
    %v7118 = vmul.f32 %v7056, 0.01
    %v7119 = vmul.f32 %v7058, 0.01
    %v7120 = vmul.f32 %v7060, 0.01
    %v7121 = vmul.f32 %v7062, 0.01
    %v7122 = vmul.f32 %v7064, 0.01
    %v7123 = vmul.f32 %v7066, 0.01
    %v7124 = vmul.f32 %v7068, 0.01
    %v7125 = vmul.f32 %v7070, 0.01
    %v7126 = vmul.f32 %v7072, 0.01
    %v7127 = vmul.f32 %v7074, 0.01
    %v7128 = vmul.f32 %v7076, 0.01
    %v7129 = vmul.f32 %v7078, 0.01
    %v7130 = vmul.f32 %v7080, 0.01
    %v7131 = vmul.f32 %v7082, 0.01
    %v7132 = vmul.f32 %v7084, 0.01
    %v7133 = vmul.f32 %v7086, 0.01
    %v7134 = vmul.f32 %v7088, 0.01
    %v7135 = vmul.f32 %v7090, 0.01
    %v7136 = vmul.f32 %v7092, 0.01
    %v7137 = vmul.f32 %v7094, 0.01
    %v7138 = vmul.f32 %v7096, 0.01
    %v7139 = vmul.f32 %v7098, 0.01
    %v7140 = vmul.f32 %v7100, 0.01
    %v7141 = vmul.f32 %v7102, 0.01
    %v7142 = vmul.f32 %v7104, 0.01
    %v7143 = vmul.f32 %v7106, 0.01
    %v7144 = vmul.f32 %v7108, 0.01
    %v7145 = vmul.f32 %v7110, 0.01
    %v7146 = vmul.f32 %v7112, 0.01
    %v7147 = vmul.f32 %v7114, 0.01
    %v7148 = vmul.f32 %v7116, 0.01
    %v7149 = vsel %vm6989, %v6024, %v7117
    %v7150 = vsel %vm6990, %v6026, %v7118
    %v7151 = vsel %vm6991, %v6137, %v7119
    %v7152 = vsel %vm6992, %v6139, %v7120
    %v7153 = vsel %vm6993, %v6030, %v7121
    %v7154 = vsel %vm6994, %v6032, %v7122
    %v7155 = vsel %vm6995, %v6143, %v7123
    %v7156 = vsel %vm6996, %v6145, %v7124
    %v7157 = vsel %vm6997, %v6036, %v7125
    %v7158 = vsel %vm6998, %v6038, %v7126
    %v7159 = vsel %vm6999, %v6149, %v7127
    %v7160 = vsel %vm7000, %v6151, %v7128
    %v7161 = vsel %vm7001, %v6042, %v7129
    %v7162 = vsel %vm7002, %v6044, %v7130
    %v7163 = vsel %vm7003, %v6155, %v7131
    %v7164 = vsel %vm7004, %v6157, %v7132
    %v7165 = vsel %vm7005, %v6048, %v7133
    %v7166 = vsel %vm7006, %v6050, %v7134
    %v7167 = vsel %vm7007, %v6161, %v7135
    %v7168 = vsel %vm7008, %v6163, %v7136
    %v7169 = vsel %vm7009, %v6054, %v7137
    %v7170 = vsel %vm7010, %v6056, %v7138
    %v7171 = vsel %vm7011, %v6167, %v7139
    %v7172 = vsel %vm7012, %v6169, %v7140
    %v7173 = vsel %vm7013, %v6060, %v7141
    %v7174 = vsel %vm7014, %v6062, %v7142
    %v7175 = vsel %vm7015, %v6173, %v7143
    %v7176 = vsel %vm7016, %v6175, %v7144
    %v7177 = vsel %vm7017, %v6066, %v7145
    %v7178 = vsel %vm7018, %v6068, %v7146
    %v7179 = vsel %vm7019, %v6179, %v7147
    %v7180 = vsel %vm7020, %v6181, %v7148
    %v7181 = vrcp.pop %v7021
    %v7182 = vmul.f32 %v6926, %v7181
    %v7183 = vrcp.pop %v7022
    %v7184 = vmul.f32 %v6928, %v7183
    %v7185 = vrcp.pop %v7023
    %v7186 = vmul.f32 %v6930, %v7185
    %v7187 = vrcp.pop %v7024
    %v7188 = vmul.f32 %v6932, %v7187
    %v7189 = vrcp.pop %v7025
    %v7190 = vmul.f32 %v6934, %v7189
    %v7191 = vrcp.pop %v7026
    %v7192 = vmul.f32 %v6936, %v7191
    %v7193 = vrcp.pop %v7027
    %v7194 = vmul.f32 %v6938, %v7193
    %v7195 = vrcp.pop %v7028
    %v7196 = vmul.f32 %v6940, %v7195
    %v7197 = vrcp.pop %v7029
    %v7198 = vmul.f32 %v6942, %v7197
    %v7199 = vrcp.pop %v7030
    %v7200 = vmul.f32 %v6944, %v7199
    %v7201 = vrcp.pop %v7031
    %v7202 = vmul.f32 %v6946, %v7201
    %v7203 = vrcp.pop %v7032
    %v7204 = vmul.f32 %v6948, %v7203
    %v7205 = vrcp.pop %v7033
    %v7206 = vmul.f32 %v6950, %v7205
    %v7207 = vrcp.pop %v7034
    %v7208 = vmul.f32 %v6952, %v7207
    %v7209 = vrcp.pop %v7035
    %v7210 = vmul.f32 %v6954, %v7209
    %v7211 = vrcp.pop %v7036
    %v7212 = vmul.f32 %v6956, %v7211
    %v7213 = vrcp.pop %v7037
    %v7214 = vmul.f32 %v6958, %v7213
    %v7215 = vrcp.pop %v7038
    %v7216 = vmul.f32 %v6960, %v7215
    %v7217 = vrcp.pop %v7039
    %v7218 = vmul.f32 %v6962, %v7217
    %v7219 = vrcp.pop %v7040
    %v7220 = vmul.f32 %v6964, %v7219
    %v7221 = vrcp.pop %v7041
    %v7222 = vmul.f32 %v6966, %v7221
    %v7223 = vrcp.pop %v7042
    %v7224 = vmul.f32 %v6968, %v7223
    %v7225 = vrcp.pop %v7043
    %v7226 = vmul.f32 %v6970, %v7225
    %v7227 = vrcp.pop %v7044
    %v7228 = vmul.f32 %v6972, %v7227
    %v7229 = vrcp.pop %v7045
    %v7230 = vmul.f32 %v6974, %v7229
    %v7231 = vrcp.pop %v7046
    %v7232 = vmul.f32 %v6976, %v7231
    %v7233 = vrcp.pop %v7047
    %v7234 = vmul.f32 %v6978, %v7233
    %v7235 = vrcp.pop %v7048
    %v7236 = vmul.f32 %v6980, %v7235
    %v7237 = vrcp.pop %v7049
    %v7238 = vmul.f32 %v6982, %v7237
    %v7239 = vrcp.pop %v7050
    %v7240 = vmul.f32 %v6984, %v7239
    %v7241 = vrcp.pop %v7051
    %v7242 = vmul.f32 %v6986, %v7241
    %v7243 = vrcp.pop %v7052
    %v7244 = vmul.f32 %v6988, %v7243
    %v7245 = vsel %vm6989, 1.0, %v7182
    %v7246 = vsel %vm6990, 1.0, %v7184
    %v7247 = vsel %vm6991, 1.0, %v7186
    %v7248 = vsel %vm6992, 1.0, %v7188
    %v7249 = vsel %vm6993, 1.0, %v7190
    %v7250 = vsel %vm6994, 1.0, %v7192
    %v7251 = vsel %vm6995, 1.0, %v7194
    %v7252 = vsel %vm6996, 1.0, %v7196
    %v7253 = vsel %vm6997, 1.0, %v7198
    %v7254 = vsel %vm6998, 1.0, %v7200
    %v7255 = vsel %vm6999, 1.0, %v7202
    %v7256 = vsel %vm7000, 1.0, %v7204
    %v7257 = vsel %vm7001, 1.0, %v7206
    %v7258 = vsel %vm7002, 1.0, %v7208
    %v7259 = vsel %vm7003, 1.0, %v7210
    %v7260 = vsel %vm7004, 1.0, %v7212
    %v7261 = vsel %vm7005, 1.0, %v7214
    %v7262 = vsel %vm7006, 1.0, %v7216
    %v7263 = vsel %vm7007, 1.0, %v7218
    %v7264 = vsel %vm7008, 1.0, %v7220
    %v7265 = vsel %vm7009, 1.0, %v7222
    %v7266 = vsel %vm7010, 1.0, %v7224
    %v7267 = vsel %vm7011, 1.0, %v7226
    %v7268 = vsel %vm7012, 1.0, %v7228
    %v7269 = vsel %vm7013, 1.0, %v7230
    %v7270 = vsel %vm7014, 1.0, %v7232
    %v7271 = vsel %vm7015, 1.0, %v7234
    %v7272 = vsel %vm7016, 1.0, %v7236
    %v7273 = vsel %vm7017, 1.0, %v7238
    %v7274 = vsel %vm7018, 1.0, %v7240
    %v7275 = vsel %vm7019, 1.0, %v7242
    %v7276 = vsel %vm7020, 1.0, %v7244
    %v7277 = vmul.f32 %v6250, %v7245
    %v7278 = vmul.f32 %v6252, %v7246
    %v7279 = vmul.f32 %v6363, %v7247
    %v7280 = vmul.f32 %v6365, %v7248
    %v7281 = vmul.f32 %v6476, %v7245
    %v7282 = vmul.f32 %v6478, %v7246
    %v7283 = vmul.f32 %v6589, %v7247
    %v7284 = vmul.f32 %v6591, %v7248
    %v7285 = vmul.f32 %v6702, %v7245
    %v7286 = vmul.f32 %v6704, %v7246
    %v7287 = vmul.f32 %v6815, %v7247
    %v7288 = vmul.f32 %v6817, %v7248
    %v7289 = vmul.f32 %v6256, %v7249
    %v7290 = vmul.f32 %v6258, %v7250
    %v7291 = vmul.f32 %v6369, %v7251
    %v7292 = vmul.f32 %v6371, %v7252
    %v7293 = vmul.f32 %v6482, %v7249
    %v7294 = vmul.f32 %v6484, %v7250
    %v7295 = vmul.f32 %v6595, %v7251
    %v7296 = vmul.f32 %v6597, %v7252
    %v7297 = vmul.f32 %v6708, %v7249
    %v7298 = vmul.f32 %v6710, %v7250
    %v7299 = vmul.f32 %v6821, %v7251
    %v7300 = vmul.f32 %v6823, %v7252
    %v7301 = vmul.f32 %v6262, %v7253
    %v7302 = vmul.f32 %v6264, %v7254
    %v7303 = vmul.f32 %v6375, %v7255
    %v7304 = vmul.f32 %v6377, %v7256
    %v7305 = vmul.f32 %v6488, %v7253
    %v7306 = vmul.f32 %v6490, %v7254
    %v7307 = vmul.f32 %v6601, %v7255
    %v7308 = vmul.f32 %v6603, %v7256
    %v7309 = vmul.f32 %v6714, %v7253
    %v7310 = vmul.f32 %v6716, %v7254
    %v7311 = vmul.f32 %v6827, %v7255
    %v7312 = vmul.f32 %v6829, %v7256
    %v7313 = vmul.f32 %v6268, %v7257
    %v7314 = vmul.f32 %v6270, %v7258
    %v7315 = vmul.f32 %v6381, %v7259
    %v7316 = vmul.f32 %v6383, %v7260
    %v7317 = vmul.f32 %v6494, %v7257
    %v7318 = vmul.f32 %v6496, %v7258
    %v7319 = vmul.f32 %v6607, %v7259
    %v7320 = vmul.f32 %v6609, %v7260
    %v7321 = vmul.f32 %v6720, %v7257
    %v7322 = vmul.f32 %v6722, %v7258
    %v7323 = vmul.f32 %v6833, %v7259
    %v7324 = vmul.f32 %v6835, %v7260
    %v7325 = vmul.f32 %v6274, %v7261
    %v7326 = vmul.f32 %v6276, %v7262
    %v7327 = vmul.f32 %v6387, %v7263
    %v7328 = vmul.f32 %v6389, %v7264
    %v7329 = vmul.f32 %v6500, %v7261
    %v7330 = vmul.f32 %v6502, %v7262
    %v7331 = vmul.f32 %v6613, %v7263
    %v7332 = vmul.f32 %v6615, %v7264
    %v7333 = vmul.f32 %v6726, %v7261
    %v7334 = vmul.f32 %v6728, %v7262
    %v7335 = vmul.f32 %v6839, %v7263
    %v7336 = vmul.f32 %v6841, %v7264
    %v7337 = vmul.f32 %v6280, %v7265
    %v7338 = vmul.f32 %v6282, %v7266
    %v7339 = vmul.f32 %v6393, %v7267
    %v7340 = vmul.f32 %v6395, %v7268
    %v7341 = vmul.f32 %v6506, %v7265
    %v7342 = vmul.f32 %v6508, %v7266
    %v7343 = vmul.f32 %v6619, %v7267
    %v7344 = vmul.f32 %v6621, %v7268
    %v7345 = vmul.f32 %v6732, %v7265
    %v7346 = vmul.f32 %v6734, %v7266
    %v7347 = vmul.f32 %v6845, %v7267
    %v7348 = vmul.f32 %v6847, %v7268
    %v7349 = vmul.f32 %v6286, %v7269
    %v7350 = vmul.f32 %v6288, %v7270
    %v7351 = vmul.f32 %v6399, %v7271
    %v7352 = vmul.f32 %v6401, %v7272
    %v7353 = vmul.f32 %v6512, %v7269
    %v7354 = vmul.f32 %v6514, %v7270
    %v7355 = vmul.f32 %v6625, %v7271
    %v7356 = vmul.f32 %v6627, %v7272
    %v7357 = vmul.f32 %v6738, %v7269
    %v7358 = vmul.f32 %v6740, %v7270
    %v7359 = vmul.f32 %v6851, %v7271
    %v7360 = vmul.f32 %v6853, %v7272
    %v7361 = vmul.f32 %v6292, %v7273
    %v7362 = vmul.f32 %v6294, %v7274
    %v7363 = vmul.f32 %v6405, %v7275
    %v7364 = vmul.f32 %v6407, %v7276
    %v7365 = vmul.f32 %v6518, %v7273
    %v7366 = vmul.f32 %v6520, %v7274
    %v7367 = vmul.f32 %v6631, %v7275
    %v7368 = vmul.f32 %v6633, %v7276
    %v7369 = vmul.f32 %v6744, %v7273
    %v7370 = vmul.f32 %v6746, %v7274
    %v7371 = vmul.f32 %v6857, %v7275
    %v7372 = vmul.f32 %v6859, %v7276
    %v7373 = vld [vmem:[%s7] sm:$0xff]
    %v7374 = vld [vmem:[%s7 + $0x8] sm:$0xff]
    %v7375 = vld [vmem:[%s7 + $0x10] sm:$0xff]
    %v7376 = vld [vmem:[%s7 + $0x18] sm:$0xff]
    %v7377 = vld [vmem:[%s7 + $0x20] sm:$0xff]
    %v7378 = vld [vmem:[%s7 + $0x28] sm:$0xff]
    %v7379 = vld [vmem:[%s7 + $0x30] sm:$0xff]
    %v7380 = vld [vmem:[%s7 + $0x38] sm:$0xff]
    %v7381 = vld [vmem:[%s7 + $0x40] sm:$0x1]
    %v7382 = vld [vmem:[%s8] sm:$0xff]
    %v7383 = vld [vmem:[%s8 + $0x8] sm:$0xff]
    %v7384 = vld [vmem:[%s8 + $0x10] sm:$0xff]
    %v7385 = vld [vmem:[%s8 + $0x18] sm:$0xff]
    %v7386 = vld [vmem:[%s8 + $0x20] sm:$0xff]
    %v7387 = vld [vmem:[%s8 + $0x28] sm:$0xff]
    %v7388 = vld [vmem:[%s8 + $0x30] sm:$0xff]
    %v7389 = vld [vmem:[%s8 + $0x38] sm:$0xff]
    %v7390 = vld [vmem:[%s8 + $0x40] sm:$0x1]
    %7392 = vset.pattern.permute.xlu0 0
    %7393 = vperm.xlu0 %7392, %v7382
    %v7394 = vpop.permute.xlu0 %7393
    %7397 = vset.pattern.permute.xlu0 0
    %7398 = vperm.xlu0 %7397, %v7383
    %v7399 = vpop.permute.xlu0 %7398
    %7402 = vset.pattern.permute.xlu0 0
    %7403 = vperm.xlu0 %7402, %v7384
    %v7404 = vpop.permute.xlu0 %7403
    %7407 = vset.pattern.permute.xlu0 0
    %7408 = vperm.xlu0 %7407, %v7385
    %v7409 = vpop.permute.xlu0 %7408
    %7412 = vset.pattern.permute.xlu0 0
    %7413 = vperm.xlu0 %7412, %v7386
    %v7414 = vpop.permute.xlu0 %7413
    %7417 = vset.pattern.permute.xlu0 0
    %7418 = vperm.xlu0 %7417, %v7387
    %v7419 = vpop.permute.xlu0 %7418
    %7422 = vset.pattern.permute.xlu0 0
    %7423 = vperm.xlu0 %7422, %v7388
    %v7424 = vpop.permute.xlu0 %7423
    %7427 = vset.pattern.permute.xlu0 0
    %7428 = vperm.xlu0 %7427, %v7389
    %v7429 = vpop.permute.xlu0 %7428
    %7432 = vset.pattern.permute.xlu0 0
    %7433 = vperm.xlu0 %7432, %v7390
    %v7434 = vpop.permute.xlu0 %7433
    %v7436 = vmul.f32 %v7394, %v2269
    %v7437 = vmul.f32 %v7394, %v2270
    %v7438 = vmul.f32 %v7394, %v2271
    %v7439 = vmul.f32 %v7394, %v2272
    %v7440 = vmul.f32 %v7394, %v2273
    %v7441 = vmul.f32 %v7394, %v2274
    %v7442 = vmul.f32 %v7394, %v2275
    %v7443 = vmul.f32 %v7394, %v2276
    %v7444 = vmul.f32 %v7394, %v2277
    %v7445 = vmul.f32 %v7394, %v2278
    %v7446 = vmul.f32 %v7394, %v2279
    %v7447 = vmul.f32 %v7394, %v2280
    %v7448 = vmul.f32 %v7394, %v2281
    %v7449 = vmul.f32 %v7394, %v2282
    %v7450 = vmul.f32 %v7394, %v2283
    %v7451 = vmul.f32 %v7394, %v2284
    %v7452 = vmul.f32 %v7399, %v2269
    %v7453 = vmul.f32 %v7399, %v2270
    %v7454 = vmul.f32 %v7399, %v2271
    %v7455 = vmul.f32 %v7399, %v2272
    %v7456 = vmul.f32 %v7404, %v2269
    %v7457 = vmul.f32 %v7404, %v2270
    %v7458 = vmul.f32 %v7404, %v2271
    %v7459 = vmul.f32 %v7404, %v2272
    %v7460 = vmul.f32 %v7409, %v2269
    %v7461 = vmul.f32 %v7409, %v2270
    %v7462 = vmul.f32 %v7409, %v2271
    %v7463 = vmul.f32 %v7409, %v2272
    %v7464 = vmul.f32 %v7414, %v2269
    %v7465 = vmul.f32 %v7414, %v2270
    %v7466 = vmul.f32 %v7414, %v2271
    %v7467 = vmul.f32 %v7414, %v2272
    %v7468 = vmul.f32 %v7419, %v2269
    %v7469 = vmul.f32 %v7419, %v2270
    %v7470 = vmul.f32 %v7419, %v2271
    %v7471 = vmul.f32 %v7419, %v2272
    %v7472 = vmul.f32 %v7424, %v2269
    %v7473 = vmul.f32 %v7424, %v2270
    %v7474 = vmul.f32 %v7424, %v2271
    %v7475 = vmul.f32 %v7424, %v2272
    %v7476 = vmul.f32 %v7429, %v2269
    %v7477 = vmul.f32 %v7429, %v2270
    %v7478 = vmul.f32 %v7429, %v2271
    %v7479 = vmul.f32 %v7429, %v2272
    %v7480 = vmul.f32 %v7434, %v2269
    %v7481 = vmul.f32 %v7434, %v2270
    %v7482 = vmul.f32 %v7434, %v2271
    %v7483 = vmul.f32 %v7434, %v2272
    %v7485 = vsel %vm4113, %v7373, 0
    %v7488 = vsel %vm4113, %v7374, 0
    %v7491 = vsel %vm4113, %v7375, 0
    %v7494 = vsel %vm4113, %v7376, 0
    %v7497 = vsel %vm4113, %v7377, 0
    %v7500 = vsel %vm4113, %v7378, 0
    %v7503 = vsel %vm4113, %v7379, 0
    %v7506 = vsel %vm4113, %v7380, 0
    %v7509 = vsel %vm4113, %v7381, 0
    %7511 = vmatprep.subr.mxu0 0.0
    %7512 = vmatpush1.msra.mxu0 0.0
    %7513 = vmatprep.subr.mxu0 0.0
    %7514 = vmatpush1.msra.mxu0 0.0
    %7515 = vmatprep.subr.mxu0 0.0
    %7516 = vmatpush1.msra.mxu0 0.0
    %7517 = vmatprep.subr.mxu0 0.0
    %7518 = vmatpush1.msra.mxu0 0.0
    %7519 = vmatprep.subr.mxu0 0.0
    %7520 = vmatpush1.msra.mxu0 0.0
    %7521 = vmatprep.subr.mxu0 0.0
    %7522 = vmatpush1.msra.mxu0 0.0
    %7523 = vmatprep.subr.mxu0 0.0
    %7524 = vmatpush1.msra.mxu0 0.0
    %7525 = vmatprep.subr.mxu0 0.0
    %7526 = vmatpush1.msra.mxu0 0.0
    %7527 = vmatprep.subr.mxu0 %v7178
    %7528 = vmatpush1.msra.mxu0 %v7177
    %7529 = vmatprep.subr.mxu0 %v7174
    %7530 = vmatpush1.msra.mxu0 %v7173
    %7531 = vmatprep.subr.mxu0 %v7170
    %7532 = vmatpush1.msra.mxu0 %v7169
    %7533 = vmatprep.subr.mxu0 %v7166
    %7534 = vmatpush1.msra.mxu0 %v7165
    %7535 = vmatprep.subr.mxu0 %v7162
    %7536 = vmatpush1.msra.mxu0 %v7161
    %7537 = vmatprep.subr.mxu0 %v7158
    %7538 = vmatpush1.msra.mxu0 %v7157
    %7539 = vmatprep.subr.mxu0 %v7154
    %7540 = vmatpush1.msra.mxu0 %v7153
    %7541 = vmatprep.subr.mxu0 %v7150
    %7542 = vmatpush1.msra.mxu0 %v7149
    %7543 = vmatprep.subr.mxu0 0.0
    %7544 = vmatpush2.msra.mxu0 0.0
    %7545 = vmatprep.subr.mxu0 0.0
    %7546 = vmatpush2.msra.mxu0 0.0
    %7547 = vmatprep.subr.mxu0 0.0
    %7548 = vmatpush2.msra.mxu0 0.0
    %7549 = vmatprep.subr.mxu0 0.0
    %7550 = vmatpush2.msra.mxu0 0.0
    %7551 = vmatprep.subr.mxu0 0.0
    %7552 = vmatpush2.msra.mxu0 0.0
    %7553 = vmatprep.subr.mxu0 0.0
    %7554 = vmatpush2.msra.mxu0 0.0
    %7555 = vmatprep.subr.mxu0 0.0
    %7556 = vmatpush2.msra.mxu0 0.0
    %7557 = vmatprep.subr.mxu0 0.0
    %7558 = vmatpush2.msra.mxu0 0.0
    %7559 = vmatprep.subr.mxu0 0.0
    %7560 = vmatpush2.msra.mxu0 0.0
    %7561 = vmatprep.subr.mxu0 0.0
    %7562 = vmatpush2.msra.mxu0 0.0
    %7563 = vmatprep.subr.mxu0 0.0
    %7564 = vmatpush2.msra.mxu0 0.0
    %7565 = vmatprep.subr.mxu0 0.0
    %7566 = vmatpush2.msra.mxu0 0.0
    %7567 = vmatprep.subr.mxu0 0.0
    %7568 = vmatpush2.msra.mxu0 0.0
    %7569 = vmatprep.subr.mxu0 0.0
    %7570 = vmatpush2.msra.mxu0 0.0
    %7571 = vmatprep.subr.mxu0 0.0
    %7572 = vmatpush2.msra.mxu0 0.0
    %7573 = vmatprep.subr.mxu0 0.0
    %7574 = vmatpush2.msra.mxu0 0.0
    %7575 = vmatprep.mubr.f32.mxu0 0.0
    %7576 = vmatmul.mubr.f32.gmra.mxu0 %v7485
    %v7577 = vpop.f32.mrf.mxu0
    %v7578 = vadd.f32 %v7436, %v7577
    %v7579 = vpop.f32.mrf.mxu0
    %v7580 = vadd.f32 %v7437, %v7579
    %7581 = vmatprep.mubr.f32.mxu0 0.0
    %7582 = vmatmul.mubr.f32.gmra.mxu0 %v7488
    %v7583 = vpop.f32.mrf.mxu0
    %v7584 = vadd.f32 %v7452, %v7583
    %v7585 = vpop.f32.mrf.mxu0
    %v7586 = vadd.f32 %v7453, %v7585
    %7587 = vmatprep.mubr.f32.mxu0 0.0
    %7588 = vmatmul.mubr.f32.gmra.mxu0 %v7491
    %v7589 = vpop.f32.mrf.mxu0
    %v7590 = vadd.f32 %v7456, %v7589
    %v7591 = vpop.f32.mrf.mxu0
    %v7592 = vadd.f32 %v7457, %v7591
    %7593 = vmatprep.mubr.f32.mxu0 0.0
    %7594 = vmatmul.mubr.f32.gmra.mxu0 %v7494
    %v7595 = vpop.f32.mrf.mxu0
    %v7596 = vadd.f32 %v7460, %v7595
    %v7597 = vpop.f32.mrf.mxu0
    %v7598 = vadd.f32 %v7461, %v7597
    %7599 = vmatprep.mubr.f32.mxu0 0.0
    %7600 = vmatmul.mubr.f32.gmra.mxu0 %v7497
    %v7601 = vpop.f32.mrf.mxu0
    %v7602 = vadd.f32 %v7464, %v7601
    %v7603 = vpop.f32.mrf.mxu0
    %v7604 = vadd.f32 %v7465, %v7603
    %7605 = vmatprep.mubr.f32.mxu0 0.0
    %7606 = vmatmul.mubr.f32.gmra.mxu0 %v7500
    %v7607 = vpop.f32.mrf.mxu0
    %v7608 = vadd.f32 %v7468, %v7607
    %v7609 = vpop.f32.mrf.mxu0
    %v7610 = vadd.f32 %v7469, %v7609
    %7611 = vmatprep.mubr.f32.mxu0 0.0
    %7612 = vmatmul.mubr.f32.gmra.mxu0 %v7503
    %v7613 = vpop.f32.mrf.mxu0
    %v7614 = vadd.f32 %v7472, %v7613
    %v7615 = vpop.f32.mrf.mxu0
    %v7616 = vadd.f32 %v7473, %v7615
    %7617 = vmatprep.mubr.f32.mxu0 0.0
    %7618 = vmatmul.mubr.f32.gmra.mxu0 %v7506
    %v7619 = vpop.f32.mrf.mxu0
    %v7620 = vadd.f32 %v7476, %v7619
    %v7621 = vpop.f32.mrf.mxu0
    %v7622 = vadd.f32 %v7477, %v7621
    %7623 = vmatprep.mubr.f32.mxu0 0.0
    %7624 = vmatmul.mubr.f32.gmra.mxu0 %v7509
    %v7625 = vpop.f32.mrf.mxu0
    %v7626 = vadd.f32 %v7480, %v7625
    %v7627 = vpop.f32.mrf.mxu0
    %v7628 = vadd.f32 %v7481, %v7627
    %7629 = vdwg.mxu0
    %7630 = vmatprep.subr.mxu0 0.0
    %7631 = vmatpush1.msra.mxu0 0.0
    %7632 = vmatprep.subr.mxu0 0.0
    %7633 = vmatpush1.msra.mxu0 0.0
    %7634 = vmatprep.subr.mxu0 0.0
    %7635 = vmatpush1.msra.mxu0 0.0
    %7636 = vmatprep.subr.mxu0 0.0
    %7637 = vmatpush1.msra.mxu0 0.0
    %7638 = vmatprep.subr.mxu0 0.0
    %7639 = vmatpush1.msra.mxu0 0.0
    %7640 = vmatprep.subr.mxu0 0.0
    %7641 = vmatpush1.msra.mxu0 0.0
    %7642 = vmatprep.subr.mxu0 0.0
    %7643 = vmatpush1.msra.mxu0 0.0
    %7644 = vmatprep.subr.mxu0 0.0
    %7645 = vmatpush1.msra.mxu0 0.0
    %7646 = vmatprep.subr.mxu0 %v7180
    %7647 = vmatpush1.msra.mxu0 %v7179
    %7648 = vmatprep.subr.mxu0 %v7176
    %7649 = vmatpush1.msra.mxu0 %v7175
    %7650 = vmatprep.subr.mxu0 %v7172
    %7651 = vmatpush1.msra.mxu0 %v7171
    %7652 = vmatprep.subr.mxu0 %v7168
    %7653 = vmatpush1.msra.mxu0 %v7167
    %7654 = vmatprep.subr.mxu0 %v7164
    %7655 = vmatpush1.msra.mxu0 %v7163
    %7656 = vmatprep.subr.mxu0 %v7160
    %7657 = vmatpush1.msra.mxu0 %v7159
    %7658 = vmatprep.subr.mxu0 %v7156
    %7659 = vmatpush1.msra.mxu0 %v7155
    %7660 = vmatprep.subr.mxu0 %v7152
    %7661 = vmatpush1.msra.mxu0 %v7151
    %7662 = vmatprep.subr.mxu0 0.0
    %7663 = vmatpush2.msra.mxu0 0.0
    %7664 = vmatprep.subr.mxu0 0.0
    %7665 = vmatpush2.msra.mxu0 0.0
    %7666 = vmatprep.subr.mxu0 0.0
    %7667 = vmatpush2.msra.mxu0 0.0
    %7668 = vmatprep.subr.mxu0 0.0
    %7669 = vmatpush2.msra.mxu0 0.0
    %7670 = vmatprep.subr.mxu0 0.0
    %7671 = vmatpush2.msra.mxu0 0.0
    %7672 = vmatprep.subr.mxu0 0.0
    %7673 = vmatpush2.msra.mxu0 0.0
    %7674 = vmatprep.subr.mxu0 0.0
    %7675 = vmatpush2.msra.mxu0 0.0
    %7676 = vmatprep.subr.mxu0 0.0
    %7677 = vmatpush2.msra.mxu0 0.0
    %7678 = vmatprep.subr.mxu0 0.0
    %7679 = vmatpush2.msra.mxu0 0.0
    %7680 = vmatprep.subr.mxu0 0.0
    %7681 = vmatpush2.msra.mxu0 0.0
    %7682 = vmatprep.subr.mxu0 0.0
    %7683 = vmatpush2.msra.mxu0 0.0
    %7684 = vmatprep.subr.mxu0 0.0
    %7685 = vmatpush2.msra.mxu0 0.0
    %7686 = vmatprep.subr.mxu0 0.0
    %7687 = vmatpush2.msra.mxu0 0.0
    %7688 = vmatprep.subr.mxu0 0.0
    %7689 = vmatpush2.msra.mxu0 0.0
    %7690 = vmatprep.subr.mxu0 0.0
    %7691 = vmatpush2.msra.mxu0 0.0
    %7692 = vmatprep.subr.mxu0 0.0
    %7693 = vmatpush2.msra.mxu0 0.0
    %7694 = vmatprep.mubr.f32.mxu0 0.0
    %7695 = vmatmul.mubr.f32.gmra.mxu0 %v7485
    %v7696 = vpop.f32.mrf.mxu0
    %v7697 = vadd.f32 %v7438, %v7696
    %v7698 = vpop.f32.mrf.mxu0
    %v7699 = vadd.f32 %v7439, %v7698
    %7700 = vmatprep.mubr.f32.mxu0 0.0
    %7701 = vmatmul.mubr.f32.gmra.mxu0 %v7488
    %v7702 = vpop.f32.mrf.mxu0
    %v7703 = vadd.f32 %v7454, %v7702
    %v7704 = vpop.f32.mrf.mxu0
    %v7705 = vadd.f32 %v7455, %v7704
    %7706 = vmatprep.mubr.f32.mxu0 0.0
    %7707 = vmatmul.mubr.f32.gmra.mxu0 %v7491
    %v7708 = vpop.f32.mrf.mxu0
    %v7709 = vadd.f32 %v7458, %v7708
    %v7710 = vpop.f32.mrf.mxu0
    %v7711 = vadd.f32 %v7459, %v7710
    %7712 = vmatprep.mubr.f32.mxu0 0.0
    %7713 = vmatmul.mubr.f32.gmra.mxu0 %v7494
    %v7714 = vpop.f32.mrf.mxu0
    %v7715 = vadd.f32 %v7462, %v7714
    %v7716 = vpop.f32.mrf.mxu0
    %v7717 = vadd.f32 %v7463, %v7716
    %7718 = vmatprep.mubr.f32.mxu0 0.0
    %7719 = vmatmul.mubr.f32.gmra.mxu0 %v7497
    %v7720 = vpop.f32.mrf.mxu0
    %v7721 = vadd.f32 %v7466, %v7720
    %v7722 = vpop.f32.mrf.mxu0
    %v7723 = vadd.f32 %v7467, %v7722
    %7724 = vmatprep.mubr.f32.mxu0 0.0
    %7725 = vmatmul.mubr.f32.gmra.mxu0 %v7500
    %v7726 = vpop.f32.mrf.mxu0
    %v7727 = vadd.f32 %v7470, %v7726
    %v7728 = vpop.f32.mrf.mxu0
    %v7729 = vadd.f32 %v7471, %v7728
    %7730 = vmatprep.mubr.f32.mxu0 0.0
    %7731 = vmatmul.mubr.f32.gmra.mxu0 %v7503
    %v7732 = vpop.f32.mrf.mxu0
    %v7733 = vadd.f32 %v7474, %v7732
    %v7734 = vpop.f32.mrf.mxu0
    %v7735 = vadd.f32 %v7475, %v7734
    %7736 = vmatprep.mubr.f32.mxu0 0.0
    %7737 = vmatmul.mubr.f32.gmra.mxu0 %v7506
    %v7738 = vpop.f32.mrf.mxu0
    %v7739 = vadd.f32 %v7478, %v7738
    %v7740 = vpop.f32.mrf.mxu0
    %v7741 = vadd.f32 %v7479, %v7740
    %7742 = vmatprep.mubr.f32.mxu0 0.0
    %7743 = vmatmul.mubr.f32.gmra.mxu0 %v7509
    %v7744 = vpop.f32.mrf.mxu0
    %v7745 = vadd.f32 %v7482, %v7744
    %v7746 = vpop.f32.mrf.mxu0
    %v7747 = vadd.f32 %v7483, %v7746
    %7748 = vdwg.mxu0
    %7749 = vmatprep.subr.mxu0 0.0
    %7750 = vmatpush1.msra.mxu0 0.0
    %7751 = vmatprep.subr.mxu0 0.0
    %7752 = vmatpush1.msra.mxu0 0.0
    %7753 = vmatprep.subr.mxu0 0.0
    %7754 = vmatpush1.msra.mxu0 0.0
    %7755 = vmatprep.subr.mxu0 0.0
    %7756 = vmatpush1.msra.mxu0 0.0
    %7757 = vmatprep.subr.mxu0 0.0
    %7758 = vmatpush1.msra.mxu0 0.0
    %7759 = vmatprep.subr.mxu0 0.0
    %7760 = vmatpush1.msra.mxu0 0.0
    %7761 = vmatprep.subr.mxu0 0.0
    %7762 = vmatpush1.msra.mxu0 0.0
    %7763 = vmatprep.subr.mxu0 0.0
    %7764 = vmatpush1.msra.mxu0 0.0
    %7765 = vmatprep.subr.mxu0 %v7362
    %7766 = vmatpush1.msra.mxu0 %v7361
    %7767 = vmatprep.subr.mxu0 %v7350
    %7768 = vmatpush1.msra.mxu0 %v7349
    %7769 = vmatprep.subr.mxu0 %v7338
    %7770 = vmatpush1.msra.mxu0 %v7337
    %7771 = vmatprep.subr.mxu0 %v7326
    %7772 = vmatpush1.msra.mxu0 %v7325
    %7773 = vmatprep.subr.mxu0 %v7314
    %7774 = vmatpush1.msra.mxu0 %v7313
    %7775 = vmatprep.subr.mxu0 %v7302
    %7776 = vmatpush1.msra.mxu0 %v7301
    %7777 = vmatprep.subr.mxu0 %v7290
    %7778 = vmatpush1.msra.mxu0 %v7289
    %7779 = vmatprep.subr.mxu0 %v7278
    %7780 = vmatpush1.msra.mxu0 %v7277
    %7781 = vmatprep.subr.mxu0 0.0
    %7782 = vmatpush2.msra.mxu0 0.0
    %7783 = vmatprep.subr.mxu0 0.0
    %7784 = vmatpush2.msra.mxu0 0.0
    %7785 = vmatprep.subr.mxu0 0.0
    %7786 = vmatpush2.msra.mxu0 0.0
    %7787 = vmatprep.subr.mxu0 0.0
    %7788 = vmatpush2.msra.mxu0 0.0
    %7789 = vmatprep.subr.mxu0 0.0
    %7790 = vmatpush2.msra.mxu0 0.0
    %7791 = vmatprep.subr.mxu0 0.0
    %7792 = vmatpush2.msra.mxu0 0.0
    %7793 = vmatprep.subr.mxu0 0.0
    %7794 = vmatpush2.msra.mxu0 0.0
    %7795 = vmatprep.subr.mxu0 0.0
    %7796 = vmatpush2.msra.mxu0 0.0
    %7797 = vmatprep.subr.mxu0 0.0
    %7798 = vmatpush2.msra.mxu0 0.0
    %7799 = vmatprep.subr.mxu0 0.0
    %7800 = vmatpush2.msra.mxu0 0.0
    %7801 = vmatprep.subr.mxu0 0.0
    %7802 = vmatpush2.msra.mxu0 0.0
    %7803 = vmatprep.subr.mxu0 0.0
    %7804 = vmatpush2.msra.mxu0 0.0
    %7805 = vmatprep.subr.mxu0 0.0
    %7806 = vmatpush2.msra.mxu0 0.0
    %7807 = vmatprep.subr.mxu0 0.0
    %7808 = vmatpush2.msra.mxu0 0.0
    %7809 = vmatprep.subr.mxu0 0.0
    %7810 = vmatpush2.msra.mxu0 0.0
    %7811 = vmatprep.subr.mxu0 0.0
    %7812 = vmatpush2.msra.mxu0 0.0
    %7813 = vmatprep.mubr.f32.mxu0 0.0
    %7814 = vmatmul.mubr.f32.gmra.mxu0 %v7485
    %v7815 = vpop.f32.mrf.mxu0
    %v7816 = vadd.f32 %v7440, %v7815
    %v7817 = vpop.f32.mrf.mxu0
    %v7818 = vadd.f32 %v7441, %v7817
    %7819 = vmatprep.mubr.f32.mxu0 0.0
    %7820 = vmatmul.mubr.f32.gmra.mxu0 %v7488
    %v7821 = vpop.f32.mrf.mxu0
    %v7822 = vpop.f32.mrf.mxu0
    %7823 = vmatprep.mubr.f32.mxu0 0.0
    %7824 = vmatmul.mubr.f32.gmra.mxu0 %v7491
    %v7825 = vpop.f32.mrf.mxu0
    %v7826 = vpop.f32.mrf.mxu0
    %7827 = vmatprep.mubr.f32.mxu0 0.0
    %7828 = vmatmul.mubr.f32.gmra.mxu0 %v7494
    %v7829 = vpop.f32.mrf.mxu0
    %v7830 = vpop.f32.mrf.mxu0
    %7831 = vmatprep.mubr.f32.mxu0 0.0
    %7832 = vmatmul.mubr.f32.gmra.mxu0 %v7497
    %v7833 = vpop.f32.mrf.mxu0
    %v7834 = vpop.f32.mrf.mxu0
    %7835 = vmatprep.mubr.f32.mxu0 0.0
    %7836 = vmatmul.mubr.f32.gmra.mxu0 %v7500
    %v7837 = vpop.f32.mrf.mxu0
    %v7838 = vpop.f32.mrf.mxu0
    %7839 = vmatprep.mubr.f32.mxu0 0.0
    %7840 = vmatmul.mubr.f32.gmra.mxu0 %v7503
    %v7841 = vpop.f32.mrf.mxu0
    %v7842 = vpop.f32.mrf.mxu0
    %7843 = vmatprep.mubr.f32.mxu0 0.0
    %7844 = vmatmul.mubr.f32.gmra.mxu0 %v7506
    %v7845 = vpop.f32.mrf.mxu0
    %v7846 = vpop.f32.mrf.mxu0
    %7847 = vmatprep.mubr.f32.mxu0 0.0
    %7848 = vmatmul.mubr.f32.gmra.mxu0 %v7509
    %v7849 = vpop.f32.mrf.mxu0
    %v7850 = vpop.f32.mrf.mxu0
    %7851 = vdwg.mxu0
    %7852 = vmatprep.subr.mxu0 0.0
    %7853 = vmatpush1.msra.mxu0 0.0
    %7854 = vmatprep.subr.mxu0 0.0
    %7855 = vmatpush1.msra.mxu0 0.0
    %7856 = vmatprep.subr.mxu0 0.0
    %7857 = vmatpush1.msra.mxu0 0.0
    %7858 = vmatprep.subr.mxu0 0.0
    %7859 = vmatpush1.msra.mxu0 0.0
    %7860 = vmatprep.subr.mxu0 0.0
    %7861 = vmatpush1.msra.mxu0 0.0
    %7862 = vmatprep.subr.mxu0 0.0
    %7863 = vmatpush1.msra.mxu0 0.0
    %7864 = vmatprep.subr.mxu0 0.0
    %7865 = vmatpush1.msra.mxu0 0.0
    %7866 = vmatprep.subr.mxu0 0.0
    %7867 = vmatpush1.msra.mxu0 0.0
    %7868 = vmatprep.subr.mxu0 %v7364
    %7869 = vmatpush1.msra.mxu0 %v7363
    %7870 = vmatprep.subr.mxu0 %v7352
    %7871 = vmatpush1.msra.mxu0 %v7351
    %7872 = vmatprep.subr.mxu0 %v7340
    %7873 = vmatpush1.msra.mxu0 %v7339
    %7874 = vmatprep.subr.mxu0 %v7328
    %7875 = vmatpush1.msra.mxu0 %v7327
    %7876 = vmatprep.subr.mxu0 %v7316
    %7877 = vmatpush1.msra.mxu0 %v7315
    %7878 = vmatprep.subr.mxu0 %v7304
    %7879 = vmatpush1.msra.mxu0 %v7303
    %7880 = vmatprep.subr.mxu0 %v7292
    %7881 = vmatpush1.msra.mxu0 %v7291
    %7882 = vmatprep.subr.mxu0 %v7280
    %7883 = vmatpush1.msra.mxu0 %v7279
    %7884 = vmatprep.subr.mxu0 0.0
    %7885 = vmatpush2.msra.mxu0 0.0
    %7886 = vmatprep.subr.mxu0 0.0
    %7887 = vmatpush2.msra.mxu0 0.0
    %7888 = vmatprep.subr.mxu0 0.0
    %7889 = vmatpush2.msra.mxu0 0.0
    %7890 = vmatprep.subr.mxu0 0.0
    %7891 = vmatpush2.msra.mxu0 0.0
    %7892 = vmatprep.subr.mxu0 0.0
    %7893 = vmatpush2.msra.mxu0 0.0
    %7894 = vmatprep.subr.mxu0 0.0
    %7895 = vmatpush2.msra.mxu0 0.0
    %7896 = vmatprep.subr.mxu0 0.0
    %7897 = vmatpush2.msra.mxu0 0.0
    %7898 = vmatprep.subr.mxu0 0.0
    %7899 = vmatpush2.msra.mxu0 0.0
    %7900 = vmatprep.subr.mxu0 0.0
    %7901 = vmatpush2.msra.mxu0 0.0
    %7902 = vmatprep.subr.mxu0 0.0
    %7903 = vmatpush2.msra.mxu0 0.0
    %7904 = vmatprep.subr.mxu0 0.0
    %7905 = vmatpush2.msra.mxu0 0.0
    %7906 = vmatprep.subr.mxu0 0.0
    %7907 = vmatpush2.msra.mxu0 0.0
    %7908 = vmatprep.subr.mxu0 0.0
    %7909 = vmatpush2.msra.mxu0 0.0
    %7910 = vmatprep.subr.mxu0 0.0
    %7911 = vmatpush2.msra.mxu0 0.0
    %7912 = vmatprep.subr.mxu0 0.0
    %7913 = vmatpush2.msra.mxu0 0.0
    %7914 = vmatprep.subr.mxu0 0.0
    %7915 = vmatpush2.msra.mxu0 0.0
    %7916 = vmatprep.mubr.f32.mxu0 0.0
    %7917 = vmatmul.mubr.f32.gmra.mxu0 %v7485
    %v7918 = vpop.f32.mrf.mxu0
    %v7919 = vadd.f32 %v7442, %v7918
    %v7920 = vpop.f32.mrf.mxu0
    %v7921 = vadd.f32 %v7443, %v7920
    %7922 = vmatprep.mubr.f32.mxu0 0.0
    %7923 = vmatmul.mubr.f32.gmra.mxu0 %v7488
    %v7924 = vpop.f32.mrf.mxu0
    %v7925 = vpop.f32.mrf.mxu0
    %7926 = vmatprep.mubr.f32.mxu0 0.0
    %7927 = vmatmul.mubr.f32.gmra.mxu0 %v7491
    %v7928 = vpop.f32.mrf.mxu0
    %v7929 = vpop.f32.mrf.mxu0
    %7930 = vmatprep.mubr.f32.mxu0 0.0
    %7931 = vmatmul.mubr.f32.gmra.mxu0 %v7494
    %v7932 = vpop.f32.mrf.mxu0
    %v7933 = vpop.f32.mrf.mxu0
    %7934 = vmatprep.mubr.f32.mxu0 0.0
    %7935 = vmatmul.mubr.f32.gmra.mxu0 %v7497
    %v7936 = vpop.f32.mrf.mxu0
    %v7937 = vpop.f32.mrf.mxu0
    %7938 = vmatprep.mubr.f32.mxu0 0.0
    %7939 = vmatmul.mubr.f32.gmra.mxu0 %v7500
    %v7940 = vpop.f32.mrf.mxu0
    %v7941 = vpop.f32.mrf.mxu0
    %7942 = vmatprep.mubr.f32.mxu0 0.0
    %7943 = vmatmul.mubr.f32.gmra.mxu0 %v7503
    %v7944 = vpop.f32.mrf.mxu0
    %v7945 = vpop.f32.mrf.mxu0
    %7946 = vmatprep.mubr.f32.mxu0 0.0
    %7947 = vmatmul.mubr.f32.gmra.mxu0 %v7506
    %v7948 = vpop.f32.mrf.mxu0
    %v7949 = vpop.f32.mrf.mxu0
    %7950 = vmatprep.mubr.f32.mxu0 0.0
    %7951 = vmatmul.mubr.f32.gmra.mxu0 %v7509
    %v7952 = vpop.f32.mrf.mxu0
    %v7953 = vpop.f32.mrf.mxu0
    %7954 = vdwg.mxu0
    %7955 = vmatprep.subr.mxu0 0.0
    %7956 = vmatpush1.msra.mxu0 0.0
    %7957 = vmatprep.subr.mxu0 0.0
    %7958 = vmatpush1.msra.mxu0 0.0
    %7959 = vmatprep.subr.mxu0 0.0
    %7960 = vmatpush1.msra.mxu0 0.0
    %7961 = vmatprep.subr.mxu0 0.0
    %7962 = vmatpush1.msra.mxu0 0.0
    %7963 = vmatprep.subr.mxu0 0.0
    %7964 = vmatpush1.msra.mxu0 0.0
    %7965 = vmatprep.subr.mxu0 0.0
    %7966 = vmatpush1.msra.mxu0 0.0
    %7967 = vmatprep.subr.mxu0 0.0
    %7968 = vmatpush1.msra.mxu0 0.0
    %7969 = vmatprep.subr.mxu0 0.0
    %7970 = vmatpush1.msra.mxu0 0.0
    %7971 = vmatprep.subr.mxu0 %v7366
    %7972 = vmatpush1.msra.mxu0 %v7365
    %7973 = vmatprep.subr.mxu0 %v7354
    %7974 = vmatpush1.msra.mxu0 %v7353
    %7975 = vmatprep.subr.mxu0 %v7342
    %7976 = vmatpush1.msra.mxu0 %v7341
    %7977 = vmatprep.subr.mxu0 %v7330
    %7978 = vmatpush1.msra.mxu0 %v7329
    %7979 = vmatprep.subr.mxu0 %v7318
    %7980 = vmatpush1.msra.mxu0 %v7317
    %7981 = vmatprep.subr.mxu0 %v7306
    %7982 = vmatpush1.msra.mxu0 %v7305
    %7983 = vmatprep.subr.mxu0 %v7294
    %7984 = vmatpush1.msra.mxu0 %v7293
    %7985 = vmatprep.subr.mxu0 %v7282
    %7986 = vmatpush1.msra.mxu0 %v7281
    %7987 = vmatprep.subr.mxu0 0.0
    %7988 = vmatpush2.msra.mxu0 0.0
    %7989 = vmatprep.subr.mxu0 0.0
    %7990 = vmatpush2.msra.mxu0 0.0
    %7991 = vmatprep.subr.mxu0 0.0
    %7992 = vmatpush2.msra.mxu0 0.0
    %7993 = vmatprep.subr.mxu0 0.0
    %7994 = vmatpush2.msra.mxu0 0.0
    %7995 = vmatprep.subr.mxu0 0.0
    %7996 = vmatpush2.msra.mxu0 0.0
    %7997 = vmatprep.subr.mxu0 0.0
    %7998 = vmatpush2.msra.mxu0 0.0
    %7999 = vmatprep.subr.mxu0 0.0
    %8000 = vmatpush2.msra.mxu0 0.0
    %8001 = vmatprep.subr.mxu0 0.0
    %8002 = vmatpush2.msra.mxu0 0.0
    %8003 = vmatprep.subr.mxu0 0.0
    %8004 = vmatpush2.msra.mxu0 0.0
    %8005 = vmatprep.subr.mxu0 0.0
    %8006 = vmatpush2.msra.mxu0 0.0
    %8007 = vmatprep.subr.mxu0 0.0
    %8008 = vmatpush2.msra.mxu0 0.0
    %8009 = vmatprep.subr.mxu0 0.0
    %8010 = vmatpush2.msra.mxu0 0.0
    %8011 = vmatprep.subr.mxu0 0.0
    %8012 = vmatpush2.msra.mxu0 0.0
    %8013 = vmatprep.subr.mxu0 0.0
    %8014 = vmatpush2.msra.mxu0 0.0
    %8015 = vmatprep.subr.mxu0 0.0
    %8016 = vmatpush2.msra.mxu0 0.0
    %8017 = vmatprep.subr.mxu0 0.0
    %8018 = vmatpush2.msra.mxu0 0.0
    %8019 = vmatprep.mubr.f32.mxu0 0.0
    %8020 = vmatmul.mubr.f32.gmra.mxu0 %v7485
    %v8021 = vpop.f32.mrf.mxu0
    %v8022 = vadd.f32 %v7444, %v8021
    %v8023 = vpop.f32.mrf.mxu0
    %v8024 = vadd.f32 %v7445, %v8023
    %8025 = vmatprep.mubr.f32.mxu0 0.0
    %8026 = vmatmul.mubr.f32.gmra.mxu0 %v7488
    %v8027 = vpop.f32.mrf.mxu0
    %v8028 = vpop.f32.mrf.mxu0
    %8029 = vmatprep.mubr.f32.mxu0 0.0
    %8030 = vmatmul.mubr.f32.gmra.mxu0 %v7491
    %v8031 = vpop.f32.mrf.mxu0
    %v8032 = vpop.f32.mrf.mxu0
    %8033 = vmatprep.mubr.f32.mxu0 0.0
    %8034 = vmatmul.mubr.f32.gmra.mxu0 %v7494
    %v8035 = vpop.f32.mrf.mxu0
    %v8036 = vpop.f32.mrf.mxu0
    %8037 = vmatprep.mubr.f32.mxu0 0.0
    %8038 = vmatmul.mubr.f32.gmra.mxu0 %v7497
    %v8039 = vpop.f32.mrf.mxu0
    %v8040 = vpop.f32.mrf.mxu0
    %8041 = vmatprep.mubr.f32.mxu0 0.0
    %8042 = vmatmul.mubr.f32.gmra.mxu0 %v7500
    %v8043 = vpop.f32.mrf.mxu0
    %v8044 = vpop.f32.mrf.mxu0
    %8045 = vmatprep.mubr.f32.mxu0 0.0
    %8046 = vmatmul.mubr.f32.gmra.mxu0 %v7503
    %v8047 = vpop.f32.mrf.mxu0
    %v8048 = vpop.f32.mrf.mxu0
    %8049 = vmatprep.mubr.f32.mxu0 0.0
    %8050 = vmatmul.mubr.f32.gmra.mxu0 %v7506
    %v8051 = vpop.f32.mrf.mxu0
    %v8052 = vpop.f32.mrf.mxu0
    %8053 = vmatprep.mubr.f32.mxu0 0.0
    %8054 = vmatmul.mubr.f32.gmra.mxu0 %v7509
    %v8055 = vpop.f32.mrf.mxu0
    %v8056 = vpop.f32.mrf.mxu0
    %8057 = vdwg.mxu0
    %8058 = vmatprep.subr.mxu0 0.0
    %8059 = vmatpush1.msra.mxu0 0.0
    %8060 = vmatprep.subr.mxu0 0.0
    %8061 = vmatpush1.msra.mxu0 0.0
    %8062 = vmatprep.subr.mxu0 0.0
    %8063 = vmatpush1.msra.mxu0 0.0
    %8064 = vmatprep.subr.mxu0 0.0
    %8065 = vmatpush1.msra.mxu0 0.0
    %8066 = vmatprep.subr.mxu0 0.0
    %8067 = vmatpush1.msra.mxu0 0.0
    %8068 = vmatprep.subr.mxu0 0.0
    %8069 = vmatpush1.msra.mxu0 0.0
    %8070 = vmatprep.subr.mxu0 0.0
    %8071 = vmatpush1.msra.mxu0 0.0
    %8072 = vmatprep.subr.mxu0 0.0
    %8073 = vmatpush1.msra.mxu0 0.0
    %8074 = vmatprep.subr.mxu0 %v7368
    %8075 = vmatpush1.msra.mxu0 %v7367
    %8076 = vmatprep.subr.mxu0 %v7356
    %8077 = vmatpush1.msra.mxu0 %v7355
    %8078 = vmatprep.subr.mxu0 %v7344
    %8079 = vmatpush1.msra.mxu0 %v7343
    %8080 = vmatprep.subr.mxu0 %v7332
    %8081 = vmatpush1.msra.mxu0 %v7331
    %8082 = vmatprep.subr.mxu0 %v7320
    %8083 = vmatpush1.msra.mxu0 %v7319
    %8084 = vmatprep.subr.mxu0 %v7308
    %8085 = vmatpush1.msra.mxu0 %v7307
    %8086 = vmatprep.subr.mxu0 %v7296
    %8087 = vmatpush1.msra.mxu0 %v7295
    %8088 = vmatprep.subr.mxu0 %v7284
    %8089 = vmatpush1.msra.mxu0 %v7283
    %8090 = vmatprep.subr.mxu0 0.0
    %8091 = vmatpush2.msra.mxu0 0.0
    %8092 = vmatprep.subr.mxu0 0.0
    %8093 = vmatpush2.msra.mxu0 0.0
    %8094 = vmatprep.subr.mxu0 0.0
    %8095 = vmatpush2.msra.mxu0 0.0
    %8096 = vmatprep.subr.mxu0 0.0
    %8097 = vmatpush2.msra.mxu0 0.0
    %8098 = vmatprep.subr.mxu0 0.0
    %8099 = vmatpush2.msra.mxu0 0.0
    %8100 = vmatprep.subr.mxu0 0.0
    %8101 = vmatpush2.msra.mxu0 0.0
    %8102 = vmatprep.subr.mxu0 0.0
    %8103 = vmatpush2.msra.mxu0 0.0
    %8104 = vmatprep.subr.mxu0 0.0
    %8105 = vmatpush2.msra.mxu0 0.0
    %8106 = vmatprep.subr.mxu0 0.0
    %8107 = vmatpush2.msra.mxu0 0.0
    %8108 = vmatprep.subr.mxu0 0.0
    %8109 = vmatpush2.msra.mxu0 0.0
    %8110 = vmatprep.subr.mxu0 0.0
    %8111 = vmatpush2.msra.mxu0 0.0
    %8112 = vmatprep.subr.mxu0 0.0
    %8113 = vmatpush2.msra.mxu0 0.0
    %8114 = vmatprep.subr.mxu0 0.0
    %8115 = vmatpush2.msra.mxu0 0.0
    %8116 = vmatprep.subr.mxu0 0.0
    %8117 = vmatpush2.msra.mxu0 0.0
    %8118 = vmatprep.subr.mxu0 0.0
    %8119 = vmatpush2.msra.mxu0 0.0
    %8120 = vmatprep.subr.mxu0 0.0
    %8121 = vmatpush2.msra.mxu0 0.0
    %8122 = vmatprep.mubr.f32.mxu0 0.0
    %8123 = vmatmul.mubr.f32.gmra.mxu0 %v7485
    %v8124 = vpop.f32.mrf.mxu0
    %v8125 = vadd.f32 %v7446, %v8124
    %v8126 = vpop.f32.mrf.mxu0
    %v8127 = vadd.f32 %v7447, %v8126
    %8128 = vmatprep.mubr.f32.mxu0 0.0
    %8129 = vmatmul.mubr.f32.gmra.mxu0 %v7488
    %v8130 = vpop.f32.mrf.mxu0
    %v8131 = vpop.f32.mrf.mxu0
    %8132 = vmatprep.mubr.f32.mxu0 0.0
    %8133 = vmatmul.mubr.f32.gmra.mxu0 %v7491
    %v8134 = vpop.f32.mrf.mxu0
    %v8135 = vpop.f32.mrf.mxu0
    %8136 = vmatprep.mubr.f32.mxu0 0.0
    %8137 = vmatmul.mubr.f32.gmra.mxu0 %v7494
    %v8138 = vpop.f32.mrf.mxu0
    %v8139 = vpop.f32.mrf.mxu0
    %8140 = vmatprep.mubr.f32.mxu0 0.0
    %8141 = vmatmul.mubr.f32.gmra.mxu0 %v7497
    %v8142 = vpop.f32.mrf.mxu0
    %v8143 = vpop.f32.mrf.mxu0
    %8144 = vmatprep.mubr.f32.mxu0 0.0
    %8145 = vmatmul.mubr.f32.gmra.mxu0 %v7500
    %v8146 = vpop.f32.mrf.mxu0
    %v8147 = vpop.f32.mrf.mxu0
    %8148 = vmatprep.mubr.f32.mxu0 0.0
    %8149 = vmatmul.mubr.f32.gmra.mxu0 %v7503
    %v8150 = vpop.f32.mrf.mxu0
    %v8151 = vpop.f32.mrf.mxu0
    %8152 = vmatprep.mubr.f32.mxu0 0.0
    %8153 = vmatmul.mubr.f32.gmra.mxu0 %v7506
    %v8154 = vpop.f32.mrf.mxu0
    %v8155 = vpop.f32.mrf.mxu0
    %8156 = vmatprep.mubr.f32.mxu0 0.0
    %8157 = vmatmul.mubr.f32.gmra.mxu0 %v7509
    %v8158 = vpop.f32.mrf.mxu0
    %v8159 = vpop.f32.mrf.mxu0
    %8160 = vdwg.mxu0
    %8161 = vmatprep.subr.mxu0 0.0
    %8162 = vmatpush1.msra.mxu0 0.0
    %8163 = vmatprep.subr.mxu0 0.0
    %8164 = vmatpush1.msra.mxu0 0.0
    %8165 = vmatprep.subr.mxu0 0.0
    %8166 = vmatpush1.msra.mxu0 0.0
    %8167 = vmatprep.subr.mxu0 0.0
    %8168 = vmatpush1.msra.mxu0 0.0
    %8169 = vmatprep.subr.mxu0 0.0
    %8170 = vmatpush1.msra.mxu0 0.0
    %8171 = vmatprep.subr.mxu0 0.0
    %8172 = vmatpush1.msra.mxu0 0.0
    %8173 = vmatprep.subr.mxu0 0.0
    %8174 = vmatpush1.msra.mxu0 0.0
    %8175 = vmatprep.subr.mxu0 0.0
    %8176 = vmatpush1.msra.mxu0 0.0
    %8177 = vmatprep.subr.mxu0 %v7370
    %8178 = vmatpush1.msra.mxu0 %v7369
    %8179 = vmatprep.subr.mxu0 %v7358
    %8180 = vmatpush1.msra.mxu0 %v7357
    %8181 = vmatprep.subr.mxu0 %v7346
    %8182 = vmatpush1.msra.mxu0 %v7345
    %8183 = vmatprep.subr.mxu0 %v7334
    %8184 = vmatpush1.msra.mxu0 %v7333
    %8185 = vmatprep.subr.mxu0 %v7322
    %8186 = vmatpush1.msra.mxu0 %v7321
    %8187 = vmatprep.subr.mxu0 %v7310
    %8188 = vmatpush1.msra.mxu0 %v7309
    %8189 = vmatprep.subr.mxu0 %v7298
    %8190 = vmatpush1.msra.mxu0 %v7297
    %8191 = vmatprep.subr.mxu0 %v7286
    %8192 = vmatpush1.msra.mxu0 %v7285
    %8193 = vmatprep.subr.mxu0 0.0
    %8194 = vmatpush2.msra.mxu0 0.0
    %8195 = vmatprep.subr.mxu0 0.0
    %8196 = vmatpush2.msra.mxu0 0.0
    %8197 = vmatprep.subr.mxu0 0.0
    %8198 = vmatpush2.msra.mxu0 0.0
    %8199 = vmatprep.subr.mxu0 0.0
    %8200 = vmatpush2.msra.mxu0 0.0
    %8201 = vmatprep.subr.mxu0 0.0
    %8202 = vmatpush2.msra.mxu0 0.0
    %8203 = vmatprep.subr.mxu0 0.0
    %8204 = vmatpush2.msra.mxu0 0.0
    %8205 = vmatprep.subr.mxu0 0.0
    %8206 = vmatpush2.msra.mxu0 0.0
    %8207 = vmatprep.subr.mxu0 0.0
    %8208 = vmatpush2.msra.mxu0 0.0
    %8209 = vmatprep.subr.mxu0 0.0
    %8210 = vmatpush2.msra.mxu0 0.0
    %8211 = vmatprep.subr.mxu0 0.0
    %8212 = vmatpush2.msra.mxu0 0.0
    %8213 = vmatprep.subr.mxu0 0.0
    %8214 = vmatpush2.msra.mxu0 0.0
    %8215 = vmatprep.subr.mxu0 0.0
    %8216 = vmatpush2.msra.mxu0 0.0
    %8217 = vmatprep.subr.mxu0 0.0
    %8218 = vmatpush2.msra.mxu0 0.0
    %8219 = vmatprep.subr.mxu0 0.0
    %8220 = vmatpush2.msra.mxu0 0.0
    %8221 = vmatprep.subr.mxu0 0.0
    %8222 = vmatpush2.msra.mxu0 0.0
    %8223 = vmatprep.subr.mxu0 0.0
    %8224 = vmatpush2.msra.mxu0 0.0
    %8225 = vmatprep.mubr.f32.mxu0 0.0
    %8226 = vmatmul.mubr.f32.gmra.mxu0 %v7485
    %v8227 = vpop.f32.mrf.mxu0
    %v8228 = vadd.f32 %v7448, %v8227
    %v8229 = vpop.f32.mrf.mxu0
    %v8230 = vadd.f32 %v7449, %v8229
    %8231 = vmatprep.mubr.f32.mxu0 0.0
    %8232 = vmatmul.mubr.f32.gmra.mxu0 %v7488
    %v8233 = vpop.f32.mrf.mxu0
    %v8234 = vpop.f32.mrf.mxu0
    %8235 = vmatprep.mubr.f32.mxu0 0.0
    %8236 = vmatmul.mubr.f32.gmra.mxu0 %v7491
    %v8237 = vpop.f32.mrf.mxu0
    %v8238 = vpop.f32.mrf.mxu0
    %8239 = vmatprep.mubr.f32.mxu0 0.0
    %8240 = vmatmul.mubr.f32.gmra.mxu0 %v7494
    %v8241 = vpop.f32.mrf.mxu0
    %v8242 = vpop.f32.mrf.mxu0
    %8243 = vmatprep.mubr.f32.mxu0 0.0
    %8244 = vmatmul.mubr.f32.gmra.mxu0 %v7497
    %v8245 = vpop.f32.mrf.mxu0
    %v8246 = vpop.f32.mrf.mxu0
    %8247 = vmatprep.mubr.f32.mxu0 0.0
    %8248 = vmatmul.mubr.f32.gmra.mxu0 %v7500
    %v8249 = vpop.f32.mrf.mxu0
    %v8250 = vpop.f32.mrf.mxu0
    %8251 = vmatprep.mubr.f32.mxu0 0.0
    %8252 = vmatmul.mubr.f32.gmra.mxu0 %v7503
    %v8253 = vpop.f32.mrf.mxu0
    %v8254 = vpop.f32.mrf.mxu0
    %8255 = vmatprep.mubr.f32.mxu0 0.0
    %8256 = vmatmul.mubr.f32.gmra.mxu0 %v7506
    %v8257 = vpop.f32.mrf.mxu0
    %v8258 = vpop.f32.mrf.mxu0
    %8259 = vmatprep.mubr.f32.mxu0 0.0
    %8260 = vmatmul.mubr.f32.gmra.mxu0 %v7509
    %v8261 = vpop.f32.mrf.mxu0
    %v8262 = vpop.f32.mrf.mxu0
    %8263 = vdwg.mxu0
    %8264 = vmatprep.subr.mxu0 0.0
    %8265 = vmatpush1.msra.mxu0 0.0
    %8266 = vmatprep.subr.mxu0 0.0
    %8267 = vmatpush1.msra.mxu0 0.0
    %8268 = vmatprep.subr.mxu0 0.0
    %8269 = vmatpush1.msra.mxu0 0.0
    %8270 = vmatprep.subr.mxu0 0.0
    %8271 = vmatpush1.msra.mxu0 0.0
    %8272 = vmatprep.subr.mxu0 0.0
    %8273 = vmatpush1.msra.mxu0 0.0
    %8274 = vmatprep.subr.mxu0 0.0
    %8275 = vmatpush1.msra.mxu0 0.0
    %8276 = vmatprep.subr.mxu0 0.0
    %8277 = vmatpush1.msra.mxu0 0.0
    %8278 = vmatprep.subr.mxu0 0.0
    %8279 = vmatpush1.msra.mxu0 0.0
    %8280 = vmatprep.subr.mxu0 %v7372
    %8281 = vmatpush1.msra.mxu0 %v7371
    %8282 = vmatprep.subr.mxu0 %v7360
    %8283 = vmatpush1.msra.mxu0 %v7359
    %8284 = vmatprep.subr.mxu0 %v7348
    %8285 = vmatpush1.msra.mxu0 %v7347
    %8286 = vmatprep.subr.mxu0 %v7336
    %8287 = vmatpush1.msra.mxu0 %v7335
    %8288 = vmatprep.subr.mxu0 %v7324
    %8289 = vmatpush1.msra.mxu0 %v7323
    %8290 = vmatprep.subr.mxu0 %v7312
    %8291 = vmatpush1.msra.mxu0 %v7311
    %8292 = vmatprep.subr.mxu0 %v7300
    %8293 = vmatpush1.msra.mxu0 %v7299
    %8294 = vmatprep.subr.mxu0 %v7288
    %8295 = vmatpush1.msra.mxu0 %v7287
    %8296 = vmatprep.subr.mxu0 0.0
    %8297 = vmatpush2.msra.mxu0 0.0
    %8298 = vmatprep.subr.mxu0 0.0
    %8299 = vmatpush2.msra.mxu0 0.0
    %8300 = vmatprep.subr.mxu0 0.0
    %8301 = vmatpush2.msra.mxu0 0.0
    %8302 = vmatprep.subr.mxu0 0.0
    %8303 = vmatpush2.msra.mxu0 0.0
    %8304 = vmatprep.subr.mxu0 0.0
    %8305 = vmatpush2.msra.mxu0 0.0
    %8306 = vmatprep.subr.mxu0 0.0
    %8307 = vmatpush2.msra.mxu0 0.0
    %8308 = vmatprep.subr.mxu0 0.0
    %8309 = vmatpush2.msra.mxu0 0.0
    %8310 = vmatprep.subr.mxu0 0.0
    %8311 = vmatpush2.msra.mxu0 0.0
    %8312 = vmatprep.subr.mxu0 0.0
    %8313 = vmatpush2.msra.mxu0 0.0
    %8314 = vmatprep.subr.mxu0 0.0
    %8315 = vmatpush2.msra.mxu0 0.0
    %8316 = vmatprep.subr.mxu0 0.0
    %8317 = vmatpush2.msra.mxu0 0.0
    %8318 = vmatprep.subr.mxu0 0.0
    %8319 = vmatpush2.msra.mxu0 0.0
    %8320 = vmatprep.subr.mxu0 0.0
    %8321 = vmatpush2.msra.mxu0 0.0
    %8322 = vmatprep.subr.mxu0 0.0
    %8323 = vmatpush2.msra.mxu0 0.0
    %8324 = vmatprep.subr.mxu0 0.0
    %8325 = vmatpush2.msra.mxu0 0.0
    %8326 = vmatprep.subr.mxu0 0.0
    %8327 = vmatpush2.msra.mxu0 0.0
    %8328 = vmatprep.mubr.f32.mxu0 0.0
    %8329 = vmatmul.mubr.f32.gmra.mxu0 %v7485
    %v8330 = vpop.f32.mrf.mxu0
    %v8331 = vadd.f32 %v7450, %v8330
    %v8332 = vpop.f32.mrf.mxu0
    %v8333 = vadd.f32 %v7451, %v8332
    %8334 = vmatprep.mubr.f32.mxu0 0.0
    %8335 = vmatmul.mubr.f32.gmra.mxu0 %v7488
    %v8336 = vpop.f32.mrf.mxu0
    %v8337 = vpop.f32.mrf.mxu0
    %8338 = vmatprep.mubr.f32.mxu0 0.0
    %8339 = vmatmul.mubr.f32.gmra.mxu0 %v7491
    %v8340 = vpop.f32.mrf.mxu0
    %v8341 = vpop.f32.mrf.mxu0
    %8342 = vmatprep.mubr.f32.mxu0 0.0
    %8343 = vmatmul.mubr.f32.gmra.mxu0 %v7494
    %v8344 = vpop.f32.mrf.mxu0
    %v8345 = vpop.f32.mrf.mxu0
    %8346 = vmatprep.mubr.f32.mxu0 0.0
    %8347 = vmatmul.mubr.f32.gmra.mxu0 %v7497
    %v8348 = vpop.f32.mrf.mxu0
    %v8349 = vpop.f32.mrf.mxu0
    %8350 = vmatprep.mubr.f32.mxu0 0.0
    %8351 = vmatmul.mubr.f32.gmra.mxu0 %v7500
    %v8352 = vpop.f32.mrf.mxu0
    %v8353 = vpop.f32.mrf.mxu0
    %8354 = vmatprep.mubr.f32.mxu0 0.0
    %8355 = vmatmul.mubr.f32.gmra.mxu0 %v7503
    %v8356 = vpop.f32.mrf.mxu0
    %v8357 = vpop.f32.mrf.mxu0
    %8358 = vmatprep.mubr.f32.mxu0 0.0
    %8359 = vmatmul.mubr.f32.gmra.mxu0 %v7506
    %v8360 = vpop.f32.mrf.mxu0
    %v8361 = vpop.f32.mrf.mxu0
    %8362 = vmatprep.mubr.f32.mxu0 0.0
    %8363 = vmatmul.mubr.f32.gmra.mxu0 %v7509
    %v8364 = vpop.f32.mrf.mxu0
    %v8365 = vpop.f32.mrf.mxu0
    %8366 = vdwg.mxu0
    %v8371 = vrot.slane %v8022, 7
    %v8372 = vrot.slane %v8024, 7
    %v8373 = vrot.slane %v8125, 7
    %v8374 = vrot.slane %v8127, 7
    %v8383 = vrot.slane %v8228, 6
    %v8384 = vrot.slane %v8230, 6
    %v8385 = vrot.slane %v8331, 6
    %v8386 = vrot.slane %v8333, 6
    %v8391 = vsel %vm171, %v7816, %v8371
    %v8392 = vsel %vm171, %v7818, %v8372
    %v8393 = vsel %vm171, %v7919, %v8373
    %v8394 = vsel %vm171, %v7921, %v8374
    %v8395 = vsel %vm176, %v8391, %v8383
    %v8396 = vsel %vm176, %v8392, %v8384
    %v8397 = vsel %vm176, %v8393, %v8385
    %v8398 = vsel %vm176, %v8394, %v8386
    %v8399 = vrot.slane %v59, 3
    %v8400 = vrot.slane %v60, 3
    %v8401 = vrot.slane %v61, 3
    %v8402 = vrot.slane %v62, 3
    %v8407 = vrot.slane %v63, 2
    %v8408 = vrot.slane %v64, 2
    %v8409 = vrot.slane %v65, 2
    %v8410 = vrot.slane %v66, 2
    %v8415 = vrot.slane %v59, 1
    %v8416 = vrot.slane %v60, 1
    %v8417 = vrot.slane %v61, 1
    %v8418 = vrot.slane %v62, 1
    %v8423 = vsel %vm171, %v8399, %v8407
    %v8424 = vsel %vm171, %v8400, %v8408
    %v8425 = vsel %vm171, %v8401, %v8409
    %v8426 = vsel %vm171, %v8402, %v8410
    %v8427 = vsel %vm176, %v8423, %v147
    %v8428 = vsel %vm176, %v8424, %v148
    %v8429 = vsel %vm176, %v8425, %v149
    %v8430 = vsel %vm176, %v8426, %v150
    %v8431 = vsel %vm181, %v8427, %v155
    %v8432 = vsel %vm181, %v8428, %v156
    %v8433 = vsel %vm181, %v8429, %v157
    %v8434 = vsel %vm181, %v8430, %v158
    %v8435 = vsel %vm186, %v8431, %v8415
    %v8436 = vsel %vm186, %v8432, %v8416
    %v8437 = vsel %vm186, %v8433, %v8417
    %v8438 = vsel %vm186, %v8434, %v8418
    %v8439 = vsel %vm191, %v8435, %v63
    %v8440 = vsel %vm191, %v8436, %v64
    %v8441 = vsel %vm191, %v8437, %v65
    %v8442 = vsel %vm191, %v8438, %v66
    %v8443 = vand.u32 2147483647, %v8439
    %vm8444 = vcmp.le.f32.partialorder %v8443, 0.7853982
    %vm8445 = vcmp.lt.s32.totalorder %v8439, 0
    %v8446 = vand.u32 %v8439, 2139095040
    %v8447 = vshrl.u32 %v8446, 23
    %v8448 = vsub.s32 %v8447, 127
    %v8449 = vand.u32 2147483647, %v8439
    %v8450 = vand.u32 %v8449, 8388607
    %v8451 = vor.u32 %v8450, 8388608
    %v8452 = vsub.s32 0, %v8451
    %v8453 = vadd.s32 %v8448, 1
    %vm8454 = vcmp.gt.s32.totalorder %v8453, 0
    %v8455 = vsel %vm8454, %v8453, 0
    %v8456 = vshrl.u32 %v8455, 5
    %v8457 = vand.u32 %v8455, 31
    %v8458 = vsub.s32 32, %v8457
    %v8459 = vshrl.u32 683565275, %v8458
    %v8460 = vshll.u32 683565275, %v8457
    %v8461 = vshrl.u32 2475754826, %v8458
    %v8462 = vor.u32 %v8460, %v8461
    %v8463 = vshll.u32 2475754826, %v8457
    %v8464 = vshrl.u32 2131351028, %v8458
    %v8465 = vor.u32 %v8463, %v8464
    %v8466 = vshll.u32 2131351028, %v8457
    %v8467 = vshrl.u32 2102212464, %v8458
    %v8468 = vor.u32 %v8466, %v8467
    %v8469 = vshll.u32 2102212464, %v8457
    %v8470 = vshrl.u32 920167782, %v8458
    %v8471 = vor.u32 %v8469, %v8470
    %v8472 = vshll.u32 920167782, %v8457
    %v8473 = vshrl.u32 1326507024, %v8458
    %v8474 = vor.u32 %v8472, %v8473
    %vm8475 = vcmp.lt.s32.totalorder %v8456, 1
    %vm8476 = vcmp.lt.s32.totalorder %v8456, 2
    %vm8477 = vcmp.lt.s32.totalorder %v8456, 3
    %vm8478 = vcmp.lt.s32.totalorder %v8456, 4
    %v8479 = vsel %vm8475, %v8459, %v8462
    %v8480 = vsel %vm8478, %v8468, 2102212464
    %v8481 = vsel %vm8477, %v8465, %v8480
    %v8482 = vsel %vm8476, %v8479, %v8481
    %v8483 = vsel %vm8475, %v8462, %v8465
    %v8484 = vsel %vm8478, %v8471, 920167782
    %v8485 = vsel %vm8477, %v8468, %v8484
    %v8486 = vsel %vm8476, %v8483, %v8485
    %v8487 = vsel %vm8475, %v8465, %v8468
    %v8488 = vsel %vm8478, %v8474, 1326507024
    %v8489 = vsel %vm8477, %v8471, %v8488
    %v8490 = vsel %vm8476, %v8487, %v8489
    %v8491 = vshll.u32 %v8451, 8
    %v8492 = vmul.u32.u64.compose %v8491, %v8490
    %v8493 = vextract.low.u32 %v8492
    %v8494 = vextract.high.u32 %v8492
    %v8495 = vmul.u32.u64.compose %v8491, %v8486
    %v8496 = vextract.low.u32 %v8495
    %v8497 = vextract.high.u32 %v8495
    %v8498 = vmul.u32 %v8491, %v8482
    %v8499 = vadd.s32 %v8494, %v8496
    %vm8500 = vc.u32 %v8494, %v8496
    %v8501 = vadd.s32 %v8497, 1
    %v8502 = vsel %vm8500, %v8501, %v8497
    %v8503 = vadd.s32 %v8498, %v8502
    %v8504 = vadd.s32 %v8503, 536870912
    %v8505 = vshrl.u32 %v8504, 30
    %v8506 = vshll.u32 %v8505, 30
    %v8507 = vsub.s32 %v8503, %v8506
    %vm8508 = vcmp.lt.s32.totalorder %v8507, 0
    %v8509 = vsub.s32 0, %v8507
    %v8510 = vsel %vm8508, %v8509, %v8507
    %v8511 = vclz %v8510
    %v8512 = vsub.s32 %v8511, 2
    %vm8513 = vcmp.gt.s32.totalorder 0, %v8512
    %v8514 = vsel %vm8513, 0, %v8512
    %v8515 = vsub.s32 32, %v8514
    %v8516 = vshll.u32 %v8507, %v8514
    %v8517 = vshrl.u32 %v8499, %v8515
    %v8518 = vor.u32 %v8516, %v8517
    %v8519 = vsub.s32 4294967266, %v8514
    %v8520 = vadd.s32 %v8519, 127
    %v8521 = vshll.u32 %v8520, 23
    %v8522 = vor.u32 4788187, %v8521
    %v8523 = vand.u32 2147483647, %v8522
    %v8525 = vcvt.s32.f32 %v8518
    %v8526 = vmul.f32 %v8525, %v8523
    %v8527 = vxor.u32 %v8526, 2147483648
    %v8528 = vsel %vm8445, %v8527, %v8526
    %v8529 = vsub.s32 4, %v8505
    %v8530 = vsel %vm8445, %v8529, %v8505
    %v8531 = vsel %vm8444, %v8439, %v8528
    %v8532 = vsel %vm8444, 0, %v8530
    %v8533 = vcosq.f32.pop %v8531
    %v8534 = vsinq.f32.pop %v8531
    %vm8535 = vweird.f32 %v8439
    %v8536 = vadd.s32 %v8532, 3
    %v8537 = vand.u32 %v8536, 3
    %vm8538 = vcmp.lt.s32.totalorder %v8537, 2
    %vm8539 = vcmp.eq.s32.totalorder %v8537, 0
    %v8540 = vxor.u32 %v8534, 2147483648
    %v8541 = vsel %vm8539, %v8533, %v8540
    %vm8542 = vcmp.eq.s32.totalorder %v8537, 2
    %v8543 = vxor.u32 %v8533, 2147483648
    %v8544 = vsel %vm8542, %v8543, %v8534
    %v8545 = vsel %vm8538, %v8541, %v8544
    %v8546 = vsel %vm8535, nan, %v8545
    %v8547 = vand.u32 2147483647, %v8440
    %vm8548 = vcmp.le.f32.partialorder %v8547, 0.7853982
    %vm8549 = vcmp.lt.s32.totalorder %v8440, 0
    %v8550 = vand.u32 %v8440, 2139095040
    %v8551 = vshrl.u32 %v8550, 23
    %v8552 = vsub.s32 %v8551, 127
    %v8553 = vand.u32 2147483647, %v8440
    %v8554 = vand.u32 %v8553, 8388607
    %v8555 = vor.u32 %v8554, 8388608
    %v8556 = vsub.s32 0, %v8555
    %v8557 = vadd.s32 %v8552, 1
    %vm8558 = vcmp.gt.s32.totalorder %v8557, 0
    %v8559 = vsel %vm8558, %v8557, 0
    %v8560 = vshrl.u32 %v8559, 5
    %v8561 = vand.u32 %v8559, 31
    %v8562 = vsub.s32 32, %v8561
    %v8563 = vshrl.u32 683565275, %v8562
    %v8564 = vshll.u32 683565275, %v8561
    %v8565 = vshrl.u32 2475754826, %v8562
    %v8566 = vor.u32 %v8564, %v8565
    %v8567 = vshll.u32 2475754826, %v8561
    %v8568 = vshrl.u32 2131351028, %v8562
    %v8569 = vor.u32 %v8567, %v8568
    %v8570 = vshll.u32 2131351028, %v8561
    %v8571 = vshrl.u32 2102212464, %v8562
    %v8572 = vor.u32 %v8570, %v8571
    %v8573 = vshll.u32 2102212464, %v8561
    %v8574 = vshrl.u32 920167782, %v8562
    %v8575 = vor.u32 %v8573, %v8574
    %v8576 = vshll.u32 920167782, %v8561
    %v8577 = vshrl.u32 1326507024, %v8562
    %v8578 = vor.u32 %v8576, %v8577
    %vm8579 = vcmp.lt.s32.totalorder %v8560, 1
    %vm8580 = vcmp.lt.s32.totalorder %v8560, 2
    %vm8581 = vcmp.lt.s32.totalorder %v8560, 3
    %vm8582 = vcmp.lt.s32.totalorder %v8560, 4
    %v8583 = vsel %vm8579, %v8563, %v8566
    %v8584 = vsel %vm8582, %v8572, 2102212464
    %v8585 = vsel %vm8581, %v8569, %v8584
    %v8586 = vsel %vm8580, %v8583, %v8585
    %v8587 = vsel %vm8579, %v8566, %v8569
    %v8588 = vsel %vm8582, %v8575, 920167782
    %v8589 = vsel %vm8581, %v8572, %v8588
    %v8590 = vsel %vm8580, %v8587, %v8589
    %v8591 = vsel %vm8579, %v8569, %v8572
    %v8592 = vsel %vm8582, %v8578, 1326507024
    %v8593 = vsel %vm8581, %v8575, %v8592
    %v8594 = vsel %vm8580, %v8591, %v8593
    %v8595 = vshll.u32 %v8555, 8
    %v8596 = vmul.u32.u64.compose %v8595, %v8594
    %v8597 = vextract.low.u32 %v8596
    %v8598 = vextract.high.u32 %v8596
    %v8599 = vmul.u32.u64.compose %v8595, %v8590
    %v8600 = vextract.low.u32 %v8599
    %v8601 = vextract.high.u32 %v8599
    %v8602 = vmul.u32 %v8595, %v8586
    %v8603 = vadd.s32 %v8598, %v8600
    %vm8604 = vc.u32 %v8598, %v8600
    %v8605 = vadd.s32 %v8601, 1
    %v8606 = vsel %vm8604, %v8605, %v8601
    %v8607 = vadd.s32 %v8602, %v8606
    %v8608 = vadd.s32 %v8607, 536870912
    %v8609 = vshrl.u32 %v8608, 30
    %v8610 = vshll.u32 %v8609, 30
    %v8611 = vsub.s32 %v8607, %v8610
    %vm8612 = vcmp.lt.s32.totalorder %v8611, 0
    %v8613 = vsub.s32 0, %v8611
    %v8614 = vsel %vm8612, %v8613, %v8611
    %v8615 = vclz %v8614
    %v8616 = vsub.s32 %v8615, 2
    %vm8617 = vcmp.gt.s32.totalorder 0, %v8616
    %v8618 = vsel %vm8617, 0, %v8616
    %v8619 = vsub.s32 32, %v8618
    %v8620 = vshll.u32 %v8611, %v8618
    %v8621 = vshrl.u32 %v8603, %v8619
    %v8622 = vor.u32 %v8620, %v8621
    %v8623 = vsub.s32 4294967266, %v8618
    %v8624 = vadd.s32 %v8623, 127
    %v8625 = vshll.u32 %v8624, 23
    %v8626 = vor.u32 4788187, %v8625
    %v8627 = vand.u32 2147483647, %v8626
    %v8629 = vcvt.s32.f32 %v8622
    %v8630 = vmul.f32 %v8629, %v8627
    %v8631 = vxor.u32 %v8630, 2147483648
    %v8632 = vsel %vm8549, %v8631, %v8630
    %v8633 = vsub.s32 4, %v8609
    %v8634 = vsel %vm8549, %v8633, %v8609
    %v8635 = vsel %vm8548, %v8440, %v8632
    %v8636 = vsel %vm8548, 0, %v8634
    %v8637 = vcosq.f32.pop %v8635
    %v8638 = vsinq.f32.pop %v8635
    %vm8639 = vweird.f32 %v8440
    %v8640 = vadd.s32 %v8636, 3
    %v8641 = vand.u32 %v8640, 3
    %vm8642 = vcmp.lt.s32.totalorder %v8641, 2
    %vm8643 = vcmp.eq.s32.totalorder %v8641, 0
    %v8644 = vxor.u32 %v8638, 2147483648
    %v8645 = vsel %vm8643, %v8637, %v8644
    %vm8646 = vcmp.eq.s32.totalorder %v8641, 2
    %v8647 = vxor.u32 %v8637, 2147483648
    %v8648 = vsel %vm8646, %v8647, %v8638
    %v8649 = vsel %vm8642, %v8645, %v8648
    %v8650 = vsel %vm8639, nan, %v8649
    %v8651 = vand.u32 2147483647, %v8441
    %vm8652 = vcmp.le.f32.partialorder %v8651, 0.7853982
    %vm8653 = vcmp.lt.s32.totalorder %v8441, 0
    %v8654 = vand.u32 %v8441, 2139095040
    %v8655 = vshrl.u32 %v8654, 23
    %v8656 = vsub.s32 %v8655, 127
    %v8657 = vand.u32 2147483647, %v8441
    %v8658 = vand.u32 %v8657, 8388607
    %v8659 = vor.u32 %v8658, 8388608
    %v8660 = vsub.s32 0, %v8659
    %v8661 = vadd.s32 %v8656, 1
    %vm8662 = vcmp.gt.s32.totalorder %v8661, 0
    %v8663 = vsel %vm8662, %v8661, 0
    %v8664 = vshrl.u32 %v8663, 5
    %v8665 = vand.u32 %v8663, 31
    %v8666 = vsub.s32 32, %v8665
    %v8667 = vshrl.u32 683565275, %v8666
    %v8668 = vshll.u32 683565275, %v8665
    %v8669 = vshrl.u32 2475754826, %v8666
    %v8670 = vor.u32 %v8668, %v8669
    %v8671 = vshll.u32 2475754826, %v8665
    %v8672 = vshrl.u32 2131351028, %v8666
    %v8673 = vor.u32 %v8671, %v8672
    %v8674 = vshll.u32 2131351028, %v8665
    %v8675 = vshrl.u32 2102212464, %v8666
    %v8676 = vor.u32 %v8674, %v8675
    %v8677 = vshll.u32 2102212464, %v8665
    %v8678 = vshrl.u32 920167782, %v8666
    %v8679 = vor.u32 %v8677, %v8678
    %v8680 = vshll.u32 920167782, %v8665
    %v8681 = vshrl.u32 1326507024, %v8666
    %v8682 = vor.u32 %v8680, %v8681
    %vm8683 = vcmp.lt.s32.totalorder %v8664, 1
    %vm8684 = vcmp.lt.s32.totalorder %v8664, 2
    %vm8685 = vcmp.lt.s32.totalorder %v8664, 3
    %vm8686 = vcmp.lt.s32.totalorder %v8664, 4
    %v8687 = vsel %vm8683, %v8667, %v8670
    %v8688 = vsel %vm8686, %v8676, 2102212464
    %v8689 = vsel %vm8685, %v8673, %v8688
    %v8690 = vsel %vm8684, %v8687, %v8689
    %v8691 = vsel %vm8683, %v8670, %v8673
    %v8692 = vsel %vm8686, %v8679, 920167782
    %v8693 = vsel %vm8685, %v8676, %v8692
    %v8694 = vsel %vm8684, %v8691, %v8693
    %v8695 = vsel %vm8683, %v8673, %v8676
    %v8696 = vsel %vm8686, %v8682, 1326507024
    %v8697 = vsel %vm8685, %v8679, %v8696
    %v8698 = vsel %vm8684, %v8695, %v8697
    %v8699 = vshll.u32 %v8659, 8
    %v8700 = vmul.u32.u64.compose %v8699, %v8698
    %v8701 = vextract.low.u32 %v8700
    %v8702 = vextract.high.u32 %v8700
    %v8703 = vmul.u32.u64.compose %v8699, %v8694
    %v8704 = vextract.low.u32 %v8703
    %v8705 = vextract.high.u32 %v8703
    %v8706 = vmul.u32 %v8699, %v8690
    %v8707 = vadd.s32 %v8702, %v8704
    %vm8708 = vc.u32 %v8702, %v8704
    %v8709 = vadd.s32 %v8705, 1
    %v8710 = vsel %vm8708, %v8709, %v8705
    %v8711 = vadd.s32 %v8706, %v8710
    %v8712 = vadd.s32 %v8711, 536870912
    %v8713 = vshrl.u32 %v8712, 30
    %v8714 = vshll.u32 %v8713, 30
    %v8715 = vsub.s32 %v8711, %v8714
    %vm8716 = vcmp.lt.s32.totalorder %v8715, 0
    %v8717 = vsub.s32 0, %v8715
    %v8718 = vsel %vm8716, %v8717, %v8715
    %v8719 = vclz %v8718
    %v8720 = vsub.s32 %v8719, 2
    %vm8721 = vcmp.gt.s32.totalorder 0, %v8720
    %v8722 = vsel %vm8721, 0, %v8720
    %v8723 = vsub.s32 32, %v8722
    %v8724 = vshll.u32 %v8715, %v8722
    %v8725 = vshrl.u32 %v8707, %v8723
    %v8726 = vor.u32 %v8724, %v8725
    %v8727 = vsub.s32 4294967266, %v8722
    %v8728 = vadd.s32 %v8727, 127
    %v8729 = vshll.u32 %v8728, 23
    %v8730 = vor.u32 4788187, %v8729
    %v8731 = vand.u32 2147483647, %v8730
    %v8733 = vcvt.s32.f32 %v8726
    %v8734 = vmul.f32 %v8733, %v8731
    %v8735 = vxor.u32 %v8734, 2147483648
    %v8736 = vsel %vm8653, %v8735, %v8734
    %v8737 = vsub.s32 4, %v8713
    %v8738 = vsel %vm8653, %v8737, %v8713
    %v8739 = vsel %vm8652, %v8441, %v8736
    %v8740 = vsel %vm8652, 0, %v8738
    %v8741 = vcosq.f32.pop %v8739
    %v8742 = vsinq.f32.pop %v8739
    %vm8743 = vweird.f32 %v8441
    %v8744 = vadd.s32 %v8740, 3
    %v8745 = vand.u32 %v8744, 3
    %vm8746 = vcmp.lt.s32.totalorder %v8745, 2
    %vm8747 = vcmp.eq.s32.totalorder %v8745, 0
    %v8748 = vxor.u32 %v8742, 2147483648
    %v8749 = vsel %vm8747, %v8741, %v8748
    %vm8750 = vcmp.eq.s32.totalorder %v8745, 2
    %v8751 = vxor.u32 %v8741, 2147483648
    %v8752 = vsel %vm8750, %v8751, %v8742
    %v8753 = vsel %vm8746, %v8749, %v8752
    %v8754 = vsel %vm8743, nan, %v8753
    %v8755 = vand.u32 2147483647, %v8442
    %vm8756 = vcmp.le.f32.partialorder %v8755, 0.7853982
    %vm8757 = vcmp.lt.s32.totalorder %v8442, 0
    %v8758 = vand.u32 %v8442, 2139095040
    %v8759 = vshrl.u32 %v8758, 23
    %v8760 = vsub.s32 %v8759, 127
    %v8761 = vand.u32 2147483647, %v8442
    %v8762 = vand.u32 %v8761, 8388607
    %v8763 = vor.u32 %v8762, 8388608
    %v8764 = vsub.s32 0, %v8763
    %v8765 = vadd.s32 %v8760, 1
    %vm8766 = vcmp.gt.s32.totalorder %v8765, 0
    %v8767 = vsel %vm8766, %v8765, 0
    %v8768 = vshrl.u32 %v8767, 5
    %v8769 = vand.u32 %v8767, 31
    %v8770 = vsub.s32 32, %v8769
    %v8771 = vshrl.u32 683565275, %v8770
    %v8772 = vshll.u32 683565275, %v8769
    %v8773 = vshrl.u32 2475754826, %v8770
    %v8774 = vor.u32 %v8772, %v8773
    %v8775 = vshll.u32 2475754826, %v8769
    %v8776 = vshrl.u32 2131351028, %v8770
    %v8777 = vor.u32 %v8775, %v8776
    %v8778 = vshll.u32 2131351028, %v8769
    %v8779 = vshrl.u32 2102212464, %v8770
    %v8780 = vor.u32 %v8778, %v8779
    %v8781 = vshll.u32 2102212464, %v8769
    %v8782 = vshrl.u32 920167782, %v8770
    %v8783 = vor.u32 %v8781, %v8782
    %v8784 = vshll.u32 920167782, %v8769
    %v8785 = vshrl.u32 1326507024, %v8770
    %v8786 = vor.u32 %v8784, %v8785
    %vm8787 = vcmp.lt.s32.totalorder %v8768, 1
    %vm8788 = vcmp.lt.s32.totalorder %v8768, 2
    %vm8789 = vcmp.lt.s32.totalorder %v8768, 3
    %vm8790 = vcmp.lt.s32.totalorder %v8768, 4
    %v8791 = vsel %vm8787, %v8771, %v8774
    %v8792 = vsel %vm8790, %v8780, 2102212464
    %v8793 = vsel %vm8789, %v8777, %v8792
    %v8794 = vsel %vm8788, %v8791, %v8793
    %v8795 = vsel %vm8787, %v8774, %v8777
    %v8796 = vsel %vm8790, %v8783, 920167782
    %v8797 = vsel %vm8789, %v8780, %v8796
    %v8798 = vsel %vm8788, %v8795, %v8797
    %v8799 = vsel %vm8787, %v8777, %v8780
    %v8800 = vsel %vm8790, %v8786, 1326507024
    %v8801 = vsel %vm8789, %v8783, %v8800
    %v8802 = vsel %vm8788, %v8799, %v8801
    %v8803 = vshll.u32 %v8763, 8
    %v8804 = vmul.u32.u64.compose %v8803, %v8802
    %v8805 = vextract.low.u32 %v8804
    %v8806 = vextract.high.u32 %v8804
    %v8807 = vmul.u32.u64.compose %v8803, %v8798
    %v8808 = vextract.low.u32 %v8807
    %v8809 = vextract.high.u32 %v8807
    %v8810 = vmul.u32 %v8803, %v8794
    %v8811 = vadd.s32 %v8806, %v8808
    %vm8812 = vc.u32 %v8806, %v8808
    %v8813 = vadd.s32 %v8809, 1
    %v8814 = vsel %vm8812, %v8813, %v8809
    %v8815 = vadd.s32 %v8810, %v8814
    %v8816 = vadd.s32 %v8815, 536870912
    %v8817 = vshrl.u32 %v8816, 30
    %v8818 = vshll.u32 %v8817, 30
    %v8819 = vsub.s32 %v8815, %v8818
    %vm8820 = vcmp.lt.s32.totalorder %v8819, 0
    %v8821 = vsub.s32 0, %v8819
    %v8822 = vsel %vm8820, %v8821, %v8819
    %v8823 = vclz %v8822
    %v8824 = vsub.s32 %v8823, 2
    %vm8825 = vcmp.gt.s32.totalorder 0, %v8824
    %v8826 = vsel %vm8825, 0, %v8824
    %v8827 = vsub.s32 32, %v8826
    %v8828 = vshll.u32 %v8819, %v8826
    %v8829 = vshrl.u32 %v8811, %v8827
    %v8830 = vor.u32 %v8828, %v8829
    %v8831 = vsub.s32 4294967266, %v8826
    %v8832 = vadd.s32 %v8831, 127
    %v8833 = vshll.u32 %v8832, 23
    %v8834 = vor.u32 4788187, %v8833
    %v8835 = vand.u32 2147483647, %v8834
    %v8837 = vcvt.s32.f32 %v8830
    %v8838 = vmul.f32 %v8837, %v8835
    %v8839 = vxor.u32 %v8838, 2147483648
    %v8840 = vsel %vm8757, %v8839, %v8838
    %v8841 = vsub.s32 4, %v8817
    %v8842 = vsel %vm8757, %v8841, %v8817
    %v8843 = vsel %vm8756, %v8442, %v8840
    %v8844 = vsel %vm8756, 0, %v8842
    %v8845 = vcosq.f32.pop %v8843
    %v8846 = vsinq.f32.pop %v8843
    %vm8847 = vweird.f32 %v8442
    %v8848 = vadd.s32 %v8844, 3
    %v8849 = vand.u32 %v8848, 3
    %vm8850 = vcmp.lt.s32.totalorder %v8849, 2
    %vm8851 = vcmp.eq.s32.totalorder %v8849, 0
    %v8852 = vxor.u32 %v8846, 2147483648
    %v8853 = vsel %vm8851, %v8845, %v8852
    %vm8854 = vcmp.eq.s32.totalorder %v8849, 2
    %v8855 = vxor.u32 %v8845, 2147483648
    %v8856 = vsel %vm8854, %v8855, %v8846
    %v8857 = vsel %vm8850, %v8853, %v8856
    %v8858 = vsel %vm8847, nan, %v8857
    %v8859 = vand.u32 2147483647, %v8439
    %vm8860 = vcmp.le.f32.partialorder %v8859, 0.7853982
    %vm8861 = vcmp.lt.s32.totalorder %v8439, 0
    %v8862 = vand.u32 %v8439, 2139095040
    %v8863 = vshrl.u32 %v8862, 23
    %v8864 = vsub.s32 %v8863, 127
    %v8865 = vand.u32 2147483647, %v8439
    %v8866 = vand.u32 %v8865, 8388607
    %v8867 = vor.u32 %v8866, 8388608
    %v8868 = vsub.s32 0, %v8867
    %v8869 = vadd.s32 %v8864, 1
    %vm8870 = vcmp.gt.s32.totalorder %v8869, 0
    %v8871 = vsel %vm8870, %v8869, 0
    %v8872 = vshrl.u32 %v8871, 5
    %v8873 = vand.u32 %v8871, 31
    %v8874 = vsub.s32 32, %v8873
    %v8875 = vshrl.u32 683565275, %v8874
    %v8876 = vshll.u32 683565275, %v8873
    %v8877 = vshrl.u32 2475754826, %v8874
    %v8878 = vor.u32 %v8876, %v8877
    %v8879 = vshll.u32 2475754826, %v8873
    %v8880 = vshrl.u32 2131351028, %v8874
    %v8881 = vor.u32 %v8879, %v8880
    %v8882 = vshll.u32 2131351028, %v8873
    %v8883 = vshrl.u32 2102212464, %v8874
    %v8884 = vor.u32 %v8882, %v8883
    %v8885 = vshll.u32 2102212464, %v8873
    %v8886 = vshrl.u32 920167782, %v8874
    %v8887 = vor.u32 %v8885, %v8886
    %v8888 = vshll.u32 920167782, %v8873
    %v8889 = vshrl.u32 1326507024, %v8874
    %v8890 = vor.u32 %v8888, %v8889
    %vm8891 = vcmp.lt.s32.totalorder %v8872, 1
    %vm8892 = vcmp.lt.s32.totalorder %v8872, 2
    %vm8893 = vcmp.lt.s32.totalorder %v8872, 3
    %vm8894 = vcmp.lt.s32.totalorder %v8872, 4
    %v8895 = vsel %vm8891, %v8875, %v8878
    %v8896 = vsel %vm8894, %v8884, 2102212464
    %v8897 = vsel %vm8893, %v8881, %v8896
    %v8898 = vsel %vm8892, %v8895, %v8897
    %v8899 = vsel %vm8891, %v8878, %v8881
    %v8900 = vsel %vm8894, %v8887, 920167782
    %v8901 = vsel %vm8893, %v8884, %v8900
    %v8902 = vsel %vm8892, %v8899, %v8901
    %v8903 = vsel %vm8891, %v8881, %v8884
    %v8904 = vsel %vm8894, %v8890, 1326507024
    %v8905 = vsel %vm8893, %v8887, %v8904
    %v8906 = vsel %vm8892, %v8903, %v8905
    %v8907 = vshll.u32 %v8867, 8
    %v8908 = vmul.u32.u64.compose %v8907, %v8906
    %v8909 = vextract.low.u32 %v8908
    %v8910 = vextract.high.u32 %v8908
    %v8911 = vmul.u32.u64.compose %v8907, %v8902
    %v8912 = vextract.low.u32 %v8911
    %v8913 = vextract.high.u32 %v8911
    %v8914 = vmul.u32 %v8907, %v8898
    %v8915 = vadd.s32 %v8910, %v8912
    %vm8916 = vc.u32 %v8910, %v8912
    %v8917 = vadd.s32 %v8913, 1
    %v8918 = vsel %vm8916, %v8917, %v8913
    %v8919 = vadd.s32 %v8914, %v8918
    %v8920 = vadd.s32 %v8919, 536870912
    %v8921 = vshrl.u32 %v8920, 30
    %v8922 = vshll.u32 %v8921, 30
    %v8923 = vsub.s32 %v8919, %v8922
    %vm8924 = vcmp.lt.s32.totalorder %v8923, 0
    %v8925 = vsub.s32 0, %v8923
    %v8926 = vsel %vm8924, %v8925, %v8923
    %v8927 = vclz %v8926
    %v8928 = vsub.s32 %v8927, 2
    %vm8929 = vcmp.gt.s32.totalorder 0, %v8928
    %v8930 = vsel %vm8929, 0, %v8928
    %v8931 = vsub.s32 32, %v8930
    %v8932 = vshll.u32 %v8923, %v8930
    %v8933 = vshrl.u32 %v8915, %v8931
    %v8934 = vor.u32 %v8932, %v8933
    %v8935 = vsub.s32 4294967266, %v8930
    %v8936 = vadd.s32 %v8935, 127
    %v8937 = vshll.u32 %v8936, 23
    %v8938 = vor.u32 4788187, %v8937
    %v8939 = vand.u32 2147483647, %v8938
    %v8941 = vcvt.s32.f32 %v8934
    %v8942 = vmul.f32 %v8941, %v8939
    %v8943 = vxor.u32 %v8942, 2147483648
    %v8944 = vsel %vm8861, %v8943, %v8942
    %v8945 = vsub.s32 4, %v8921
    %v8946 = vsel %vm8861, %v8945, %v8921
    %v8947 = vsel %vm8860, %v8439, %v8944
    %v8948 = vsel %vm8860, 0, %v8946
    %v8949 = vcosq.f32.pop %v8947
    %v8950 = vsinq.f32.pop %v8947
    %vm8951 = vweird.f32 %v8439
    %v8952 = vand.u32 %v8948, 3
    %vm8953 = vcmp.lt.s32.totalorder %v8952, 2
    %vm8954 = vcmp.eq.s32.totalorder %v8952, 0
    %v8955 = vxor.u32 %v8950, 2147483648
    %v8956 = vsel %vm8954, %v8949, %v8955
    %vm8957 = vcmp.eq.s32.totalorder %v8952, 2
    %v8958 = vxor.u32 %v8949, 2147483648
    %v8959 = vsel %vm8957, %v8958, %v8950
    %v8960 = vsel %vm8953, %v8956, %v8959
    %v8961 = vsel %vm8951, nan, %v8960
    %v8962 = vand.u32 2147483647, %v8440
    %vm8963 = vcmp.le.f32.partialorder %v8962, 0.7853982
    %vm8964 = vcmp.lt.s32.totalorder %v8440, 0
    %v8965 = vand.u32 %v8440, 2139095040
    %v8966 = vshrl.u32 %v8965, 23
    %v8967 = vsub.s32 %v8966, 127
    %v8968 = vand.u32 2147483647, %v8440
    %v8969 = vand.u32 %v8968, 8388607
    %v8970 = vor.u32 %v8969, 8388608
    %v8971 = vsub.s32 0, %v8970
    %v8972 = vadd.s32 %v8967, 1
    %vm8973 = vcmp.gt.s32.totalorder %v8972, 0
    %v8974 = vsel %vm8973, %v8972, 0
    %v8975 = vshrl.u32 %v8974, 5
    %v8976 = vand.u32 %v8974, 31
    %v8977 = vsub.s32 32, %v8976
    %v8978 = vshrl.u32 683565275, %v8977
    %v8979 = vshll.u32 683565275, %v8976
    %v8980 = vshrl.u32 2475754826, %v8977
    %v8981 = vor.u32 %v8979, %v8980
    %v8982 = vshll.u32 2475754826, %v8976
    %v8983 = vshrl.u32 2131351028, %v8977
    %v8984 = vor.u32 %v8982, %v8983
    %v8985 = vshll.u32 2131351028, %v8976
    %v8986 = vshrl.u32 2102212464, %v8977
    %v8987 = vor.u32 %v8985, %v8986
    %v8988 = vshll.u32 2102212464, %v8976
    %v8989 = vshrl.u32 920167782, %v8977
    %v8990 = vor.u32 %v8988, %v8989
    %v8991 = vshll.u32 920167782, %v8976
    %v8992 = vshrl.u32 1326507024, %v8977
    %v8993 = vor.u32 %v8991, %v8992
    %vm8994 = vcmp.lt.s32.totalorder %v8975, 1
    %vm8995 = vcmp.lt.s32.totalorder %v8975, 2
    %vm8996 = vcmp.lt.s32.totalorder %v8975, 3
    %vm8997 = vcmp.lt.s32.totalorder %v8975, 4
    %v8998 = vsel %vm8994, %v8978, %v8981
    %v8999 = vsel %vm8997, %v8987, 2102212464
    %v9000 = vsel %vm8996, %v8984, %v8999
    %v9001 = vsel %vm8995, %v8998, %v9000
    %v9002 = vsel %vm8994, %v8981, %v8984
    %v9003 = vsel %vm8997, %v8990, 920167782
    %v9004 = vsel %vm8996, %v8987, %v9003
    %v9005 = vsel %vm8995, %v9002, %v9004
    %v9006 = vsel %vm8994, %v8984, %v8987
    %v9007 = vsel %vm8997, %v8993, 1326507024
    %v9008 = vsel %vm8996, %v8990, %v9007
    %v9009 = vsel %vm8995, %v9006, %v9008
    %v9010 = vshll.u32 %v8970, 8
    %v9011 = vmul.u32.u64.compose %v9010, %v9009
    %v9012 = vextract.low.u32 %v9011
    %v9013 = vextract.high.u32 %v9011
    %v9014 = vmul.u32.u64.compose %v9010, %v9005
    %v9015 = vextract.low.u32 %v9014
    %v9016 = vextract.high.u32 %v9014
    %v9017 = vmul.u32 %v9010, %v9001
    %v9018 = vadd.s32 %v9013, %v9015
    %vm9019 = vc.u32 %v9013, %v9015
    %v9020 = vadd.s32 %v9016, 1
    %v9021 = vsel %vm9019, %v9020, %v9016
    %v9022 = vadd.s32 %v9017, %v9021
    %v9023 = vadd.s32 %v9022, 536870912
    %v9024 = vshrl.u32 %v9023, 30
    %v9025 = vshll.u32 %v9024, 30
    %v9026 = vsub.s32 %v9022, %v9025
    %vm9027 = vcmp.lt.s32.totalorder %v9026, 0
    %v9028 = vsub.s32 0, %v9026
    %v9029 = vsel %vm9027, %v9028, %v9026
    %v9030 = vclz %v9029
    %v9031 = vsub.s32 %v9030, 2
    %vm9032 = vcmp.gt.s32.totalorder 0, %v9031
    %v9033 = vsel %vm9032, 0, %v9031
    %v9034 = vsub.s32 32, %v9033
    %v9035 = vshll.u32 %v9026, %v9033
    %v9036 = vshrl.u32 %v9018, %v9034
    %v9037 = vor.u32 %v9035, %v9036
    %v9038 = vsub.s32 4294967266, %v9033
    %v9039 = vadd.s32 %v9038, 127
    %v9040 = vshll.u32 %v9039, 23
    %v9041 = vor.u32 4788187, %v9040
    %v9042 = vand.u32 2147483647, %v9041
    %v9044 = vcvt.s32.f32 %v9037
    %v9045 = vmul.f32 %v9044, %v9042
    %v9046 = vxor.u32 %v9045, 2147483648
    %v9047 = vsel %vm8964, %v9046, %v9045
    %v9048 = vsub.s32 4, %v9024
    %v9049 = vsel %vm8964, %v9048, %v9024
    %v9050 = vsel %vm8963, %v8440, %v9047
    %v9051 = vsel %vm8963, 0, %v9049
    %v9052 = vcosq.f32.pop %v9050
    %v9053 = vsinq.f32.pop %v9050
    %vm9054 = vweird.f32 %v8440
    %v9055 = vand.u32 %v9051, 3
    %vm9056 = vcmp.lt.s32.totalorder %v9055, 2
    %vm9057 = vcmp.eq.s32.totalorder %v9055, 0
    %v9058 = vxor.u32 %v9053, 2147483648
    %v9059 = vsel %vm9057, %v9052, %v9058
    %vm9060 = vcmp.eq.s32.totalorder %v9055, 2
    %v9061 = vxor.u32 %v9052, 2147483648
    %v9062 = vsel %vm9060, %v9061, %v9053
    %v9063 = vsel %vm9056, %v9059, %v9062
    %v9064 = vsel %vm9054, nan, %v9063
    %v9065 = vand.u32 2147483647, %v8441
    %vm9066 = vcmp.le.f32.partialorder %v9065, 0.7853982
    %vm9067 = vcmp.lt.s32.totalorder %v8441, 0
    %v9068 = vand.u32 %v8441, 2139095040
    %v9069 = vshrl.u32 %v9068, 23
    %v9070 = vsub.s32 %v9069, 127
    %v9071 = vand.u32 2147483647, %v8441
    %v9072 = vand.u32 %v9071, 8388607
    %v9073 = vor.u32 %v9072, 8388608
    %v9074 = vsub.s32 0, %v9073
    %v9075 = vadd.s32 %v9070, 1
    %vm9076 = vcmp.gt.s32.totalorder %v9075, 0
    %v9077 = vsel %vm9076, %v9075, 0
    %v9078 = vshrl.u32 %v9077, 5
    %v9079 = vand.u32 %v9077, 31
    %v9080 = vsub.s32 32, %v9079
    %v9081 = vshrl.u32 683565275, %v9080
    %v9082 = vshll.u32 683565275, %v9079
    %v9083 = vshrl.u32 2475754826, %v9080
    %v9084 = vor.u32 %v9082, %v9083
    %v9085 = vshll.u32 2475754826, %v9079
    %v9086 = vshrl.u32 2131351028, %v9080
    %v9087 = vor.u32 %v9085, %v9086
    %v9088 = vshll.u32 2131351028, %v9079
    %v9089 = vshrl.u32 2102212464, %v9080
    %v9090 = vor.u32 %v9088, %v9089
    %v9091 = vshll.u32 2102212464, %v9079
    %v9092 = vshrl.u32 920167782, %v9080
    %v9093 = vor.u32 %v9091, %v9092
    %v9094 = vshll.u32 920167782, %v9079
    %v9095 = vshrl.u32 1326507024, %v9080
    %v9096 = vor.u32 %v9094, %v9095
    %vm9097 = vcmp.lt.s32.totalorder %v9078, 1
    %vm9098 = vcmp.lt.s32.totalorder %v9078, 2
    %vm9099 = vcmp.lt.s32.totalorder %v9078, 3
    %vm9100 = vcmp.lt.s32.totalorder %v9078, 4
    %v9101 = vsel %vm9097, %v9081, %v9084
    %v9102 = vsel %vm9100, %v9090, 2102212464
    %v9103 = vsel %vm9099, %v9087, %v9102
    %v9104 = vsel %vm9098, %v9101, %v9103
    %v9105 = vsel %vm9097, %v9084, %v9087
    %v9106 = vsel %vm9100, %v9093, 920167782
    %v9107 = vsel %vm9099, %v9090, %v9106
    %v9108 = vsel %vm9098, %v9105, %v9107
    %v9109 = vsel %vm9097, %v9087, %v9090
    %v9110 = vsel %vm9100, %v9096, 1326507024
    %v9111 = vsel %vm9099, %v9093, %v9110
    %v9112 = vsel %vm9098, %v9109, %v9111
    %v9113 = vshll.u32 %v9073, 8
    %v9114 = vmul.u32.u64.compose %v9113, %v9112
    %v9115 = vextract.low.u32 %v9114
    %v9116 = vextract.high.u32 %v9114
    %v9117 = vmul.u32.u64.compose %v9113, %v9108
    %v9118 = vextract.low.u32 %v9117
    %v9119 = vextract.high.u32 %v9117
    %v9120 = vmul.u32 %v9113, %v9104
    %v9121 = vadd.s32 %v9116, %v9118
    %vm9122 = vc.u32 %v9116, %v9118
    %v9123 = vadd.s32 %v9119, 1
    %v9124 = vsel %vm9122, %v9123, %v9119
    %v9125 = vadd.s32 %v9120, %v9124
    %v9126 = vadd.s32 %v9125, 536870912
    %v9127 = vshrl.u32 %v9126, 30
    %v9128 = vshll.u32 %v9127, 30
    %v9129 = vsub.s32 %v9125, %v9128
    %vm9130 = vcmp.lt.s32.totalorder %v9129, 0
    %v9131 = vsub.s32 0, %v9129
    %v9132 = vsel %vm9130, %v9131, %v9129
    %v9133 = vclz %v9132
    %v9134 = vsub.s32 %v9133, 2
    %vm9135 = vcmp.gt.s32.totalorder 0, %v9134
    %v9136 = vsel %vm9135, 0, %v9134
    %v9137 = vsub.s32 32, %v9136
    %v9138 = vshll.u32 %v9129, %v9136
    %v9139 = vshrl.u32 %v9121, %v9137
    %v9140 = vor.u32 %v9138, %v9139
    %v9141 = vsub.s32 4294967266, %v9136
    %v9142 = vadd.s32 %v9141, 127
    %v9143 = vshll.u32 %v9142, 23
    %v9144 = vor.u32 4788187, %v9143
    %v9145 = vand.u32 2147483647, %v9144
    %v9147 = vcvt.s32.f32 %v9140
    %v9148 = vmul.f32 %v9147, %v9145
    %v9149 = vxor.u32 %v9148, 2147483648
    %v9150 = vsel %vm9067, %v9149, %v9148
    %v9151 = vsub.s32 4, %v9127
    %v9152 = vsel %vm9067, %v9151, %v9127
    %v9153 = vsel %vm9066, %v8441, %v9150
    %v9154 = vsel %vm9066, 0, %v9152
    %v9155 = vcosq.f32.pop %v9153
    %v9156 = vsinq.f32.pop %v9153
    %vm9157 = vweird.f32 %v8441
    %v9158 = vand.u32 %v9154, 3
    %vm9159 = vcmp.lt.s32.totalorder %v9158, 2
    %vm9160 = vcmp.eq.s32.totalorder %v9158, 0
    %v9161 = vxor.u32 %v9156, 2147483648
    %v9162 = vsel %vm9160, %v9155, %v9161
    %vm9163 = vcmp.eq.s32.totalorder %v9158, 2
    %v9164 = vxor.u32 %v9155, 2147483648
    %v9165 = vsel %vm9163, %v9164, %v9156
    %v9166 = vsel %vm9159, %v9162, %v9165
    %v9167 = vsel %vm9157, nan, %v9166
    %v9168 = vand.u32 2147483647, %v8442
    %vm9169 = vcmp.le.f32.partialorder %v9168, 0.7853982
    %vm9170 = vcmp.lt.s32.totalorder %v8442, 0
    %v9171 = vand.u32 %v8442, 2139095040
    %v9172 = vshrl.u32 %v9171, 23
    %v9173 = vsub.s32 %v9172, 127
    %v9174 = vand.u32 2147483647, %v8442
    %v9175 = vand.u32 %v9174, 8388607
    %v9176 = vor.u32 %v9175, 8388608
    %v9177 = vsub.s32 0, %v9176
    %v9178 = vadd.s32 %v9173, 1
    %vm9179 = vcmp.gt.s32.totalorder %v9178, 0
    %v9180 = vsel %vm9179, %v9178, 0
    %v9181 = vshrl.u32 %v9180, 5
    %v9182 = vand.u32 %v9180, 31
    %v9183 = vsub.s32 32, %v9182
    %v9184 = vshrl.u32 683565275, %v9183
    %v9185 = vshll.u32 683565275, %v9182
    %v9186 = vshrl.u32 2475754826, %v9183
    %v9187 = vor.u32 %v9185, %v9186
    %v9188 = vshll.u32 2475754826, %v9182
    %v9189 = vshrl.u32 2131351028, %v9183
    %v9190 = vor.u32 %v9188, %v9189
    %v9191 = vshll.u32 2131351028, %v9182
    %v9192 = vshrl.u32 2102212464, %v9183
    %v9193 = vor.u32 %v9191, %v9192
    %v9194 = vshll.u32 2102212464, %v9182
    %v9195 = vshrl.u32 920167782, %v9183
    %v9196 = vor.u32 %v9194, %v9195
    %v9197 = vshll.u32 920167782, %v9182
    %v9198 = vshrl.u32 1326507024, %v9183
    %v9199 = vor.u32 %v9197, %v9198
    %vm9200 = vcmp.lt.s32.totalorder %v9181, 1
    %vm9201 = vcmp.lt.s32.totalorder %v9181, 2
    %vm9202 = vcmp.lt.s32.totalorder %v9181, 3
    %vm9203 = vcmp.lt.s32.totalorder %v9181, 4
    %v9204 = vsel %vm9200, %v9184, %v9187
    %v9205 = vsel %vm9203, %v9193, 2102212464
    %v9206 = vsel %vm9202, %v9190, %v9205
    %v9207 = vsel %vm9201, %v9204, %v9206
    %v9208 = vsel %vm9200, %v9187, %v9190
    %v9209 = vsel %vm9203, %v9196, 920167782
    %v9210 = vsel %vm9202, %v9193, %v9209
    %v9211 = vsel %vm9201, %v9208, %v9210
    %v9212 = vsel %vm9200, %v9190, %v9193
    %v9213 = vsel %vm9203, %v9199, 1326507024
    %v9214 = vsel %vm9202, %v9196, %v9213
    %v9215 = vsel %vm9201, %v9212, %v9214
    %v9216 = vshll.u32 %v9176, 8
    %v9217 = vmul.u32.u64.compose %v9216, %v9215
    %v9218 = vextract.low.u32 %v9217
    %v9219 = vextract.high.u32 %v9217
    %v9220 = vmul.u32.u64.compose %v9216, %v9211
    %v9221 = vextract.low.u32 %v9220
    %v9222 = vextract.high.u32 %v9220
    %v9223 = vmul.u32 %v9216, %v9207
    %v9224 = vadd.s32 %v9219, %v9221
    %vm9225 = vc.u32 %v9219, %v9221
    %v9226 = vadd.s32 %v9222, 1
    %v9227 = vsel %vm9225, %v9226, %v9222
    %v9228 = vadd.s32 %v9223, %v9227
    %v9229 = vadd.s32 %v9228, 536870912
    %v9230 = vshrl.u32 %v9229, 30
    %v9231 = vshll.u32 %v9230, 30
    %v9232 = vsub.s32 %v9228, %v9231
    %vm9233 = vcmp.lt.s32.totalorder %v9232, 0
    %v9234 = vsub.s32 0, %v9232
    %v9235 = vsel %vm9233, %v9234, %v9232
    %v9236 = vclz %v9235
    %v9237 = vsub.s32 %v9236, 2
    %vm9238 = vcmp.gt.s32.totalorder 0, %v9237
    %v9239 = vsel %vm9238, 0, %v9237
    %v9240 = vsub.s32 32, %v9239
    %v9241 = vshll.u32 %v9232, %v9239
    %v9242 = vshrl.u32 %v9224, %v9240
    %v9243 = vor.u32 %v9241, %v9242
    %v9244 = vsub.s32 4294967266, %v9239
    %v9245 = vadd.s32 %v9244, 127
    %v9246 = vshll.u32 %v9245, 23
    %v9247 = vor.u32 4788187, %v9246
    %v9248 = vand.u32 2147483647, %v9247
    %v9250 = vcvt.s32.f32 %v9243
    %v9251 = vmul.f32 %v9250, %v9248
    %v9252 = vxor.u32 %v9251, 2147483648
    %v9253 = vsel %vm9170, %v9252, %v9251
    %v9254 = vsub.s32 4, %v9230
    %v9255 = vsel %vm9170, %v9254, %v9230
    %v9256 = vsel %vm9169, %v8442, %v9253
    %v9257 = vsel %vm9169, 0, %v9255
    %v9258 = vcosq.f32.pop %v9256
    %v9259 = vsinq.f32.pop %v9256
    %vm9260 = vweird.f32 %v8442
    %v9261 = vand.u32 %v9257, 3
    %vm9262 = vcmp.lt.s32.totalorder %v9261, 2
    %vm9263 = vcmp.eq.s32.totalorder %v9261, 0
    %v9264 = vxor.u32 %v9259, 2147483648
    %v9265 = vsel %vm9263, %v9258, %v9264
    %vm9266 = vcmp.eq.s32.totalorder %v9261, 2
    %v9267 = vxor.u32 %v9258, 2147483648
    %v9268 = vsel %vm9266, %v9267, %v9259
    %v9269 = vsel %vm9262, %v9265, %v9268
    %v9270 = vsel %vm9260, nan, %v9269
    %v9275 = vrot.slane %v55, 3
    %v9276 = vrot.slane %v56, 3
    %v9277 = vrot.slane %v57, 3
    %v9278 = vrot.slane %v58, 3
    %v9287 = vrot.slane %v8546, 5
    %v9288 = vrot.slane %v8650, 5
    %v9289 = vrot.slane %v8754, 5
    %v9290 = vrot.slane %v8858, 5
    %v9299 = vrot.slane %v8961, 3
    %v9300 = vrot.slane %v9064, 3
    %v9301 = vrot.slane %v9167, 3
    %v9302 = vrot.slane %v9270, 3
    %v9307 = vrot.slane %v8546, 3
    %v9308 = vrot.slane %v8650, 3
    %v9309 = vrot.slane %v8754, 3
    %v9310 = vrot.slane %v8858, 3
    %v9315 = vrot.slane %v8961, 1
    %v9316 = vrot.slane %v9064, 1
    %v9317 = vrot.slane %v9167, 1
    %v9318 = vrot.slane %v9270, 1
    %v9323 = vrot.slane %v8546, 1
    %v9324 = vrot.slane %v8650, 1
    %v9325 = vrot.slane %v8754, 1
    %v9326 = vrot.slane %v8858, 1
    %v9331 = vrot.slane %v8961, 7
    %v9332 = vrot.slane %v9064, 7
    %v9333 = vrot.slane %v9167, 7
    %v9334 = vrot.slane %v9270, 7
    %v9339 = vsel %vm181, %v9275, %v9287
    %v9340 = vsel %vm181, %v9276, %v9288
    %v9341 = vsel %vm181, %v9277, %v9289
    %v9342 = vsel %vm181, %v9278, %v9290
    %v9343 = vsel %vm191, %v9339, %v9299
    %v9344 = vsel %vm191, %v9340, %v9300
    %v9345 = vsel %vm191, %v9341, %v9301
    %v9346 = vsel %vm191, %v9342, %v9302
    %v9347 = vsel %vm201, %v9343, %v9307
    %v9348 = vsel %vm201, %v9344, %v9308
    %v9349 = vsel %vm201, %v9345, %v9309
    %v9350 = vsel %vm201, %v9346, %v9310
    %v9351 = vsel %vm171, %v9307, %v9315
    %v9352 = vsel %vm171, %v9308, %v9316
    %v9353 = vsel %vm171, %v9309, %v9317
    %v9354 = vsel %vm171, %v9310, %v9318
    %v9355 = vsel %vm181, %v9351, %v9323
    %v9356 = vsel %vm181, %v9352, %v9324
    %v9357 = vsel %vm181, %v9353, %v9325
    %v9358 = vsel %vm181, %v9354, %v9326
    %v9359 = vsel %vm191, %v9355, %v9331
    %v9360 = vsel %vm191, %v9356, %v9332
    %v9361 = vsel %vm191, %v9357, %v9333
    %v9362 = vsel %vm191, %v9358, %v9334
    %v9371 = vrot.slane %v9347, 5
    %v9372 = vrot.slane %v9348, 5
    %v9373 = vrot.slane %v9349, 5
    %v9374 = vrot.slane %v9350, 5
    %v9375 = vrot.slane %v9359, 5
    %v9376 = vsel %vm181, %v9371, %v9375
    %v9377 = vrot.slane %v9360, 5
    %v9378 = vsel %vm181, %v9372, %v9377
    %v9379 = vrot.slane %v9361, 5
    %v9380 = vsel %vm181, %v9373, %v9379
    %v9381 = vrot.slane %v9362, 5
    %v9382 = vsel %vm181, %v9374, %v9381
    %v9399 = vrot.slane %v8395, 6
    %v9400 = vrot.slane %v8396, 6
    %v9401 = vrot.slane %v8397, 6
    %v9402 = vrot.slane %v8398, 6
    %v9443 = vrot.slane %v7578, 4
    %v9444 = vrot.slane %v7580, 4
    %v9445 = vrot.slane %v7697, 4
    %v9446 = vrot.slane %v7699, 4
    %v9447 = vrot.slane %v7584, 4
    %v9448 = vsel %vm186, %v9443, %v9447
    %v9449 = vrot.slane %v7586, 4
    %v9450 = vsel %vm186, %v9444, %v9449
    %v9451 = vrot.slane %v7703, 4
    %v9452 = vsel %vm186, %v9445, %v9451
    %v9453 = vrot.slane %v7705, 4
    %v9454 = vsel %vm186, %v9446, %v9453
    %v9455 = vrot.slane %v7590, 4
    %v9456 = vsel %vm186, %v9447, %v9455
    %v9457 = vrot.slane %v7592, 4
    %v9458 = vsel %vm186, %v9449, %v9457
    %v9459 = vrot.slane %v7709, 4
    %v9460 = vsel %vm186, %v9451, %v9459
    %v9461 = vrot.slane %v7711, 4
    %v9462 = vsel %vm186, %v9453, %v9461
    %v9463 = vrot.slane %v7596, 4
    %v9464 = vsel %vm186, %v9455, %v9463
    %v9465 = vrot.slane %v7598, 4
    %v9466 = vsel %vm186, %v9457, %v9465
    %v9467 = vrot.slane %v7715, 4
    %v9468 = vsel %vm186, %v9459, %v9467
    %v9469 = vrot.slane %v7717, 4
    %v9470 = vsel %vm186, %v9461, %v9469
    %v9471 = vrot.slane %v7602, 4
    %v9472 = vsel %vm186, %v9463, %v9471
    %v9473 = vrot.slane %v7604, 4
    %v9474 = vsel %vm186, %v9465, %v9473
    %v9475 = vrot.slane %v7721, 4
    %v9476 = vsel %vm186, %v9467, %v9475
    %v9477 = vrot.slane %v7723, 4
    %v9478 = vsel %vm186, %v9469, %v9477
    %v9479 = vrot.slane %v7608, 4
    %v9480 = vsel %vm186, %v9471, %v9479
    %v9481 = vrot.slane %v7610, 4
    %v9482 = vsel %vm186, %v9473, %v9481
    %v9483 = vrot.slane %v7727, 4
    %v9484 = vsel %vm186, %v9475, %v9483
    %v9485 = vrot.slane %v7729, 4
    %v9486 = vsel %vm186, %v9477, %v9485
    %v9487 = vrot.slane %v7614, 4
    %v9488 = vsel %vm186, %v9479, %v9487
    %v9489 = vrot.slane %v7616, 4
    %v9490 = vsel %vm186, %v9481, %v9489
    %v9491 = vrot.slane %v7733, 4
    %v9492 = vsel %vm186, %v9483, %v9491
    %v9493 = vrot.slane %v7735, 4
    %v9494 = vsel %vm186, %v9485, %v9493
    %v9495 = vrot.slane %v7620, 4
    %v9496 = vsel %vm186, %v9487, %v9495
    %v9497 = vrot.slane %v7622, 4
    %v9498 = vsel %vm186, %v9489, %v9497
    %v9499 = vrot.slane %v7739, 4
    %v9500 = vsel %vm186, %v9491, %v9499
    %v9501 = vrot.slane %v7741, 4
    %v9502 = vsel %vm186, %v9493, %v9501
    %v9503 = vrot.slane %v7626, 4
    %v9504 = vsel %vm186, %v9495, %v9503
    %v9505 = vrot.slane %v7628, 4
    %v9506 = vsel %vm186, %v9497, %v9505
    %v9507 = vrot.slane %v7745, 4
    %v9508 = vsel %vm186, %v9499, %v9507
    %v9509 = vrot.slane %v7747, 4
    %v9510 = vsel %vm186, %v9501, %v9509
    %v9543 = vsel %vm181, %v55, %v9371
    %v9544 = vsel %vm181, %v56, %v9372
    %v9545 = vsel %vm181, %v57, %v9373
    %v9546 = vsel %vm181, %v58, %v9374
    %v9547 = vsel %vm176, %v9375, %v9399
    %v9548 = vsel %vm176, %v9377, %v9400
    %v9549 = vsel %vm176, %v9379, %v9401
    %v9550 = vsel %vm176, %v9381, %v9402
    %v9551 = vsel %vm191, %v9547, %v9443
    %v9552 = vsel %vm191, %v9548, %v9444
    %v9553 = vsel %vm191, %v9549, %v9445
    %v9554 = vsel %vm191, %v9550, %v9446
    %v9555 = vld [vmem:[%s9] sm:$0xff]
    %v9556 = vld [vmem:[%s9 + $0x8] sm:$0xff]
    %v9557 = vld [vmem:[%s9 + $0x10] sm:$0xff]
    %v9558 = vld [vmem:[%s9 + $0x18] sm:$0xff]
    %v9559 = vld [vmem:[%s9 + $0x20] sm:$0xff]
    %v9560 = vld [vmem:[%s9 + $0x28] sm:$0xff]
    %v9561 = vld [vmem:[%s9 + $0x30] sm:$0xff]
    %v9562 = vld [vmem:[%s9 + $0x38] sm:$0xff]
    %v9563 = vld [vmem:[%s10] sm:$0xff]
    %v9564 = vld [vmem:[%s10 + $0x8] sm:$0xff]
    %v9565 = vld [vmem:[%s10 + $0x10] sm:$0xff]
    %v9566 = vld [vmem:[%s10 + $0x18] sm:$0xff]
    %v9567 = vld [vmem:[%s10 + $0x20] sm:$0xff]
    %v9568 = vld [vmem:[%s10 + $0x28] sm:$0xff]
    %v9569 = vld [vmem:[%s10 + $0x30] sm:$0xff]
    %v9570 = vld [vmem:[%s10 + $0x38] sm:$0xff]
    %9572 = vset.pattern.permute.xlu0 0
    %9573 = vperm.xlu0 %9572, %v9563
    %v9574 = vpop.permute.xlu0 %9573
    %9577 = vset.pattern.permute.xlu0 0
    %9578 = vperm.xlu0 %9577, %v9564
    %v9579 = vpop.permute.xlu0 %9578
    %9582 = vset.pattern.permute.xlu0 0
    %9583 = vperm.xlu0 %9582, %v9565
    %v9584 = vpop.permute.xlu0 %9583
    %9587 = vset.pattern.permute.xlu0 0
    %9588 = vperm.xlu0 %9587, %v9566
    %v9589 = vpop.permute.xlu0 %9588
    %9592 = vset.pattern.permute.xlu0 0
    %9593 = vperm.xlu0 %9592, %v9567
    %v9594 = vpop.permute.xlu0 %9593
    %9597 = vset.pattern.permute.xlu0 0
    %9598 = vperm.xlu0 %9597, %v9568
    %v9599 = vpop.permute.xlu0 %9598
    %9602 = vset.pattern.permute.xlu0 0
    %9603 = vperm.xlu0 %9602, %v9569
    %v9604 = vpop.permute.xlu0 %9603
    %9607 = vset.pattern.permute.xlu0 0
    %9608 = vperm.xlu0 %9607, %v9570
    %v9609 = vpop.permute.xlu0 %9608
    %vm9611 = vcmask 695296
    %v9613 = vsel %vm9611, %v9555, 0
    %v9616 = vsel %vm9611, %v9556, 0
    %v9619 = vsel %vm9611, %v9557, 0
    %v9622 = vsel %vm9611, %v9558, 0
    %v9625 = vsel %vm9611, %v9559, 0
    %v9628 = vsel %vm9611, %v9560, 0
    %v9631 = vsel %vm9611, %v9561, 0
    %v9634 = vsel %vm9611, %v9562, 0
    %v9636 = vsel %vm191, %v9504, 0
    %v9638 = vsel %vm191, %v9506, 0
    %v9640 = vsel %vm191, %v9508, 0
    %v9642 = vsel %vm191, %v9510, 0
    %9644 = vmatprep.subr.mxu0 0.0
    %9645 = vmatpush1.msra.mxu0 0.0
    %9646 = vmatprep.subr.mxu0 0.0
    %9647 = vmatpush1.msra.mxu0 0.0
    %9648 = vmatprep.subr.mxu0 0.0
    %9649 = vmatpush1.msra.mxu0 0.0
    %9650 = vmatprep.subr.mxu0 0.0
    %9651 = vmatpush1.msra.mxu0 0.0
    %9652 = vmatprep.subr.mxu0 0.0
    %9653 = vmatpush1.msra.mxu0 0.0
    %9654 = vmatprep.subr.mxu0 %v9638
    %9655 = vmatpush1.msra.mxu0 %v9636
    %9656 = vmatprep.subr.mxu0 %v9498
    %9657 = vmatpush1.msra.mxu0 %v9496
    %9658 = vmatprep.subr.mxu0 %v9490
    %9659 = vmatpush1.msra.mxu0 %v9488
    %9660 = vmatprep.subr.mxu0 %v9482
    %9661 = vmatpush1.msra.mxu0 %v9480
    %9662 = vmatprep.subr.mxu0 %v9474
    %9663 = vmatpush1.msra.mxu0 %v9472
    %9664 = vmatprep.subr.mxu0 %v9466
    %9665 = vmatpush1.msra.mxu0 %v9464
    %9666 = vmatprep.subr.mxu0 %v9458
    %9667 = vmatpush1.msra.mxu0 %v9456
    %9668 = vmatprep.subr.mxu0 %v9450
    %9669 = vmatpush1.msra.mxu0 %v9448
    %9670 = vmatprep.subr.mxu0 %v9552
    %9671 = vmatpush1.msra.mxu0 %v9551
    %9672 = vmatprep.subr.mxu0 %v9378
    %9673 = vmatpush1.msra.mxu0 %v9376
    %9674 = vmatprep.subr.mxu0 %v9544
    %9675 = vmatpush1.msra.mxu0 %v9543
    %9676 = vmatprep.subr.mxu0 0.0
    %9677 = vmatpush2.msra.mxu0 0.0
    %9678 = vmatprep.subr.mxu0 0.0
    %9679 = vmatpush2.msra.mxu0 0.0
    %9680 = vmatprep.subr.mxu0 0.0
    %9681 = vmatpush2.msra.mxu0 0.0
    %9682 = vmatprep.subr.mxu0 0.0
    %9683 = vmatpush2.msra.mxu0 0.0
    %9684 = vmatprep.subr.mxu0 0.0
    %9685 = vmatpush2.msra.mxu0 0.0
    %9686 = vmatprep.subr.mxu0 0.0
    %9687 = vmatpush2.msra.mxu0 0.0
    %9688 = vmatprep.subr.mxu0 0.0
    %9689 = vmatpush2.msra.mxu0 0.0
    %9690 = vmatprep.subr.mxu0 0.0
    %9691 = vmatpush2.msra.mxu0 0.0
    %9692 = vmatprep.subr.mxu0 0.0
    %9693 = vmatpush2.msra.mxu0 0.0
    %9694 = vmatprep.subr.mxu0 0.0
    %9695 = vmatpush2.msra.mxu0 0.0
    %9696 = vmatprep.subr.mxu0 0.0
    %9697 = vmatpush2.msra.mxu0 0.0
    %9698 = vmatprep.subr.mxu0 0.0
    %9699 = vmatpush2.msra.mxu0 0.0
    %9700 = vmatprep.subr.mxu0 0.0
    %9701 = vmatpush2.msra.mxu0 0.0
    %9702 = vmatprep.subr.mxu0 0.0
    %9703 = vmatpush2.msra.mxu0 0.0
    %9704 = vmatprep.subr.mxu0 0.0
    %9705 = vmatpush2.msra.mxu0 0.0
    %9706 = vmatprep.subr.mxu0 0.0
    %9707 = vmatpush2.msra.mxu0 0.0
    %9708 = vmatprep.mubr.f32.mxu0 0.0
    %9709 = vmatmul.mubr.f32.gmra.mxu0 %v9613
    %v9710 = vpop.f32.mrf.mxu0
    %v9711 = vadd.f32 %v9574, %v9710
    %v9712 = vpop.f32.mrf.mxu0
    %v9713 = vadd.f32 %v9574, %v9712
    %9714 = vmatprep.mubr.f32.mxu0 0.0
    %9715 = vmatmul.mubr.f32.gmra.mxu0 %v9616
    %v9716 = vpop.f32.mrf.mxu0
    %v9717 = vadd.f32 %v9579, %v9716
    %v9718 = vpop.f32.mrf.mxu0
    %v9719 = vadd.f32 %v9579, %v9718
    %9720 = vmatprep.mubr.f32.mxu0 0.0
    %9721 = vmatmul.mubr.f32.gmra.mxu0 %v9619
    %v9722 = vpop.f32.mrf.mxu0
    %v9723 = vadd.f32 %v9584, %v9722
    %v9724 = vpop.f32.mrf.mxu0
    %v9725 = vadd.f32 %v9584, %v9724
    %9726 = vmatprep.mubr.f32.mxu0 0.0
    %9727 = vmatmul.mubr.f32.gmra.mxu0 %v9622
    %v9728 = vpop.f32.mrf.mxu0
    %v9729 = vadd.f32 %v9589, %v9728
    %v9730 = vpop.f32.mrf.mxu0
    %v9731 = vadd.f32 %v9589, %v9730
    %9732 = vmatprep.mubr.f32.mxu0 0.0
    %9733 = vmatmul.mubr.f32.gmra.mxu0 %v9625
    %v9734 = vpop.f32.mrf.mxu0
    %v9735 = vadd.f32 %v9594, %v9734
    %v9736 = vpop.f32.mrf.mxu0
    %v9737 = vadd.f32 %v9594, %v9736
    %9738 = vmatprep.mubr.f32.mxu0 0.0
    %9739 = vmatmul.mubr.f32.gmra.mxu0 %v9628
    %v9740 = vpop.f32.mrf.mxu0
    %v9741 = vadd.f32 %v9599, %v9740
    %v9742 = vpop.f32.mrf.mxu0
    %v9743 = vadd.f32 %v9599, %v9742
    %9744 = vmatprep.mubr.f32.mxu0 0.0
    %9745 = vmatmul.mubr.f32.gmra.mxu0 %v9631
    %v9746 = vpop.f32.mrf.mxu0
    %v9747 = vadd.f32 %v9604, %v9746
    %v9748 = vpop.f32.mrf.mxu0
    %v9749 = vadd.f32 %v9604, %v9748
    %9750 = vmatprep.mubr.f32.mxu0 0.0
    %9751 = vmatmul.mubr.f32.gmra.mxu0 %v9634
    %v9752 = vpop.f32.mrf.mxu0
    %v9753 = vadd.f32 %v9609, %v9752
    %v9754 = vpop.f32.mrf.mxu0
    %v9755 = vadd.f32 %v9609, %v9754
    %9756 = vdwg.mxu0
    %9757 = vmatprep.subr.mxu0 0.0
    %9758 = vmatpush1.msra.mxu0 0.0
    %9759 = vmatprep.subr.mxu0 0.0
    %9760 = vmatpush1.msra.mxu0 0.0
    %9761 = vmatprep.subr.mxu0 0.0
    %9762 = vmatpush1.msra.mxu0 0.0
    %9763 = vmatprep.subr.mxu0 0.0
    %9764 = vmatpush1.msra.mxu0 0.0
    %9765 = vmatprep.subr.mxu0 0.0
    %9766 = vmatpush1.msra.mxu0 0.0
    %9767 = vmatprep.subr.mxu0 %v9642
    %9768 = vmatpush1.msra.mxu0 %v9640
    %9769 = vmatprep.subr.mxu0 %v9502
    %9770 = vmatpush1.msra.mxu0 %v9500
    %9771 = vmatprep.subr.mxu0 %v9494
    %9772 = vmatpush1.msra.mxu0 %v9492
    %9773 = vmatprep.subr.mxu0 %v9486
    %9774 = vmatpush1.msra.mxu0 %v9484
    %9775 = vmatprep.subr.mxu0 %v9478
    %9776 = vmatpush1.msra.mxu0 %v9476
    %9777 = vmatprep.subr.mxu0 %v9470
    %9778 = vmatpush1.msra.mxu0 %v9468
    %9779 = vmatprep.subr.mxu0 %v9462
    %9780 = vmatpush1.msra.mxu0 %v9460
    %9781 = vmatprep.subr.mxu0 %v9454
    %9782 = vmatpush1.msra.mxu0 %v9452
    %9783 = vmatprep.subr.mxu0 %v9554
    %9784 = vmatpush1.msra.mxu0 %v9553
    %9785 = vmatprep.subr.mxu0 %v9382
    %9786 = vmatpush1.msra.mxu0 %v9380
    %9787 = vmatprep.subr.mxu0 %v9546
    %9788 = vmatpush1.msra.mxu0 %v9545
    %9789 = vmatprep.subr.mxu0 0.0
    %9790 = vmatpush2.msra.mxu0 0.0
    %9791 = vmatprep.subr.mxu0 0.0
    %9792 = vmatpush2.msra.mxu0 0.0
    %9793 = vmatprep.subr.mxu0 0.0
    %9794 = vmatpush2.msra.mxu0 0.0
    %9795 = vmatprep.subr.mxu0 0.0
    %9796 = vmatpush2.msra.mxu0 0.0
    %9797 = vmatprep.subr.mxu0 0.0
    %9798 = vmatpush2.msra.mxu0 0.0
    %9799 = vmatprep.subr.mxu0 0.0
    %9800 = vmatpush2.msra.mxu0 0.0
    %9801 = vmatprep.subr.mxu0 0.0
    %9802 = vmatpush2.msra.mxu0 0.0
    %9803 = vmatprep.subr.mxu0 0.0
    %9804 = vmatpush2.msra.mxu0 0.0
    %9805 = vmatprep.subr.mxu0 0.0
    %9806 = vmatpush2.msra.mxu0 0.0
    %9807 = vmatprep.subr.mxu0 0.0
    %9808 = vmatpush2.msra.mxu0 0.0
    %9809 = vmatprep.subr.mxu0 0.0
    %9810 = vmatpush2.msra.mxu0 0.0
    %9811 = vmatprep.subr.mxu0 0.0
    %9812 = vmatpush2.msra.mxu0 0.0
    %9813 = vmatprep.subr.mxu0 0.0
    %9814 = vmatpush2.msra.mxu0 0.0
    %9815 = vmatprep.subr.mxu0 0.0
    %9816 = vmatpush2.msra.mxu0 0.0
    %9817 = vmatprep.subr.mxu0 0.0
    %9818 = vmatpush2.msra.mxu0 0.0
    %9819 = vmatprep.subr.mxu0 0.0
    %9820 = vmatpush2.msra.mxu0 0.0
    %9821 = vmatprep.mubr.f32.mxu0 0.0
    %9822 = vmatmul.mubr.f32.gmra.mxu0 %v9613
    %v9823 = vpop.f32.mrf.mxu0
    %v9824 = vadd.f32 %v9574, %v9823
    %v9825 = vpop.f32.mrf.mxu0
    %v9826 = vadd.f32 %v9574, %v9825
    %9827 = vmatprep.mubr.f32.mxu0 0.0
    %9828 = vmatmul.mubr.f32.gmra.mxu0 %v9616
    %v9829 = vpop.f32.mrf.mxu0
    %v9830 = vadd.f32 %v9579, %v9829
    %v9831 = vpop.f32.mrf.mxu0
    %v9832 = vadd.f32 %v9579, %v9831
    %9833 = vmatprep.mubr.f32.mxu0 0.0
    %9834 = vmatmul.mubr.f32.gmra.mxu0 %v9619
    %v9835 = vpop.f32.mrf.mxu0
    %v9836 = vadd.f32 %v9584, %v9835
    %v9837 = vpop.f32.mrf.mxu0
    %v9838 = vadd.f32 %v9584, %v9837
    %9839 = vmatprep.mubr.f32.mxu0 0.0
    %9840 = vmatmul.mubr.f32.gmra.mxu0 %v9622
    %v9841 = vpop.f32.mrf.mxu0
    %v9842 = vadd.f32 %v9589, %v9841
    %v9843 = vpop.f32.mrf.mxu0
    %v9844 = vadd.f32 %v9589, %v9843
    %9845 = vmatprep.mubr.f32.mxu0 0.0
    %9846 = vmatmul.mubr.f32.gmra.mxu0 %v9625
    %v9847 = vpop.f32.mrf.mxu0
    %v9848 = vadd.f32 %v9594, %v9847
    %v9849 = vpop.f32.mrf.mxu0
    %v9850 = vadd.f32 %v9594, %v9849
    %9851 = vmatprep.mubr.f32.mxu0 0.0
    %9852 = vmatmul.mubr.f32.gmra.mxu0 %v9628
    %v9853 = vpop.f32.mrf.mxu0
    %v9854 = vadd.f32 %v9599, %v9853
    %v9855 = vpop.f32.mrf.mxu0
    %v9856 = vadd.f32 %v9599, %v9855
    %9857 = vmatprep.mubr.f32.mxu0 0.0
    %9858 = vmatmul.mubr.f32.gmra.mxu0 %v9631
    %v9859 = vpop.f32.mrf.mxu0
    %v9860 = vadd.f32 %v9604, %v9859
    %v9861 = vpop.f32.mrf.mxu0
    %v9862 = vadd.f32 %v9604, %v9861
    %9863 = vmatprep.mubr.f32.mxu0 0.0
    %9864 = vmatmul.mubr.f32.gmra.mxu0 %v9634
    %v9865 = vpop.f32.mrf.mxu0
    %v9866 = vadd.f32 %v9609, %v9865
    %v9867 = vpop.f32.mrf.mxu0
    %v9868 = vadd.f32 %v9609, %v9867
    %9869 = vdwg.mxu0
    %v9870 = vmax.f32 %v9711, 0.0
    %v9871 = vmax.f32 %v9713, 0.0
    %v9872 = vmax.f32 %v9824, 0.0
    %v9873 = vmax.f32 %v9826, 0.0
    %v9874 = vmax.f32 %v9717, 0.0
    %v9875 = vmax.f32 %v9719, 0.0
    %v9876 = vmax.f32 %v9830, 0.0
    %v9877 = vmax.f32 %v9832, 0.0
    %v9878 = vmax.f32 %v9723, 0.0
    %v9879 = vmax.f32 %v9725, 0.0
    %v9880 = vmax.f32 %v9836, 0.0
    %v9881 = vmax.f32 %v9838, 0.0
    %v9882 = vmax.f32 %v9729, 0.0
    %v9883 = vmax.f32 %v9731, 0.0
    %v9884 = vmax.f32 %v9842, 0.0
    %v9885 = vmax.f32 %v9844, 0.0
    %v9886 = vmax.f32 %v9735, 0.0
    %v9887 = vmax.f32 %v9737, 0.0
    %v9888 = vmax.f32 %v9848, 0.0
    %v9889 = vmax.f32 %v9850, 0.0
    %v9890 = vmax.f32 %v9741, 0.0
    %v9891 = vmax.f32 %v9743, 0.0
    %v9892 = vmax.f32 %v9854, 0.0
    %v9893 = vmax.f32 %v9856, 0.0
    %v9894 = vmax.f32 %v9747, 0.0
    %v9895 = vmax.f32 %v9749, 0.0
    %v9896 = vmax.f32 %v9860, 0.0
    %v9897 = vmax.f32 %v9862, 0.0
    %v9898 = vmax.f32 %v9753, 0.0
    %v9899 = vmax.f32 %v9755, 0.0
    %v9900 = vmax.f32 %v9866, 0.0
    %v9901 = vmax.f32 %v9868, 0.0
    %v9902 = vld [vmem:[%s11] sm:$0xff]
    %v9903 = vld [vmem:[%s11 + $0x8] sm:$0xff]
    %v9904 = vld [vmem:[%s11 + $0x10] sm:$0xff]
    %v9905 = vld [vmem:[%s11 + $0x18] sm:$0xff]
    %v9906 = vld [vmem:[%s11 + $0x20] sm:$0xff]
    %v9907 = vld [vmem:[%s11 + $0x28] sm:$0xff]
    %v9908 = vld [vmem:[%s11 + $0x30] sm:$0xff]
    %v9909 = vld [vmem:[%s11 + $0x38] sm:$0xff]
    %v9910 = vld [vmem:[%s12] sm:$0xff]
    %v9911 = vld [vmem:[%s12 + $0x8] sm:$0xff]
    %v9912 = vld [vmem:[%s12 + $0x10] sm:$0xff]
    %v9913 = vld [vmem:[%s12 + $0x18] sm:$0xff]
    %v9914 = vld [vmem:[%s12 + $0x20] sm:$0xff]
    %v9915 = vld [vmem:[%s12 + $0x28] sm:$0xff]
    %v9916 = vld [vmem:[%s12 + $0x30] sm:$0xff]
    %v9917 = vld [vmem:[%s12 + $0x38] sm:$0xff]
    %9919 = vset.pattern.permute.xlu0 0
    %9920 = vperm.xlu0 %9919, %v9910
    %v9921 = vpop.permute.xlu0 %9920
    %9924 = vset.pattern.permute.xlu0 0
    %9925 = vperm.xlu0 %9924, %v9911
    %v9926 = vpop.permute.xlu0 %9925
    %9929 = vset.pattern.permute.xlu0 0
    %9930 = vperm.xlu0 %9929, %v9912
    %v9931 = vpop.permute.xlu0 %9930
    %9934 = vset.pattern.permute.xlu0 0
    %9935 = vperm.xlu0 %9934, %v9913
    %v9936 = vpop.permute.xlu0 %9935
    %9939 = vset.pattern.permute.xlu0 0
    %9940 = vperm.xlu0 %9939, %v9914
    %v9941 = vpop.permute.xlu0 %9940
    %9944 = vset.pattern.permute.xlu0 0
    %9945 = vperm.xlu0 %9944, %v9915
    %v9946 = vpop.permute.xlu0 %9945
    %9949 = vset.pattern.permute.xlu0 0
    %9950 = vperm.xlu0 %9949, %v9916
    %v9951 = vpop.permute.xlu0 %9950
    %9954 = vset.pattern.permute.xlu0 0
    %9955 = vperm.xlu0 %9954, %v9917
    %v9956 = vpop.permute.xlu0 %9955
    %v9959 = vsel %vm4113, %v9902, 0
    %v9962 = vsel %vm4113, %v9903, 0
    %v9965 = vsel %vm4113, %v9904, 0
    %v9968 = vsel %vm4113, %v9905, 0
    %v9971 = vsel %vm4113, %v9906, 0
    %v9974 = vsel %vm4113, %v9907, 0
    %v9977 = vsel %vm4113, %v9908, 0
    %v9980 = vsel %vm4113, %v9909, 0
    %9982 = vmatprep.subr.mxu0 0.0
    %9983 = vmatpush1.msra.mxu0 0.0
    %9984 = vmatprep.subr.mxu0 0.0
    %9985 = vmatpush1.msra.mxu0 0.0
    %9986 = vmatprep.subr.mxu0 0.0
    %9987 = vmatpush1.msra.mxu0 0.0
    %9988 = vmatprep.subr.mxu0 0.0
    %9989 = vmatpush1.msra.mxu0 0.0
    %9990 = vmatprep.subr.mxu0 0.0
    %9991 = vmatpush1.msra.mxu0 0.0
    %9992 = vmatprep.subr.mxu0 0.0
    %9993 = vmatpush1.msra.mxu0 0.0
    %9994 = vmatprep.subr.mxu0 0.0
    %9995 = vmatpush1.msra.mxu0 0.0
    %9996 = vmatprep.subr.mxu0 0.0
    %9997 = vmatpush1.msra.mxu0 0.0
    %9998 = vmatprep.subr.mxu0 %v9899
    %9999 = vmatpush1.msra.mxu0 %v9898
    %10000 = vmatprep.subr.mxu0 %v9895
    %10001 = vmatpush1.msra.mxu0 %v9894
    %10002 = vmatprep.subr.mxu0 %v9891
    %10003 = vmatpush1.msra.mxu0 %v9890
    %10004 = vmatprep.subr.mxu0 %v9887
    %10005 = vmatpush1.msra.mxu0 %v9886
    %10006 = vmatprep.subr.mxu0 %v9883
    %10007 = vmatpush1.msra.mxu0 %v9882
    %10008 = vmatprep.subr.mxu0 %v9879
    %10009 = vmatpush1.msra.mxu0 %v9878
    %10010 = vmatprep.subr.mxu0 %v9875
    %10011 = vmatpush1.msra.mxu0 %v9874
    %10012 = vmatprep.subr.mxu0 %v9871
    %10013 = vmatpush1.msra.mxu0 %v9870
    %10014 = vmatprep.subr.mxu0 0.0
    %10015 = vmatpush2.msra.mxu0 0.0
    %10016 = vmatprep.subr.mxu0 0.0
    %10017 = vmatpush2.msra.mxu0 0.0
    %10018 = vmatprep.subr.mxu0 0.0
    %10019 = vmatpush2.msra.mxu0 0.0
    %10020 = vmatprep.subr.mxu0 0.0
    %10021 = vmatpush2.msra.mxu0 0.0
    %10022 = vmatprep.subr.mxu0 0.0
    %10023 = vmatpush2.msra.mxu0 0.0
    %10024 = vmatprep.subr.mxu0 0.0
    %10025 = vmatpush2.msra.mxu0 0.0
    %10026 = vmatprep.subr.mxu0 0.0
    %10027 = vmatpush2.msra.mxu0 0.0
    %10028 = vmatprep.subr.mxu0 0.0
    %10029 = vmatpush2.msra.mxu0 0.0
    %10030 = vmatprep.subr.mxu0 0.0
    %10031 = vmatpush2.msra.mxu0 0.0
    %10032 = vmatprep.subr.mxu0 0.0
    %10033 = vmatpush2.msra.mxu0 0.0
    %10034 = vmatprep.subr.mxu0 0.0
    %10035 = vmatpush2.msra.mxu0 0.0
    %10036 = vmatprep.subr.mxu0 0.0
    %10037 = vmatpush2.msra.mxu0 0.0
    %10038 = vmatprep.subr.mxu0 0.0
    %10039 = vmatpush2.msra.mxu0 0.0
    %10040 = vmatprep.subr.mxu0 0.0
    %10041 = vmatpush2.msra.mxu0 0.0
    %10042 = vmatprep.subr.mxu0 0.0
    %10043 = vmatpush2.msra.mxu0 0.0
    %10044 = vmatprep.subr.mxu0 0.0
    %10045 = vmatpush2.msra.mxu0 0.0
    %10046 = vmatprep.mubr.f32.mxu0 0.0
    %10047 = vmatmul.mubr.f32.gmra.mxu0 %v9959
    %v10048 = vpop.f32.mrf.mxu0
    %v10049 = vadd.f32 %v9921, %v10048
    %v10050 = vpop.f32.mrf.mxu0
    %v10051 = vadd.f32 %v9921, %v10050
    %10052 = vmatprep.mubr.f32.mxu0 0.0
    %10053 = vmatmul.mubr.f32.gmra.mxu0 %v9962
    %v10054 = vpop.f32.mrf.mxu0
    %v10055 = vadd.f32 %v9926, %v10054
    %v10056 = vpop.f32.mrf.mxu0
    %v10057 = vadd.f32 %v9926, %v10056
    %10058 = vmatprep.mubr.f32.mxu0 0.0
    %10059 = vmatmul.mubr.f32.gmra.mxu0 %v9965
    %v10060 = vpop.f32.mrf.mxu0
    %v10061 = vadd.f32 %v9931, %v10060
    %v10062 = vpop.f32.mrf.mxu0
    %v10063 = vadd.f32 %v9931, %v10062
    %10064 = vmatprep.mubr.f32.mxu0 0.0
    %10065 = vmatmul.mubr.f32.gmra.mxu0 %v9968
    %v10066 = vpop.f32.mrf.mxu0
    %v10067 = vadd.f32 %v9936, %v10066
    %v10068 = vpop.f32.mrf.mxu0
    %v10069 = vadd.f32 %v9936, %v10068
    %10070 = vmatprep.mubr.f32.mxu0 0.0
    %10071 = vmatmul.mubr.f32.gmra.mxu0 %v9971
    %v10072 = vpop.f32.mrf.mxu0
    %v10073 = vadd.f32 %v9941, %v10072
    %v10074 = vpop.f32.mrf.mxu0
    %v10075 = vadd.f32 %v9941, %v10074
    %10076 = vmatprep.mubr.f32.mxu0 0.0
    %10077 = vmatmul.mubr.f32.gmra.mxu0 %v9974
    %v10078 = vpop.f32.mrf.mxu0
    %v10079 = vadd.f32 %v9946, %v10078
    %v10080 = vpop.f32.mrf.mxu0
    %v10081 = vadd.f32 %v9946, %v10080
    %10082 = vmatprep.mubr.f32.mxu0 0.0
    %10083 = vmatmul.mubr.f32.gmra.mxu0 %v9977
    %v10084 = vpop.f32.mrf.mxu0
    %v10085 = vadd.f32 %v9951, %v10084
    %v10086 = vpop.f32.mrf.mxu0
    %v10087 = vadd.f32 %v9951, %v10086
    %10088 = vmatprep.mubr.f32.mxu0 0.0
    %10089 = vmatmul.mubr.f32.gmra.mxu0 %v9980
    %v10090 = vpop.f32.mrf.mxu0
    %v10091 = vadd.f32 %v9956, %v10090
    %v10092 = vpop.f32.mrf.mxu0
    %v10093 = vadd.f32 %v9956, %v10092
    %10094 = vdwg.mxu0
    %10095 = vmatprep.subr.mxu0 0.0
    %10096 = vmatpush1.msra.mxu0 0.0
    %10097 = vmatprep.subr.mxu0 0.0
    %10098 = vmatpush1.msra.mxu0 0.0
    %10099 = vmatprep.subr.mxu0 0.0
    %10100 = vmatpush1.msra.mxu0 0.0
    %10101 = vmatprep.subr.mxu0 0.0
    %10102 = vmatpush1.msra.mxu0 0.0
    %10103 = vmatprep.subr.mxu0 0.0
    %10104 = vmatpush1.msra.mxu0 0.0
    %10105 = vmatprep.subr.mxu0 0.0
    %10106 = vmatpush1.msra.mxu0 0.0
    %10107 = vmatprep.subr.mxu0 0.0
    %10108 = vmatpush1.msra.mxu0 0.0
    %10109 = vmatprep.subr.mxu0 0.0
    %10110 = vmatpush1.msra.mxu0 0.0
    %10111 = vmatprep.subr.mxu0 %v9901
    %10112 = vmatpush1.msra.mxu0 %v9900
    %10113 = vmatprep.subr.mxu0 %v9897
    %10114 = vmatpush1.msra.mxu0 %v9896
    %10115 = vmatprep.subr.mxu0 %v9893
    %10116 = vmatpush1.msra.mxu0 %v9892
    %10117 = vmatprep.subr.mxu0 %v9889
    %10118 = vmatpush1.msra.mxu0 %v9888
    %10119 = vmatprep.subr.mxu0 %v9885
    %10120 = vmatpush1.msra.mxu0 %v9884
    %10121 = vmatprep.subr.mxu0 %v9881
    %10122 = vmatpush1.msra.mxu0 %v9880
    %10123 = vmatprep.subr.mxu0 %v9877
    %10124 = vmatpush1.msra.mxu0 %v9876
    %10125 = vmatprep.subr.mxu0 %v9873
    %10126 = vmatpush1.msra.mxu0 %v9872
    %10127 = vmatprep.subr.mxu0 0.0
    %10128 = vmatpush2.msra.mxu0 0.0
    %10129 = vmatprep.subr.mxu0 0.0
    %10130 = vmatpush2.msra.mxu0 0.0
    %10131 = vmatprep.subr.mxu0 0.0
    %10132 = vmatpush2.msra.mxu0 0.0
    %10133 = vmatprep.subr.mxu0 0.0
    %10134 = vmatpush2.msra.mxu0 0.0
    %10135 = vmatprep.subr.mxu0 0.0
    %10136 = vmatpush2.msra.mxu0 0.0
    %10137 = vmatprep.subr.mxu0 0.0
    %10138 = vmatpush2.msra.mxu0 0.0
    %10139 = vmatprep.subr.mxu0 0.0
    %10140 = vmatpush2.msra.mxu0 0.0
    %10141 = vmatprep.subr.mxu0 0.0
    %10142 = vmatpush2.msra.mxu0 0.0
    %10143 = vmatprep.subr.mxu0 0.0
    %10144 = vmatpush2.msra.mxu0 0.0
    %10145 = vmatprep.subr.mxu0 0.0
    %10146 = vmatpush2.msra.mxu0 0.0
    %10147 = vmatprep.subr.mxu0 0.0
    %10148 = vmatpush2.msra.mxu0 0.0
    %10149 = vmatprep.subr.mxu0 0.0
    %10150 = vmatpush2.msra.mxu0 0.0
    %10151 = vmatprep.subr.mxu0 0.0
    %10152 = vmatpush2.msra.mxu0 0.0
    %10153 = vmatprep.subr.mxu0 0.0
    %10154 = vmatpush2.msra.mxu0 0.0
    %10155 = vmatprep.subr.mxu0 0.0
    %10156 = vmatpush2.msra.mxu0 0.0
    %10157 = vmatprep.subr.mxu0 0.0
    %10158 = vmatpush2.msra.mxu0 0.0
    %10159 = vmatprep.mubr.f32.mxu0 0.0
    %10160 = vmatmul.mubr.f32.gmra.mxu0 %v9959
    %v10161 = vpop.f32.mrf.mxu0
    %v10162 = vadd.f32 %v9921, %v10161
    %v10163 = vpop.f32.mrf.mxu0
    %v10164 = vadd.f32 %v9921, %v10163
    %10165 = vmatprep.mubr.f32.mxu0 0.0
    %10166 = vmatmul.mubr.f32.gmra.mxu0 %v9962
    %v10167 = vpop.f32.mrf.mxu0
    %v10168 = vadd.f32 %v9926, %v10167
    %v10169 = vpop.f32.mrf.mxu0
    %v10170 = vadd.f32 %v9926, %v10169
    %10171 = vmatprep.mubr.f32.mxu0 0.0
    %10172 = vmatmul.mubr.f32.gmra.mxu0 %v9965
    %v10173 = vpop.f32.mrf.mxu0
    %v10174 = vadd.f32 %v9931, %v10173
    %v10175 = vpop.f32.mrf.mxu0
    %v10176 = vadd.f32 %v9931, %v10175
    %10177 = vmatprep.mubr.f32.mxu0 0.0
    %10178 = vmatmul.mubr.f32.gmra.mxu0 %v9968
    %v10179 = vpop.f32.mrf.mxu0
    %v10180 = vadd.f32 %v9936, %v10179
    %v10181 = vpop.f32.mrf.mxu0
    %v10182 = vadd.f32 %v9936, %v10181
    %10183 = vmatprep.mubr.f32.mxu0 0.0
    %10184 = vmatmul.mubr.f32.gmra.mxu0 %v9971
    %v10185 = vpop.f32.mrf.mxu0
    %v10186 = vadd.f32 %v9941, %v10185
    %v10187 = vpop.f32.mrf.mxu0
    %v10188 = vadd.f32 %v9941, %v10187
    %10189 = vmatprep.mubr.f32.mxu0 0.0
    %10190 = vmatmul.mubr.f32.gmra.mxu0 %v9974
    %v10191 = vpop.f32.mrf.mxu0
    %v10192 = vadd.f32 %v9946, %v10191
    %v10193 = vpop.f32.mrf.mxu0
    %v10194 = vadd.f32 %v9946, %v10193
    %10195 = vmatprep.mubr.f32.mxu0 0.0
    %10196 = vmatmul.mubr.f32.gmra.mxu0 %v9977
    %v10197 = vpop.f32.mrf.mxu0
    %v10198 = vadd.f32 %v9951, %v10197
    %v10199 = vpop.f32.mrf.mxu0
    %v10200 = vadd.f32 %v9951, %v10199
    %10201 = vmatprep.mubr.f32.mxu0 0.0
    %10202 = vmatmul.mubr.f32.gmra.mxu0 %v9980
    %v10203 = vpop.f32.mrf.mxu0
    %v10204 = vadd.f32 %v9956, %v10203
    %v10205 = vpop.f32.mrf.mxu0
    %v10206 = vadd.f32 %v9956, %v10205
    %10207 = vdwg.mxu0
    %v10208 = vmax.f32 %v10049, 0.0
    %v10209 = vmax.f32 %v10051, 0.0
    %v10210 = vmax.f32 %v10162, 0.0
    %v10211 = vmax.f32 %v10164, 0.0
    %v10212 = vmax.f32 %v10055, 0.0
    %v10213 = vmax.f32 %v10057, 0.0
    %v10214 = vmax.f32 %v10168, 0.0
    %v10215 = vmax.f32 %v10170, 0.0
    %v10216 = vmax.f32 %v10061, 0.0
    %v10217 = vmax.f32 %v10063, 0.0
    %v10218 = vmax.f32 %v10174, 0.0
    %v10219 = vmax.f32 %v10176, 0.0
    %v10220 = vmax.f32 %v10067, 0.0
    %v10221 = vmax.f32 %v10069, 0.0
    %v10222 = vmax.f32 %v10180, 0.0
    %v10223 = vmax.f32 %v10182, 0.0
    %v10224 = vmax.f32 %v10073, 0.0
    %v10225 = vmax.f32 %v10075, 0.0
    %v10226 = vmax.f32 %v10186, 0.0
    %v10227 = vmax.f32 %v10188, 0.0
    %v10228 = vmax.f32 %v10079, 0.0
    %v10229 = vmax.f32 %v10081, 0.0
    %v10230 = vmax.f32 %v10192, 0.0
    %v10231 = vmax.f32 %v10194, 0.0
    %v10232 = vmax.f32 %v10085, 0.0
    %v10233 = vmax.f32 %v10087, 0.0
    %v10234 = vmax.f32 %v10198, 0.0
    %v10235 = vmax.f32 %v10200, 0.0
    %v10236 = vmax.f32 %v10091, 0.0
    %v10237 = vmax.f32 %v10093, 0.0
    %v10238 = vmax.f32 %v10204, 0.0
    %v10239 = vmax.f32 %v10206, 0.0
    %v10240 = vld [vmem:[%s13] sm:$0x7]
    %v10241 = vld [vmem:[%s14] sm:$0x7]
    %10243 = vset.pattern.permute.xlu0 0
    %10244 = vperm.xlu0 %10243, %v10241
    %v10245 = vpop.permute.xlu0 %10244
    %v10248 = vsel %vm4113, %v10240, 0
    %10250 = vmatprep.subr.mxu0 0.0
    %10251 = vmatpush1.msra.mxu0 0.0
    %10252 = vmatprep.subr.mxu0 0.0
    %10253 = vmatpush1.msra.mxu0 0.0
    %10254 = vmatprep.subr.mxu0 0.0
    %10255 = vmatpush1.msra.mxu0 0.0
    %10256 = vmatprep.subr.mxu0 0.0
    %10257 = vmatpush1.msra.mxu0 0.0
    %10258 = vmatprep.subr.mxu0 0.0
    %10259 = vmatpush1.msra.mxu0 0.0
    %10260 = vmatprep.subr.mxu0 0.0
    %10261 = vmatpush1.msra.mxu0 0.0
    %10262 = vmatprep.subr.mxu0 0.0
    %10263 = vmatpush1.msra.mxu0 0.0
    %10264 = vmatprep.subr.mxu0 0.0
    %10265 = vmatpush1.msra.mxu0 0.0
    %10266 = vmatprep.subr.mxu0 %v10237
    %10267 = vmatpush1.msra.mxu0 %v10236
    %10268 = vmatprep.subr.mxu0 %v10233
    %10269 = vmatpush1.msra.mxu0 %v10232
    %10270 = vmatprep.subr.mxu0 %v10229
    %10271 = vmatpush1.msra.mxu0 %v10228
    %10272 = vmatprep.subr.mxu0 %v10225
    %10273 = vmatpush1.msra.mxu0 %v10224
    %10274 = vmatprep.subr.mxu0 %v10221
    %10275 = vmatpush1.msra.mxu0 %v10220
    %10276 = vmatprep.subr.mxu0 %v10217
    %10277 = vmatpush1.msra.mxu0 %v10216
    %10278 = vmatprep.subr.mxu0 %v10213
    %10279 = vmatpush1.msra.mxu0 %v10212
    %10280 = vmatprep.subr.mxu0 %v10209
    %10281 = vmatpush1.msra.mxu0 %v10208
    %10282 = vmatprep.subr.mxu0 0.0
    %10283 = vmatpush2.msra.mxu0 0.0
    %10284 = vmatprep.subr.mxu0 0.0
    %10285 = vmatpush2.msra.mxu0 0.0
    %10286 = vmatprep.subr.mxu0 0.0
    %10287 = vmatpush2.msra.mxu0 0.0
    %10288 = vmatprep.subr.mxu0 0.0
    %10289 = vmatpush2.msra.mxu0 0.0
    %10290 = vmatprep.subr.mxu0 0.0
    %10291 = vmatpush2.msra.mxu0 0.0
    %10292 = vmatprep.subr.mxu0 0.0
    %10293 = vmatpush2.msra.mxu0 0.0
    %10294 = vmatprep.subr.mxu0 0.0
    %10295 = vmatpush2.msra.mxu0 0.0
    %10296 = vmatprep.subr.mxu0 0.0
    %10297 = vmatpush2.msra.mxu0 0.0
    %10298 = vmatprep.subr.mxu0 0.0
    %10299 = vmatpush2.msra.mxu0 0.0
    %10300 = vmatprep.subr.mxu0 0.0
    %10301 = vmatpush2.msra.mxu0 0.0
    %10302 = vmatprep.subr.mxu0 0.0
    %10303 = vmatpush2.msra.mxu0 0.0
    %10304 = vmatprep.subr.mxu0 0.0
    %10305 = vmatpush2.msra.mxu0 0.0
    %10306 = vmatprep.subr.mxu0 0.0
    %10307 = vmatpush2.msra.mxu0 0.0
    %10308 = vmatprep.subr.mxu0 0.0
    %10309 = vmatpush2.msra.mxu0 0.0
    %10310 = vmatprep.subr.mxu0 0.0
    %10311 = vmatpush2.msra.mxu0 0.0
    %10312 = vmatprep.subr.mxu0 0.0
    %10313 = vmatpush2.msra.mxu0 0.0
    %10314 = vmatprep.mubr.f32.mxu0 0.0
    %10315 = vmatmul.mubr.f32.gmra.mxu0 %v10248
    %v10316 = vpop.f32.mrf.mxu0
    %v10317 = vadd.f32 %v10245, %v10316
    %v10318 = vpop.f32.mrf.mxu0
    %v10319 = vadd.f32 %v10245, %v10318
    %10320 = vdwg.mxu0
    %10321 = vmatprep.subr.mxu0 0.0
    %10322 = vmatpush1.msra.mxu0 0.0
    %10323 = vmatprep.subr.mxu0 0.0
    %10324 = vmatpush1.msra.mxu0 0.0
    %10325 = vmatprep.subr.mxu0 0.0
    %10326 = vmatpush1.msra.mxu0 0.0
    %10327 = vmatprep.subr.mxu0 0.0
    %10328 = vmatpush1.msra.mxu0 0.0
    %10329 = vmatprep.subr.mxu0 0.0
    %10330 = vmatpush1.msra.mxu0 0.0
    %10331 = vmatprep.subr.mxu0 0.0
    %10332 = vmatpush1.msra.mxu0 0.0
    %10333 = vmatprep.subr.mxu0 0.0
    %10334 = vmatpush1.msra.mxu0 0.0
    %10335 = vmatprep.subr.mxu0 0.0
    %10336 = vmatpush1.msra.mxu0 0.0
    %10337 = vmatprep.subr.mxu0 %v10239
    %10338 = vmatpush1.msra.mxu0 %v10238
    %10339 = vmatprep.subr.mxu0 %v10235
    %10340 = vmatpush1.msra.mxu0 %v10234
    %10341 = vmatprep.subr.mxu0 %v10231
    %10342 = vmatpush1.msra.mxu0 %v10230
    %10343 = vmatprep.subr.mxu0 %v10227
    %10344 = vmatpush1.msra.mxu0 %v10226
    %10345 = vmatprep.subr.mxu0 %v10223
    %10346 = vmatpush1.msra.mxu0 %v10222
    %10347 = vmatprep.subr.mxu0 %v10219
    %10348 = vmatpush1.msra.mxu0 %v10218
    %10349 = vmatprep.subr.mxu0 %v10215
    %10350 = vmatpush1.msra.mxu0 %v10214
    %10351 = vmatprep.subr.mxu0 %v10211
    %10352 = vmatpush1.msra.mxu0 %v10210
    %10353 = vmatprep.subr.mxu0 0.0
    %10354 = vmatpush2.msra.mxu0 0.0
    %10355 = vmatprep.subr.mxu0 0.0
    %10356 = vmatpush2.msra.mxu0 0.0
    %10357 = vmatprep.subr.mxu0 0.0
    %10358 = vmatpush2.msra.mxu0 0.0
    %10359 = vmatprep.subr.mxu0 0.0
    %10360 = vmatpush2.msra.mxu0 0.0
    %10361 = vmatprep.subr.mxu0 0.0
    %10362 = vmatpush2.msra.mxu0 0.0
    %10363 = vmatprep.subr.mxu0 0.0
    %10364 = vmatpush2.msra.mxu0 0.0
    %10365 = vmatprep.subr.mxu0 0.0
    %10366 = vmatpush2.msra.mxu0 0.0
    %10367 = vmatprep.subr.mxu0 0.0
    %10368 = vmatpush2.msra.mxu0 0.0
    %10369 = vmatprep.subr.mxu0 0.0
    %10370 = vmatpush2.msra.mxu0 0.0
    %10371 = vmatprep.subr.mxu0 0.0
    %10372 = vmatpush2.msra.mxu0 0.0
    %10373 = vmatprep.subr.mxu0 0.0
    %10374 = vmatpush2.msra.mxu0 0.0
    %10375 = vmatprep.subr.mxu0 0.0
    %10376 = vmatpush2.msra.mxu0 0.0
    %10377 = vmatprep.subr.mxu0 0.0
    %10378 = vmatpush2.msra.mxu0 0.0
    %10379 = vmatprep.subr.mxu0 0.0
    %10380 = vmatpush2.msra.mxu0 0.0
    %10381 = vmatprep.subr.mxu0 0.0
    %10382 = vmatpush2.msra.mxu0 0.0
    %10383 = vmatprep.subr.mxu0 0.0
    %10384 = vmatpush2.msra.mxu0 0.0
    %10385 = vmatprep.mubr.f32.mxu0 0.0
    %10386 = vmatmul.mubr.f32.gmra.mxu0 %v10248
    %v10387 = vpop.f32.mrf.mxu0
    %v10388 = vadd.f32 %v10245, %v10387
    %v10389 = vpop.f32.mrf.mxu0
    %v10390 = vadd.f32 %v10245, %v10389
    %10391 = vdwg.mxu0
    %v10392 = vsub.f32 0.0, %v10317
    %v10393 = vsub.f32 0.0, %v10319
    %v10394 = vsub.f32 0.0, %v10388
    %v10395 = vsub.f32 0.0, %v10390
    %v10396 = vmul.f32 %v10392, 1.442695
    %v10397 = vpow.pop %v10396
    %v10398 = vmul.f32 %v10393, 1.442695
    %v10399 = vpow.pop %v10398
    %v10400 = vmul.f32 %v10394, 1.442695
    %v10401 = vpow.pop %v10400
    %v10402 = vmul.f32 %v10395, 1.442695
    %v10403 = vpow.pop %v10402
    %v10404 = vadd.f32 %v10397, 1.0
    %v10405 = vadd.f32 %v10399, 1.0
    %v10406 = vadd.f32 %v10401, 1.0
    %v10407 = vadd.f32 %v10403, 1.0
    %v10408 = vrcp.pop %v10404
    %v10409 = vmul.f32 1.0, %v10408
    %v10410 = vrcp.pop %v10405
    %v10411 = vmul.f32 1.0, %v10410
    %v10412 = vrcp.pop %v10406
    %v10413 = vmul.f32 1.0, %v10412
    %v10414 = vrcp.pop %v10407
    %v10415 = vmul.f32 1.0, %v10414
    %v10416 = vmul.f32 %v55, %v55
    %v10417 = vmul.f32 %v56, %v56
    %v10418 = vmul.f32 %v57, %v57
    %v10419 = vmul.f32 %v58, %v58
    %v10420 = vsel %vm181, %v10416, 0.0
    %v10421 = vrot.slane %v10420, 4
    %v10422 = vadd.f32 %v10420, %v10421
    %v10423 = vrot.slane %v10422, 2
    %v10424 = vadd.f32 %v10422, %v10423
    %v10425 = vrot.slane %v10424, 1
    %v10426 = vadd.f32 %v10424, %v10425
    %v10427 = vsel %vm181, %v10417, 0.0
    %v10428 = vrot.slane %v10427, 4
    %v10429 = vadd.f32 %v10427, %v10428
    %v10430 = vrot.slane %v10429, 2
    %v10431 = vadd.f32 %v10429, %v10430
    %v10432 = vrot.slane %v10431, 1
    %v10433 = vadd.f32 %v10431, %v10432
    %v10434 = vsel %vm181, %v10418, 0.0
    %v10435 = vrot.slane %v10434, 4
    %v10436 = vadd.f32 %v10434, %v10435
    %v10437 = vrot.slane %v10436, 2
    %v10438 = vadd.f32 %v10436, %v10437
    %v10439 = vrot.slane %v10438, 1
    %v10440 = vadd.f32 %v10438, %v10439
    %v10441 = vsel %vm181, %v10419, 0.0
    %v10442 = vrot.slane %v10441, 4
    %v10443 = vadd.f32 %v10441, %v10442
    %v10444 = vrot.slane %v10443, 2
    %v10445 = vadd.f32 %v10443, %v10444
    %v10446 = vrot.slane %v10445, 1
    %v10447 = vadd.f32 %v10445, %v10446
    %v10448 = vrsqrt.pop %v10426
    %v10449 = vmul.f32 %v10426, %v10448
    %vm10450 = vcmp.eq.f32.partialorder %v10426, inf
    %v10451 = vsel %vm10450, %v10426, %v10449
    %vm10452 = vcmp.eq.f32.partialorder %v10426, 0.0
    %v10453 = vand.u32 %v10426, 2147483648
    %v10454 = vsel %vm10452, %v10453, %v10451
    %v10455 = vrsqrt.pop %v10433
    %v10456 = vmul.f32 %v10433, %v10455
    %vm10457 = vcmp.eq.f32.partialorder %v10433, inf
    %v10458 = vsel %vm10457, %v10433, %v10456
    %vm10459 = vcmp.eq.f32.partialorder %v10433, 0.0
    %v10460 = vand.u32 %v10433, 2147483648
    %v10461 = vsel %vm10459, %v10460, %v10458
    %v10462 = vrsqrt.pop %v10440
    %v10463 = vmul.f32 %v10440, %v10462
    %vm10464 = vcmp.eq.f32.partialorder %v10440, inf
    %v10465 = vsel %vm10464, %v10440, %v10463
    %vm10466 = vcmp.eq.f32.partialorder %v10440, 0.0
    %v10467 = vand.u32 %v10440, 2147483648
    %v10468 = vsel %vm10466, %v10467, %v10465
    %v10469 = vrsqrt.pop %v10447
    %v10470 = vmul.f32 %v10447, %v10469
    %vm10471 = vcmp.eq.f32.partialorder %v10447, inf
    %v10472 = vsel %vm10471, %v10447, %v10470
    %vm10473 = vcmp.eq.f32.partialorder %v10447, 0.0
    %v10474 = vand.u32 %v10447, 2147483648
    %v10475 = vsel %vm10473, %v10474, %v10472
    %v10476 = vsub.f32 3.0, %v10454
    %v10477 = vsub.f32 3.0, %v10461
    %v10478 = vsub.f32 3.0, %v10468
    %v10479 = vsub.f32 3.0, %v10475
    %v10480 = vmin.f32 %v7578, %v10476
    %v10481 = vmin.f32 %v7580, %v10477
    %v10482 = vmin.f32 %v7697, %v10478
    %v10483 = vmin.f32 %v7699, %v10479
    %v10488 = vcombine.low %v10409, %v10411
    %v10489 = vcombine.low %v10413, %v10415
    %10492 = vst [vmem:[#allocation2] sm:$0x77] %v10488
    %10493 = vst [vmem:[#allocation2 + $0x8] sm:$0x77] %v10489
    %v10498 = vcombine.low %v10480, %v10481
    %v10499 = vcombine.low %v10482, %v10483
    %v10501 = vunpack.c.l.s4 1966171168
    %v10502 = vunpack.c.0.s8 %v10501
    %v10503 = vlaneseq
    %v10504 = vshrl.u32 %v10503, 7
    %v10505 = vsub.s32 %v10502, %v10504
    %v10506 = vrot.slane %v10498, %v10505
    %v10508 = vunpack.c.l.s4 1966171168
    %v10509 = vunpack.c.0.s8 %v10508
    %v10510 = vlaneseq
    %v10511 = vshrl.u32 %v10510, 7
    %v10512 = vsub.s32 %v10509, %v10511
    %v10513 = vrot.slane %v10499, %v10512
    %v10514 = vcombine.low %v10506, %v10513
    %v10516 = vunpack.c.l.s4 1966171168
    %v10517 = vunpack.c.0.s8 %v10516
    %v10518 = vlaneseq
    %v10519 = vshrl.u32 %v10518, 7
    %v10520 = vsub.s32 %v10517, %v10519
    %v10521 = vrot.slane %v10514, %v10520
    %v10523 = vlaneseq
    %vm10524 = vcmp.ge.s32.totalorder %v10523, 0
    %vm10525 = vcmp.lt.s32.totalorder %v10523, 512
    %vm10526 = vmand %vm10524, %vm10525
    %10527 = vst.msk [vmem:[#allocation4] sm:$0xf] %vm10526, %v10521
    %v10528 = vcombine.low %v8395, %v8396
    %v10529 = vcombine.low %v8397, %v8398
    %10532 = vst [vmem:[#allocation6] sm:$0x77] %v10528
    %10533 = vst [vmem:[#allocation6 + $0x8] sm:$0x77] %v10529
    // Predicated region
    $region62: #{tpu_custom_call.1} parent=1 // pred_check
      _
    $region63: #{tpu_custom_call.1} parent=1 // pred_check_branch
      %10535 = sbr.rel (0) target = $region65
    $region64: #{tpu_custom_call.1} parent=1 // pred_region
      %s10537 = ssub.s32 256, 256
      %10538 = vsyncadd [#allocation3], %s10537
      %s10540 = sshll.u32 [#allocation2], 4
      %s10541 = int_to_ptr.vmem [resolvable:$true] %s10540
      %10543 = dma.vmem_to_hbm [thread:$0]  %s10541, 256, %s15, [#allocation3]
    $region65: #{tpu_custom_call.1} parent=1 // pred_fallthru
      _
    // Predicated region
    $region66: #{tpu_custom_call.1} parent=1 // pred_check
      _
    $region67: #{tpu_custom_call.1} parent=1 // pred_check_branch
      %10545 = sbr.rel (0) target = $region69
    $region68: #{tpu_custom_call.1} parent=1 // pred_region
      %s10547 = ssub.s32 64, 64
      %10548 = vsyncadd [#allocation5], %s10547
      %s10550 = sshll.u32 [#allocation4], 4
      %s10551 = int_to_ptr.vmem [resolvable:$true] %s10550
      %10553 = dma.vmem_to_hbm [thread:$0]  %s10551, 64, %s16, [#allocation5]
    $region69: #{tpu_custom_call.1} parent=1 // pred_fallthru
      _
    // Predicated region
    $region70: #{tpu_custom_call.1} parent=1 // pred_check
      _
    $region71: #{tpu_custom_call.1} parent=1 // pred_check_branch
      %10555 = sbr.rel (0) target = $region73
    $region72: #{tpu_custom_call.1} parent=1 // pred_region
      %s10557 = ssub.s32 256, 256
      %10558 = vsyncadd [#allocation5], %s10557
      %s10560 = sshll.u32 [#allocation6], 4
      %s10561 = int_to_ptr.vmem [resolvable:$true] %s10560
      %10563 = dma.vmem_to_hbm [thread:$0]  %s10561, 256, %s17, [#allocation5]
    $region73: #{tpu_custom_call.1} parent=1 // pred_fallthru
      _
    // Predicated region
    $region74: #{tpu_custom_call.1} parent=1 // pred_check
      _
    $region75: #{tpu_custom_call.1} parent=1 // pred_check_branch
      %10565 = sbr.rel (0) target = $region77
    $region76: #{tpu_custom_call.1} parent=1 // pred_region
      %10566 = dma.done [#allocation3], 256
    $region77: #{tpu_custom_call.1} parent=1 // pred_fallthru
      _
    // Predicated region
    $region78: #{tpu_custom_call.1} parent=1 // pred_check
      _
    $region79: #{tpu_custom_call.1} parent=1 // pred_check_branch
      %10568 = sbr.rel (0) target = $region81
    $region80: #{tpu_custom_call.1} parent=1 // pred_region
      %10569 = dma.done [#allocation5], 64
    $region81: #{tpu_custom_call.1} parent=1 // pred_fallthru
      _
    // Predicated region
    $region82: #{tpu_custom_call.1} parent=1 // pred_check
      _
    $region83: #{tpu_custom_call.1} parent=1 // pred_check_branch
      %10571 = sbr.rel (0) target = $region85
    $region84: #{tpu_custom_call.1} parent=1 // pred_region
      %10572 = dma.done [#allocation5], 256
    $region85: #{tpu_custom_call.1} parent=1 // pred_fallthru
      _
    %10573 = vsyncpa [#allocation3], 1
    %10574 = vsyncpa [#allocation5], 1

</llo_original>
